<compile_context>
chip_gen: v5e
topology: v5e:2x2
jax: 0.10.0
libtpu: 0.0.40
codegen_flags: <defaults>
</compile_context>

<pallas_src>
import functools

import numpy as np
import jax
import jax.numpy as jnp
from jax import lax
from jax.experimental import pallas as pl
from jax.experimental.pallas import tpu as pltpu

NO_OF_CLASSES = 10      # the EuroSAT "2750" folder has 10 class directories
ROW_CHUNK = 128         # conv rows processed per in-kernel chunk


def _round_up(x, m):
    return (x + m - 1) // m * m


# ---------------------------------------------------------------------------
# Single fused kernel: conv1 -> conv2 -> maxpool -> flatten -> fc1 -> op_fcl
# ---------------------------------------------------------------------------
def _fused_kernel(dims, x_ref, w1_ref, b1_ref, w2_ref, b2_ref,
                  wfc1_hbm, bfc1_ref, wop_ref, bop_ref,
                  out_ref, h1_sc, c2_sc, act_sc, wfc1_vmem, dma_sem):
    (N, H, W, CIN, C1, C2, HP, WP, NH1, NC2, GC) = dims
    KK = 3

    # Kick off the fc1-weight DMA now; it overlaps with all conv compute and
    # is only waited on right before the fc1 matmuls.
    wcopy = pltpu.make_async_copy(wfc1_hbm, wfc1_vmem, dma_sem)
    wcopy.start()

    b1v = b1_ref[...]                       # (1, C1) f32, hoisted out of loops
    b2v = b2_ref[...]                       # (1, C2) f32

    # ---- conv1 + bias + ReLU: h1_sc[r, :] for r in [0, NH1) --------------
    # Row r = n*H*W + h*W + w ; tap (kh, kw) is a shifted-row read of the
    # row-major (N*H*W, CIN) input slab (implicit im2col, nothing materialized
    # in HBM).
    for c0 in range(0, NH1, ROW_CHUNK):
        rows = min(ROW_CHUNK, NH1 - c0)
        acc = jnp.zeros((rows, C1), jnp.float32)
        for kh in range(KK):
            for kw in range(KK):
                t = kh * KK + kw
                off = kh * W + kw
                xs = x_ref[c0 + off:c0 + off + rows, :]          # bf16
                wt = w1_ref[t * CIN:(t + 1) * CIN, :]            # bf16
                acc += jnp.dot(xs, wt, preferred_element_type=jnp.float32)
        h1_sc[c0:c0 + rows, :] = jnp.maximum(acc + b1v, 0.0).astype(jnp.bfloat16)

    # ---- conv2 + bias + ReLU: c2_sc[r, :] for r in [0, NC2) --------------
    for c0 in range(0, NC2, ROW_CHUNK):
        rows = min(ROW_CHUNK, NC2 - c0)
        acc = jnp.zeros((rows, C2), jnp.float32)
        for kh in range(KK):
            for kw in range(KK):
                t = kh * KK + kw
                off = kh * W + kw
                hs = h1_sc[c0 + off:c0 + off + rows, :]          # bf16
                wt = w2_ref[t * C1:(t + 1) * C1, :]              # bf16
                acc += jnp.dot(hs, wt, preferred_element_type=jnp.float32)
        c2_sc[c0:c0 + rows, :] = jnp.maximum(acc + b2v, 0.0)

    # ---- 2x2/2 maxpool + whole-batch flatten -> act_sc (WP, N*HP*C2) -----
    # For each (n, ph) group the four pool corners are strided sublane reads
    # of c2_sc; the (WP, C2) max block is stored at lane offset g*C2, giving a
    # lane-dense flat activation with order (pw, n, ph, c) (the fc1 weight
    # columns were pre-permuted to match).
    for n in range(N):
        for ph in range(HP):
            g = n * HP + ph
            base = n * H * W + 2 * ph * W
            p00 = c2_sc[pl.ds(base, WP, stride=2), :]
            p01 = c2_sc[pl.ds(base + 1, WP, stride=2), :]
            p10 = c2_sc[pl.ds(base + W, WP, stride=2), :]
            p11 = c2_sc[pl.ds(base + W + 1, WP, stride=2), :]
            pg = jnp.maximum(jnp.maximum(p00, p01), jnp.maximum(p10, p11))
            act_sc[0:WP, g * C2:(g + 1) * C2] = pg.astype(jnp.bfloat16)

    # ---- fc1 + ReLU -> dropout (identity) -> op_fcl ----------------------
    wcopy.wait()                                     # fc1 weights now in VMEM
    h = bfc1_ref[...]                                # (1, 128) f32
    for pw in range(WP):
        h = h + jnp.dot(act_sc[pw:pw + 1, :],
                        wfc1_vmem[pw * GC:(pw + 1) * GC, :],
                        preferred_element_type=jnp.float32)
    h = jnp.maximum(h, 0.0)
    # TODO(synk): nn.Dropout(0.5) implemented with eval-mode semantics
    # (identity); train-mode masking would need pltpu.prng_seed/prng_random_bits.
    out_ref[...] = jnp.dot(h.astype(jnp.bfloat16), wop_ref[...],
                           preferred_element_type=jnp.float32) + bop_ref[...]


def fused_forward(x2d, p, dims):
    (N, H, W, CIN, C1, C2, HP, WP, NH1, NC2, GC) = dims
    R1 = N * H * W
    HID = p['bfc1'].shape[1]
    NC = p['bop'].shape[1]
    h1_rows = _round_up(NH1, 8)
    c2_rows = _round_up(NC2, 8)
    kern = functools.partial(_fused_kernel, dims)
    return pl.pallas_call(
        kern,
        out_shape=jax.ShapeDtypeStruct((1, NC), jnp.float32),
        grid=(1,),
        in_specs=[pl.BlockSpec((R1, CIN), lambda i: (0, 0)),
                  pl.BlockSpec((9 * CIN, C1), lambda i: (0, 0)),
                  pl.BlockSpec((1, C1), lambda i: (0, 0)),
                  pl.BlockSpec((9 * C1, C2), lambda i: (0, 0)),
                  pl.BlockSpec((1, C2), lambda i: (0, 0)),
                  pl.BlockSpec(memory_space=pl.ANY),   # wfc1 stays in HBM
                  pl.BlockSpec((1, HID), lambda i: (0, 0)),
                  pl.BlockSpec((HID, NC), lambda i: (0, 0)),
                  pl.BlockSpec((1, NC), lambda i: (0, 0))],
        out_specs=pl.BlockSpec((1, NC), lambda i: (0, 0)),
        scratch_shapes=[pltpu.VMEM((h1_rows, C1), jnp.bfloat16),   # conv1 out
                        pltpu.VMEM((c2_rows, C2), jnp.float32),    # conv2 out
                        pltpu.VMEM((8, GC), jnp.bfloat16),         # flat act
                        pltpu.VMEM((WP * GC, HID), jnp.bfloat16),  # fc1 weight
                        pltpu.SemaphoreType.DMA],
        compiler_params=pltpu.CompilerParams(
            dimension_semantics=("arbitrary",)),
    )(x2d, p['w1m'], p['b1'], p['w2m'], p['b2'], p['wfc1'],
      p['bfc1'], p['wop'], p['bop'])


# ---------------------------------------------------------------------------
# One-time (hoisted) parameter layout preparation
# ---------------------------------------------------------------------------
def prepare_params(params, x_shape):
    N, CIN, H, W = x_shape
    C1 = params['w1'].shape[0]                 # 16
    C2 = params['w2'].shape[0]                 # 32
    HP, WP = (H - 4) // 2, (W - 4) // 2

    # Exact intermediate row counts (rows beyond these are never needed):
    base_max = (N - 1) * H * W + 2 * (HP - 1) * W + 2 * (WP - 1)
    NC2 = base_max + W + 2                     # conv2 rows read by the pool
    NH1 = NC2 + 2 * W + 2                      # conv1 rows read by conv2
    # conv1 then reads exactly the N*H*W input rows -> no input padding needed.
    assert NH1 + 2 * W + 2 == N * H * W, "valid-conv row-count identity broken"
    GC = N * HP * C2                           # lanes per pw-row of flat act
    dims = (N, H, W, CIN, C1, C2, HP, WP, NH1, NC2, GC)

    # conv weights as stacked (kh, kw) taps of shape (Cin, Cout), bf16
    w1m = jnp.asarray(np.transpose(np.asarray(params['w1']), (2, 3, 1, 0))
                      .reshape(9 * CIN, C1), jnp.bfloat16)
    w2m = jnp.asarray(np.transpose(np.asarray(params['w2']), (2, 3, 1, 0))
                      .reshape(9 * C1, C2), jnp.bfloat16)
    b1 = jnp.asarray(params['b1'], jnp.float32).reshape(1, C1)
    b2 = jnp.asarray(params['b2'], jnp.float32).reshape(1, C2)

    # fc1 weight: permute columns from torch whole-batch-flatten order
    # (n, c, ph, pw) to the kernel's flat-activation order (pw, n, ph, c),
    # then lay out as (K, 128) rows and cast to bf16.
    wfc1 = np.asarray(params['wfc1'])                   # (128, N*C2*HP*WP)
    HID = wfc1.shape[0]
    wfc1_r = (wfc1.reshape(HID, N, C2, HP, WP)
              .transpose(4, 1, 3, 2, 0)                 # (pw, n, ph, c, o)
              .reshape(WP * GC, HID))
    wfc1_r = jnp.asarray(wfc1_r, jnp.bfloat16)
    bfc1 = jnp.asarray(params['bfc1'], jnp.float32).reshape(1, HID)
    wop_r = jnp.asarray(np.asarray(params['wop']).T, jnp.bfloat16)
    bop = jnp.asarray(params['bop'], jnp.float32).reshape(1, -1)

    prep = dict(w1m=w1m, b1=b1, w2m=w2m, b2=b2,
                wfc1=wfc1_r, bfc1=bfc1, wop=wop_r, bop=bop)
    return prep, dims


# ---------------------------------------------------------------------------
# Forward pass
# ---------------------------------------------------------------------------
@functools.partial(jax.jit, static_argnums=(2,))
def net_forward(x_nchw, prep, dims):
    (N, H, W, CIN, C1, C2, HP, WP, NH1, NC2, GC) = dims
    # Single fused XLA glue op: NCHW -> row-major (n, h, w, c) slab, bf16.
    # (bf16 is what the MXU operands use anyway and halves the padded DMA.)
    x2d = jnp.transpose(x_nchw, (0, 2, 3, 1)).reshape(N * H * W, CIN)
    x2d = x2d.astype(jnp.bfloat16)
    out = fused_forward(x2d, prep, dims)              # (1, no_of_classes)
    return out.reshape(-1)                            # (no_of_classes,)


# ---------------------------------------------------------------------------
# Pure-JAX reference (HIGHEST precision) for correctness checking
# ---------------------------------------------------------------------------
def reference_forward(x_nchw, params):
    x = jnp.transpose(x_nchw, (0, 2, 3, 1))
    w1h = jnp.transpose(params['w1'], (2, 3, 1, 0))
    w2h = jnp.transpose(params['w2'], (2, 3, 1, 0))
    h1 = jax.nn.relu(lax.conv_general_dilated(
        x, w1h, (1, 1), 'VALID',
        dimension_numbers=('NHWC', 'HWIO', 'NHWC'),
        precision=lax.Precision.HIGHEST) + params['b1'])
    h2 = jax.nn.relu(lax.conv_general_dilated(
        h1, w2h, (1, 1), 'VALID',
        dimension_numbers=('NHWC', 'HWIO', 'NHWC'),
        precision=lax.Precision.HIGHEST) + params['b2'])
    pooled = lax.reduce_window(h2, -jnp.inf, lax.max,
                               (1, 2, 2, 1), (1, 2, 2, 1), 'VALID')
    flat = jnp.transpose(pooled, (0, 3, 1, 2)).reshape(-1)
    hfc = jax.nn.relu(flat @ params['wfc1'].T + params['bfc1'])
    return hfc @ params['wop'].T + params['bop']


if __name__ == "__main__":
    key = jax.random.PRNGKey(0)
    ks = jax.random.split(key, 9)

    N, H, W = 2, 16, 16                              # small NCHW input
    x = jax.random.normal(ks[0], (N, 3, H, W), jnp.float32)

    HP, WP = (H - 4) // 2, (W - 4) // 2
    flat_dim = N * 32 * HP * WP                      # fc1 input size (whole batch!)

    params = dict(
        w1=0.1 * jax.random.normal(ks[1], (16, 3, 3, 3), jnp.float32),   # (O,I,KH,KW)
        b1=0.1 * jax.random.normal(ks[2], (16,), jnp.float32),
        w2=0.1 * jax.random.normal(ks[3], (32, 16, 3, 3), jnp.float32),
        b2=0.1 * jax.random.normal(ks[4], (32,), jnp.float32),
        wfc1=0.05 * jax.random.normal(ks[5], (128, flat_dim), jnp.float32),  # (out,in)
        bfc1=0.05 * jax.random.normal(ks[6], (128,), jnp.float32),
        wop=0.05 * jax.random.normal(ks[7], (NO_OF_CLASSES, 128), jnp.float32),
        bop=0.05 * jax.random.normal(ks[8], (NO_OF_CLASSES,), jnp.float32),
    )

    prep, dims = prepare_params(params, (N, 3, H, W))    # hoisted layout work

    out = jax.block_until_ready(net_forward(x, prep, dims))
    ref = jax.block_until_ready(reference_forward(x, params))

    assert out.shape == (NO_OF_CLASSES,), out.shape
    # bf16 MXU operands through conv1->conv2->fc1 vs f32 HIGHEST reference.
    assert jnp.allclose(out, ref, atol=3e-2, rtol=3e-2), (out, ref)
    print("KERNEL_OK")
</pallas_src>

<mosaic_0001>
module attributes {stable_mosaic.version = 11 : i64} {
  func.func @_fused_kernel(%arg0: i32, %arg1: memref<512x3xbf16, #tpu.memory_space<vmem>>, %arg2: memref<27x16xbf16, #tpu.memory_space<vmem>>, %arg3: memref<1x16xf32, #tpu.memory_space<vmem>>, %arg4: memref<144x32xbf16, #tpu.memory_space<vmem>>, %arg5: memref<1x32xf32, #tpu.memory_space<vmem>>, %arg6: memref<2304x128xbf16, #tpu.memory_space<any>>, %arg7: memref<1x128xf32, #tpu.memory_space<vmem>>, %arg8: memref<128x10xbf16, #tpu.memory_space<vmem>>, %arg9: memref<1x10xf32, #tpu.memory_space<vmem>>, %arg10: memref<1x10xf32, #tpu.memory_space<vmem>>, %arg11: memref<480x16xbf16, #tpu.memory_space<vmem>>, %arg12: memref<448x32xf32, #tpu.memory_space<vmem>>, %arg13: memref<8x384xbf16, #tpu.memory_space<vmem>>, %arg14: memref<2304x128xbf16, #tpu.memory_space<vmem>>, %arg15: memref<!tpu.dma_semaphore, #tpu.memory_space<semaphore_mem>>) attributes {dimension_semantics = [#tpu.dimension_semantics<arbitrary>], iteration_bounds = array<i64: 1>, scalar_prefetch = 0 : i64, scratch_operands = 5 : i64, tpu.core_type = #tpu.core_type<tc>, window_params = [{pipeline_mode = #tpu.pipeline_mode<synchronous>, transform_indices = @transform_0, window_bounds = array<i64: 512, 3>}, {pipeline_mode = #tpu.pipeline_mode<synchronous>, transform_indices = @transform_1, window_bounds = array<i64: 27, 16>}, {pipeline_mode = #tpu.pipeline_mode<synchronous>, transform_indices = @transform_2, window_bounds = array<i64: 1, 16>}, {pipeline_mode = #tpu.pipeline_mode<synchronous>, transform_indices = @transform_3, window_bounds = array<i64: 144, 32>}, {pipeline_mode = #tpu.pipeline_mode<synchronous>, transform_indices = @transform_4, window_bounds = array<i64: 1, 32>}, {}, {pipeline_mode = #tpu.pipeline_mode<synchronous>, transform_indices = @transform_6, window_bounds = array<i64: 1, 128>}, {pipeline_mode = #tpu.pipeline_mode<synchronous>, transform_indices = @transform_7, window_bounds = array<i64: 128, 10>}, {pipeline_mode = #tpu.pipeline_mode<synchronous>, transform_indices = @transform_8, window_bounds = array<i64: 1, 10>}, {pipeline_mode = #tpu.pipeline_mode<synchronous>, transform_indices = @transform_9, window_bounds = array<i64: 1, 10>}]} {
    tpu.enqueue_dma source(%arg6 : memref<2304x128xbf16, #tpu.memory_space<any>>) target(%arg14 : memref<2304x128xbf16, #tpu.memory_space<vmem>>) target_semaphore(%arg15 : memref<!tpu.dma_semaphore, #tpu.memory_space<semaphore_mem>>)
    %c0 = arith.constant 0 : index
    %c0_0 = arith.constant 0 : index
    %0 = vector.load %arg3[%c0, %c0_0] : memref<1x16xf32, #tpu.memory_space<vmem>>, vector<1x16xf32>
    %c0_1 = arith.constant 0 : index
    %c0_2 = arith.constant 0 : index
    %1 = vector.load %arg5[%c0_1, %c0_2] : memref<1x32xf32, #tpu.memory_space<vmem>>, vector<1x32xf32>
    %cst = arith.constant 0.000000e+00 : f32
    %2 = vector.broadcast %cst : f32 to vector<128x16xf32>
    %c0_3 = arith.constant 0 : index
    %c0_4 = arith.constant 0 : index
    %3 = vector.load %arg1[%c0_3, %c0_4] : memref<512x3xbf16, #tpu.memory_space<vmem>>, vector<128x3xbf16>
    %c0_5 = arith.constant 0 : index
    %c0_6 = arith.constant 0 : index
    %4 = vector.load %arg2[%c0_5, %c0_6] : memref<27x16xbf16, #tpu.memory_space<vmem>>, vector<3x16xbf16>
    %cst_7 = arith.constant dense<0.000000e+00> : vector<128x16xf32>
    %5 = tpu.matmul %3, %4, %cst_7 {dimension_numbers = #tpu.dot_dimension_numbers<[1], [0], [0], [1], [0, 0, 1, 1], [], []>} : vector<128x3xbf16>, vector<3x16xbf16>, vector<128x16xf32> -> vector<128x16xf32>
    %6 = arith.addf %2, %5 : vector<128x16xf32>
    %c1 = arith.constant 1 : index
    %c0_8 = arith.constant 0 : index
    %7 = vector.load %arg1[%c1, %c0_8] : memref<512x3xbf16, #tpu.memory_space<vmem>>, vector<128x3xbf16>
    %c3 = arith.constant 3 : index
    %c0_9 = arith.constant 0 : index
    %8 = vector.load %arg2[%c3, %c0_9] : memref<27x16xbf16, #tpu.memory_space<vmem>>, vector<3x16xbf16>
    %cst_10 = arith.constant dense<0.000000e+00> : vector<128x16xf32>
    %9 = tpu.matmul %7, %8, %cst_10 {dimension_numbers = #tpu.dot_dimension_numbers<[1], [0], [0], [1], [0, 0, 1, 1], [], []>} : vector<128x3xbf16>, vector<3x16xbf16>, vector<128x16xf32> -> vector<128x16xf32>
    %10 = arith.addf %6, %9 : vector<128x16xf32>
    %c2 = arith.constant 2 : index
    %c0_11 = arith.constant 0 : index
    %11 = vector.load %arg1[%c2, %c0_11] : memref<512x3xbf16, #tpu.memory_space<vmem>>, vector<128x3xbf16>
    %c6 = arith.constant 6 : index
    %c0_12 = arith.constant 0 : index
    %12 = vector.load %arg2[%c6, %c0_12] : memref<27x16xbf16, #tpu.memory_space<vmem>>, vector<3x16xbf16>
    %cst_13 = arith.constant dense<0.000000e+00> : vector<128x16xf32>
    %13 = tpu.matmul %11, %12, %cst_13 {dimension_numbers = #tpu.dot_dimension_numbers<[1], [0], [0], [1], [0, 0, 1, 1], [], []>} : vector<128x3xbf16>, vector<3x16xbf16>, vector<128x16xf32> -> vector<128x16xf32>
    %14 = arith.addf %10, %13 : vector<128x16xf32>
    %c16 = arith.constant 16 : index
    %c0_14 = arith.constant 0 : index
    %15 = vector.load %arg1[%c16, %c0_14] : memref<512x3xbf16, #tpu.memory_space<vmem>>, vector<128x3xbf16>
    %c9 = arith.constant 9 : index
    %c0_15 = arith.constant 0 : index
    %16 = vector.load %arg2[%c9, %c0_15] : memref<27x16xbf16, #tpu.memory_space<vmem>>, vector<3x16xbf16>
    %cst_16 = arith.constant dense<0.000000e+00> : vector<128x16xf32>
    %17 = tpu.matmul %15, %16, %cst_16 {dimension_numbers = #tpu.dot_dimension_numbers<[1], [0], [0], [1], [0, 0, 1, 1], [], []>} : vector<128x3xbf16>, vector<3x16xbf16>, vector<128x16xf32> -> vector<128x16xf32>
    %18 = arith.addf %14, %17 : vector<128x16xf32>
    %c17 = arith.constant 17 : index
    %c0_17 = arith.constant 0 : index
    %19 = vector.load %arg1[%c17, %c0_17] : memref<512x3xbf16, #tpu.memory_space<vmem>>, vector<128x3xbf16>
    %c12 = arith.constant 12 : index
    %c0_18 = arith.constant 0 : index
    %20 = vector.load %arg2[%c12, %c0_18] : memref<27x16xbf16, #tpu.memory_space<vmem>>, vector<3x16xbf16>
    %cst_19 = arith.constant dense<0.000000e+00> : vector<128x16xf32>
    %21 = tpu.matmul %19, %20, %cst_19 {dimension_numbers = #tpu.dot_dimension_numbers<[1], [0], [0], [1], [0, 0, 1, 1], [], []>} : vector<128x3xbf16>, vector<3x16xbf16>, vector<128x16xf32> -> vector<128x16xf32>
    %22 = arith.addf %18, %21 : vector<128x16xf32>
    %c18 = arith.constant 18 : index
    %c0_20 = arith.constant 0 : index
    %23 = vector.load %arg1[%c18, %c0_20] : memref<512x3xbf16, #tpu.memory_space<vmem>>, vector<128x3xbf16>
    %c15 = arith.constant 15 : index
    %c0_21 = arith.constant 0 : index
    %24 = vector.load %arg2[%c15, %c0_21] : memref<27x16xbf16, #tpu.memory_space<vmem>>, vector<3x16xbf16>
    %cst_22 = arith.constant dense<0.000000e+00> : vector<128x16xf32>
    %25 = tpu.matmul %23, %24, %cst_22 {dimension_numbers = #tpu.dot_dimension_numbers<[1], [0], [0], [1], [0, 0, 1, 1], [], []>} : vector<128x3xbf16>, vector<3x16xbf16>, vector<128x16xf32> -> vector<128x16xf32>
    %26 = arith.addf %22, %25 : vector<128x16xf32>
    %c32 = arith.constant 32 : index
    %c0_23 = arith.constant 0 : index
    %27 = vector.load %arg1[%c32, %c0_23] : memref<512x3xbf16, #tpu.memory_space<vmem>>, vector<128x3xbf16>
    %c18_24 = arith.constant 18 : index
    %c0_25 = arith.constant 0 : index
    %28 = vector.load %arg2[%c18_24, %c0_25] : memref<27x16xbf16, #tpu.memory_space<vmem>>, vector<3x16xbf16>
    %cst_26 = arith.constant dense<0.000000e+00> : vector<128x16xf32>
    %29 = tpu.matmul %27, %28, %cst_26 {dimension_numbers = #tpu.dot_dimension_numbers<[1], [0], [0], [1], [0, 0, 1, 1], [], []>} : vector<128x3xbf16>, vector<3x16xbf16>, vector<128x16xf32> -> vector<128x16xf32>
    %30 = arith.addf %26, %29 : vector<128x16xf32>
    %c33 = arith.constant 33 : index
    %c0_27 = arith.constant 0 : index
    %31 = vector.load %arg1[%c33, %c0_27] : memref<512x3xbf16, #tpu.memory_space<vmem>>, vector<128x3xbf16>
    %c21 = arith.constant 21 : index
    %c0_28 = arith.constant 0 : index
    %32 = vector.load %arg2[%c21, %c0_28] : memref<27x16xbf16, #tpu.memory_space<vmem>>, vector<3x16xbf16>
    %cst_29 = arith.constant dense<0.000000e+00> : vector<128x16xf32>
    %33 = tpu.matmul %31, %32, %cst_29 {dimension_numbers = #tpu.dot_dimension_numbers<[1], [0], [0], [1], [0, 0, 1, 1], [], []>} : vector<128x3xbf16>, vector<3x16xbf16>, vector<128x16xf32> -> vector<128x16xf32>
    %34 = arith.addf %30, %33 : vector<128x16xf32>
    %c34 = arith.constant 34 : index
    %c0_30 = arith.constant 0 : index
    %35 = vector.load %arg1[%c34, %c0_30] : memref<512x3xbf16, #tpu.memory_space<vmem>>, vector<128x3xbf16>
    %c24 = arith.constant 24 : index
    %c0_31 = arith.constant 0 : index
    %36 = vector.load %arg2[%c24, %c0_31] : memref<27x16xbf16, #tpu.memory_space<vmem>>, vector<3x16xbf16>
    %cst_32 = arith.constant dense<0.000000e+00> : vector<128x16xf32>
    %37 = tpu.matmul %35, %36, %cst_32 {dimension_numbers = #tpu.dot_dimension_numbers<[1], [0], [0], [1], [0, 0, 1, 1], [], []>} : vector<128x3xbf16>, vector<3x16xbf16>, vector<128x16xf32> -> vector<128x16xf32>
    %38 = arith.addf %34, %37 : vector<128x16xf32>
    %39 = vector.broadcast %0 : vector<1x16xf32> to vector<128x16xf32>
    %40 = arith.addf %38, %39 : vector<128x16xf32>
    %cst_33 = arith.constant 0.000000e+00 : f32
    %41 = vector.broadcast %cst_33 : f32 to vector<128x16xf32>
    %42 = arith.maximumf %40, %41 : vector<128x16xf32>
    %43 = arith.truncf %42 : vector<128x16xf32> to vector<128x16xbf16>
    %c0_34 = arith.constant 0 : index
    %c0_35 = arith.constant 0 : index
    %44 = vector.load %arg11[%c0_34, %c0_35] : memref<480x16xbf16, #tpu.memory_space<vmem>>, vector<128x16xbf16>
    tpu.vector_store %arg11[%c0_34, %c0_35], %43 {strides = array<i32>} : memref<480x16xbf16, #tpu.memory_space<vmem>>, vector<128x16xbf16>,
    %cst_36 = arith.constant 0.000000e+00 : f32
    %45 = vector.broadcast %cst_36 : f32 to vector<128x16xf32>
    %c128 = arith.constant 128 : index
    %c0_37 = arith.constant 0 : index
    %46 = vector.load %arg1[%c128, %c0_37] : memref<512x3xbf16, #tpu.memory_space<vmem>>, vector<128x3xbf16>
    %c0_38 = arith.constant 0 : index
    %c0_39 = arith.constant 0 : index
    %47 = vector.load %arg2[%c0_38, %c0_39] : memref<27x16xbf16, #tpu.memory_space<vmem>>, vector<3x16xbf16>
    %cst_40 = arith.constant dense<0.000000e+00> : vector<128x16xf32>
    %48 = tpu.matmul %46, %47, %cst_40 {dimension_numbers = #tpu.dot_dimension_numbers<[1], [0], [0], [1], [0, 0, 1, 1], [], []>} : vector<128x3xbf16>, vector<3x16xbf16>, vector<128x16xf32> -> vector<128x16xf32>
    %49 = arith.addf %45, %48 : vector<128x16xf32>
    %c129 = arith.constant 129 : index
    %c0_41 = arith.constant 0 : index
    %50 = vector.load %arg1[%c129, %c0_41] : memref<512x3xbf16, #tpu.memory_space<vmem>>, vector<128x3xbf16>
    %c3_42 = arith.constant 3 : index
    %c0_43 = arith.constant 0 : index
    %51 = vector.load %arg2[%c3_42, %c0_43] : memref<27x16xbf16, #tpu.memory_space<vmem>>, vector<3x16xbf16>
    %cst_44 = arith.constant dense<0.000000e+00> : vector<128x16xf32>
    %52 = tpu.matmul %50, %51, %cst_44 {dimension_numbers = #tpu.dot_dimension_numbers<[1], [0], [0], [1], [0, 0, 1, 1], [], []>} : vector<128x3xbf16>, vector<3x16xbf16>, vector<128x16xf32> -> vector<128x16xf32>
    %53 = arith.addf %49, %52 : vector<128x16xf32>
    %c130 = arith.constant 130 : index
    %c0_45 = arith.constant 0 : index
    %54 = vector.load %arg1[%c130, %c0_45] : memref<512x3xbf16, #tpu.memory_space<vmem>>, vector<128x3xbf16>
    %c6_46 = arith.constant 6 : index
    %c0_47 = arith.constant 0 : index
    %55 = vector.load %arg2[%c6_46, %c0_47] : memref<27x16xbf16, #tpu.memory_space<vmem>>, vector<3x16xbf16>
    %cst_48 = arith.constant dense<0.000000e+00> : vector<128x16xf32>
    %56 = tpu.matmul %54, %55, %cst_48 {dimension_numbers = #tpu.dot_dimension_numbers<[1], [0], [0], [1], [0, 0, 1, 1], [], []>} : vector<128x3xbf16>, vector<3x16xbf16>, vector<128x16xf32> -> vector<128x16xf32>
    %57 = arith.addf %53, %56 : vector<128x16xf32>
    %c144 = arith.constant 144 : index
    %c0_49 = arith.constant 0 : index
    %58 = vector.load %arg1[%c144, %c0_49] : memref<512x3xbf16, #tpu.memory_space<vmem>>, vector<128x3xbf16>
    %c9_50 = arith.constant 9 : index
    %c0_51 = arith.constant 0 : index
    %59 = vector.load %arg2[%c9_50, %c0_51] : memref<27x16xbf16, #tpu.memory_space<vmem>>, vector<3x16xbf16>
    %cst_52 = arith.constant dense<0.000000e+00> : vector<128x16xf32>
    %60 = tpu.matmul %58, %59, %cst_52 {dimension_numbers = #tpu.dot_dimension_numbers<[1], [0], [0], [1], [0, 0, 1, 1], [], []>} : vector<128x3xbf16>, vector<3x16xbf16>, vector<128x16xf32> -> vector<128x16xf32>
    %61 = arith.addf %57, %60 : vector<128x16xf32>
    %c145 = arith.constant 145 : index
    %c0_53 = arith.constant 0 : index
    %62 = vector.load %arg1[%c145, %c0_53] : memref<512x3xbf16, #tpu.memory_space<vmem>>, vector<128x3xbf16>
    %c12_54 = arith.constant 12 : index
    %c0_55 = arith.constant 0 : index
    %63 = vector.load %arg2[%c12_54, %c0_55] : memref<27x16xbf16, #tpu.memory_space<vmem>>, vector<3x16xbf16>
    %cst_56 = arith.constant dense<0.000000e+00> : vector<128x16xf32>
    %64 = tpu.matmul %62, %63, %cst_56 {dimension_numbers = #tpu.dot_dimension_numbers<[1], [0], [0], [1], [0, 0, 1, 1], [], []>} : vector<128x3xbf16>, vector<3x16xbf16>, vector<128x16xf32> -> vector<128x16xf32>
    %65 = arith.addf %61, %64 : vector<128x16xf32>
    %c146 = arith.constant 146 : index
    %c0_57 = arith.constant 0 : index
    %66 = vector.load %arg1[%c146, %c0_57] : memref<512x3xbf16, #tpu.memory_space<vmem>>, vector<128x3xbf16>
    %c15_58 = arith.constant 15 : index
    %c0_59 = arith.constant 0 : index
    %67 = vector.load %arg2[%c15_58, %c0_59] : memref<27x16xbf16, #tpu.memory_space<vmem>>, vector<3x16xbf16>
    %cst_60 = arith.constant dense<0.000000e+00> : vector<128x16xf32>
    %68 = tpu.matmul %66, %67, %cst_60 {dimension_numbers = #tpu.dot_dimension_numbers<[1], [0], [0], [1], [0, 0, 1, 1], [], []>} : vector<128x3xbf16>, vector<3x16xbf16>, vector<128x16xf32> -> vector<128x16xf32>
    %69 = arith.addf %65, %68 : vector<128x16xf32>
    %c160 = arith.constant 160 : index
    %c0_61 = arith.constant 0 : index
    %70 = vector.load %arg1[%c160, %c0_61] : memref<512x3xbf16, #tpu.memory_space<vmem>>, vector<128x3xbf16>
    %c18_62 = arith.constant 18 : index
    %c0_63 = arith.constant 0 : index
    %71 = vector.load %arg2[%c18_62, %c0_63] : memref<27x16xbf16, #tpu.memory_space<vmem>>, vector<3x16xbf16>
    %cst_64 = arith.constant dense<0.000000e+00> : vector<128x16xf32>
    %72 = tpu.matmul %70, %71, %cst_64 {dimension_numbers = #tpu.dot_dimension_numbers<[1], [0], [0], [1], [0, 0, 1, 1], [], []>} : vector<128x3xbf16>, vector<3x16xbf16>, vector<128x16xf32> -> vector<128x16xf32>
    %73 = arith.addf %69, %72 : vector<128x16xf32>
    %c161 = arith.constant 161 : index
    %c0_65 = arith.constant 0 : index
    %74 = vector.load %arg1[%c161, %c0_65] : memref<512x3xbf16, #tpu.memory_space<vmem>>, vector<128x3xbf16>
    %c21_66 = arith.constant 21 : index
    %c0_67 = arith.constant 0 : index
    %75 = vector.load %arg2[%c21_66, %c0_67] : memref<27x16xbf16, #tpu.memory_space<vmem>>, vector<3x16xbf16>
    %cst_68 = arith.constant dense<0.000000e+00> : vector<128x16xf32>
    %76 = tpu.matmul %74, %75, %cst_68 {dimension_numbers = #tpu.dot_dimension_numbers<[1], [0], [0], [1], [0, 0, 1, 1], [], []>} : vector<128x3xbf16>, vector<3x16xbf16>, vector<128x16xf32> -> vector<128x16xf32>
    %77 = arith.addf %73, %76 : vector<128x16xf32>
    %c162 = arith.constant 162 : index
    %c0_69 = arith.constant 0 : index
    %78 = vector.load %arg1[%c162, %c0_69] : memref<512x3xbf16, #tpu.memory_space<vmem>>, vector<128x3xbf16>
    %c24_70 = arith.constant 24 : index
    %c0_71 = arith.constant 0 : index
    %79 = vector.load %arg2[%c24_70, %c0_71] : memref<27x16xbf16, #tpu.memory_space<vmem>>, vector<3x16xbf16>
    %cst_72 = arith.constant dense<0.000000e+00> : vector<128x16xf32>
    %80 = tpu.matmul %78, %79, %cst_72 {dimension_numbers = #tpu.dot_dimension_numbers<[1], [0], [0], [1], [0, 0, 1, 1], [], []>} : vector<128x3xbf16>, vector<3x16xbf16>, vector<128x16xf32> -> vector<128x16xf32>
    %81 = arith.addf %77, %80 : vector<128x16xf32>
    %82 = vector.broadcast %0 : vector<1x16xf32> to vector<128x16xf32>
    %83 = arith.addf %81, %82 : vector<128x16xf32>
    %cst_73 = arith.constant 0.000000e+00 : f32
    %84 = vector.broadcast %cst_73 : f32 to vector<128x16xf32>
    %85 = arith.maximumf %83, %84 : vector<128x16xf32>
    %86 = arith.truncf %85 : vector<128x16xf32> to vector<128x16xbf16>
    %c128_74 = arith.constant 128 : index
    %c0_75 = arith.constant 0 : index
    %87 = vector.load %arg11[%c128_74, %c0_75] : memref<480x16xbf16, #tpu.memory_space<vmem>>, vector<128x16xbf16>
    tpu.vector_store %arg11[%c128_74, %c0_75], %86 {strides = array<i32>} : memref<480x16xbf16, #tpu.memory_space<vmem>>, vector<128x16xbf16>,
    %cst_76 = arith.constant 0.000000e+00 : f32
    %88 = vector.broadcast %cst_76 : f32 to vector<128x16xf32>
    %c256 = arith.constant 256 : index
    %c0_77 = arith.constant 0 : index
    %89 = vector.load %arg1[%c256, %c0_77] : memref<512x3xbf16, #tpu.memory_space<vmem>>, vector<128x3xbf16>
    %c0_78 = arith.constant 0 : index
    %c0_79 = arith.constant 0 : index
    %90 = vector.load %arg2[%c0_78, %c0_79] : memref<27x16xbf16, #tpu.memory_space<vmem>>, vector<3x16xbf16>
    %cst_80 = arith.constant dense<0.000000e+00> : vector<128x16xf32>
    %91 = tpu.matmul %89, %90, %cst_80 {dimension_numbers = #tpu.dot_dimension_numbers<[1], [0], [0], [1], [0, 0, 1, 1], [], []>} : vector<128x3xbf16>, vector<3x16xbf16>, vector<128x16xf32> -> vector<128x16xf32>
    %92 = arith.addf %88, %91 : vector<128x16xf32>
    %c257 = arith.constant 257 : index
    %c0_81 = arith.constant 0 : index
    %93 = vector.load %arg1[%c257, %c0_81] : memref<512x3xbf16, #tpu.memory_space<vmem>>, vector<128x3xbf16>
    %c3_82 = arith.constant 3 : index
    %c0_83 = arith.constant 0 : index
    %94 = vector.load %arg2[%c3_82, %c0_83] : memref<27x16xbf16, #tpu.memory_space<vmem>>, vector<3x16xbf16>
    %cst_84 = arith.constant dense<0.000000e+00> : vector<128x16xf32>
    %95 = tpu.matmul %93, %94, %cst_84 {dimension_numbers = #tpu.dot_dimension_numbers<[1], [0], [0], [1], [0, 0, 1, 1], [], []>} : vector<128x3xbf16>, vector<3x16xbf16>, vector<128x16xf32> -> vector<128x16xf32>
    %96 = arith.addf %92, %95 : vector<128x16xf32>
    %c258 = arith.constant 258 : index
    %c0_85 = arith.constant 0 : index
    %97 = vector.load %arg1[%c258, %c0_85] : memref<512x3xbf16, #tpu.memory_space<vmem>>, vector<128x3xbf16>
    %c6_86 = arith.constant 6 : index
    %c0_87 = arith.constant 0 : index
    %98 = vector.load %arg2[%c6_86, %c0_87] : memref<27x16xbf16, #tpu.memory_space<vmem>>, vector<3x16xbf16>
    %cst_88 = arith.constant dense<0.000000e+00> : vector<128x16xf32>
    %99 = tpu.matmul %97, %98, %cst_88 {dimension_numbers = #tpu.dot_dimension_numbers<[1], [0], [0], [1], [0, 0, 1, 1], [], []>} : vector<128x3xbf16>, vector<3x16xbf16>, vector<128x16xf32> -> vector<128x16xf32>
    %100 = arith.addf %96, %99 : vector<128x16xf32>
    %c272 = arith.constant 272 : index
    %c0_89 = arith.constant 0 : index
    %101 = vector.load %arg1[%c272, %c0_89] : memref<512x3xbf16, #tpu.memory_space<vmem>>, vector<128x3xbf16>
    %c9_90 = arith.constant 9 : index
    %c0_91 = arith.constant 0 : index
    %102 = vector.load %arg2[%c9_90, %c0_91] : memref<27x16xbf16, #tpu.memory_space<vmem>>, vector<3x16xbf16>
    %cst_92 = arith.constant dense<0.000000e+00> : vector<128x16xf32>
    %103 = tpu.matmul %101, %102, %cst_92 {dimension_numbers = #tpu.dot_dimension_numbers<[1], [0], [0], [1], [0, 0, 1, 1], [], []>} : vector<128x3xbf16>, vector<3x16xbf16>, vector<128x16xf32> -> vector<128x16xf32>
    %104 = arith.addf %100, %103 : vector<128x16xf32>
    %c273 = arith.constant 273 : index
    %c0_93 = arith.constant 0 : index
    %105 = vector.load %arg1[%c273, %c0_93] : memref<512x3xbf16, #tpu.memory_space<vmem>>, vector<128x3xbf16>
    %c12_94 = arith.constant 12 : index
    %c0_95 = arith.constant 0 : index
    %106 = vector.load %arg2[%c12_94, %c0_95] : memref<27x16xbf16, #tpu.memory_space<vmem>>, vector<3x16xbf16>
    %cst_96 = arith.constant dense<0.000000e+00> : vector<128x16xf32>
    %107 = tpu.matmul %105, %106, %cst_96 {dimension_numbers = #tpu.dot_dimension_numbers<[1], [0], [0], [1], [0, 0, 1, 1], [], []>} : vector<128x3xbf16>, vector<3x16xbf16>, vector<128x16xf32> -> vector<128x16xf32>
    %108 = arith.addf %104, %107 : vector<128x16xf32>
    %c274 = arith.constant 274 : index
    %c0_97 = arith.constant 0 : index
    %109 = vector.load %arg1[%c274, %c0_97] : memref<512x3xbf16, #tpu.memory_space<vmem>>, vector<128x3xbf16>
    %c15_98 = arith.constant 15 : index
    %c0_99 = arith.constant 0 : index
    %110 = vector.load %arg2[%c15_98, %c0_99] : memref<27x16xbf16, #tpu.memory_space<vmem>>, vector<3x16xbf16>
    %cst_100 = arith.constant dense<0.000000e+00> : vector<128x16xf32>
    %111 = tpu.matmul %109, %110, %cst_100 {dimension_numbers = #tpu.dot_dimension_numbers<[1], [0], [0], [1], [0, 0, 1, 1], [], []>} : vector<128x3xbf16>, vector<3x16xbf16>, vector<128x16xf32> -> vector<128x16xf32>
    %112 = arith.addf %108, %111 : vector<128x16xf32>
    %c288 = arith.constant 288 : index
    %c0_101 = arith.constant 0 : index
    %113 = vector.load %arg1[%c288, %c0_101] : memref<512x3xbf16, #tpu.memory_space<vmem>>, vector<128x3xbf16>
    %c18_102 = arith.constant 18 : index
    %c0_103 = arith.constant 0 : index
    %114 = vector.load %arg2[%c18_102, %c0_103] : memref<27x16xbf16, #tpu.memory_space<vmem>>, vector<3x16xbf16>
    %cst_104 = arith.constant dense<0.000000e+00> : vector<128x16xf32>
    %115 = tpu.matmul %113, %114, %cst_104 {dimension_numbers = #tpu.dot_dimension_numbers<[1], [0], [0], [1], [0, 0, 1, 1], [], []>} : vector<128x3xbf16>, vector<3x16xbf16>, vector<128x16xf32> -> vector<128x16xf32>
    %116 = arith.addf %112, %115 : vector<128x16xf32>
    %c289 = arith.constant 289 : index
    %c0_105 = arith.constant 0 : index
    %117 = vector.load %arg1[%c289, %c0_105] : memref<512x3xbf16, #tpu.memory_space<vmem>>, vector<128x3xbf16>
    %c21_106 = arith.constant 21 : index
    %c0_107 = arith.constant 0 : index
    %118 = vector.load %arg2[%c21_106, %c0_107] : memref<27x16xbf16, #tpu.memory_space<vmem>>, vector<3x16xbf16>
    %cst_108 = arith.constant dense<0.000000e+00> : vector<128x16xf32>
    %119 = tpu.matmul %117, %118, %cst_108 {dimension_numbers = #tpu.dot_dimension_numbers<[1], [0], [0], [1], [0, 0, 1, 1], [], []>} : vector<128x3xbf16>, vector<3x16xbf16>, vector<128x16xf32> -> vector<128x16xf32>
    %120 = arith.addf %116, %119 : vector<128x16xf32>
    %c290 = arith.constant 290 : index
    %c0_109 = arith.constant 0 : index
    %121 = vector.load %arg1[%c290, %c0_109] : memref<512x3xbf16, #tpu.memory_space<vmem>>, vector<128x3xbf16>
    %c24_110 = arith.constant 24 : index
    %c0_111 = arith.constant 0 : index
    %122 = vector.load %arg2[%c24_110, %c0_111] : memref<27x16xbf16, #tpu.memory_space<vmem>>, vector<3x16xbf16>
    %cst_112 = arith.constant dense<0.000000e+00> : vector<128x16xf32>
    %123 = tpu.matmul %121, %122, %cst_112 {dimension_numbers = #tpu.dot_dimension_numbers<[1], [0], [0], [1], [0, 0, 1, 1], [], []>} : vector<128x3xbf16>, vector<3x16xbf16>, vector<128x16xf32> -> vector<128x16xf32>
    %124 = arith.addf %120, %123 : vector<128x16xf32>
    %125 = vector.broadcast %0 : vector<1x16xf32> to vector<128x16xf32>
    %126 = arith.addf %124, %125 : vector<128x16xf32>
    %cst_113 = arith.constant 0.000000e+00 : f32
    %127 = vector.broadcast %cst_113 : f32 to vector<128x16xf32>
    %128 = arith.maximumf %126, %127 : vector<128x16xf32>
    %129 = arith.truncf %128 : vector<128x16xf32> to vector<128x16xbf16>
    %c256_114 = arith.constant 256 : index
    %c0_115 = arith.constant 0 : index
    %130 = vector.load %arg11[%c256_114, %c0_115] : memref<480x16xbf16, #tpu.memory_space<vmem>>, vector<128x16xbf16>
    tpu.vector_store %arg11[%c256_114, %c0_115], %129 {strides = array<i32>} : memref<480x16xbf16, #tpu.memory_space<vmem>>, vector<128x16xbf16>,
    %cst_116 = arith.constant 0.000000e+00 : f32
    %131 = vector.broadcast %cst_116 : f32 to vector<94x16xf32>
    %c384 = arith.constant 384 : index
    %c0_117 = arith.constant 0 : index
    %132 = vector.load %arg1[%c384, %c0_117] : memref<512x3xbf16, #tpu.memory_space<vmem>>, vector<94x3xbf16>
    %c0_118 = arith.constant 0 : index
    %c0_119 = arith.constant 0 : index
    %133 = vector.load %arg2[%c0_118, %c0_119] : memref<27x16xbf16, #tpu.memory_space<vmem>>, vector<3x16xbf16>
    %cst_120 = arith.constant dense<0.000000e+00> : vector<94x16xf32>
    %134 = tpu.matmul %132, %133, %cst_120 {dimension_numbers = #tpu.dot_dimension_numbers<[1], [0], [0], [1], [0, 0, 1, 1], [], []>} : vector<94x3xbf16>, vector<3x16xbf16>, vector<94x16xf32> -> vector<94x16xf32>
    %135 = arith.addf %131, %134 : vector<94x16xf32>
    %c385 = arith.constant 385 : index
    %c0_121 = arith.constant 0 : index
    %136 = vector.load %arg1[%c385, %c0_121] : memref<512x3xbf16, #tpu.memory_space<vmem>>, vector<94x3xbf16>
    %c3_122 = arith.constant 3 : index
    %c0_123 = arith.constant 0 : index
    %137 = vector.load %arg2[%c3_122, %c0_123] : memref<27x16xbf16, #tpu.memory_space<vmem>>, vector<3x16xbf16>
    %cst_124 = arith.constant dense<0.000000e+00> : vector<94x16xf32>
    %138 = tpu.matmul %136, %137, %cst_124 {dimension_numbers = #tpu.dot_dimension_numbers<[1], [0], [0], [1], [0, 0, 1, 1], [], []>} : vector<94x3xbf16>, vector<3x16xbf16>, vector<94x16xf32> -> vector<94x16xf32>
    %139 = arith.addf %135, %138 : vector<94x16xf32>
    %c386 = arith.constant 386 : index
    %c0_125 = arith.constant 0 : index
    %140 = vector.load %arg1[%c386, %c0_125] : memref<512x3xbf16, #tpu.memory_space<vmem>>, vector<94x3xbf16>
    %c6_126 = arith.constant 6 : index
    %c0_127 = arith.constant 0 : index
    %141 = vector.load %arg2[%c6_126, %c0_127] : memref<27x16xbf16, #tpu.memory_space<vmem>>, vector<3x16xbf16>
    %cst_128 = arith.constant dense<0.000000e+00> : vector<94x16xf32>
    %142 = tpu.matmul %140, %141, %cst_128 {dimension_numbers = #tpu.dot_dimension_numbers<[1], [0], [0], [1], [0, 0, 1, 1], [], []>} : vector<94x3xbf16>, vector<3x16xbf16>, vector<94x16xf32> -> vector<94x16xf32>
    %143 = arith.addf %139, %142 : vector<94x16xf32>
    %c400 = arith.constant 400 : index
    %c0_129 = arith.constant 0 : index
    %144 = vector.load %arg1[%c400, %c0_129] : memref<512x3xbf16, #tpu.memory_space<vmem>>, vector<94x3xbf16>
    %c9_130 = arith.constant 9 : index
    %c0_131 = arith.constant 0 : index
    %145 = vector.load %arg2[%c9_130, %c0_131] : memref<27x16xbf16, #tpu.memory_space<vmem>>, vector<3x16xbf16>
    %cst_132 = arith.constant dense<0.000000e+00> : vector<94x16xf32>
    %146 = tpu.matmul %144, %145, %cst_132 {dimension_numbers = #tpu.dot_dimension_numbers<[1], [0], [0], [1], [0, 0, 1, 1], [], []>} : vector<94x3xbf16>, vector<3x16xbf16>, vector<94x16xf32> -> vector<94x16xf32>
    %147 = arith.addf %143, %146 : vector<94x16xf32>
    %c401 = arith.constant 401 : index
    %c0_133 = arith.constant 0 : index
    %148 = vector.load %arg1[%c401, %c0_133] : memref<512x3xbf16, #tpu.memory_space<vmem>>, vector<94x3xbf16>
    %c12_134 = arith.constant 12 : index
    %c0_135 = arith.constant 0 : index
    %149 = vector.load %arg2[%c12_134, %c0_135] : memref<27x16xbf16, #tpu.memory_space<vmem>>, vector<3x16xbf16>
    %cst_136 = arith.constant dense<0.000000e+00> : vector<94x16xf32>
    %150 = tpu.matmul %148, %149, %cst_136 {dimension_numbers = #tpu.dot_dimension_numbers<[1], [0], [0], [1], [0, 0, 1, 1], [], []>} : vector<94x3xbf16>, vector<3x16xbf16>, vector<94x16xf32> -> vector<94x16xf32>
    %151 = arith.addf %147, %150 : vector<94x16xf32>
    %c402 = arith.constant 402 : index
    %c0_137 = arith.constant 0 : index
    %152 = vector.load %arg1[%c402, %c0_137] : memref<512x3xbf16, #tpu.memory_space<vmem>>, vector<94x3xbf16>
    %c15_138 = arith.constant 15 : index
    %c0_139 = arith.constant 0 : index
    %153 = vector.load %arg2[%c15_138, %c0_139] : memref<27x16xbf16, #tpu.memory_space<vmem>>, vector<3x16xbf16>
    %cst_140 = arith.constant dense<0.000000e+00> : vector<94x16xf32>
    %154 = tpu.matmul %152, %153, %cst_140 {dimension_numbers = #tpu.dot_dimension_numbers<[1], [0], [0], [1], [0, 0, 1, 1], [], []>} : vector<94x3xbf16>, vector<3x16xbf16>, vector<94x16xf32> -> vector<94x16xf32>
    %155 = arith.addf %151, %154 : vector<94x16xf32>
    %c416 = arith.constant 416 : index
    %c0_141 = arith.constant 0 : index
    %156 = vector.load %arg1[%c416, %c0_141] : memref<512x3xbf16, #tpu.memory_space<vmem>>, vector<94x3xbf16>
    %c18_142 = arith.constant 18 : index
    %c0_143 = arith.constant 0 : index
    %157 = vector.load %arg2[%c18_142, %c0_143] : memref<27x16xbf16, #tpu.memory_space<vmem>>, vector<3x16xbf16>
    %cst_144 = arith.constant dense<0.000000e+00> : vector<94x16xf32>
    %158 = tpu.matmul %156, %157, %cst_144 {dimension_numbers = #tpu.dot_dimension_numbers<[1], [0], [0], [1], [0, 0, 1, 1], [], []>} : vector<94x3xbf16>, vector<3x16xbf16>, vector<94x16xf32> -> vector<94x16xf32>
    %159 = arith.addf %155, %158 : vector<94x16xf32>
    %c417 = arith.constant 417 : index
    %c0_145 = arith.constant 0 : index
    %160 = vector.load %arg1[%c417, %c0_145] : memref<512x3xbf16, #tpu.memory_space<vmem>>, vector<94x3xbf16>
    %c21_146 = arith.constant 21 : index
    %c0_147 = arith.constant 0 : index
    %161 = vector.load %arg2[%c21_146, %c0_147] : memref<27x16xbf16, #tpu.memory_space<vmem>>, vector<3x16xbf16>
    %cst_148 = arith.constant dense<0.000000e+00> : vector<94x16xf32>
    %162 = tpu.matmul %160, %161, %cst_148 {dimension_numbers = #tpu.dot_dimension_numbers<[1], [0], [0], [1], [0, 0, 1, 1], [], []>} : vector<94x3xbf16>, vector<3x16xbf16>, vector<94x16xf32> -> vector<94x16xf32>
    %163 = arith.addf %159, %162 : vector<94x16xf32>
    %c418 = arith.constant 418 : index
    %c0_149 = arith.constant 0 : index
    %164 = vector.load %arg1[%c418, %c0_149] : memref<512x3xbf16, #tpu.memory_space<vmem>>, vector<94x3xbf16>
    %c24_150 = arith.constant 24 : index
    %c0_151 = arith.constant 0 : index
    %165 = vector.load %arg2[%c24_150, %c0_151] : memref<27x16xbf16, #tpu.memory_space<vmem>>, vector<3x16xbf16>
    %cst_152 = arith.constant dense<0.000000e+00> : vector<94x16xf32>
    %166 = tpu.matmul %164, %165, %cst_152 {dimension_numbers = #tpu.dot_dimension_numbers<[1], [0], [0], [1], [0, 0, 1, 1], [], []>} : vector<94x3xbf16>, vector<3x16xbf16>, vector<94x16xf32> -> vector<94x16xf32>
    %167 = arith.addf %163, %166 : vector<94x16xf32>
    %168 = vector.broadcast %0 : vector<1x16xf32> to vector<94x16xf32>
    %169 = arith.addf %167, %168 : vector<94x16xf32>
    %cst_153 = arith.constant 0.000000e+00 : f32
    %170 = vector.broadcast %cst_153 : f32 to vector<94x16xf32>
    %171 = arith.maximumf %169, %170 : vector<94x16xf32>
    %172 = arith.truncf %171 : vector<94x16xf32> to vector<94x16xbf16>
    %c384_154 = arith.constant 384 : index
    %c0_155 = arith.constant 0 : index
    %173 = vector.load %arg11[%c384_154, %c0_155] : memref<480x16xbf16, #tpu.memory_space<vmem>>, vector<94x16xbf16>
    tpu.vector_store %arg11[%c384_154, %c0_155], %172 {strides = array<i32>} : memref<480x16xbf16, #tpu.memory_space<vmem>>, vector<94x16xbf16>,
    %cst_156 = arith.constant 0.000000e+00 : f32
    %174 = vector.broadcast %cst_156 : f32 to vector<128x32xf32>
    %c0_157 = arith.constant 0 : index
    %c0_158 = arith.constant 0 : index
    %175 = vector.load %arg11[%c0_157, %c0_158] : memref<480x16xbf16, #tpu.memory_space<vmem>>, vector<128x16xbf16>
    %c0_159 = arith.constant 0 : index
    %c0_160 = arith.constant 0 : index
    %176 = vector.load %arg4[%c0_159, %c0_160] : memref<144x32xbf16, #tpu.memory_space<vmem>>, vector<16x32xbf16>
    %cst_161 = arith.constant dense<0.000000e+00> : vector<128x32xf32>
    %177 = tpu.matmul %175, %176, %cst_161 {dimension_numbers = #tpu.dot_dimension_numbers<[1], [0], [0], [1], [0, 0, 1, 1], [], []>} : vector<128x16xbf16>, vector<16x32xbf16>, vector<128x32xf32> -> vector<128x32xf32>
    %178 = arith.addf %174, %177 : vector<128x32xf32>
    %c1_162 = arith.constant 1 : index
    %c0_163 = arith.constant 0 : index
    %179 = vector.load %arg11[%c1_162, %c0_163] : memref<480x16xbf16, #tpu.memory_space<vmem>>, vector<128x16xbf16>
    %c16_164 = arith.constant 16 : index
    %c0_165 = arith.constant 0 : index
    %180 = vector.load %arg4[%c16_164, %c0_165] : memref<144x32xbf16, #tpu.memory_space<vmem>>, vector<16x32xbf16>
    %cst_166 = arith.constant dense<0.000000e+00> : vector<128x32xf32>
    %181 = tpu.matmul %179, %180, %cst_166 {dimension_numbers = #tpu.dot_dimension_numbers<[1], [0], [0], [1], [0, 0, 1, 1], [], []>} : vector<128x16xbf16>, vector<16x32xbf16>, vector<128x32xf32> -> vector<128x32xf32>
    %182 = arith.addf %178, %181 : vector<128x32xf32>
    %c2_167 = arith.constant 2 : index
    %c0_168 = arith.constant 0 : index
    %183 = vector.load %arg11[%c2_167, %c0_168] : memref<480x16xbf16, #tpu.memory_space<vmem>>, vector<128x16xbf16>
    %c32_169 = arith.constant 32 : index
    %c0_170 = arith.constant 0 : index
    %184 = vector.load %arg4[%c32_169, %c0_170] : memref<144x32xbf16, #tpu.memory_space<vmem>>, vector<16x32xbf16>
    %cst_171 = arith.constant dense<0.000000e+00> : vector<128x32xf32>
    %185 = tpu.matmul %183, %184, %cst_171 {dimension_numbers = #tpu.dot_dimension_numbers<[1], [0], [0], [1], [0, 0, 1, 1], [], []>} : vector<128x16xbf16>, vector<16x32xbf16>, vector<128x32xf32> -> vector<128x32xf32>
    %186 = arith.addf %182, %185 : vector<128x32xf32>
    %c16_172 = arith.constant 16 : index
    %c0_173 = arith.constant 0 : index
    %187 = vector.load %arg11[%c16_172, %c0_173] : memref<480x16xbf16, #tpu.memory_space<vmem>>, vector<128x16xbf16>
    %c48 = arith.constant 48 : index
    %c0_174 = arith.constant 0 : index
    %188 = vector.load %arg4[%c48, %c0_174] : memref<144x32xbf16, #tpu.memory_space<vmem>>, vector<16x32xbf16>
    %cst_175 = arith.constant dense<0.000000e+00> : vector<128x32xf32>
    %189 = tpu.matmul %187, %188, %cst_175 {dimension_numbers = #tpu.dot_dimension_numbers<[1], [0], [0], [1], [0, 0, 1, 1], [], []>} : vector<128x16xbf16>, vector<16x32xbf16>, vector<128x32xf32> -> vector<128x32xf32>
    %190 = arith.addf %186, %189 : vector<128x32xf32>
    %c17_176 = arith.constant 17 : index
    %c0_177 = arith.constant 0 : index
    %191 = vector.load %arg11[%c17_176, %c0_177] : memref<480x16xbf16, #tpu.memory_space<vmem>>, vector<128x16xbf16>
    %c64 = arith.constant 64 : index
    %c0_178 = arith.constant 0 : index
    %192 = vector.load %arg4[%c64, %c0_178] : memref<144x32xbf16, #tpu.memory_space<vmem>>, vector<16x32xbf16>
    %cst_179 = arith.constant dense<0.000000e+00> : vector<128x32xf32>
    %193 = tpu.matmul %191, %192, %cst_179 {dimension_numbers = #tpu.dot_dimension_numbers<[1], [0], [0], [1], [0, 0, 1, 1], [], []>} : vector<128x16xbf16>, vector<16x32xbf16>, vector<128x32xf32> -> vector<128x32xf32>
    %194 = arith.addf %190, %193 : vector<128x32xf32>
    %c18_180 = arith.constant 18 : index
    %c0_181 = arith.constant 0 : index
    %195 = vector.load %arg11[%c18_180, %c0_181] : memref<480x16xbf16, #tpu.memory_space<vmem>>, vector<128x16xbf16>
    %c80 = arith.constant 80 : index
    %c0_182 = arith.constant 0 : index
    %196 = vector.load %arg4[%c80, %c0_182] : memref<144x32xbf16, #tpu.memory_space<vmem>>, vector<16x32xbf16>
    %cst_183 = arith.constant dense<0.000000e+00> : vector<128x32xf32>
    %197 = tpu.matmul %195, %196, %cst_183 {dimension_numbers = #tpu.dot_dimension_numbers<[1], [0], [0], [1], [0, 0, 1, 1], [], []>} : vector<128x16xbf16>, vector<16x32xbf16>, vector<128x32xf32> -> vector<128x32xf32>
    %198 = arith.addf %194, %197 : vector<128x32xf32>
    %c32_184 = arith.constant 32 : index
    %c0_185 = arith.constant 0 : index
    %199 = vector.load %arg11[%c32_184, %c0_185] : memref<480x16xbf16, #tpu.memory_space<vmem>>, vector<128x16xbf16>
    %c96 = arith.constant 96 : index
    %c0_186 = arith.constant 0 : index
    %200 = vector.load %arg4[%c96, %c0_186] : memref<144x32xbf16, #tpu.memory_space<vmem>>, vector<16x32xbf16>
    %cst_187 = arith.constant dense<0.000000e+00> : vector<128x32xf32>
    %201 = tpu.matmul %199, %200, %cst_187 {dimension_numbers = #tpu.dot_dimension_numbers<[1], [0], [0], [1], [0, 0, 1, 1], [], []>} : vector<128x16xbf16>, vector<16x32xbf16>, vector<128x32xf32> -> vector<128x32xf32>
    %202 = arith.addf %198, %201 : vector<128x32xf32>
    %c33_188 = arith.constant 33 : index
    %c0_189 = arith.constant 0 : index
    %203 = vector.load %arg11[%c33_188, %c0_189] : memref<480x16xbf16, #tpu.memory_space<vmem>>, vector<128x16xbf16>
    %c112 = arith.constant 112 : index
    %c0_190 = arith.constant 0 : index
    %204 = vector.load %arg4[%c112, %c0_190] : memref<144x32xbf16, #tpu.memory_space<vmem>>, vector<16x32xbf16>
    %cst_191 = arith.constant dense<0.000000e+00> : vector<128x32xf32>
    %205 = tpu.matmul %203, %204, %cst_191 {dimension_numbers = #tpu.dot_dimension_numbers<[1], [0], [0], [1], [0, 0, 1, 1], [], []>} : vector<128x16xbf16>, vector<16x32xbf16>, vector<128x32xf32> -> vector<128x32xf32>
    %206 = arith.addf %202, %205 : vector<128x32xf32>
    %c34_192 = arith.constant 34 : index
    %c0_193 = arith.constant 0 : index
    %207 = vector.load %arg11[%c34_192, %c0_193] : memref<480x16xbf16, #tpu.memory_space<vmem>>, vector<128x16xbf16>
    %c128_194 = arith.constant 128 : index
    %c0_195 = arith.constant 0 : index
    %208 = vector.load %arg4[%c128_194, %c0_195] : memref<144x32xbf16, #tpu.memory_space<vmem>>, vector<16x32xbf16>
    %cst_196 = arith.constant dense<0.000000e+00> : vector<128x32xf32>
    %209 = tpu.matmul %207, %208, %cst_196 {dimension_numbers = #tpu.dot_dimension_numbers<[1], [0], [0], [1], [0, 0, 1, 1], [], []>} : vector<128x16xbf16>, vector<16x32xbf16>, vector<128x32xf32> -> vector<128x32xf32>
    %210 = arith.addf %206, %209 : vector<128x32xf32>
    %211 = vector.broadcast %1 : vector<1x32xf32> to vector<128x32xf32>
    %212 = arith.addf %210, %211 : vector<128x32xf32>
    %cst_197 = arith.constant 0.000000e+00 : f32
    %213 = vector.broadcast %cst_197 : f32 to vector<128x32xf32>
    %214 = arith.maximumf %212, %213 : vector<128x32xf32>
    %c0_198 = arith.constant 0 : index
    %c0_199 = arith.constant 0 : index
    %215 = vector.load %arg12[%c0_198, %c0_199] : memref<448x32xf32, #tpu.memory_space<vmem>>, vector<128x32xf32>
    tpu.vector_store %arg12[%c0_198, %c0_199], %214 {strides = array<i32>} : memref<448x32xf32, #tpu.memory_space<vmem>>, vector<128x32xf32>,
    %cst_200 = arith.constant 0.000000e+00 : f32
    %216 = vector.broadcast %cst_200 : f32 to vector<128x32xf32>
    %c128_201 = arith.constant 128 : index
    %c0_202 = arith.constant 0 : index
    %217 = vector.load %arg11[%c128_201, %c0_202] : memref<480x16xbf16, #tpu.memory_space<vmem>>, vector<128x16xbf16>
    %c0_203 = arith.constant 0 : index
    %c0_204 = arith.constant 0 : index
    %218 = vector.load %arg4[%c0_203, %c0_204] : memref<144x32xbf16, #tpu.memory_space<vmem>>, vector<16x32xbf16>
    %cst_205 = arith.constant dense<0.000000e+00> : vector<128x32xf32>
    %219 = tpu.matmul %217, %218, %cst_205 {dimension_numbers = #tpu.dot_dimension_numbers<[1], [0], [0], [1], [0, 0, 1, 1], [], []>} : vector<128x16xbf16>, vector<16x32xbf16>, vector<128x32xf32> -> vector<128x32xf32>
    %220 = arith.addf %216, %219 : vector<128x32xf32>
    %c129_206 = arith.constant 129 : index
    %c0_207 = arith.constant 0 : index
    %221 = vector.load %arg11[%c129_206, %c0_207] : memref<480x16xbf16, #tpu.memory_space<vmem>>, vector<128x16xbf16>
    %c16_208 = arith.constant 16 : index
    %c0_209 = arith.constant 0 : index
    %222 = vector.load %arg4[%c16_208, %c0_209] : memref<144x32xbf16, #tpu.memory_space<vmem>>, vector<16x32xbf16>
    %cst_210 = arith.constant dense<0.000000e+00> : vector<128x32xf32>
    %223 = tpu.matmul %221, %222, %cst_210 {dimension_numbers = #tpu.dot_dimension_numbers<[1], [0], [0], [1], [0, 0, 1, 1], [], []>} : vector<128x16xbf16>, vector<16x32xbf16>, vector<128x32xf32> -> vector<128x32xf32>
    %224 = arith.addf %220, %223 : vector<128x32xf32>
    %c130_211 = arith.constant 130 : index
    %c0_212 = arith.constant 0 : index
    %225 = vector.load %arg11[%c130_211, %c0_212] : memref<480x16xbf16, #tpu.memory_space<vmem>>, vector<128x16xbf16>
    %c32_213 = arith.constant 32 : index
    %c0_214 = arith.constant 0 : index
    %226 = vector.load %arg4[%c32_213, %c0_214] : memref<144x32xbf16, #tpu.memory_space<vmem>>, vector<16x32xbf16>
    %cst_215 = arith.constant dense<0.000000e+00> : vector<128x32xf32>
    %227 = tpu.matmul %225, %226, %cst_215 {dimension_numbers = #tpu.dot_dimension_numbers<[1], [0], [0], [1], [0, 0, 1, 1], [], []>} : vector<128x16xbf16>, vector<16x32xbf16>, vector<128x32xf32> -> vector<128x32xf32>
    %228 = arith.addf %224, %227 : vector<128x32xf32>
    %c144_216 = arith.constant 144 : index
    %c0_217 = arith.constant 0 : index
    %229 = vector.load %arg11[%c144_216, %c0_217] : memref<480x16xbf16, #tpu.memory_space<vmem>>, vector<128x16xbf16>
    %c48_218 = arith.constant 48 : index
    %c0_219 = arith.constant 0 : index
    %230 = vector.load %arg4[%c48_218, %c0_219] : memref<144x32xbf16, #tpu.memory_space<vmem>>, vector<16x32xbf16>
    %cst_220 = arith.constant dense<0.000000e+00> : vector<128x32xf32>
    %231 = tpu.matmul %229, %230, %cst_220 {dimension_numbers = #tpu.dot_dimension_numbers<[1], [0], [0], [1], [0, 0, 1, 1], [], []>} : vector<128x16xbf16>, vector<16x32xbf16>, vector<128x32xf32> -> vector<128x32xf32>
    %232 = arith.addf %228, %231 : vector<128x32xf32>
    %c145_221 = arith.constant 145 : index
    %c0_222 = arith.constant 0 : index
    %233 = vector.load %arg11[%c145_221, %c0_222] : memref<480x16xbf16, #tpu.memory_space<vmem>>, vector<128x16xbf16>
    %c64_223 = arith.constant 64 : index
    %c0_224 = arith.constant 0 : index
    %234 = vector.load %arg4[%c64_223, %c0_224] : memref<144x32xbf16, #tpu.memory_space<vmem>>, vector<16x32xbf16>
    %cst_225 = arith.constant dense<0.000000e+00> : vector<128x32xf32>
    %235 = tpu.matmul %233, %234, %cst_225 {dimension_numbers = #tpu.dot_dimension_numbers<[1], [0], [0], [1], [0, 0, 1, 1], [], []>} : vector<128x16xbf16>, vector<16x32xbf16>, vector<128x32xf32> -> vector<128x32xf32>
    %236 = arith.addf %232, %235 : vector<128x32xf32>
    %c146_226 = arith.constant 146 : index
    %c0_227 = arith.constant 0 : index
    %237 = vector.load %arg11[%c146_226, %c0_227] : memref<480x16xbf16, #tpu.memory_space<vmem>>, vector<128x16xbf16>
    %c80_228 = arith.constant 80 : index
    %c0_229 = arith.constant 0 : index
    %238 = vector.load %arg4[%c80_228, %c0_229] : memref<144x32xbf16, #tpu.memory_space<vmem>>, vector<16x32xbf16>
    %cst_230 = arith.constant dense<0.000000e+00> : vector<128x32xf32>
    %239 = tpu.matmul %237, %238, %cst_230 {dimension_numbers = #tpu.dot_dimension_numbers<[1], [0], [0], [1], [0, 0, 1, 1], [], []>} : vector<128x16xbf16>, vector<16x32xbf16>, vector<128x32xf32> -> vector<128x32xf32>
    %240 = arith.addf %236, %239 : vector<128x32xf32>
    %c160_231 = arith.constant 160 : index
    %c0_232 = arith.constant 0 : index
    %241 = vector.load %arg11[%c160_231, %c0_232] : memref<480x16xbf16, #tpu.memory_space<vmem>>, vector<128x16xbf16>
    %c96_233 = arith.constant 96 : index
    %c0_234 = arith.constant 0 : index
    %242 = vector.load %arg4[%c96_233, %c0_234] : memref<144x32xbf16, #tpu.memory_space<vmem>>, vector<16x32xbf16>
    %cst_235 = arith.constant dense<0.000000e+00> : vector<128x32xf32>
    %243 = tpu.matmul %241, %242, %cst_235 {dimension_numbers = #tpu.dot_dimension_numbers<[1], [0], [0], [1], [0, 0, 1, 1], [], []>} : vector<128x16xbf16>, vector<16x32xbf16>, vector<128x32xf32> -> vector<128x32xf32>
    %244 = arith.addf %240, %243 : vector<128x32xf32>
    %c161_236 = arith.constant 161 : index
    %c0_237 = arith.constant 0 : index
    %245 = vector.load %arg11[%c161_236, %c0_237] : memref<480x16xbf16, #tpu.memory_space<vmem>>, vector<128x16xbf16>
    %c112_238 = arith.constant 112 : index
    %c0_239 = arith.constant 0 : index
    %246 = vector.load %arg4[%c112_238, %c0_239] : memref<144x32xbf16, #tpu.memory_space<vmem>>, vector<16x32xbf16>
    %cst_240 = arith.constant dense<0.000000e+00> : vector<128x32xf32>
    %247 = tpu.matmul %245, %246, %cst_240 {dimension_numbers = #tpu.dot_dimension_numbers<[1], [0], [0], [1], [0, 0, 1, 1], [], []>} : vector<128x16xbf16>, vector<16x32xbf16>, vector<128x32xf32> -> vector<128x32xf32>
    %248 = arith.addf %244, %247 : vector<128x32xf32>
    %c162_241 = arith.constant 162 : index
    %c0_242 = arith.constant 0 : index
    %249 = vector.load %arg11[%c162_241, %c0_242] : memref<480x16xbf16, #tpu.memory_space<vmem>>, vector<128x16xbf16>
    %c128_243 = arith.constant 128 : index
    %c0_244 = arith.constant 0 : index
    %250 = vector.load %arg4[%c128_243, %c0_244] : memref<144x32xbf16, #tpu.memory_space<vmem>>, vector<16x32xbf16>
    %cst_245 = arith.constant dense<0.000000e+00> : vector<128x32xf32>
    %251 = tpu.matmul %249, %250, %cst_245 {dimension_numbers = #tpu.dot_dimension_numbers<[1], [0], [0], [1], [0, 0, 1, 1], [], []>} : vector<128x16xbf16>, vector<16x32xbf16>, vector<128x32xf32> -> vector<128x32xf32>
    %252 = arith.addf %248, %251 : vector<128x32xf32>
    %253 = vector.broadcast %1 : vector<1x32xf32> to vector<128x32xf32>
    %254 = arith.addf %252, %253 : vector<128x32xf32>
    %cst_246 = arith.constant 0.000000e+00 : f32
    %255 = vector.broadcast %cst_246 : f32 to vector<128x32xf32>
    %256 = arith.maximumf %254, %255 : vector<128x32xf32>
    %c128_247 = arith.constant 128 : index
    %c0_248 = arith.constant 0 : index
    %257 = vector.load %arg12[%c128_247, %c0_248] : memref<448x32xf32, #tpu.memory_space<vmem>>, vector<128x32xf32>
    tpu.vector_store %arg12[%c128_247, %c0_248], %256 {strides = array<i32>} : memref<448x32xf32, #tpu.memory_space<vmem>>, vector<128x32xf32>,
    %cst_249 = arith.constant 0.000000e+00 : f32
    %258 = vector.broadcast %cst_249 : f32 to vector<128x32xf32>
    %c256_250 = arith.constant 256 : index
    %c0_251 = arith.constant 0 : index
    %259 = vector.load %arg11[%c256_250, %c0_251] : memref<480x16xbf16, #tpu.memory_space<vmem>>, vector<128x16xbf16>
    %c0_252 = arith.constant 0 : index
    %c0_253 = arith.constant 0 : index
    %260 = vector.load %arg4[%c0_252, %c0_253] : memref<144x32xbf16, #tpu.memory_space<vmem>>, vector<16x32xbf16>
    %cst_254 = arith.constant dense<0.000000e+00> : vector<128x32xf32>
    %261 = tpu.matmul %259, %260, %cst_254 {dimension_numbers = #tpu.dot_dimension_numbers<[1], [0], [0], [1], [0, 0, 1, 1], [], []>} : vector<128x16xbf16>, vector<16x32xbf16>, vector<128x32xf32> -> vector<128x32xf32>
    %262 = arith.addf %258, %261 : vector<128x32xf32>
    %c257_255 = arith.constant 257 : index
    %c0_256 = arith.constant 0 : index
    %263 = vector.load %arg11[%c257_255, %c0_256] : memref<480x16xbf16, #tpu.memory_space<vmem>>, vector<128x16xbf16>
    %c16_257 = arith.constant 16 : index
    %c0_258 = arith.constant 0 : index
    %264 = vector.load %arg4[%c16_257, %c0_258] : memref<144x32xbf16, #tpu.memory_space<vmem>>, vector<16x32xbf16>
    %cst_259 = arith.constant dense<0.000000e+00> : vector<128x32xf32>
    %265 = tpu.matmul %263, %264, %cst_259 {dimension_numbers = #tpu.dot_dimension_numbers<[1], [0], [0], [1], [0, 0, 1, 1], [], []>} : vector<128x16xbf16>, vector<16x32xbf16>, vector<128x32xf32> -> vector<128x32xf32>
    %266 = arith.addf %262, %265 : vector<128x32xf32>
    %c258_260 = arith.constant 258 : index
    %c0_261 = arith.constant 0 : index
    %267 = vector.load %arg11[%c258_260, %c0_261] : memref<480x16xbf16, #tpu.memory_space<vmem>>, vector<128x16xbf16>
    %c32_262 = arith.constant 32 : index
    %c0_263 = arith.constant 0 : index
    %268 = vector.load %arg4[%c32_262, %c0_263] : memref<144x32xbf16, #tpu.memory_space<vmem>>, vector<16x32xbf16>
    %cst_264 = arith.constant dense<0.000000e+00> : vector<128x32xf32>
    %269 = tpu.matmul %267, %268, %cst_264 {dimension_numbers = #tpu.dot_dimension_numbers<[1], [0], [0], [1], [0, 0, 1, 1], [], []>} : vector<128x16xbf16>, vector<16x32xbf16>, vector<128x32xf32> -> vector<128x32xf32>
    %270 = arith.addf %266, %269 : vector<128x32xf32>
    %c272_265 = arith.constant 272 : index
    %c0_266 = arith.constant 0 : index
    %271 = vector.load %arg11[%c272_265, %c0_266] : memref<480x16xbf16, #tpu.memory_space<vmem>>, vector<128x16xbf16>
    %c48_267 = arith.constant 48 : index
    %c0_268 = arith.constant 0 : index
    %272 = vector.load %arg4[%c48_267, %c0_268] : memref<144x32xbf16, #tpu.memory_space<vmem>>, vector<16x32xbf16>
    %cst_269 = arith.constant dense<0.000000e+00> : vector<128x32xf32>
    %273 = tpu.matmul %271, %272, %cst_269 {dimension_numbers = #tpu.dot_dimension_numbers<[1], [0], [0], [1], [0, 0, 1, 1], [], []>} : vector<128x16xbf16>, vector<16x32xbf16>, vector<128x32xf32> -> vector<128x32xf32>
    %274 = arith.addf %270, %273 : vector<128x32xf32>
    %c273_270 = arith.constant 273 : index
    %c0_271 = arith.constant 0 : index
    %275 = vector.load %arg11[%c273_270, %c0_271] : memref<480x16xbf16, #tpu.memory_space<vmem>>, vector<128x16xbf16>
    %c64_272 = arith.constant 64 : index
    %c0_273 = arith.constant 0 : index
    %276 = vector.load %arg4[%c64_272, %c0_273] : memref<144x32xbf16, #tpu.memory_space<vmem>>, vector<16x32xbf16>
    %cst_274 = arith.constant dense<0.000000e+00> : vector<128x32xf32>
    %277 = tpu.matmul %275, %276, %cst_274 {dimension_numbers = #tpu.dot_dimension_numbers<[1], [0], [0], [1], [0, 0, 1, 1], [], []>} : vector<128x16xbf16>, vector<16x32xbf16>, vector<128x32xf32> -> vector<128x32xf32>
    %278 = arith.addf %274, %277 : vector<128x32xf32>
    %c274_275 = arith.constant 274 : index
    %c0_276 = arith.constant 0 : index
    %279 = vector.load %arg11[%c274_275, %c0_276] : memref<480x16xbf16, #tpu.memory_space<vmem>>, vector<128x16xbf16>
    %c80_277 = arith.constant 80 : index
    %c0_278 = arith.constant 0 : index
    %280 = vector.load %arg4[%c80_277, %c0_278] : memref<144x32xbf16, #tpu.memory_space<vmem>>, vector<16x32xbf16>
    %cst_279 = arith.constant dense<0.000000e+00> : vector<128x32xf32>
    %281 = tpu.matmul %279, %280, %cst_279 {dimension_numbers = #tpu.dot_dimension_numbers<[1], [0], [0], [1], [0, 0, 1, 1], [], []>} : vector<128x16xbf16>, vector<16x32xbf16>, vector<128x32xf32> -> vector<128x32xf32>
    %282 = arith.addf %278, %281 : vector<128x32xf32>
    %c288_280 = arith.constant 288 : index
    %c0_281 = arith.constant 0 : index
    %283 = vector.load %arg11[%c288_280, %c0_281] : memref<480x16xbf16, #tpu.memory_space<vmem>>, vector<128x16xbf16>
    %c96_282 = arith.constant 96 : index
    %c0_283 = arith.constant 0 : index
    %284 = vector.load %arg4[%c96_282, %c0_283] : memref<144x32xbf16, #tpu.memory_space<vmem>>, vector<16x32xbf16>
    %cst_284 = arith.constant dense<0.000000e+00> : vector<128x32xf32>
    %285 = tpu.matmul %283, %284, %cst_284 {dimension_numbers = #tpu.dot_dimension_numbers<[1], [0], [0], [1], [0, 0, 1, 1], [], []>} : vector<128x16xbf16>, vector<16x32xbf16>, vector<128x32xf32> -> vector<128x32xf32>
    %286 = arith.addf %282, %285 : vector<128x32xf32>
    %c289_285 = arith.constant 289 : index
    %c0_286 = arith.constant 0 : index
    %287 = vector.load %arg11[%c289_285, %c0_286] : memref<480x16xbf16, #tpu.memory_space<vmem>>, vector<128x16xbf16>
    %c112_287 = arith.constant 112 : index
    %c0_288 = arith.constant 0 : index
    %288 = vector.load %arg4[%c112_287, %c0_288] : memref<144x32xbf16, #tpu.memory_space<vmem>>, vector<16x32xbf16>
    %cst_289 = arith.constant dense<0.000000e+00> : vector<128x32xf32>
    %289 = tpu.matmul %287, %288, %cst_289 {dimension_numbers = #tpu.dot_dimension_numbers<[1], [0], [0], [1], [0, 0, 1, 1], [], []>} : vector<128x16xbf16>, vector<16x32xbf16>, vector<128x32xf32> -> vector<128x32xf32>
    %290 = arith.addf %286, %289 : vector<128x32xf32>
    %c290_290 = arith.constant 290 : index
    %c0_291 = arith.constant 0 : index
    %291 = vector.load %arg11[%c290_290, %c0_291] : memref<480x16xbf16, #tpu.memory_space<vmem>>, vector<128x16xbf16>
    %c128_292 = arith.constant 128 : index
    %c0_293 = arith.constant 0 : index
    %292 = vector.load %arg4[%c128_292, %c0_293] : memref<144x32xbf16, #tpu.memory_space<vmem>>, vector<16x32xbf16>
    %cst_294 = arith.constant dense<0.000000e+00> : vector<128x32xf32>
    %293 = tpu.matmul %291, %292, %cst_294 {dimension_numbers = #tpu.dot_dimension_numbers<[1], [0], [0], [1], [0, 0, 1, 1], [], []>} : vector<128x16xbf16>, vector<16x32xbf16>, vector<128x32xf32> -> vector<128x32xf32>
    %294 = arith.addf %290, %293 : vector<128x32xf32>
    %295 = vector.broadcast %1 : vector<1x32xf32> to vector<128x32xf32>
    %296 = arith.addf %294, %295 : vector<128x32xf32>
    %cst_295 = arith.constant 0.000000e+00 : f32
    %297 = vector.broadcast %cst_295 : f32 to vector<128x32xf32>
    %298 = arith.maximumf %296, %297 : vector<128x32xf32>
    %c256_296 = arith.constant 256 : index
    %c0_297 = arith.constant 0 : index
    %299 = vector.load %arg12[%c256_296, %c0_297] : memref<448x32xf32, #tpu.memory_space<vmem>>, vector<128x32xf32>
    tpu.vector_store %arg12[%c256_296, %c0_297], %298 {strides = array<i32>} : memref<448x32xf32, #tpu.memory_space<vmem>>, vector<128x32xf32>,
    %cst_298 = arith.constant 0.000000e+00 : f32
    %300 = vector.broadcast %cst_298 : f32 to vector<60x32xf32>
    %c384_299 = arith.constant 384 : index
    %c0_300 = arith.constant 0 : index
    %301 = vector.load %arg11[%c384_299, %c0_300] : memref<480x16xbf16, #tpu.memory_space<vmem>>, vector<60x16xbf16>
    %c0_301 = arith.constant 0 : index
    %c0_302 = arith.constant 0 : index
    %302 = vector.load %arg4[%c0_301, %c0_302] : memref<144x32xbf16, #tpu.memory_space<vmem>>, vector<16x32xbf16>
    %cst_303 = arith.constant dense<0.000000e+00> : vector<60x32xf32>
    %303 = tpu.matmul %301, %302, %cst_303 {dimension_numbers = #tpu.dot_dimension_numbers<[1], [0], [0], [1], [0, 0, 1, 1], [], []>} : vector<60x16xbf16>, vector<16x32xbf16>, vector<60x32xf32> -> vector<60x32xf32>
    %304 = arith.addf %300, %303 : vector<60x32xf32>
    %c385_304 = arith.constant 385 : index
    %c0_305 = arith.constant 0 : index
    %305 = vector.load %arg11[%c385_304, %c0_305] : memref<480x16xbf16, #tpu.memory_space<vmem>>, vector<60x16xbf16>
    %c16_306 = arith.constant 16 : index
    %c0_307 = arith.constant 0 : index
    %306 = vector.load %arg4[%c16_306, %c0_307] : memref<144x32xbf16, #tpu.memory_space<vmem>>, vector<16x32xbf16>
    %cst_308 = arith.constant dense<0.000000e+00> : vector<60x32xf32>
    %307 = tpu.matmul %305, %306, %cst_308 {dimension_numbers = #tpu.dot_dimension_numbers<[1], [0], [0], [1], [0, 0, 1, 1], [], []>} : vector<60x16xbf16>, vector<16x32xbf16>, vector<60x32xf32> -> vector<60x32xf32>
    %308 = arith.addf %304, %307 : vector<60x32xf32>
    %c386_309 = arith.constant 386 : index
    %c0_310 = arith.constant 0 : index
    %309 = vector.load %arg11[%c386_309, %c0_310] : memref<480x16xbf16, #tpu.memory_space<vmem>>, vector<60x16xbf16>
    %c32_311 = arith.constant 32 : index
    %c0_312 = arith.constant 0 : index
    %310 = vector.load %arg4[%c32_311, %c0_312] : memref<144x32xbf16, #tpu.memory_space<vmem>>, vector<16x32xbf16>
    %cst_313 = arith.constant dense<0.000000e+00> : vector<60x32xf32>
    %311 = tpu.matmul %309, %310, %cst_313 {dimension_numbers = #tpu.dot_dimension_numbers<[1], [0], [0], [1], [0, 0, 1, 1], [], []>} : vector<60x16xbf16>, vector<16x32xbf16>, vector<60x32xf32> -> vector<60x32xf32>
    %312 = arith.addf %308, %311 : vector<60x32xf32>
    %c400_314 = arith.constant 400 : index
    %c0_315 = arith.constant 0 : index
    %313 = vector.load %arg11[%c400_314, %c0_315] : memref<480x16xbf16, #tpu.memory_space<vmem>>, vector<60x16xbf16>
    %c48_316 = arith.constant 48 : index
    %c0_317 = arith.constant 0 : index
    %314 = vector.load %arg4[%c48_316, %c0_317] : memref<144x32xbf16, #tpu.memory_space<vmem>>, vector<16x32xbf16>
    %cst_318 = arith.constant dense<0.000000e+00> : vector<60x32xf32>
    %315 = tpu.matmul %313, %314, %cst_318 {dimension_numbers = #tpu.dot_dimension_numbers<[1], [0], [0], [1], [0, 0, 1, 1], [], []>} : vector<60x16xbf16>, vector<16x32xbf16>, vector<60x32xf32> -> vector<60x32xf32>
    %316 = arith.addf %312, %315 : vector<60x32xf32>
    %c401_319 = arith.constant 401 : index
    %c0_320 = arith.constant 0 : index
    %317 = vector.load %arg11[%c401_319, %c0_320] : memref<480x16xbf16, #tpu.memory_space<vmem>>, vector<60x16xbf16>
    %c64_321 = arith.constant 64 : index
    %c0_322 = arith.constant 0 : index
    %318 = vector.load %arg4[%c64_321, %c0_322] : memref<144x32xbf16, #tpu.memory_space<vmem>>, vector<16x32xbf16>
    %cst_323 = arith.constant dense<0.000000e+00> : vector<60x32xf32>
    %319 = tpu.matmul %317, %318, %cst_323 {dimension_numbers = #tpu.dot_dimension_numbers<[1], [0], [0], [1], [0, 0, 1, 1], [], []>} : vector<60x16xbf16>, vector<16x32xbf16>, vector<60x32xf32> -> vector<60x32xf32>
    %320 = arith.addf %316, %319 : vector<60x32xf32>
    %c402_324 = arith.constant 402 : index
    %c0_325 = arith.constant 0 : index
    %321 = vector.load %arg11[%c402_324, %c0_325] : memref<480x16xbf16, #tpu.memory_space<vmem>>, vector<60x16xbf16>
    %c80_326 = arith.constant 80 : index
    %c0_327 = arith.constant 0 : index
    %322 = vector.load %arg4[%c80_326, %c0_327] : memref<144x32xbf16, #tpu.memory_space<vmem>>, vector<16x32xbf16>
    %cst_328 = arith.constant dense<0.000000e+00> : vector<60x32xf32>
    %323 = tpu.matmul %321, %322, %cst_328 {dimension_numbers = #tpu.dot_dimension_numbers<[1], [0], [0], [1], [0, 0, 1, 1], [], []>} : vector<60x16xbf16>, vector<16x32xbf16>, vector<60x32xf32> -> vector<60x32xf32>
    %324 = arith.addf %320, %323 : vector<60x32xf32>
    %c416_329 = arith.constant 416 : index
    %c0_330 = arith.constant 0 : index
    %325 = vector.load %arg11[%c416_329, %c0_330] : memref<480x16xbf16, #tpu.memory_space<vmem>>, vector<60x16xbf16>
    %c96_331 = arith.constant 96 : index
    %c0_332 = arith.constant 0 : index
    %326 = vector.load %arg4[%c96_331, %c0_332] : memref<144x32xbf16, #tpu.memory_space<vmem>>, vector<16x32xbf16>
    %cst_333 = arith.constant dense<0.000000e+00> : vector<60x32xf32>
    %327 = tpu.matmul %325, %326, %cst_333 {dimension_numbers = #tpu.dot_dimension_numbers<[1], [0], [0], [1], [0, 0, 1, 1], [], []>} : vector<60x16xbf16>, vector<16x32xbf16>, vector<60x32xf32> -> vector<60x32xf32>
    %328 = arith.addf %324, %327 : vector<60x32xf32>
    %c417_334 = arith.constant 417 : index
    %c0_335 = arith.constant 0 : index
    %329 = vector.load %arg11[%c417_334, %c0_335] : memref<480x16xbf16, #tpu.memory_space<vmem>>, vector<60x16xbf16>
    %c112_336 = arith.constant 112 : index
    %c0_337 = arith.constant 0 : index
    %330 = vector.load %arg4[%c112_336, %c0_337] : memref<144x32xbf16, #tpu.memory_space<vmem>>, vector<16x32xbf16>
    %cst_338 = arith.constant dense<0.000000e+00> : vector<60x32xf32>
    %331 = tpu.matmul %329, %330, %cst_338 {dimension_numbers = #tpu.dot_dimension_numbers<[1], [0], [0], [1], [0, 0, 1, 1], [], []>} : vector<60x16xbf16>, vector<16x32xbf16>, vector<60x32xf32> -> vector<60x32xf32>
    %332 = arith.addf %328, %331 : vector<60x32xf32>
    %c418_339 = arith.constant 418 : index
    %c0_340 = arith.constant 0 : index
    %333 = vector.load %arg11[%c418_339, %c0_340] : memref<480x16xbf16, #tpu.memory_space<vmem>>, vector<60x16xbf16>
    %c128_341 = arith.constant 128 : index
    %c0_342 = arith.constant 0 : index
    %334 = vector.load %arg4[%c128_341, %c0_342] : memref<144x32xbf16, #tpu.memory_space<vmem>>, vector<16x32xbf16>
    %cst_343 = arith.constant dense<0.000000e+00> : vector<60x32xf32>
    %335 = tpu.matmul %333, %334, %cst_343 {dimension_numbers = #tpu.dot_dimension_numbers<[1], [0], [0], [1], [0, 0, 1, 1], [], []>} : vector<60x16xbf16>, vector<16x32xbf16>, vector<60x32xf32> -> vector<60x32xf32>
    %336 = arith.addf %332, %335 : vector<60x32xf32>
    %337 = vector.broadcast %1 : vector<1x32xf32> to vector<60x32xf32>
    %338 = arith.addf %336, %337 : vector<60x32xf32>
    %cst_344 = arith.constant 0.000000e+00 : f32
    %339 = vector.broadcast %cst_344 : f32 to vector<60x32xf32>
    %340 = arith.maximumf %338, %339 : vector<60x32xf32>
    %c384_345 = arith.constant 384 : index
    %c0_346 = arith.constant 0 : index
    %341 = vector.load %arg12[%c384_345, %c0_346] : memref<448x32xf32, #tpu.memory_space<vmem>>, vector<60x32xf32>
    tpu.vector_store %arg12[%c384_345, %c0_346], %340 {strides = array<i32>} : memref<448x32xf32, #tpu.memory_space<vmem>>, vector<60x32xf32>,
    %c0_347 = arith.constant 0 : index
    %c0_348 = arith.constant 0 : index
    %342 = tpu.strided_load %arg12[%c0_347, %c0_348] {strides = array<i32: 2, 1>} : memref<448x32xf32, #tpu.memory_space<vmem>>, vector<6x32xf32>
    %c1_349 = arith.constant 1 : index
    %c0_350 = arith.constant 0 : index
    %343 = tpu.strided_load %arg12[%c1_349, %c0_350] {strides = array<i32: 2, 1>} : memref<448x32xf32, #tpu.memory_space<vmem>>, vector<6x32xf32>
    %c16_351 = arith.constant 16 : index
    %c0_352 = arith.constant 0 : index
    %344 = tpu.strided_load %arg12[%c16_351, %c0_352] {strides = array<i32: 2, 1>} : memref<448x32xf32, #tpu.memory_space<vmem>>, vector<6x32xf32>
    %c17_353 = arith.constant 17 : index
    %c0_354 = arith.constant 0 : index
    %345 = tpu.strided_load %arg12[%c17_353, %c0_354] {strides = array<i32: 2, 1>} : memref<448x32xf32, #tpu.memory_space<vmem>>, vector<6x32xf32>
    %346 = arith.maximumf %342, %343 : vector<6x32xf32>
    %347 = arith.maximumf %344, %345 : vector<6x32xf32>
    %348 = arith.maximumf %346, %347 : vector<6x32xf32>
    %349 = arith.truncf %348 : vector<6x32xf32> to vector<6x32xbf16>
    %c0_355 = arith.constant 0 : index
    %c0_356 = arith.constant 0 : index
    %350 = vector.load %arg13[%c0_355, %c0_356] : memref<8x384xbf16, #tpu.memory_space<vmem>>, vector<6x32xbf16>
    tpu.vector_store %arg13[%c0_355, %c0_356], %349 {strides = array<i32>} : memref<8x384xbf16, #tpu.memory_space<vmem>>, vector<6x32xbf16>,
    %c32_357 = arith.constant 32 : index
    %c0_358 = arith.constant 0 : index
    %351 = tpu.strided_load %arg12[%c32_357, %c0_358] {strides = array<i32: 2, 1>} : memref<448x32xf32, #tpu.memory_space<vmem>>, vector<6x32xf32>
    %c33_359 = arith.constant 33 : index
    %c0_360 = arith.constant 0 : index
    %352 = tpu.strided_load %arg12[%c33_359, %c0_360] {strides = array<i32: 2, 1>} : memref<448x32xf32, #tpu.memory_space<vmem>>, vector<6x32xf32>
    %c48_361 = arith.constant 48 : index
    %c0_362 = arith.constant 0 : index
    %353 = tpu.strided_load %arg12[%c48_361, %c0_362] {strides = array<i32: 2, 1>} : memref<448x32xf32, #tpu.memory_space<vmem>>, vector<6x32xf32>
    %c49 = arith.constant 49 : index
    %c0_363 = arith.constant 0 : index
    %354 = tpu.strided_load %arg12[%c49, %c0_363] {strides = array<i32: 2, 1>} : memref<448x32xf32, #tpu.memory_space<vmem>>, vector<6x32xf32>
    %355 = arith.maximumf %351, %352 : vector<6x32xf32>
    %356 = arith.maximumf %353, %354 : vector<6x32xf32>
    %357 = arith.maximumf %355, %356 : vector<6x32xf32>
    %358 = arith.truncf %357 : vector<6x32xf32> to vector<6x32xbf16>
    %c0_364 = arith.constant 0 : index
    %c32_365 = arith.constant 32 : index
    %359 = vector.load %arg13[%c0_364, %c32_365] : memref<8x384xbf16, #tpu.memory_space<vmem>>, vector<6x32xbf16>
    tpu.vector_store %arg13[%c0_364, %c32_365], %358 {strides = array<i32>} : memref<8x384xbf16, #tpu.memory_space<vmem>>, vector<6x32xbf16>,
    %c64_366 = arith.constant 64 : index
    %c0_367 = arith.constant 0 : index
    %360 = tpu.strided_load %arg12[%c64_366, %c0_367] {strides = array<i32: 2, 1>} : memref<448x32xf32, #tpu.memory_space<vmem>>, vector<6x32xf32>
    %c65 = arith.constant 65 : index
    %c0_368 = arith.constant 0 : index
    %361 = tpu.strided_load %arg12[%c65, %c0_368] {strides = array<i32: 2, 1>} : memref<448x32xf32, #tpu.memory_space<vmem>>, vector<6x32xf32>
    %c80_369 = arith.constant 80 : index
    %c0_370 = arith.constant 0 : index
    %362 = tpu.strided_load %arg12[%c80_369, %c0_370] {strides = array<i32: 2, 1>} : memref<448x32xf32, #tpu.memory_space<vmem>>, vector<6x32xf32>
    %c81 = arith.constant 81 : index
    %c0_371 = arith.constant 0 : index
    %363 = tpu.strided_load %arg12[%c81, %c0_371] {strides = array<i32: 2, 1>} : memref<448x32xf32, #tpu.memory_space<vmem>>, vector<6x32xf32>
    %364 = arith.maximumf %360, %361 : vector<6x32xf32>
    %365 = arith.maximumf %362, %363 : vector<6x32xf32>
    %366 = arith.maximumf %364, %365 : vector<6x32xf32>
    %367 = arith.truncf %366 : vector<6x32xf32> to vector<6x32xbf16>
    %c0_372 = arith.constant 0 : index
    %c64_373 = arith.constant 64 : index
    %368 = vector.load %arg13[%c0_372, %c64_373] : memref<8x384xbf16, #tpu.memory_space<vmem>>, vector<6x32xbf16>
    tpu.vector_store %arg13[%c0_372, %c64_373], %367 {strides = array<i32>} : memref<8x384xbf16, #tpu.memory_space<vmem>>, vector<6x32xbf16>,
    %c96_374 = arith.constant 96 : index
    %c0_375 = arith.constant 0 : index
    %369 = tpu.strided_load %arg12[%c96_374, %c0_375] {strides = array<i32: 2, 1>} : memref<448x32xf32, #tpu.memory_space<vmem>>, vector<6x32xf32>
    %c97 = arith.constant 97 : index
    %c0_376 = arith.constant 0 : index
    %370 = tpu.strided_load %arg12[%c97, %c0_376] {strides = array<i32: 2, 1>} : memref<448x32xf32, #tpu.memory_space<vmem>>, vector<6x32xf32>
    %c112_377 = arith.constant 112 : index
    %c0_378 = arith.constant 0 : index
    %371 = tpu.strided_load %arg12[%c112_377, %c0_378] {strides = array<i32: 2, 1>} : memref<448x32xf32, #tpu.memory_space<vmem>>, vector<6x32xf32>
    %c113 = arith.constant 113 : index
    %c0_379 = arith.constant 0 : index
    %372 = tpu.strided_load %arg12[%c113, %c0_379] {strides = array<i32: 2, 1>} : memref<448x32xf32, #tpu.memory_space<vmem>>, vector<6x32xf32>
    %373 = arith.maximumf %369, %370 : vector<6x32xf32>
    %374 = arith.maximumf %371, %372 : vector<6x32xf32>
    %375 = arith.maximumf %373, %374 : vector<6x32xf32>
    %376 = arith.truncf %375 : vector<6x32xf32> to vector<6x32xbf16>
    %c0_380 = arith.constant 0 : index
    %c96_381 = arith.constant 96 : index
    %377 = vector.load %arg13[%c0_380, %c96_381] : memref<8x384xbf16, #tpu.memory_space<vmem>>, vector<6x32xbf16>
    tpu.vector_store %arg13[%c0_380, %c96_381], %376 {strides = array<i32>} : memref<8x384xbf16, #tpu.memory_space<vmem>>, vector<6x32xbf16>,
    %c128_382 = arith.constant 128 : index
    %c0_383 = arith.constant 0 : index
    %378 = tpu.strided_load %arg12[%c128_382, %c0_383] {strides = array<i32: 2, 1>} : memref<448x32xf32, #tpu.memory_space<vmem>>, vector<6x32xf32>
    %c129_384 = arith.constant 129 : index
    %c0_385 = arith.constant 0 : index
    %379 = tpu.strided_load %arg12[%c129_384, %c0_385] {strides = array<i32: 2, 1>} : memref<448x32xf32, #tpu.memory_space<vmem>>, vector<6x32xf32>
    %c144_386 = arith.constant 144 : index
    %c0_387 = arith.constant 0 : index
    %380 = tpu.strided_load %arg12[%c144_386, %c0_387] {strides = array<i32: 2, 1>} : memref<448x32xf32, #tpu.memory_space<vmem>>, vector<6x32xf32>
    %c145_388 = arith.constant 145 : index
    %c0_389 = arith.constant 0 : index
    %381 = tpu.strided_load %arg12[%c145_388, %c0_389] {strides = array<i32: 2, 1>} : memref<448x32xf32, #tpu.memory_space<vmem>>, vector<6x32xf32>
    %382 = arith.maximumf %378, %379 : vector<6x32xf32>
    %383 = arith.maximumf %380, %381 : vector<6x32xf32>
    %384 = arith.maximumf %382, %383 : vector<6x32xf32>
    %385 = arith.truncf %384 : vector<6x32xf32> to vector<6x32xbf16>
    %c0_390 = arith.constant 0 : index
    %c128_391 = arith.constant 128 : index
    %386 = vector.load %arg13[%c0_390, %c128_391] : memref<8x384xbf16, #tpu.memory_space<vmem>>, vector<6x32xbf16>
    tpu.vector_store %arg13[%c0_390, %c128_391], %385 {strides = array<i32>} : memref<8x384xbf16, #tpu.memory_space<vmem>>, vector<6x32xbf16>,
    %c160_392 = arith.constant 160 : index
    %c0_393 = arith.constant 0 : index
    %387 = tpu.strided_load %arg12[%c160_392, %c0_393] {strides = array<i32: 2, 1>} : memref<448x32xf32, #tpu.memory_space<vmem>>, vector<6x32xf32>
    %c161_394 = arith.constant 161 : index
    %c0_395 = arith.constant 0 : index
    %388 = tpu.strided_load %arg12[%c161_394, %c0_395] {strides = array<i32: 2, 1>} : memref<448x32xf32, #tpu.memory_space<vmem>>, vector<6x32xf32>
    %c176 = arith.constant 176 : index
    %c0_396 = arith.constant 0 : index
    %389 = tpu.strided_load %arg12[%c176, %c0_396] {strides = array<i32: 2, 1>} : memref<448x32xf32, #tpu.memory_space<vmem>>, vector<6x32xf32>
    %c177 = arith.constant 177 : index
    %c0_397 = arith.constant 0 : index
    %390 = tpu.strided_load %arg12[%c177, %c0_397] {strides = array<i32: 2, 1>} : memref<448x32xf32, #tpu.memory_space<vmem>>, vector<6x32xf32>
    %391 = arith.maximumf %387, %388 : vector<6x32xf32>
    %392 = arith.maximumf %389, %390 : vector<6x32xf32>
    %393 = arith.maximumf %391, %392 : vector<6x32xf32>
    %394 = arith.truncf %393 : vector<6x32xf32> to vector<6x32xbf16>
    %c0_398 = arith.constant 0 : index
    %c160_399 = arith.constant 160 : index
    %395 = vector.load %arg13[%c0_398, %c160_399] : memref<8x384xbf16, #tpu.memory_space<vmem>>, vector<6x32xbf16>
    tpu.vector_store %arg13[%c0_398, %c160_399], %394 {strides = array<i32>} : memref<8x384xbf16, #tpu.memory_space<vmem>>, vector<6x32xbf16>,
    %c256_400 = arith.constant 256 : index
    %c0_401 = arith.constant 0 : index
    %396 = tpu.strided_load %arg12[%c256_400, %c0_401] {strides = array<i32: 2, 1>} : memref<448x32xf32, #tpu.memory_space<vmem>>, vector<6x32xf32>
    %c257_402 = arith.constant 257 : index
    %c0_403 = arith.constant 0 : index
    %397 = tpu.strided_load %arg12[%c257_402, %c0_403] {strides = array<i32: 2, 1>} : memref<448x32xf32, #tpu.memory_space<vmem>>, vector<6x32xf32>
    %c272_404 = arith.constant 272 : index
    %c0_405 = arith.constant 0 : index
    %398 = tpu.strided_load %arg12[%c272_404, %c0_405] {strides = array<i32: 2, 1>} : memref<448x32xf32, #tpu.memory_space<vmem>>, vector<6x32xf32>
    %c273_406 = arith.constant 273 : index
    %c0_407 = arith.constant 0 : index
    %399 = tpu.strided_load %arg12[%c273_406, %c0_407] {strides = array<i32: 2, 1>} : memref<448x32xf32, #tpu.memory_space<vmem>>, vector<6x32xf32>
    %400 = arith.maximumf %396, %397 : vector<6x32xf32>
    %401 = arith.maximumf %398, %399 : vector<6x32xf32>
    %402 = arith.maximumf %400, %401 : vector<6x32xf32>
    %403 = arith.truncf %402 : vector<6x32xf32> to vector<6x32xbf16>
    %c0_408 = arith.constant 0 : index
    %c192 = arith.constant 192 : index
    %404 = vector.load %arg13[%c0_408, %c192] : memref<8x384xbf16, #tpu.memory_space<vmem>>, vector<6x32xbf16>
    tpu.vector_store %arg13[%c0_408, %c192], %403 {strides = array<i32>} : memref<8x384xbf16, #tpu.memory_space<vmem>>, vector<6x32xbf16>,
    %c288_409 = arith.constant 288 : index
    %c0_410 = arith.constant 0 : index
    %405 = tpu.strided_load %arg12[%c288_409, %c0_410] {strides = array<i32: 2, 1>} : memref<448x32xf32, #tpu.memory_space<vmem>>, vector<6x32xf32>
    %c289_411 = arith.constant 289 : index
    %c0_412 = arith.constant 0 : index
    %406 = tpu.strided_load %arg12[%c289_411, %c0_412] {strides = array<i32: 2, 1>} : memref<448x32xf32, #tpu.memory_space<vmem>>, vector<6x32xf32>
    %c304 = arith.constant 304 : index
    %c0_413 = arith.constant 0 : index
    %407 = tpu.strided_load %arg12[%c304, %c0_413] {strides = array<i32: 2, 1>} : memref<448x32xf32, #tpu.memory_space<vmem>>, vector<6x32xf32>
    %c305 = arith.constant 305 : index
    %c0_414 = arith.constant 0 : index
    %408 = tpu.strided_load %arg12[%c305, %c0_414] {strides = array<i32: 2, 1>} : memref<448x32xf32, #tpu.memory_space<vmem>>, vector<6x32xf32>
    %409 = arith.maximumf %405, %406 : vector<6x32xf32>
    %410 = arith.maximumf %407, %408 : vector<6x32xf32>
    %411 = arith.maximumf %409, %410 : vector<6x32xf32>
    %412 = arith.truncf %411 : vector<6x32xf32> to vector<6x32xbf16>
    %c0_415 = arith.constant 0 : index
    %c224 = arith.constant 224 : index
    %413 = vector.load %arg13[%c0_415, %c224] : memref<8x384xbf16, #tpu.memory_space<vmem>>, vector<6x32xbf16>
    tpu.vector_store %arg13[%c0_415, %c224], %412 {strides = array<i32>} : memref<8x384xbf16, #tpu.memory_space<vmem>>, vector<6x32xbf16>,
    %c320 = arith.constant 320 : index
    %c0_416 = arith.constant 0 : index
    %414 = tpu.strided_load %arg12[%c320, %c0_416] {strides = array<i32: 2, 1>} : memref<448x32xf32, #tpu.memory_space<vmem>>, vector<6x32xf32>
    %c321 = arith.constant 321 : index
    %c0_417 = arith.constant 0 : index
    %415 = tpu.strided_load %arg12[%c321, %c0_417] {strides = array<i32: 2, 1>} : memref<448x32xf32, #tpu.memory_space<vmem>>, vector<6x32xf32>
    %c336 = arith.constant 336 : index
    %c0_418 = arith.constant 0 : index
    %416 = tpu.strided_load %arg12[%c336, %c0_418] {strides = array<i32: 2, 1>} : memref<448x32xf32, #tpu.memory_space<vmem>>, vector<6x32xf32>
    %c337 = arith.constant 337 : index
    %c0_419 = arith.constant 0 : index
    %417 = tpu.strided_load %arg12[%c337, %c0_419] {strides = array<i32: 2, 1>} : memref<448x32xf32, #tpu.memory_space<vmem>>, vector<6x32xf32>
    %418 = arith.maximumf %414, %415 : vector<6x32xf32>
    %419 = arith.maximumf %416, %417 : vector<6x32xf32>
    %420 = arith.maximumf %418, %419 : vector<6x32xf32>
    %421 = arith.truncf %420 : vector<6x32xf32> to vector<6x32xbf16>
    %c0_420 = arith.constant 0 : index
    %c256_421 = arith.constant 256 : index
    %422 = vector.load %arg13[%c0_420, %c256_421] : memref<8x384xbf16, #tpu.memory_space<vmem>>, vector<6x32xbf16>
    tpu.vector_store %arg13[%c0_420, %c256_421], %421 {strides = array<i32>} : memref<8x384xbf16, #tpu.memory_space<vmem>>, vector<6x32xbf16>,
    %c352 = arith.constant 352 : index
    %c0_422 = arith.constant 0 : index
    %423 = tpu.strided_load %arg12[%c352, %c0_422] {strides = array<i32: 2, 1>} : memref<448x32xf32, #tpu.memory_space<vmem>>, vector<6x32xf32>
    %c353 = arith.constant 353 : index
    %c0_423 = arith.constant 0 : index
    %424 = tpu.strided_load %arg12[%c353, %c0_423] {strides = array<i32: 2, 1>} : memref<448x32xf32, #tpu.memory_space<vmem>>, vector<6x32xf32>
    %c368 = arith.constant 368 : index
    %c0_424 = arith.constant 0 : index
    %425 = tpu.strided_load %arg12[%c368, %c0_424] {strides = array<i32: 2, 1>} : memref<448x32xf32, #tpu.memory_space<vmem>>, vector<6x32xf32>
    %c369 = arith.constant 369 : index
    %c0_425 = arith.constant 0 : index
    %426 = tpu.strided_load %arg12[%c369, %c0_425] {strides = array<i32: 2, 1>} : memref<448x32xf32, #tpu.memory_space<vmem>>, vector<6x32xf32>
    %427 = arith.maximumf %423, %424 : vector<6x32xf32>
    %428 = arith.maximumf %425, %426 : vector<6x32xf32>
    %429 = arith.maximumf %427, %428 : vector<6x32xf32>
    %430 = arith.truncf %429 : vector<6x32xf32> to vector<6x32xbf16>
    %c0_426 = arith.constant 0 : index
    %c288_427 = arith.constant 288 : index
    %431 = vector.load %arg13[%c0_426, %c288_427] : memref<8x384xbf16, #tpu.memory_space<vmem>>, vector<6x32xbf16>
    tpu.vector_store %arg13[%c0_426, %c288_427], %430 {strides = array<i32>} : memref<8x384xbf16, #tpu.memory_space<vmem>>, vector<6x32xbf16>,
    %c384_428 = arith.constant 384 : index
    %c0_429 = arith.constant 0 : index
    %432 = tpu.strided_load %arg12[%c384_428, %c0_429] {strides = array<i32: 2, 1>} : memref<448x32xf32, #tpu.memory_space<vmem>>, vector<6x32xf32>
    %c385_430 = arith.constant 385 : index
    %c0_431 = arith.constant 0 : index
    %433 = tpu.strided_load %arg12[%c385_430, %c0_431] {strides = array<i32: 2, 1>} : memref<448x32xf32, #tpu.memory_space<vmem>>, vector<6x32xf32>
    %c400_432 = arith.constant 400 : index
    %c0_433 = arith.constant 0 : index
    %434 = tpu.strided_load %arg12[%c400_432, %c0_433] {strides = array<i32: 2, 1>} : memref<448x32xf32, #tpu.memory_space<vmem>>, vector<6x32xf32>
    %c401_434 = arith.constant 401 : index
    %c0_435 = arith.constant 0 : index
    %435 = tpu.strided_load %arg12[%c401_434, %c0_435] {strides = array<i32: 2, 1>} : memref<448x32xf32, #tpu.memory_space<vmem>>, vector<6x32xf32>
    %436 = arith.maximumf %432, %433 : vector<6x32xf32>
    %437 = arith.maximumf %434, %435 : vector<6x32xf32>
    %438 = arith.maximumf %436, %437 : vector<6x32xf32>
    %439 = arith.truncf %438 : vector<6x32xf32> to vector<6x32xbf16>
    %c0_436 = arith.constant 0 : index
    %c320_437 = arith.constant 320 : index
    %440 = vector.load %arg13[%c0_436, %c320_437] : memref<8x384xbf16, #tpu.memory_space<vmem>>, vector<6x32xbf16>
    tpu.vector_store %arg13[%c0_436, %c320_437], %439 {strides = array<i32>} : memref<8x384xbf16, #tpu.memory_space<vmem>>, vector<6x32xbf16>,
    %c416_438 = arith.constant 416 : index
    %c0_439 = arith.constant 0 : index
    %441 = tpu.strided_load %arg12[%c416_438, %c0_439] {strides = array<i32: 2, 1>} : memref<448x32xf32, #tpu.memory_space<vmem>>, vector<6x32xf32>
    %c417_440 = arith.constant 417 : index
    %c0_441 = arith.constant 0 : index
    %442 = tpu.strided_load %arg12[%c417_440, %c0_441] {strides = array<i32: 2, 1>} : memref<448x32xf32, #tpu.memory_space<vmem>>, vector<6x32xf32>
    %c432 = arith.constant 432 : index
    %c0_442 = arith.constant 0 : index
    %443 = tpu.strided_load %arg12[%c432, %c0_442] {strides = array<i32: 2, 1>} : memref<448x32xf32, #tpu.memory_space<vmem>>, vector<6x32xf32>
    %c433 = arith.constant 433 : index
    %c0_443 = arith.constant 0 : index
    %444 = tpu.strided_load %arg12[%c433, %c0_443] {strides = array<i32: 2, 1>} : memref<448x32xf32, #tpu.memory_space<vmem>>, vector<6x32xf32>
    %445 = arith.maximumf %441, %442 : vector<6x32xf32>
    %446 = arith.maximumf %443, %444 : vector<6x32xf32>
    %447 = arith.maximumf %445, %446 : vector<6x32xf32>
    %448 = arith.truncf %447 : vector<6x32xf32> to vector<6x32xbf16>
    %c0_444 = arith.constant 0 : index
    %c352_445 = arith.constant 352 : index
    %449 = vector.load %arg13[%c0_444, %c352_445] : memref<8x384xbf16, #tpu.memory_space<vmem>>, vector<6x32xbf16>
    tpu.vector_store %arg13[%c0_444, %c352_445], %448 {strides = array<i32>} : memref<8x384xbf16, #tpu.memory_space<vmem>>, vector<6x32xbf16>,
    tpu.wait_dma2 semaphore(%arg15 : memref<!tpu.dma_semaphore, #tpu.memory_space<semaphore_mem>>) src(%arg6 : memref<2304x128xbf16, #tpu.memory_space<any>>) dst(%arg14 : memref<2304x128xbf16, #tpu.memory_space<vmem>>)
    %c0_446 = arith.constant 0 : index
    %c0_447 = arith.constant 0 : index
    %450 = vector.load %arg7[%c0_446, %c0_447] : memref<1x128xf32, #tpu.memory_space<vmem>>, vector<1x128xf32>
    %c0_448 = arith.constant 0 : index
    %c0_449 = arith.constant 0 : index
    %451 = vector.load %arg13[%c0_448, %c0_449] : memref<8x384xbf16, #tpu.memory_space<vmem>>, vector<1x384xbf16>
    %c0_450 = arith.constant 0 : index
    %c0_451 = arith.constant 0 : index
    %452 = vector.load %arg14[%c0_450, %c0_451] : memref<2304x128xbf16, #tpu.memory_space<vmem>>, vector<384x128xbf16>
    %cst_452 = arith.constant dense<0.000000e+00> : vector<1x128xf32>
    %453 = tpu.matmul %451, %452, %cst_452 {dimension_numbers = #tpu.dot_dimension_numbers<[1], [0], [0], [1], [0, 0, 1, 1], [], []>} : vector<1x384xbf16>, vector<384x128xbf16>, vector<1x128xf32> -> vector<1x128xf32>
    %454 = arith.addf %450, %453 : vector<1x128xf32>
    %c1_453 = arith.constant 1 : index
    %c0_454 = arith.constant 0 : index
    %455 = vector.load %arg13[%c1_453, %c0_454] : memref<8x384xbf16, #tpu.memory_space<vmem>>, vector<1x384xbf16>
    %c384_455 = arith.constant 384 : index
    %c0_456 = arith.constant 0 : index
    %456 = vector.load %arg14[%c384_455, %c0_456] : memref<2304x128xbf16, #tpu.memory_space<vmem>>, vector<384x128xbf16>
    %cst_457 = arith.constant dense<0.000000e+00> : vector<1x128xf32>
    %457 = tpu.matmul %455, %456, %cst_457 {dimension_numbers = #tpu.dot_dimension_numbers<[1], [0], [0], [1], [0, 0, 1, 1], [], []>} : vector<1x384xbf16>, vector<384x128xbf16>, vector<1x128xf32> -> vector<1x128xf32>
    %458 = arith.addf %454, %457 : vector<1x128xf32>
    %c2_458 = arith.constant 2 : index
    %c0_459 = arith.constant 0 : index
    %459 = vector.load %arg13[%c2_458, %c0_459] : memref<8x384xbf16, #tpu.memory_space<vmem>>, vector<1x384xbf16>
    %c768 = arith.constant 768 : index
    %c0_460 = arith.constant 0 : index
    %460 = vector.load %arg14[%c768, %c0_460] : memref<2304x128xbf16, #tpu.memory_space<vmem>>, vector<384x128xbf16>
    %cst_461 = arith.constant dense<0.000000e+00> : vector<1x128xf32>
    %461 = tpu.matmul %459, %460, %cst_461 {dimension_numbers = #tpu.dot_dimension_numbers<[1], [0], [0], [1], [0, 0, 1, 1], [], []>} : vector<1x384xbf16>, vector<384x128xbf16>, vector<1x128xf32> -> vector<1x128xf32>
    %462 = arith.addf %458, %461 : vector<1x128xf32>
    %c3_462 = arith.constant 3 : index
    %c0_463 = arith.constant 0 : index
    %463 = vector.load %arg13[%c3_462, %c0_463] : memref<8x384xbf16, #tpu.memory_space<vmem>>, vector<1x384xbf16>
    %c1152 = arith.constant 1152 : index
    %c0_464 = arith.constant 0 : index
    %464 = vector.load %arg14[%c1152, %c0_464] : memref<2304x128xbf16, #tpu.memory_space<vmem>>, vector<384x128xbf16>
    %cst_465 = arith.constant dense<0.000000e+00> : vector<1x128xf32>
    %465 = tpu.matmul %463, %464, %cst_465 {dimension_numbers = #tpu.dot_dimension_numbers<[1], [0], [0], [1], [0, 0, 1, 1], [], []>} : vector<1x384xbf16>, vector<384x128xbf16>, vector<1x128xf32> -> vector<1x128xf32>
    %466 = arith.addf %462, %465 : vector<1x128xf32>
    %c4 = arith.constant 4 : index
    %c0_466 = arith.constant 0 : index
    %467 = vector.load %arg13[%c4, %c0_466] : memref<8x384xbf16, #tpu.memory_space<vmem>>, vector<1x384xbf16>
    %c1536 = arith.constant 1536 : index
    %c0_467 = arith.constant 0 : index
    %468 = vector.load %arg14[%c1536, %c0_467] : memref<2304x128xbf16, #tpu.memory_space<vmem>>, vector<384x128xbf16>
    %cst_468 = arith.constant dense<0.000000e+00> : vector<1x128xf32>
    %469 = tpu.matmul %467, %468, %cst_468 {dimension_numbers = #tpu.dot_dimension_numbers<[1], [0], [0], [1], [0, 0, 1, 1], [], []>} : vector<1x384xbf16>, vector<384x128xbf16>, vector<1x128xf32> -> vector<1x128xf32>
    %470 = arith.addf %466, %469 : vector<1x128xf32>
    %c5 = arith.constant 5 : index
    %c0_469 = arith.constant 0 : index
    %471 = vector.load %arg13[%c5, %c0_469] : memref<8x384xbf16, #tpu.memory_space<vmem>>, vector<1x384xbf16>
    %c1920 = arith.constant 1920 : index
    %c0_470 = arith.constant 0 : index
    %472 = vector.load %arg14[%c1920, %c0_470] : memref<2304x128xbf16, #tpu.memory_space<vmem>>, vector<384x128xbf16>
    %cst_471 = arith.constant dense<0.000000e+00> : vector<1x128xf32>
    %473 = tpu.matmul %471, %472, %cst_471 {dimension_numbers = #tpu.dot_dimension_numbers<[1], [0], [0], [1], [0, 0, 1, 1], [], []>} : vector<1x384xbf16>, vector<384x128xbf16>, vector<1x128xf32> -> vector<1x128xf32>
    %474 = arith.addf %470, %473 : vector<1x128xf32>
    %cst_472 = arith.constant 0.000000e+00 : f32
    %475 = vector.broadcast %cst_472 : f32 to vector<1x128xf32>
    %476 = arith.maximumf %474, %475 : vector<1x128xf32>
    %477 = arith.truncf %476 : vector<1x128xf32> to vector<1x128xbf16>
    %c0_473 = arith.constant 0 : index
    %c0_474 = arith.constant 0 : index
    %478 = vector.load %arg8[%c0_473, %c0_474] : memref<128x10xbf16, #tpu.memory_space<vmem>>, vector<128x10xbf16>
    %cst_475 = arith.constant dense<0.000000e+00> : vector<1x10xf32>
    %479 = tpu.matmul %477, %478, %cst_475 {dimension_numbers = #tpu.dot_dimension_numbers<[1], [0], [0], [1], [0, 0, 1, 1], [], []>} : vector<1x128xbf16>, vector<128x10xbf16>, vector<1x10xf32> -> vector<1x10xf32>
    %c0_476 = arith.constant 0 : index
    %c0_477 = arith.constant 0 : index
    %480 = vector.load %arg9[%c0_476, %c0_477] : memref<1x10xf32, #tpu.memory_space<vmem>>, vector<1x10xf32>
    %481 = arith.addf %479, %480 : vector<1x10xf32>
    %c0_478 = arith.constant 0 : index
    %c0_479 = arith.constant 0 : index
    %482 = vector.load %arg10[%c0_478, %c0_479] : memref<1x10xf32, #tpu.memory_space<vmem>>, vector<1x10xf32>
    tpu.vector_store %arg10[%c0_478, %c0_479], %481 {strides = array<i32>} : memref<1x10xf32, #tpu.memory_space<vmem>>, vector<1x10xf32>,
    return
  }
  func.func @transform_0(%arg0: i32) -> (i32, i32) {
    %c0_i32 = arith.constant 0 : i32
    %c0_i32_0 = arith.constant 0 : i32
    %c0_i32_1 = arith.constant 0 : i32
    return %c0_i32, %c0_i32_0 : i32, i32
  }
  func.func @transform_1(%arg0: i32) -> (i32, i32) {
    %c0_i32 = arith.constant 0 : i32
    %c0_i32_0 = arith.constant 0 : i32
    %c0_i32_1 = arith.constant 0 : i32
    return %c0_i32, %c0_i32_0 : i32, i32
  }
  func.func @transform_2(%arg0: i32) -> (i32, i32) {
    %c0_i32 = arith.constant 0 : i32
    %c0_i32_0 = arith.constant 0 : i32
    %c0_i32_1 = arith.constant 0 : i32
    return %c0_i32, %c0_i32_0 : i32, i32
  }
  func.func @transform_3(%arg0: i32) -> (i32, i32) {
    %c0_i32 = arith.constant 0 : i32
    %c0_i32_0 = arith.constant 0 : i32
    %c0_i32_1 = arith.constant 0 : i32
    return %c0_i32, %c0_i32_0 : i32, i32
  }
  func.func @transform_4(%arg0: i32) -> (i32, i32) {
    %c0_i32 = arith.constant 0 : i32
    %c0_i32_0 = arith.constant 0 : i32
    %c0_i32_1 = arith.constant 0 : i32
    return %c0_i32, %c0_i32_0 : i32, i32
  }
  func.func @transform_6(%arg0: i32) -> (i32, i32) {
    %c0_i32 = arith.constant 0 : i32
    %c0_i32_0 = arith.constant 0 : i32
    %c0_i32_1 = arith.constant 0 : i32
    return %c0_i32, %c0_i32_0 : i32, i32
  }
  func.func @transform_7(%arg0: i32) -> (i32, i32) {
    %c0_i32 = arith.constant 0 : i32
    %c0_i32_0 = arith.constant 0 : i32
    %c0_i32_1 = arith.constant 0 : i32
    return %c0_i32, %c0_i32_0 : i32, i32
  }
  func.func @transform_8(%arg0: i32) -> (i32, i32) {
    %c0_i32 = arith.constant 0 : i32
    %c0_i32_0 = arith.constant 0 : i32
    %c0_i32_1 = arith.constant 0 : i32
    return %c0_i32, %c0_i32_0 : i32, i32
  }
  func.func @transform_9(%arg0: i32) -> (i32, i32) {
    %c0_i32 = arith.constant 0 : i32
    %c0_i32_0 = arith.constant 0 : i32
    %c0_i32_1 = arith.constant 0 : i32
    return %c0_i32, %c0_i32_0 : i32, i32
  }
}

</mosaic_0001>

<llo_original>
// kernel: net_forward.1
$region0: #{net_forward.1}
  #allocation0 [shape = 'u32[]', space=smem, size = 0x4, offset = 0x4, fixed_abs, tag = 'smem constant byte address 0x4 - core index']
  #allocation1 [shape = 'u32[72,128]{1,0:T(1,128)}', space=vmem, size = 0x9000, scoped, tag = 'internal scratch']
  #allocation2 [shape = 'bf16[480,16]{1,0:T(8,128)(2,1)}', space=vmem, size = 0x1e000, scoped, tag = 'scratch operand']
  #allocation3 [shape = 'f32[448,32]{1,0:T(8,128)}', space=vmem, size = 0x38000, scoped, tag = 'scratch operand']
  #allocation4 [shape = 'bf16[8,384]{1,0:T(8,128)(2,1)}', space=vmem, size = 0x1800, scoped, tag = 'scratch operand']
  #allocation5 [shape = 'bf16[2304,128]{1,0:T(8,128)(2,1)}', space=vmem, size = 0x90000, scoped, tag = 'scratch operand']
  #allocation6 [shape = 's32[1]{0}', space=sflag, size = 0x4, scoped, tag = 'scratch operand']
  #allocation9 [shape = 's32[]', space=sflag, size = 0x4, offset = 0, fixed_abs, tag = 'sflag constant byte address 0x0 - dummy sync flag']
  #allocation10 [shape = 's32[]', space=sflag, size = 0x4, offset = 0, fixed_abs, tag = 'sflag constant byte address 0x0 - dummy sync flag']
  #allocation11 [shape = 'u32[]', space=smem, size = 0x4, offset = 0x44, fixed_abs, tag = 'smem constant byte address 0x44 - assertion arg 0']
  #allocation12 [shape = 'u32[]', space=smem, size = 0x4, offset = 0x48, fixed_abs, tag = 'smem constant byte address 0x48 - assertion arg 1']
  %s0 = inlined_call_operand.vmem [shape: bf16[512,3], index: 0, kind: input, shape index: {}]
  %s1 = inlined_call_operand.vmem [shape: bf16[27,16], index: 1, kind: input, shape index: {}]
  %s2 = inlined_call_operand.vmem [shape: f32[1,16], index: 2, kind: input, shape index: {}]
  %s3 = inlined_call_operand.vmem [shape: bf16[144,32], index: 3, kind: input, shape index: {}]
  %s4 = inlined_call_operand.vmem [shape: f32[1,32], index: 4, kind: input, shape index: {}]
  %s5 = inlined_call_operand.hbm [shape: bf16[2304,128], index: 5, kind: input, shape index: {}]
  %s6 = inlined_call_operand.vmem [shape: f32[1,128], index: 6, kind: input, shape index: {}]
  %s7 = inlined_call_operand.vmem [shape: bf16[128,10], index: 7, kind: input, shape index: {}]
  %s8 = inlined_call_operand.vmem [shape: f32[1,10], index: 8, kind: input, shape index: {}]
  %s9 = inlined_call_operand.hbm [shape: f32[1,10], index: 9, kind: output, shape index: {}]
  %s10 = sld [smem:[#allocation0]]
  $region46: #{net_forward.1} parent=0
    _
  %s12 = ssub.s32 1, %s10
  %s13 = scalar_select 0, %s12, %s10
  $region1: #{net_forward.1} parent=0
    #allocation7 [shape = 'u8[512]{0}', space=vmem, size = 0x400, scoped, tag = 'output window, operand 0, single buffered']
    #allocation8 [shape = 's32[1]{0}', space=sflag, size = 0x4, scoped, tag = 'scoped memory for net_forward.1']
    %14 = vsyncpa [#allocation8], 0
    // Predicated region
    $region2: #{net_forward.1} parent=1 // pred_check
      _
    $region3: #{net_forward.1} parent=1 // pred_check_branch
      %16 = sbr.rel (0) target = $region5
    $region4: #{net_forward.1} parent=1 // pred_region
      _
    $region5: #{net_forward.1} parent=1 // pred_fallthru
      _
    // Predicated region
    $region6: #{net_forward.1} parent=1 // pred_check
      _
    $region7: #{net_forward.1} parent=1 // pred_check_branch
      %18 = sbr.rel (0) target = $region9
    $region8: #{net_forward.1} parent=1 // pred_region
      _
    $region9: #{net_forward.1} parent=1 // pred_fallthru
      _
    // Predicated region
    $region10: #{net_forward.1} parent=1 // pred_check
      _
    $region11: #{net_forward.1} parent=1 // pred_check_branch
      %20 = sbr.rel (0) target = $region13
    $region12: #{net_forward.1} parent=1 // pred_region
      _
    $region13: #{net_forward.1} parent=1 // pred_fallthru
      _
    // Predicated region
    $region14: #{net_forward.1} parent=1 // pred_check
      _
    $region15: #{net_forward.1} parent=1 // pred_check_branch
      %22 = sbr.rel (0) target = $region17
    $region16: #{net_forward.1} parent=1 // pred_region
      _
    $region17: #{net_forward.1} parent=1 // pred_fallthru
      _
    // Predicated region
    $region18: #{net_forward.1} parent=1 // pred_check
      _
    $region19: #{net_forward.1} parent=1 // pred_check_branch
      %24 = sbr.rel (0) target = $region21
    $region20: #{net_forward.1} parent=1 // pred_region
      _
    $region21: #{net_forward.1} parent=1 // pred_fallthru
      _
    // Predicated region
    $region22: #{net_forward.1} parent=1 // pred_check
      _
    $region23: #{net_forward.1} parent=1 // pred_check_branch
      %26 = sbr.rel (0) target = $region25
    $region24: #{net_forward.1} parent=1 // pred_region
      _
    $region25: #{net_forward.1} parent=1 // pred_fallthru
      _
    // Predicated region
    $region26: #{net_forward.1} parent=1 // pred_check
      _
    $region27: #{net_forward.1} parent=1 // pred_check_branch
      %28 = sbr.rel (0) target = $region29
    $region28: #{net_forward.1} parent=1 // pred_region
      _
    $region29: #{net_forward.1} parent=1 // pred_fallthru
      _
    // Predicated region
    $region30: #{net_forward.1} parent=1 // pred_check
      _
    $region31: #{net_forward.1} parent=1 // pred_check_branch
      %30 = sbr.rel (0) target = $region33
    $region32: #{net_forward.1} parent=1 // pred_region
      _
    $region33: #{net_forward.1} parent=1 // pred_fallthru
      _
    // Predicated region
    $region34: #{net_forward.1} parent=1 // pred_check
      _
    $region35: #{net_forward.1} parent=1 // pred_check_branch
      %33 = sbr.rel target = $region37
    $region36: #{net_forward.1} parent=1 // pred_region
      %34 = sst [smem:[#allocation11]] [#allocation10]
      %35 = sst [smem:[#allocation12]] [#allocation9]
    $region37: #{net_forward.1} parent=1 // pred_fallthru
      _
    %37 = shalt.err (0)
    %s39 = sshll.u32 %s5, 4
    %s40 = int_to_ptr.hbm [resolvable:$true] %s39
    %s41 = sshll.u32 [#allocation5], 4
    %s42 = int_to_ptr.vmem [resolvable:$true] %s41
    %44 = dma.hbm_to_vmem [thread:$0]  %s40, 18432, %s42, [#allocation6]
    %v45 = vld [vmem:[%s2] sm:$0x1]
    %v46 = vld [vmem:[%s4] sm:$0x1]
    %v47 = vld [vmem:[%s0] sm:$0xf]
    %v48 = vld [vmem:[%s0 + $0x4] sm:$0xf]
    %v49 = vld [vmem:[%s0 + $0x8] sm:$0xf]
    %v50 = vld [vmem:[%s0 + $0xc] sm:$0xf]
    %v51 = vld [vmem:[%s0 + $0x10] sm:$0xf]
    %v52 = vld [vmem:[%s0 + $0x14] sm:$0xf]
    %v53 = vld [vmem:[%s0 + $0x18] sm:$0xf]
    %v54 = vld [vmem:[%s0 + $0x1c] sm:$0xf]
    %v55 = vld [vmem:[%s0 + $0x20] sm:$0xf]
    %v56 = vld [vmem:[%s0 + $0x24] sm:$0xf]
    %v57 = vld [vmem:[%s0 + $0x28] sm:$0xf]
    %v58 = vld [vmem:[%s0 + $0x2c] sm:$0xf]
    %v59 = vld [vmem:[%s0 + $0x30] sm:$0xf]
    %v60 = vld [vmem:[%s0 + $0x34] sm:$0xf]
    %v61 = vld [vmem:[%s0 + $0x38] sm:$0xf]
    %v62 = vld [vmem:[%s0 + $0x3c] sm:$0xf]
    %v63 = vld [vmem:[%s1] sm:$0x3]
    %v64 = vld [vmem:[%s0 + $0x40] sm:$0x1]
    %v65 = vld [vmem:[%s1] sm:$0x6]
    %v83 = vunpack.c.l.b16 %v47
    %v84 = vunpack.c.l.b16 %v48
    %v85 = vunpack.c.l.b16 %v49
    %v86 = vunpack.c.l.b16 %v50
    %v87 = vunpack.c.l.b16 %v51
    %v88 = vunpack.c.l.b16 %v52
    %v89 = vunpack.c.l.b16 %v53
    %v90 = vunpack.c.l.b16 %v54
    %v91 = vunpack.c.l.b16 %v55
    %v92 = vunpack.c.l.b16 %v56
    %v93 = vunpack.c.l.b16 %v57
    %v94 = vunpack.c.l.b16 %v58
    %v95 = vunpack.c.l.b16 %v59
    %v96 = vunpack.c.l.b16 %v60
    %v97 = vunpack.c.l.b16 %v61
    %v98 = vunpack.c.l.b16 %v62
    %v99 = vunpack.c.l.b16 %v64
    %v100 = vpack.c.b16 %v84, %v83
    %v101 = vpack.c.b16 %v86, %v85
    %v102 = vpack.c.b16 %v88, %v87
    %v103 = vpack.c.b16 %v90, %v89
    %v104 = vpack.c.b16 %v92, %v91
    %v105 = vpack.c.b16 %v94, %v93
    %v106 = vpack.c.b16 %v96, %v95
    %v107 = vpack.c.b16 %v98, %v97
    %v108 = vpack.c.b16 %v99, %v99
    %vm109 = vsmask.f32 7424
    %v111 = vshrl.u32 %v100, 16
    %v113 = vshll.u32 %v100, 16
    %v115 = vrot.slane %v113, 1
    %v116 = vor.u32 %v111, %v115
    %v118 = vshll.u32 %v101, 16
    %v120 = vrot.slane %v118, 1
    %v121 = vsel %vm109, %v116, %v120
    %v122 = vshrl.u32 %v101, 16
    %v124 = vor.u32 %v122, %v120
    %v126 = vshll.u32 %v102, 16
    %v128 = vrot.slane %v126, 1
    %v129 = vsel %vm109, %v124, %v128
    %v130 = vshrl.u32 %v102, 16
    %v132 = vor.u32 %v130, %v128
    %v134 = vshll.u32 %v103, 16
    %v136 = vrot.slane %v134, 1
    %v137 = vsel %vm109, %v132, %v136
    %v138 = vshrl.u32 %v103, 16
    %v140 = vor.u32 %v138, %v136
    %v142 = vshll.u32 %v104, 16
    %v144 = vrot.slane %v142, 1
    %v145 = vsel %vm109, %v140, %v144
    %v146 = vshrl.u32 %v104, 16
    %v148 = vor.u32 %v146, %v144
    %v150 = vshll.u32 %v105, 16
    %v152 = vrot.slane %v150, 1
    %v153 = vsel %vm109, %v148, %v152
    %v154 = vshrl.u32 %v105, 16
    %v156 = vor.u32 %v154, %v152
    %v158 = vshll.u32 %v106, 16
    %v160 = vrot.slane %v158, 1
    %v161 = vsel %vm109, %v156, %v160
    %v162 = vshrl.u32 %v106, 16
    %v164 = vor.u32 %v162, %v160
    %v166 = vshll.u32 %v107, 16
    %v168 = vrot.slane %v166, 1
    %v169 = vsel %vm109, %v164, %v168
    %v170 = vshrl.u32 %v107, 16
    %v172 = vor.u32 %v170, %v168
    %v174 = vshll.u32 %v108, 16
    %v176 = vrot.slane %v174, 1
    %v177 = vsel %vm109, %v172, %v176
    %v179 = vunpack.c.l.b16 %v65
    %v180 = vpack.c.b16 %v179, %v179
    %v182 = vshrl.u32 %v180, 16
    %v184 = vrot.slane %v182, 1
    %v185 = vshll.u32 %v180, 16
    %v187 = vrot.slane %v185, 2
    %v188 = vor.u32 %v184, %v187
    %vm189 = vcmask 23552
    %v191 = vsel %vm189, %v121, 0
    %v194 = vsel %vm189, %v129, 0
    %v197 = vsel %vm189, %v137, 0
    %v200 = vsel %vm189, %v145, 0
    %v203 = vsel %vm189, %v153, 0
    %v206 = vsel %vm189, %v161, 0
    %v209 = vsel %vm189, %v169, 0
    %v212 = vsel %vm189, %v177, 0
    %vm214 = vcmask 1040384
    %vm215 = vcmask 1041408
    %v216 = vsel %vm214, 4294967295, 65535
    %v217 = vsel %vm215, %v216, 0
    %v219 = vand.u32 %v188, %v217
    %221 = vmatpush.bf16.msra.mxu0 0
    %222 = vmatpush.bf16.msra.mxu0 0
    %223 = vmatpush.bf16.msra.mxu0 0
    %224 = vmatpush.bf16.msra.mxu0 0
    %225 = vmatpush.bf16.msra.mxu0 0
    %226 = vmatpush.bf16.msra.mxu0 0
    %227 = vmatpush.bf16.msra.mxu0 0
    %228 = vmatpush.bf16.msra.mxu0 %v219
    %229 = vmatmul.bf16.gmra.mxu0 %v191
    %v230 = vpop.f32.mrf.mxu0
    %v231 = vadd.f32 0.0, %v230
    %v232 = vpop.f32.mrf.mxu0
    %v233 = vadd.f32 0.0, %v232
    %234 = vmatmul.bf16.gmra.mxu0 %v194
    %v235 = vpop.f32.mrf.mxu0
    %v236 = vadd.f32 0.0, %v235
    %v237 = vpop.f32.mrf.mxu0
    %v238 = vadd.f32 0.0, %v237
    %239 = vmatmul.bf16.gmra.mxu0 %v197
    %v240 = vpop.f32.mrf.mxu0
    %v241 = vadd.f32 0.0, %v240
    %v242 = vpop.f32.mrf.mxu0
    %v243 = vadd.f32 0.0, %v242
    %244 = vmatmul.bf16.gmra.mxu0 %v200
    %v245 = vpop.f32.mrf.mxu0
    %v246 = vadd.f32 0.0, %v245
    %v247 = vpop.f32.mrf.mxu0
    %v248 = vadd.f32 0.0, %v247
    %249 = vmatmul.bf16.gmra.mxu0 %v203
    %v250 = vpop.f32.mrf.mxu0
    %v251 = vadd.f32 0.0, %v250
    %v252 = vpop.f32.mrf.mxu0
    %v253 = vadd.f32 0.0, %v252
    %254 = vmatmul.bf16.gmra.mxu0 %v206
    %v255 = vpop.f32.mrf.mxu0
    %v256 = vadd.f32 0.0, %v255
    %v257 = vpop.f32.mrf.mxu0
    %v258 = vadd.f32 0.0, %v257
    %259 = vmatmul.bf16.gmra.mxu0 %v209
    %v260 = vpop.f32.mrf.mxu0
    %v261 = vadd.f32 0.0, %v260
    %v262 = vpop.f32.mrf.mxu0
    %v263 = vadd.f32 0.0, %v262
    %264 = vmatmul.bf16.gmra.mxu0 %v212
    %v265 = vpop.f32.mrf.mxu0
    %v266 = vadd.f32 0.0, %v265
    %v267 = vpop.f32.mrf.mxu0
    %v268 = vadd.f32 0.0, %v267
    %269 = vdwg.mxu0
    %v270 = vsel %vm189, %v100, 0
    %v272 = vsel %vm189, %v101, 0
    %v274 = vsel %vm189, %v102, 0
    %v276 = vsel %vm189, %v103, 0
    %v278 = vsel %vm189, %v104, 0
    %v280 = vsel %vm189, %v105, 0
    %v282 = vsel %vm189, %v106, 0
    %v284 = vsel %vm189, %v107, 0
    %v287 = vand.u32 %v63, %v217
    %289 = vmatpush.bf16.msra.mxu0 0
    %290 = vmatpush.bf16.msra.mxu0 0
    %291 = vmatpush.bf16.msra.mxu0 0
    %292 = vmatpush.bf16.msra.mxu0 0
    %293 = vmatpush.bf16.msra.mxu0 0
    %294 = vmatpush.bf16.msra.mxu0 0
    %295 = vmatpush.bf16.msra.mxu0 0
    %296 = vmatpush.bf16.msra.mxu0 %v287
    %297 = vmatmul.bf16.gmra.mxu0 %v270
    %v298 = vpop.f32.mrf.mxu0
    %v299 = vadd.f32 %v231, %v298
    %v300 = vpop.f32.mrf.mxu0
    %v301 = vadd.f32 %v233, %v300
    %302 = vmatmul.bf16.gmra.mxu0 %v272
    %v303 = vpop.f32.mrf.mxu0
    %v304 = vadd.f32 %v236, %v303
    %v305 = vpop.f32.mrf.mxu0
    %v306 = vadd.f32 %v238, %v305
    %307 = vmatmul.bf16.gmra.mxu0 %v274
    %v308 = vpop.f32.mrf.mxu0
    %v309 = vadd.f32 %v241, %v308
    %v310 = vpop.f32.mrf.mxu0
    %v311 = vadd.f32 %v243, %v310
    %312 = vmatmul.bf16.gmra.mxu0 %v276
    %v313 = vpop.f32.mrf.mxu0
    %v314 = vadd.f32 %v246, %v313
    %v315 = vpop.f32.mrf.mxu0
    %v316 = vadd.f32 %v248, %v315
    %317 = vmatmul.bf16.gmra.mxu0 %v278
    %v318 = vpop.f32.mrf.mxu0
    %v319 = vadd.f32 %v251, %v318
    %v320 = vpop.f32.mrf.mxu0
    %v321 = vadd.f32 %v253, %v320
    %322 = vmatmul.bf16.gmra.mxu0 %v280
    %v323 = vpop.f32.mrf.mxu0
    %v324 = vadd.f32 %v256, %v323
    %v325 = vpop.f32.mrf.mxu0
    %v326 = vadd.f32 %v258, %v325
    %327 = vmatmul.bf16.gmra.mxu0 %v282
    %v328 = vpop.f32.mrf.mxu0
    %v329 = vadd.f32 %v261, %v328
    %v330 = vpop.f32.mrf.mxu0
    %v331 = vadd.f32 %v263, %v330
    %332 = vmatmul.bf16.gmra.mxu0 %v284
    %v333 = vpop.f32.mrf.mxu0
    %v334 = vadd.f32 %v266, %v333
    %v335 = vpop.f32.mrf.mxu0
    %v336 = vadd.f32 %v268, %v335
    %337 = vdwg.mxu0
    %v338 = vld [vmem:[%s0] sm:$0xe]
    %v339 = vld [vmem:[%s1] sm:$0x8]
    %v340 = vld [vmem:[%s1 + $0x4] sm:$0x1]
    %v342 = vunpack.c.l.b16 %v338
    %v343 = vpack.c.b16 %v84, %v342
    %vm344 = vcmask 1046528
    %v345 = vrot.slane %v343, 1
    %v346 = vrot.slane %v101, 1
    %v347 = vsel %vm344, %v345, %v346
    %v348 = vrot.slane %v102, 1
    %v349 = vsel %vm344, %v346, %v348
    %v350 = vrot.slane %v103, 1
    %v351 = vsel %vm344, %v348, %v350
    %v352 = vrot.slane %v104, 1
    %v353 = vsel %vm344, %v350, %v352
    %v354 = vrot.slane %v105, 1
    %v355 = vsel %vm344, %v352, %v354
    %v356 = vrot.slane %v106, 1
    %v357 = vsel %vm344, %v354, %v356
    %v358 = vrot.slane %v107, 1
    %v359 = vsel %vm344, %v356, %v358
    %v360 = vrot.slane %v108, 1
    %v361 = vsel %vm344, %v358, %v360
    %v364 = vunpack.c.l.b16 %v339
    %v365 = vunpack.c.l.b16 %v340
    %v366 = vpack.c.b16 %v365, %v364
    %v367 = vrot.slane %v366, 3
    %v369 = vsel %vm189, %v347, 0
    %v372 = vsel %vm189, %v349, 0
    %v375 = vsel %vm189, %v351, 0
    %v378 = vsel %vm189, %v353, 0
    %v381 = vsel %vm189, %v355, 0
    %v384 = vsel %vm189, %v357, 0
    %v387 = vsel %vm189, %v359, 0
    %v390 = vsel %vm189, %v361, 0
    %v393 = vand.u32 %v367, %v217
    %395 = vmatpush.bf16.msra.mxu0 0
    %396 = vmatpush.bf16.msra.mxu0 0
    %397 = vmatpush.bf16.msra.mxu0 0
    %398 = vmatpush.bf16.msra.mxu0 0
    %399 = vmatpush.bf16.msra.mxu0 0
    %400 = vmatpush.bf16.msra.mxu0 0
    %401 = vmatpush.bf16.msra.mxu0 0
    %402 = vmatpush.bf16.msra.mxu0 %v393
    %403 = vmatmul.bf16.gmra.mxu0 %v369
    %v404 = vpop.f32.mrf.mxu0
    %v405 = vadd.f32 0.0, %v404
    %v406 = vpop.f32.mrf.mxu0
    %v407 = vadd.f32 0.0, %v406
    %408 = vmatmul.bf16.gmra.mxu0 %v372
    %v409 = vpop.f32.mrf.mxu0
    %v410 = vadd.f32 0.0, %v409
    %v411 = vpop.f32.mrf.mxu0
    %v412 = vadd.f32 0.0, %v411
    %413 = vmatmul.bf16.gmra.mxu0 %v375
    %v414 = vpop.f32.mrf.mxu0
    %v415 = vadd.f32 0.0, %v414
    %v416 = vpop.f32.mrf.mxu0
    %v417 = vadd.f32 0.0, %v416
    %418 = vmatmul.bf16.gmra.mxu0 %v378
    %v419 = vpop.f32.mrf.mxu0
    %v420 = vadd.f32 0.0, %v419
    %v421 = vpop.f32.mrf.mxu0
    %v422 = vadd.f32 0.0, %v421
    %423 = vmatmul.bf16.gmra.mxu0 %v381
    %v424 = vpop.f32.mrf.mxu0
    %v425 = vadd.f32 0.0, %v424
    %v426 = vpop.f32.mrf.mxu0
    %v427 = vadd.f32 0.0, %v426
    %428 = vmatmul.bf16.gmra.mxu0 %v384
    %v429 = vpop.f32.mrf.mxu0
    %v430 = vadd.f32 0.0, %v429
    %v431 = vpop.f32.mrf.mxu0
    %v432 = vadd.f32 0.0, %v431
    %433 = vmatmul.bf16.gmra.mxu0 %v387
    %v434 = vpop.f32.mrf.mxu0
    %v435 = vadd.f32 0.0, %v434
    %v436 = vpop.f32.mrf.mxu0
    %v437 = vadd.f32 0.0, %v436
    %438 = vmatmul.bf16.gmra.mxu0 %v390
    %v439 = vpop.f32.mrf.mxu0
    %v440 = vadd.f32 0.0, %v439
    %v441 = vpop.f32.mrf.mxu0
    %v442 = vadd.f32 0.0, %v441
    %443 = vdwg.mxu0
    %v444 = vadd.f32 %v299, %v405
    %v445 = vadd.f32 %v301, %v407
    %v446 = vadd.f32 %v304, %v410
    %v447 = vadd.f32 %v306, %v412
    %v448 = vadd.f32 %v309, %v415
    %v449 = vadd.f32 %v311, %v417
    %v450 = vadd.f32 %v314, %v420
    %v451 = vadd.f32 %v316, %v422
    %v452 = vadd.f32 %v319, %v425
    %v453 = vadd.f32 %v321, %v427
    %v454 = vadd.f32 %v324, %v430
    %v455 = vadd.f32 %v326, %v432
    %v456 = vadd.f32 %v329, %v435
    %v457 = vadd.f32 %v331, %v437
    %v458 = vadd.f32 %v334, %v440
    %v459 = vadd.f32 %v336, %v442
    %v460 = vld [vmem:[%s0 + $0x8] sm:$0xf]
    %v461 = vld [vmem:[%s0 + $0xc] sm:$0xf]
    %v462 = vld [vmem:[%s0 + $0x10] sm:$0xf]
    %v463 = vld [vmem:[%s0 + $0x14] sm:$0xf]
    %v464 = vld [vmem:[%s0 + $0x18] sm:$0xf]
    %v465 = vld [vmem:[%s0 + $0x1c] sm:$0xf]
    %v466 = vld [vmem:[%s0 + $0x20] sm:$0xf]
    %v467 = vld [vmem:[%s0 + $0x24] sm:$0xf]
    %v468 = vld [vmem:[%s0 + $0x28] sm:$0xf]
    %v469 = vld [vmem:[%s0 + $0x2c] sm:$0xf]
    %v470 = vld [vmem:[%s0 + $0x30] sm:$0xf]
    %v471 = vld [vmem:[%s0 + $0x34] sm:$0xf]
    %v472 = vld [vmem:[%s0 + $0x38] sm:$0xf]
    %v473 = vld [vmem:[%s0 + $0x3c] sm:$0xf]
    %v474 = vld [vmem:[%s0 + $0x40] sm:$0xf]
    %v475 = vld [vmem:[%s0 + $0x44] sm:$0xf]
    %v476 = vld [vmem:[%s1 + $0x4] sm:$0x3]
    %v493 = vunpack.c.l.b16 %v460
    %v494 = vunpack.c.l.b16 %v461
    %v495 = vunpack.c.l.b16 %v462
    %v496 = vunpack.c.l.b16 %v463
    %v497 = vunpack.c.l.b16 %v464
    %v498 = vunpack.c.l.b16 %v465
    %v499 = vunpack.c.l.b16 %v466
    %v500 = vunpack.c.l.b16 %v467
    %v501 = vunpack.c.l.b16 %v468
    %v502 = vunpack.c.l.b16 %v469
    %v503 = vunpack.c.l.b16 %v470
    %v504 = vunpack.c.l.b16 %v471
    %v505 = vunpack.c.l.b16 %v472
    %v506 = vunpack.c.l.b16 %v473
    %v507 = vunpack.c.l.b16 %v474
    %v508 = vunpack.c.l.b16 %v475
    %v509 = vpack.c.b16 %v494, %v493
    %v510 = vpack.c.b16 %v496, %v495
    %v511 = vpack.c.b16 %v498, %v497
    %v512 = vpack.c.b16 %v500, %v499
    %v513 = vpack.c.b16 %v502, %v501
    %v514 = vpack.c.b16 %v504, %v503
    %v515 = vpack.c.b16 %v506, %v505
    %v516 = vpack.c.b16 %v508, %v507
    %v518 = vunpack.c.l.b16 %v476
    %v519 = vpack.c.b16 %v518, %v518
    %v521 = vshrl.u32 %v519, 16
    %v523 = vshll.u32 %v519, 16
    %v525 = vrot.slane %v523, 1
    %v526 = vor.u32 %v521, %v525
    %v528 = vsel %vm189, %v509, 0
    %v531 = vsel %vm189, %v510, 0
    %v534 = vsel %vm189, %v511, 0
    %v537 = vsel %vm189, %v512, 0
    %v540 = vsel %vm189, %v513, 0
    %v543 = vsel %vm189, %v514, 0
    %v546 = vsel %vm189, %v515, 0
    %v549 = vsel %vm189, %v516, 0
    %v552 = vand.u32 %v526, %v217
    %554 = vmatpush.bf16.msra.mxu0 0
    %555 = vmatpush.bf16.msra.mxu0 0
    %556 = vmatpush.bf16.msra.mxu0 0
    %557 = vmatpush.bf16.msra.mxu0 0
    %558 = vmatpush.bf16.msra.mxu0 0
    %559 = vmatpush.bf16.msra.mxu0 0
    %560 = vmatpush.bf16.msra.mxu0 0
    %561 = vmatpush.bf16.msra.mxu0 %v552
    %562 = vmatmul.bf16.gmra.mxu0 %v528
    %v563 = vpop.f32.mrf.mxu0
    %v564 = vadd.f32 0.0, %v563
    %v565 = vpop.f32.mrf.mxu0
    %v566 = vadd.f32 0.0, %v565
    %567 = vmatmul.bf16.gmra.mxu0 %v531
    %v568 = vpop.f32.mrf.mxu0
    %v569 = vadd.f32 0.0, %v568
    %v570 = vpop.f32.mrf.mxu0
    %v571 = vadd.f32 0.0, %v570
    %572 = vmatmul.bf16.gmra.mxu0 %v534
    %v573 = vpop.f32.mrf.mxu0
    %v574 = vadd.f32 0.0, %v573
    %v575 = vpop.f32.mrf.mxu0
    %v576 = vadd.f32 0.0, %v575
    %577 = vmatmul.bf16.gmra.mxu0 %v537
    %v578 = vpop.f32.mrf.mxu0
    %v579 = vadd.f32 0.0, %v578
    %v580 = vpop.f32.mrf.mxu0
    %v581 = vadd.f32 0.0, %v580
    %582 = vmatmul.bf16.gmra.mxu0 %v540
    %v583 = vpop.f32.mrf.mxu0
    %v584 = vadd.f32 0.0, %v583
    %v585 = vpop.f32.mrf.mxu0
    %v586 = vadd.f32 0.0, %v585
    %587 = vmatmul.bf16.gmra.mxu0 %v543
    %v588 = vpop.f32.mrf.mxu0
    %v589 = vadd.f32 0.0, %v588
    %v590 = vpop.f32.mrf.mxu0
    %v591 = vadd.f32 0.0, %v590
    %592 = vmatmul.bf16.gmra.mxu0 %v546
    %v593 = vpop.f32.mrf.mxu0
    %v594 = vadd.f32 0.0, %v593
    %v595 = vpop.f32.mrf.mxu0
    %v596 = vadd.f32 0.0, %v595
    %597 = vmatmul.bf16.gmra.mxu0 %v549
    %v598 = vpop.f32.mrf.mxu0
    %v599 = vadd.f32 0.0, %v598
    %v600 = vpop.f32.mrf.mxu0
    %v601 = vadd.f32 0.0, %v600
    %602 = vdwg.mxu0
    %v603 = vadd.f32 %v444, %v564
    %v604 = vadd.f32 %v445, %v566
    %v605 = vadd.f32 %v446, %v569
    %v606 = vadd.f32 %v447, %v571
    %v607 = vadd.f32 %v448, %v574
    %v608 = vadd.f32 %v449, %v576
    %v609 = vadd.f32 %v450, %v579
    %v610 = vadd.f32 %v451, %v581
    %v611 = vadd.f32 %v452, %v584
    %v612 = vadd.f32 %v453, %v586
    %v613 = vadd.f32 %v454, %v589
    %v614 = vadd.f32 %v455, %v591
    %v615 = vadd.f32 %v456, %v594
    %v616 = vadd.f32 %v457, %v596
    %v617 = vadd.f32 %v458, %v599
    %v618 = vadd.f32 %v459, %v601
    %v619 = vld [vmem:[%s0 + $0x8] sm:$0xf]
    %v620 = vld [vmem:[%s0 + $0xc] sm:$0xf]
    %v621 = vld [vmem:[%s0 + $0x10] sm:$0xf]
    %v622 = vld [vmem:[%s0 + $0x14] sm:$0xf]
    %v623 = vld [vmem:[%s0 + $0x18] sm:$0xf]
    %v624 = vld [vmem:[%s0 + $0x1c] sm:$0xf]
    %v625 = vld [vmem:[%s0 + $0x20] sm:$0xf]
    %v626 = vld [vmem:[%s0 + $0x24] sm:$0xf]
    %v627 = vld [vmem:[%s0 + $0x28] sm:$0xf]
    %v628 = vld [vmem:[%s0 + $0x2c] sm:$0xf]
    %v629 = vld [vmem:[%s0 + $0x30] sm:$0xf]
    %v630 = vld [vmem:[%s0 + $0x34] sm:$0xf]
    %v631 = vld [vmem:[%s0 + $0x38] sm:$0xf]
    %v632 = vld [vmem:[%s0 + $0x3c] sm:$0xf]
    %v633 = vld [vmem:[%s0 + $0x40] sm:$0xf]
    %v634 = vld [vmem:[%s0 + $0x44] sm:$0xf]
    %v635 = vld [vmem:[%s0 + $0x48] sm:$0x1]
    %v636 = vld [vmem:[%s1 + $0x4] sm:$0xc]
    %v654 = vunpack.c.l.b16 %v619
    %v655 = vunpack.c.l.b16 %v620
    %v656 = vunpack.c.l.b16 %v621
    %v657 = vunpack.c.l.b16 %v622
    %v658 = vunpack.c.l.b16 %v623
    %v659 = vunpack.c.l.b16 %v624
    %v660 = vunpack.c.l.b16 %v625
    %v661 = vunpack.c.l.b16 %v626
    %v662 = vunpack.c.l.b16 %v627
    %v663 = vunpack.c.l.b16 %v628
    %v664 = vunpack.c.l.b16 %v629
    %v665 = vunpack.c.l.b16 %v630
    %v666 = vunpack.c.l.b16 %v631
    %v667 = vunpack.c.l.b16 %v632
    %v668 = vunpack.c.l.b16 %v633
    %v669 = vunpack.c.l.b16 %v634
    %v670 = vunpack.c.l.b16 %v635
    %v671 = vpack.c.b16 %v655, %v654
    %v672 = vpack.c.b16 %v657, %v656
    %v673 = vpack.c.b16 %v659, %v658
    %v674 = vpack.c.b16 %v661, %v660
    %v675 = vpack.c.b16 %v663, %v662
    %v676 = vpack.c.b16 %v665, %v664
    %v677 = vpack.c.b16 %v667, %v666
    %v678 = vpack.c.b16 %v669, %v668
    %v679 = vpack.c.b16 %v670, %v670
    %v681 = vshrl.u32 %v671, 16
    %v683 = vshll.u32 %v671, 16
    %v685 = vrot.slane %v683, 1
    %v686 = vor.u32 %v681, %v685
    %v688 = vshll.u32 %v672, 16
    %v690 = vrot.slane %v688, 1
    %v691 = vsel %vm109, %v686, %v690
    %v692 = vshrl.u32 %v672, 16
    %v694 = vor.u32 %v692, %v690
    %v696 = vshll.u32 %v673, 16
    %v698 = vrot.slane %v696, 1
    %v699 = vsel %vm109, %v694, %v698
    %v700 = vshrl.u32 %v673, 16
    %v702 = vor.u32 %v700, %v698
    %v704 = vshll.u32 %v674, 16
    %v706 = vrot.slane %v704, 1
    %v707 = vsel %vm109, %v702, %v706
    %v708 = vshrl.u32 %v674, 16
    %v710 = vor.u32 %v708, %v706
    %v712 = vshll.u32 %v675, 16
    %v714 = vrot.slane %v712, 1
    %v715 = vsel %vm109, %v710, %v714
    %v716 = vshrl.u32 %v675, 16
    %v718 = vor.u32 %v716, %v714
    %v720 = vshll.u32 %v676, 16
    %v722 = vrot.slane %v720, 1
    %v723 = vsel %vm109, %v718, %v722
    %v724 = vshrl.u32 %v676, 16
    %v726 = vor.u32 %v724, %v722
    %v728 = vshll.u32 %v677, 16
    %v730 = vrot.slane %v728, 1
    %v731 = vsel %vm109, %v726, %v730
    %v732 = vshrl.u32 %v677, 16
    %v734 = vor.u32 %v732, %v730
    %v736 = vshll.u32 %v678, 16
    %v738 = vrot.slane %v736, 1
    %v739 = vsel %vm109, %v734, %v738
    %v740 = vshrl.u32 %v678, 16
    %v742 = vor.u32 %v740, %v738
    %v744 = vshll.u32 %v679, 16
    %v746 = vrot.slane %v744, 1
    %v747 = vsel %vm109, %v742, %v746
    %v749 = vunpack.c.l.b16 %v636
    %v750 = vpack.c.b16 %v749, %v749
    %v751 = vrot.slane %v750, 2
    %v753 = vsel %vm189, %v691, 0
    %v756 = vsel %vm189, %v699, 0
    %v759 = vsel %vm189, %v707, 0
    %v762 = vsel %vm189, %v715, 0
    %v765 = vsel %vm189, %v723, 0
    %v768 = vsel %vm189, %v731, 0
    %v771 = vsel %vm189, %v739, 0
    %v774 = vsel %vm189, %v747, 0
    %v777 = vand.u32 %v751, %v217
    %779 = vmatpush.bf16.msra.mxu0 0
    %780 = vmatpush.bf16.msra.mxu0 0
    %781 = vmatpush.bf16.msra.mxu0 0
    %782 = vmatpush.bf16.msra.mxu0 0
    %783 = vmatpush.bf16.msra.mxu0 0
    %784 = vmatpush.bf16.msra.mxu0 0
    %785 = vmatpush.bf16.msra.mxu0 0
    %786 = vmatpush.bf16.msra.mxu0 %v777
    %787 = vmatmul.bf16.gmra.mxu0 %v753
    %v788 = vpop.f32.mrf.mxu0
    %v789 = vadd.f32 0.0, %v788
    %v790 = vpop.f32.mrf.mxu0
    %v791 = vadd.f32 0.0, %v790
    %792 = vmatmul.bf16.gmra.mxu0 %v756
    %v793 = vpop.f32.mrf.mxu0
    %v794 = vadd.f32 0.0, %v793
    %v795 = vpop.f32.mrf.mxu0
    %v796 = vadd.f32 0.0, %v795
    %797 = vmatmul.bf16.gmra.mxu0 %v759
    %v798 = vpop.f32.mrf.mxu0
    %v799 = vadd.f32 0.0, %v798
    %v800 = vpop.f32.mrf.mxu0
    %v801 = vadd.f32 0.0, %v800
    %802 = vmatmul.bf16.gmra.mxu0 %v762
    %v803 = vpop.f32.mrf.mxu0
    %v804 = vadd.f32 0.0, %v803
    %v805 = vpop.f32.mrf.mxu0
    %v806 = vadd.f32 0.0, %v805
    %807 = vmatmul.bf16.gmra.mxu0 %v765
    %v808 = vpop.f32.mrf.mxu0
    %v809 = vadd.f32 0.0, %v808
    %v810 = vpop.f32.mrf.mxu0
    %v811 = vadd.f32 0.0, %v810
    %812 = vmatmul.bf16.gmra.mxu0 %v768
    %v813 = vpop.f32.mrf.mxu0
    %v814 = vadd.f32 0.0, %v813
    %v815 = vpop.f32.mrf.mxu0
    %v816 = vadd.f32 0.0, %v815
    %817 = vmatmul.bf16.gmra.mxu0 %v771
    %v818 = vpop.f32.mrf.mxu0
    %v819 = vadd.f32 0.0, %v818
    %v820 = vpop.f32.mrf.mxu0
    %v821 = vadd.f32 0.0, %v820
    %822 = vmatmul.bf16.gmra.mxu0 %v774
    %v823 = vpop.f32.mrf.mxu0
    %v824 = vadd.f32 0.0, %v823
    %v825 = vpop.f32.mrf.mxu0
    %v826 = vadd.f32 0.0, %v825
    %827 = vdwg.mxu0
    %v828 = vadd.f32 %v603, %v789
    %v829 = vadd.f32 %v604, %v791
    %v830 = vadd.f32 %v605, %v794
    %v831 = vadd.f32 %v606, %v796
    %v832 = vadd.f32 %v607, %v799
    %v833 = vadd.f32 %v608, %v801
    %v834 = vadd.f32 %v609, %v804
    %v835 = vadd.f32 %v610, %v806
    %v836 = vadd.f32 %v611, %v809
    %v837 = vadd.f32 %v612, %v811
    %v838 = vadd.f32 %v613, %v814
    %v839 = vadd.f32 %v614, %v816
    %v840 = vadd.f32 %v615, %v819
    %v841 = vadd.f32 %v616, %v821
    %v842 = vadd.f32 %v617, %v824
    %v843 = vadd.f32 %v618, %v826
    %v844 = vld [vmem:[%s0 + $0x8] sm:$0xe]
    %v845 = vld [vmem:[%s1 + $0x4] sm:$0x8]
    %v846 = vld [vmem:[%s1 + $0x8] sm:$0x1]
    %v848 = vunpack.c.l.b16 %v844
    %v849 = vpack.c.b16 %v655, %v848
    %v850 = vrot.slane %v849, 1
    %v851 = vrot.slane %v672, 1
    %v852 = vsel %vm344, %v850, %v851
    %v853 = vrot.slane %v673, 1
    %v854 = vsel %vm344, %v851, %v853
    %v855 = vrot.slane %v674, 1
    %v856 = vsel %vm344, %v853, %v855
    %v857 = vrot.slane %v675, 1
    %v858 = vsel %vm344, %v855, %v857
    %v859 = vrot.slane %v676, 1
    %v860 = vsel %vm344, %v857, %v859
    %v861 = vrot.slane %v677, 1
    %v862 = vsel %vm344, %v859, %v861
    %v863 = vrot.slane %v678, 1
    %v864 = vsel %vm344, %v861, %v863
    %v865 = vrot.slane %v679, 1
    %v866 = vsel %vm344, %v863, %v865
    %v869 = vunpack.c.l.b16 %v845
    %v870 = vunpack.c.l.b16 %v846
    %v871 = vpack.c.b16 %v870, %v869
    %v873 = vshrl.u32 %v871, 16
    %v875 = vrot.slane %v873, 3
    %v876 = vshll.u32 %v871, 16
    %v878 = vrot.slane %v876, 4
    %v879 = vor.u32 %v875, %v878
    %v881 = vsel %vm189, %v852, 0
    %v884 = vsel %vm189, %v854, 0
    %v887 = vsel %vm189, %v856, 0
    %v890 = vsel %vm189, %v858, 0
    %v893 = vsel %vm189, %v860, 0
    %v896 = vsel %vm189, %v862, 0
    %v899 = vsel %vm189, %v864, 0
    %v902 = vsel %vm189, %v866, 0
    %v905 = vand.u32 %v879, %v217
    %907 = vmatpush.bf16.msra.mxu0 0
    %908 = vmatpush.bf16.msra.mxu0 0
    %909 = vmatpush.bf16.msra.mxu0 0
    %910 = vmatpush.bf16.msra.mxu0 0
    %911 = vmatpush.bf16.msra.mxu0 0
    %912 = vmatpush.bf16.msra.mxu0 0
    %913 = vmatpush.bf16.msra.mxu0 0
    %914 = vmatpush.bf16.msra.mxu0 %v905
    %915 = vmatmul.bf16.gmra.mxu0 %v881
    %v916 = vpop.f32.mrf.mxu0
    %v917 = vadd.f32 0.0, %v916
    %v918 = vpop.f32.mrf.mxu0
    %v919 = vadd.f32 0.0, %v918
    %920 = vmatmul.bf16.gmra.mxu0 %v884
    %v921 = vpop.f32.mrf.mxu0
    %v922 = vadd.f32 0.0, %v921
    %v923 = vpop.f32.mrf.mxu0
    %v924 = vadd.f32 0.0, %v923
    %925 = vmatmul.bf16.gmra.mxu0 %v887
    %v926 = vpop.f32.mrf.mxu0
    %v927 = vadd.f32 0.0, %v926
    %v928 = vpop.f32.mrf.mxu0
    %v929 = vadd.f32 0.0, %v928
    %930 = vmatmul.bf16.gmra.mxu0 %v890
    %v931 = vpop.f32.mrf.mxu0
    %v932 = vadd.f32 0.0, %v931
    %v933 = vpop.f32.mrf.mxu0
    %v934 = vadd.f32 0.0, %v933
    %935 = vmatmul.bf16.gmra.mxu0 %v893
    %v936 = vpop.f32.mrf.mxu0
    %v937 = vadd.f32 0.0, %v936
    %v938 = vpop.f32.mrf.mxu0
    %v939 = vadd.f32 0.0, %v938
    %940 = vmatmul.bf16.gmra.mxu0 %v896
    %v941 = vpop.f32.mrf.mxu0
    %v942 = vadd.f32 0.0, %v941
    %v943 = vpop.f32.mrf.mxu0
    %v944 = vadd.f32 0.0, %v943
    %945 = vmatmul.bf16.gmra.mxu0 %v899
    %v946 = vpop.f32.mrf.mxu0
    %v947 = vadd.f32 0.0, %v946
    %v948 = vpop.f32.mrf.mxu0
    %v949 = vadd.f32 0.0, %v948
    %950 = vmatmul.bf16.gmra.mxu0 %v902
    %v951 = vpop.f32.mrf.mxu0
    %v952 = vadd.f32 0.0, %v951
    %v953 = vpop.f32.mrf.mxu0
    %v954 = vadd.f32 0.0, %v953
    %955 = vdwg.mxu0
    %v956 = vadd.f32 %v828, %v917
    %v957 = vadd.f32 %v829, %v919
    %v958 = vadd.f32 %v830, %v922
    %v959 = vadd.f32 %v831, %v924
    %v960 = vadd.f32 %v832, %v927
    %v961 = vadd.f32 %v833, %v929
    %v962 = vadd.f32 %v834, %v932
    %v963 = vadd.f32 %v835, %v934
    %v964 = vadd.f32 %v836, %v937
    %v965 = vadd.f32 %v837, %v939
    %v966 = vadd.f32 %v838, %v942
    %v967 = vadd.f32 %v839, %v944
    %v968 = vadd.f32 %v840, %v947
    %v969 = vadd.f32 %v841, %v949
    %v970 = vadd.f32 %v842, %v952
    %v971 = vadd.f32 %v843, %v954
    %v972 = vld [vmem:[%s0 + $0x10] sm:$0xf]
    %v973 = vld [vmem:[%s0 + $0x14] sm:$0xf]
    %v974 = vld [vmem:[%s0 + $0x18] sm:$0xf]
    %v975 = vld [vmem:[%s0 + $0x1c] sm:$0xf]
    %v976 = vld [vmem:[%s0 + $0x20] sm:$0xf]
    %v977 = vld [vmem:[%s0 + $0x24] sm:$0xf]
    %v978 = vld [vmem:[%s0 + $0x28] sm:$0xf]
    %v979 = vld [vmem:[%s0 + $0x2c] sm:$0xf]
    %v980 = vld [vmem:[%s0 + $0x30] sm:$0xf]
    %v981 = vld [vmem:[%s0 + $0x34] sm:$0xf]
    %v982 = vld [vmem:[%s0 + $0x38] sm:$0xf]
    %v983 = vld [vmem:[%s0 + $0x3c] sm:$0xf]
    %v984 = vld [vmem:[%s0 + $0x40] sm:$0xf]
    %v985 = vld [vmem:[%s0 + $0x44] sm:$0xf]
    %v986 = vld [vmem:[%s0 + $0x48] sm:$0xf]
    %v987 = vld [vmem:[%s0 + $0x4c] sm:$0xf]
    %v988 = vld [vmem:[%s1 + $0x8] sm:$0x6]
    %v1005 = vunpack.c.l.b16 %v972
    %v1006 = vunpack.c.l.b16 %v973
    %v1007 = vunpack.c.l.b16 %v974
    %v1008 = vunpack.c.l.b16 %v975
    %v1009 = vunpack.c.l.b16 %v976
    %v1010 = vunpack.c.l.b16 %v977
    %v1011 = vunpack.c.l.b16 %v978
    %v1012 = vunpack.c.l.b16 %v979
    %v1013 = vunpack.c.l.b16 %v980
    %v1014 = vunpack.c.l.b16 %v981
    %v1015 = vunpack.c.l.b16 %v982
    %v1016 = vunpack.c.l.b16 %v983
    %v1017 = vunpack.c.l.b16 %v984
    %v1018 = vunpack.c.l.b16 %v985
    %v1019 = vunpack.c.l.b16 %v986
    %v1020 = vunpack.c.l.b16 %v987
    %v1021 = vpack.c.b16 %v1006, %v1005
    %v1022 = vpack.c.b16 %v1008, %v1007
    %v1023 = vpack.c.b16 %v1010, %v1009
    %v1024 = vpack.c.b16 %v1012, %v1011
    %v1025 = vpack.c.b16 %v1014, %v1013
    %v1026 = vpack.c.b16 %v1016, %v1015
    %v1027 = vpack.c.b16 %v1018, %v1017
    %v1028 = vpack.c.b16 %v1020, %v1019
    %v1030 = vunpack.c.l.b16 %v988
    %v1031 = vpack.c.b16 %v1030, %v1030
    %v1032 = vrot.slane %v1031, 1
    %v1034 = vsel %vm189, %v1021, 0
    %v1037 = vsel %vm189, %v1022, 0
    %v1040 = vsel %vm189, %v1023, 0
    %v1043 = vsel %vm189, %v1024, 0
    %v1046 = vsel %vm189, %v1025, 0
    %v1049 = vsel %vm189, %v1026, 0
    %v1052 = vsel %vm189, %v1027, 0
    %v1055 = vsel %vm189, %v1028, 0
    %v1058 = vand.u32 %v1032, %v217
    %1060 = vmatpush.bf16.msra.mxu0 0
    %1061 = vmatpush.bf16.msra.mxu0 0
    %1062 = vmatpush.bf16.msra.mxu0 0
    %1063 = vmatpush.bf16.msra.mxu0 0
    %1064 = vmatpush.bf16.msra.mxu0 0
    %1065 = vmatpush.bf16.msra.mxu0 0
    %1066 = vmatpush.bf16.msra.mxu0 0
    %1067 = vmatpush.bf16.msra.mxu0 %v1058
    %1068 = vmatmul.bf16.gmra.mxu0 %v1034
    %v1069 = vpop.f32.mrf.mxu0
    %v1070 = vadd.f32 0.0, %v1069
    %v1071 = vpop.f32.mrf.mxu0
    %v1072 = vadd.f32 0.0, %v1071
    %1073 = vmatmul.bf16.gmra.mxu0 %v1037
    %v1074 = vpop.f32.mrf.mxu0
    %v1075 = vadd.f32 0.0, %v1074
    %v1076 = vpop.f32.mrf.mxu0
    %v1077 = vadd.f32 0.0, %v1076
    %1078 = vmatmul.bf16.gmra.mxu0 %v1040
    %v1079 = vpop.f32.mrf.mxu0
    %v1080 = vadd.f32 0.0, %v1079
    %v1081 = vpop.f32.mrf.mxu0
    %v1082 = vadd.f32 0.0, %v1081
    %1083 = vmatmul.bf16.gmra.mxu0 %v1043
    %v1084 = vpop.f32.mrf.mxu0
    %v1085 = vadd.f32 0.0, %v1084
    %v1086 = vpop.f32.mrf.mxu0
    %v1087 = vadd.f32 0.0, %v1086
    %1088 = vmatmul.bf16.gmra.mxu0 %v1046
    %v1089 = vpop.f32.mrf.mxu0
    %v1090 = vadd.f32 0.0, %v1089
    %v1091 = vpop.f32.mrf.mxu0
    %v1092 = vadd.f32 0.0, %v1091
    %1093 = vmatmul.bf16.gmra.mxu0 %v1049
    %v1094 = vpop.f32.mrf.mxu0
    %v1095 = vadd.f32 0.0, %v1094
    %v1096 = vpop.f32.mrf.mxu0
    %v1097 = vadd.f32 0.0, %v1096
    %1098 = vmatmul.bf16.gmra.mxu0 %v1052
    %v1099 = vpop.f32.mrf.mxu0
    %v1100 = vadd.f32 0.0, %v1099
    %v1101 = vpop.f32.mrf.mxu0
    %v1102 = vadd.f32 0.0, %v1101
    %1103 = vmatmul.bf16.gmra.mxu0 %v1055
    %v1104 = vpop.f32.mrf.mxu0
    %v1105 = vadd.f32 0.0, %v1104
    %v1106 = vpop.f32.mrf.mxu0
    %v1107 = vadd.f32 0.0, %v1106
    %1108 = vdwg.mxu0
    %v1109 = vadd.f32 %v956, %v1070
    %v1110 = vadd.f32 %v957, %v1072
    %v1111 = vadd.f32 %v958, %v1075
    %v1112 = vadd.f32 %v959, %v1077
    %v1113 = vadd.f32 %v960, %v1080
    %v1114 = vadd.f32 %v961, %v1082
    %v1115 = vadd.f32 %v962, %v1085
    %v1116 = vadd.f32 %v963, %v1087
    %v1117 = vadd.f32 %v964, %v1090
    %v1118 = vadd.f32 %v965, %v1092
    %v1119 = vadd.f32 %v966, %v1095
    %v1120 = vadd.f32 %v967, %v1097
    %v1121 = vadd.f32 %v968, %v1100
    %v1122 = vadd.f32 %v969, %v1102
    %v1123 = vadd.f32 %v970, %v1105
    %v1124 = vadd.f32 %v971, %v1107
    %v1125 = vld [vmem:[%s0 + $0x10] sm:$0xf]
    %v1126 = vld [vmem:[%s0 + $0x14] sm:$0xf]
    %v1127 = vld [vmem:[%s0 + $0x18] sm:$0xf]
    %v1128 = vld [vmem:[%s0 + $0x1c] sm:$0xf]
    %v1129 = vld [vmem:[%s0 + $0x20] sm:$0xf]
    %v1130 = vld [vmem:[%s0 + $0x24] sm:$0xf]
    %v1131 = vld [vmem:[%s0 + $0x28] sm:$0xf]
    %v1132 = vld [vmem:[%s0 + $0x2c] sm:$0xf]
    %v1133 = vld [vmem:[%s0 + $0x30] sm:$0xf]
    %v1134 = vld [vmem:[%s0 + $0x34] sm:$0xf]
    %v1135 = vld [vmem:[%s0 + $0x38] sm:$0xf]
    %v1136 = vld [vmem:[%s0 + $0x3c] sm:$0xf]
    %v1137 = vld [vmem:[%s0 + $0x40] sm:$0xf]
    %v1138 = vld [vmem:[%s0 + $0x44] sm:$0xf]
    %v1139 = vld [vmem:[%s0 + $0x48] sm:$0xf]
    %v1140 = vld [vmem:[%s0 + $0x4c] sm:$0xf]
    %v1141 = vld [vmem:[%s0 + $0x50] sm:$0x1]
    %v1142 = vld [vmem:[%s1 + $0x8] sm:$0xc]
    %v1160 = vunpack.c.l.b16 %v1125
    %v1161 = vunpack.c.l.b16 %v1126
    %v1162 = vunpack.c.l.b16 %v1127
    %v1163 = vunpack.c.l.b16 %v1128
    %v1164 = vunpack.c.l.b16 %v1129
    %v1165 = vunpack.c.l.b16 %v1130
    %v1166 = vunpack.c.l.b16 %v1131
    %v1167 = vunpack.c.l.b16 %v1132
    %v1168 = vunpack.c.l.b16 %v1133
    %v1169 = vunpack.c.l.b16 %v1134
    %v1170 = vunpack.c.l.b16 %v1135
    %v1171 = vunpack.c.l.b16 %v1136
    %v1172 = vunpack.c.l.b16 %v1137
    %v1173 = vunpack.c.l.b16 %v1138
    %v1174 = vunpack.c.l.b16 %v1139
    %v1175 = vunpack.c.l.b16 %v1140
    %v1176 = vunpack.c.l.b16 %v1141
    %v1177 = vpack.c.b16 %v1161, %v1160
    %v1178 = vpack.c.b16 %v1163, %v1162
    %v1179 = vpack.c.b16 %v1165, %v1164
    %v1180 = vpack.c.b16 %v1167, %v1166
    %v1181 = vpack.c.b16 %v1169, %v1168
    %v1182 = vpack.c.b16 %v1171, %v1170
    %v1183 = vpack.c.b16 %v1173, %v1172
    %v1184 = vpack.c.b16 %v1175, %v1174
    %v1185 = vpack.c.b16 %v1176, %v1176
    %v1187 = vshrl.u32 %v1177, 16
    %v1189 = vshll.u32 %v1177, 16
    %v1191 = vrot.slane %v1189, 1
    %v1192 = vor.u32 %v1187, %v1191
    %v1194 = vshll.u32 %v1178, 16
    %v1196 = vrot.slane %v1194, 1
    %v1197 = vsel %vm109, %v1192, %v1196
    %v1198 = vshrl.u32 %v1178, 16
    %v1200 = vor.u32 %v1198, %v1196
    %v1202 = vshll.u32 %v1179, 16
    %v1204 = vrot.slane %v1202, 1
    %v1205 = vsel %vm109, %v1200, %v1204
    %v1206 = vshrl.u32 %v1179, 16
    %v1208 = vor.u32 %v1206, %v1204
    %v1210 = vshll.u32 %v1180, 16
    %v1212 = vrot.slane %v1210, 1
    %v1213 = vsel %vm109, %v1208, %v1212
    %v1214 = vshrl.u32 %v1180, 16
    %v1216 = vor.u32 %v1214, %v1212
    %v1218 = vshll.u32 %v1181, 16
    %v1220 = vrot.slane %v1218, 1
    %v1221 = vsel %vm109, %v1216, %v1220
    %v1222 = vshrl.u32 %v1181, 16
    %v1224 = vor.u32 %v1222, %v1220
    %v1226 = vshll.u32 %v1182, 16
    %v1228 = vrot.slane %v1226, 1
    %v1229 = vsel %vm109, %v1224, %v1228
    %v1230 = vshrl.u32 %v1182, 16
    %v1232 = vor.u32 %v1230, %v1228
    %v1234 = vshll.u32 %v1183, 16
    %v1236 = vrot.slane %v1234, 1
    %v1237 = vsel %vm109, %v1232, %v1236
    %v1238 = vshrl.u32 %v1183, 16
    %v1240 = vor.u32 %v1238, %v1236
    %v1242 = vshll.u32 %v1184, 16
    %v1244 = vrot.slane %v1242, 1
    %v1245 = vsel %vm109, %v1240, %v1244
    %v1246 = vshrl.u32 %v1184, 16
    %v1248 = vor.u32 %v1246, %v1244
    %v1250 = vshll.u32 %v1185, 16
    %v1252 = vrot.slane %v1250, 1
    %v1253 = vsel %vm109, %v1248, %v1252
    %v1255 = vunpack.c.l.b16 %v1142
    %v1256 = vpack.c.b16 %v1255, %v1255
    %v1258 = vshrl.u32 %v1256, 16
    %v1260 = vrot.slane %v1258, 2
    %v1261 = vshll.u32 %v1256, 16
    %v1263 = vrot.slane %v1261, 3
    %v1264 = vor.u32 %v1260, %v1263
    %v1266 = vsel %vm189, %v1197, 0
    %v1269 = vsel %vm189, %v1205, 0
    %v1272 = vsel %vm189, %v1213, 0
    %v1275 = vsel %vm189, %v1221, 0
    %v1278 = vsel %vm189, %v1229, 0
    %v1281 = vsel %vm189, %v1237, 0
    %v1284 = vsel %vm189, %v1245, 0
    %v1287 = vsel %vm189, %v1253, 0
    %v1290 = vand.u32 %v1264, %v217
    %1292 = vmatpush.bf16.msra.mxu0 0
    %1293 = vmatpush.bf16.msra.mxu0 0
    %1294 = vmatpush.bf16.msra.mxu0 0
    %1295 = vmatpush.bf16.msra.mxu0 0
    %1296 = vmatpush.bf16.msra.mxu0 0
    %1297 = vmatpush.bf16.msra.mxu0 0
    %1298 = vmatpush.bf16.msra.mxu0 0
    %1299 = vmatpush.bf16.msra.mxu0 %v1290
    %1300 = vmatmul.bf16.gmra.mxu0 %v1266
    %v1301 = vpop.f32.mrf.mxu0
    %v1302 = vadd.f32 0.0, %v1301
    %v1303 = vpop.f32.mrf.mxu0
    %v1304 = vadd.f32 0.0, %v1303
    %1305 = vmatmul.bf16.gmra.mxu0 %v1269
    %v1306 = vpop.f32.mrf.mxu0
    %v1307 = vadd.f32 0.0, %v1306
    %v1308 = vpop.f32.mrf.mxu0
    %v1309 = vadd.f32 0.0, %v1308
    %1310 = vmatmul.bf16.gmra.mxu0 %v1272
    %v1311 = vpop.f32.mrf.mxu0
    %v1312 = vadd.f32 0.0, %v1311
    %v1313 = vpop.f32.mrf.mxu0
    %v1314 = vadd.f32 0.0, %v1313
    %1315 = vmatmul.bf16.gmra.mxu0 %v1275
    %v1316 = vpop.f32.mrf.mxu0
    %v1317 = vadd.f32 0.0, %v1316
    %v1318 = vpop.f32.mrf.mxu0
    %v1319 = vadd.f32 0.0, %v1318
    %1320 = vmatmul.bf16.gmra.mxu0 %v1278
    %v1321 = vpop.f32.mrf.mxu0
    %v1322 = vadd.f32 0.0, %v1321
    %v1323 = vpop.f32.mrf.mxu0
    %v1324 = vadd.f32 0.0, %v1323
    %1325 = vmatmul.bf16.gmra.mxu0 %v1281
    %v1326 = vpop.f32.mrf.mxu0
    %v1327 = vadd.f32 0.0, %v1326
    %v1328 = vpop.f32.mrf.mxu0
    %v1329 = vadd.f32 0.0, %v1328
    %1330 = vmatmul.bf16.gmra.mxu0 %v1284
    %v1331 = vpop.f32.mrf.mxu0
    %v1332 = vadd.f32 0.0, %v1331
    %v1333 = vpop.f32.mrf.mxu0
    %v1334 = vadd.f32 0.0, %v1333
    %1335 = vmatmul.bf16.gmra.mxu0 %v1287
    %v1336 = vpop.f32.mrf.mxu0
    %v1337 = vadd.f32 0.0, %v1336
    %v1338 = vpop.f32.mrf.mxu0
    %v1339 = vadd.f32 0.0, %v1338
    %1340 = vdwg.mxu0
    %v1341 = vadd.f32 %v1109, %v1302
    %v1342 = vadd.f32 %v1110, %v1304
    %v1343 = vadd.f32 %v1111, %v1307
    %v1344 = vadd.f32 %v1112, %v1309
    %v1345 = vadd.f32 %v1113, %v1312
    %v1346 = vadd.f32 %v1114, %v1314
    %v1347 = vadd.f32 %v1115, %v1317
    %v1348 = vadd.f32 %v1116, %v1319
    %v1349 = vadd.f32 %v1117, %v1322
    %v1350 = vadd.f32 %v1118, %v1324
    %v1351 = vadd.f32 %v1119, %v1327
    %v1352 = vadd.f32 %v1120, %v1329
    %v1353 = vadd.f32 %v1121, %v1332
    %v1354 = vadd.f32 %v1122, %v1334
    %v1355 = vadd.f32 %v1123, %v1337
    %v1356 = vadd.f32 %v1124, %v1339
    %v1357 = vld [vmem:[%s0 + $0x10] sm:$0xe]
    %v1358 = vld [vmem:[%s1 + $0xc] sm:$0x3]
    %v1360 = vunpack.c.l.b16 %v1357
    %v1361 = vpack.c.b16 %v1161, %v1360
    %v1362 = vrot.slane %v1361, 1
    %v1363 = vrot.slane %v1178, 1
    %v1364 = vsel %vm344, %v1362, %v1363
    %v1365 = vrot.slane %v1179, 1
    %v1366 = vsel %vm344, %v1363, %v1365
    %v1367 = vrot.slane %v1180, 1
    %v1368 = vsel %vm344, %v1365, %v1367
    %v1369 = vrot.slane %v1181, 1
    %v1370 = vsel %vm344, %v1367, %v1369
    %v1371 = vrot.slane %v1182, 1
    %v1372 = vsel %vm344, %v1369, %v1371
    %v1373 = vrot.slane %v1183, 1
    %v1374 = vsel %vm344, %v1371, %v1373
    %v1375 = vrot.slane %v1184, 1
    %v1376 = vsel %vm344, %v1373, %v1375
    %v1377 = vrot.slane %v1185, 1
    %v1378 = vsel %vm344, %v1375, %v1377
    %v1380 = vsel %vm189, %v1364, 0
    %v1383 = vsel %vm189, %v1366, 0
    %v1386 = vsel %vm189, %v1368, 0
    %v1389 = vsel %vm189, %v1370, 0
    %v1392 = vsel %vm189, %v1372, 0
    %v1395 = vsel %vm189, %v1374, 0
    %v1398 = vsel %vm189, %v1376, 0
    %v1401 = vsel %vm189, %v1378, 0
    %v1404 = vand.u32 %v1358, %v217
    %1406 = vmatpush.bf16.msra.mxu0 0
    %1407 = vmatpush.bf16.msra.mxu0 0
    %1408 = vmatpush.bf16.msra.mxu0 0
    %1409 = vmatpush.bf16.msra.mxu0 0
    %1410 = vmatpush.bf16.msra.mxu0 0
    %1411 = vmatpush.bf16.msra.mxu0 0
    %1412 = vmatpush.bf16.msra.mxu0 0
    %1413 = vmatpush.bf16.msra.mxu0 %v1404
    %1414 = vmatmul.bf16.gmra.mxu0 %v1380
    %v1415 = vpop.f32.mrf.mxu0
    %v1416 = vadd.f32 0.0, %v1415
    %v1417 = vpop.f32.mrf.mxu0
    %v1418 = vadd.f32 0.0, %v1417
    %1419 = vmatmul.bf16.gmra.mxu0 %v1383
    %v1420 = vpop.f32.mrf.mxu0
    %v1421 = vadd.f32 0.0, %v1420
    %v1422 = vpop.f32.mrf.mxu0
    %v1423 = vadd.f32 0.0, %v1422
    %1424 = vmatmul.bf16.gmra.mxu0 %v1386
    %v1425 = vpop.f32.mrf.mxu0
    %v1426 = vadd.f32 0.0, %v1425
    %v1427 = vpop.f32.mrf.mxu0
    %v1428 = vadd.f32 0.0, %v1427
    %1429 = vmatmul.bf16.gmra.mxu0 %v1389
    %v1430 = vpop.f32.mrf.mxu0
    %v1431 = vadd.f32 0.0, %v1430
    %v1432 = vpop.f32.mrf.mxu0
    %v1433 = vadd.f32 0.0, %v1432
    %1434 = vmatmul.bf16.gmra.mxu0 %v1392
    %v1435 = vpop.f32.mrf.mxu0
    %v1436 = vadd.f32 0.0, %v1435
    %v1437 = vpop.f32.mrf.mxu0
    %v1438 = vadd.f32 0.0, %v1437
    %1439 = vmatmul.bf16.gmra.mxu0 %v1395
    %v1440 = vpop.f32.mrf.mxu0
    %v1441 = vadd.f32 0.0, %v1440
    %v1442 = vpop.f32.mrf.mxu0
    %v1443 = vadd.f32 0.0, %v1442
    %1444 = vmatmul.bf16.gmra.mxu0 %v1398
    %v1445 = vpop.f32.mrf.mxu0
    %v1446 = vadd.f32 0.0, %v1445
    %v1447 = vpop.f32.mrf.mxu0
    %v1448 = vadd.f32 0.0, %v1447
    %1449 = vmatmul.bf16.gmra.mxu0 %v1401
    %v1450 = vpop.f32.mrf.mxu0
    %v1451 = vadd.f32 0.0, %v1450
    %v1452 = vpop.f32.mrf.mxu0
    %v1453 = vadd.f32 0.0, %v1452
    %1454 = vdwg.mxu0
    %v1455 = vadd.f32 %v1341, %v1416
    %v1456 = vadd.f32 %v1342, %v1418
    %v1457 = vadd.f32 %v1343, %v1421
    %v1458 = vadd.f32 %v1344, %v1423
    %v1459 = vadd.f32 %v1345, %v1426
    %v1460 = vadd.f32 %v1346, %v1428
    %v1461 = vadd.f32 %v1347, %v1431
    %v1462 = vadd.f32 %v1348, %v1433
    %v1463 = vadd.f32 %v1349, %v1436
    %v1464 = vadd.f32 %v1350, %v1438
    %v1465 = vadd.f32 %v1351, %v1441
    %v1466 = vadd.f32 %v1352, %v1443
    %v1467 = vadd.f32 %v1353, %v1446
    %v1468 = vadd.f32 %v1354, %v1448
    %v1469 = vadd.f32 %v1355, %v1451
    %v1470 = vadd.f32 %v1356, %v1453
    %v1472 = vperm.slane %v45, 0
    %v1474 = vadd.f32 %v1455, %v1472
    %v1475 = vadd.f32 %v1456, %v1472
    %v1476 = vadd.f32 %v1457, %v1472
    %v1477 = vadd.f32 %v1458, %v1472
    %v1478 = vadd.f32 %v1459, %v1472
    %v1479 = vadd.f32 %v1460, %v1472
    %v1480 = vadd.f32 %v1461, %v1472
    %v1481 = vadd.f32 %v1462, %v1472
    %v1482 = vadd.f32 %v1463, %v1472
    %v1483 = vadd.f32 %v1464, %v1472
    %v1484 = vadd.f32 %v1465, %v1472
    %v1485 = vadd.f32 %v1466, %v1472
    %v1486 = vadd.f32 %v1467, %v1472
    %v1487 = vadd.f32 %v1468, %v1472
    %v1488 = vadd.f32 %v1469, %v1472
    %v1489 = vadd.f32 %v1470, %v1472
    %v1490 = vmax.f32 %v1474, 0.0
    %v1491 = vmax.f32 %v1475, 0.0
    %v1492 = vmax.f32 %v1476, 0.0
    %v1493 = vmax.f32 %v1477, 0.0
    %v1494 = vmax.f32 %v1478, 0.0
    %v1495 = vmax.f32 %v1479, 0.0
    %v1496 = vmax.f32 %v1480, 0.0
    %v1497 = vmax.f32 %v1481, 0.0
    %v1498 = vmax.f32 %v1482, 0.0
    %v1499 = vmax.f32 %v1483, 0.0
    %v1500 = vmax.f32 %v1484, 0.0
    %v1501 = vmax.f32 %v1485, 0.0
    %v1502 = vmax.f32 %v1486, 0.0
    %v1503 = vmax.f32 %v1487, 0.0
    %v1504 = vmax.f32 %v1488, 0.0
    %v1505 = vmax.f32 %v1489, 0.0
    %v1506 = vpack.c.bf16 %v1490, %v1490
    %v1507 = vpack.c.bf16 %v1491, %v1491
    %v1508 = vpack.c.bf16 %v1492, %v1492
    %v1509 = vpack.c.bf16 %v1493, %v1493
    %v1510 = vpack.c.bf16 %v1494, %v1494
    %v1511 = vpack.c.bf16 %v1495, %v1495
    %v1512 = vpack.c.bf16 %v1496, %v1496
    %v1513 = vpack.c.bf16 %v1497, %v1497
    %v1514 = vpack.c.bf16 %v1498, %v1498
    %v1515 = vpack.c.bf16 %v1499, %v1499
    %v1516 = vpack.c.bf16 %v1500, %v1500
    %v1517 = vpack.c.bf16 %v1501, %v1501
    %v1518 = vpack.c.bf16 %v1502, %v1502
    %v1519 = vpack.c.bf16 %v1503, %v1503
    %v1520 = vpack.c.bf16 %v1504, %v1504
    %v1521 = vpack.c.bf16 %v1505, %v1505
    %vm1522 = vcmask 125952
    %1523 = vst.msk [vmem:[#allocation2] sm:$0xf] %vm1522, %v1506
    %1524 = vst.msk [vmem:[#allocation2 + $0x4] sm:$0xf] %vm1522, %v1507
    %1525 = vst.msk [vmem:[#allocation2 + $0x8] sm:$0xf] %vm1522, %v1508
    %1526 = vst.msk [vmem:[#allocation2 + $0xc] sm:$0xf] %vm1522, %v1509
    %1527 = vst.msk [vmem:[#allocation2 + $0x10] sm:$0xf] %vm1522, %v1510
    %1528 = vst.msk [vmem:[#allocation2 + $0x14] sm:$0xf] %vm1522, %v1511
    %1529 = vst.msk [vmem:[#allocation2 + $0x18] sm:$0xf] %vm1522, %v1512
    %1530 = vst.msk [vmem:[#allocation2 + $0x1c] sm:$0xf] %vm1522, %v1513
    %1531 = vst.msk [vmem:[#allocation2 + $0x20] sm:$0xf] %vm1522, %v1514
    %1532 = vst.msk [vmem:[#allocation2 + $0x24] sm:$0xf] %vm1522, %v1515
    %1533 = vst.msk [vmem:[#allocation2 + $0x28] sm:$0xf] %vm1522, %v1516
    %1534 = vst.msk [vmem:[#allocation2 + $0x2c] sm:$0xf] %vm1522, %v1517
    %1535 = vst.msk [vmem:[#allocation2 + $0x30] sm:$0xf] %vm1522, %v1518
    %1536 = vst.msk [vmem:[#allocation2 + $0x34] sm:$0xf] %vm1522, %v1519
    %1537 = vst.msk [vmem:[#allocation2 + $0x38] sm:$0xf] %vm1522, %v1520
    %1538 = vst.msk [vmem:[#allocation2 + $0x3c] sm:$0xf] %vm1522, %v1521
    %v1539 = vld [vmem:[%s0 + $0x40] sm:$0xf]
    %v1540 = vld [vmem:[%s0 + $0x44] sm:$0xf]
    %v1541 = vld [vmem:[%s0 + $0x48] sm:$0xf]
    %v1542 = vld [vmem:[%s0 + $0x4c] sm:$0xf]
    %v1543 = vld [vmem:[%s0 + $0x50] sm:$0xf]
    %v1544 = vld [vmem:[%s0 + $0x54] sm:$0xf]
    %v1545 = vld [vmem:[%s0 + $0x58] sm:$0xf]
    %v1546 = vld [vmem:[%s0 + $0x5c] sm:$0xf]
    %v1547 = vld [vmem:[%s0 + $0x60] sm:$0xf]
    %v1548 = vld [vmem:[%s0 + $0x64] sm:$0xf]
    %v1549 = vld [vmem:[%s0 + $0x68] sm:$0xf]
    %v1550 = vld [vmem:[%s0 + $0x6c] sm:$0xf]
    %v1551 = vld [vmem:[%s0 + $0x70] sm:$0xf]
    %v1552 = vld [vmem:[%s0 + $0x74] sm:$0xf]
    %v1553 = vld [vmem:[%s0 + $0x78] sm:$0xf]
    %v1554 = vld [vmem:[%s0 + $0x7c] sm:$0xf]
    %v1555 = vld [vmem:[%s1] sm:$0x3]
    %v1556 = vld [vmem:[%s0 + $0x80] sm:$0x1]
    %v1557 = vld [vmem:[%s1] sm:$0x6]
    %v1575 = vunpack.c.l.b16 %v1539
    %v1576 = vunpack.c.l.b16 %v1540
    %v1577 = vunpack.c.l.b16 %v1541
    %v1578 = vunpack.c.l.b16 %v1542
    %v1579 = vunpack.c.l.b16 %v1543
    %v1580 = vunpack.c.l.b16 %v1544
    %v1581 = vunpack.c.l.b16 %v1545
    %v1582 = vunpack.c.l.b16 %v1546
    %v1583 = vunpack.c.l.b16 %v1547
    %v1584 = vunpack.c.l.b16 %v1548
    %v1585 = vunpack.c.l.b16 %v1549
    %v1586 = vunpack.c.l.b16 %v1550
    %v1587 = vunpack.c.l.b16 %v1551
    %v1588 = vunpack.c.l.b16 %v1552
    %v1589 = vunpack.c.l.b16 %v1553
    %v1590 = vunpack.c.l.b16 %v1554
    %v1591 = vunpack.c.l.b16 %v1556
    %v1592 = vpack.c.b16 %v1576, %v1575
    %v1593 = vpack.c.b16 %v1578, %v1577
    %v1594 = vpack.c.b16 %v1580, %v1579
    %v1595 = vpack.c.b16 %v1582, %v1581
    %v1596 = vpack.c.b16 %v1584, %v1583
    %v1597 = vpack.c.b16 %v1586, %v1585
    %v1598 = vpack.c.b16 %v1588, %v1587
    %v1599 = vpack.c.b16 %v1590, %v1589
    %v1600 = vpack.c.b16 %v1591, %v1591
    %v1602 = vshrl.u32 %v1592, 16
    %v1604 = vshll.u32 %v1592, 16
    %v1606 = vrot.slane %v1604, 1
    %v1607 = vor.u32 %v1602, %v1606
    %v1609 = vshll.u32 %v1593, 16
    %v1611 = vrot.slane %v1609, 1
    %v1612 = vsel %vm109, %v1607, %v1611
    %v1613 = vshrl.u32 %v1593, 16
    %v1615 = vor.u32 %v1613, %v1611
    %v1617 = vshll.u32 %v1594, 16
    %v1619 = vrot.slane %v1617, 1
    %v1620 = vsel %vm109, %v1615, %v1619
    %v1621 = vshrl.u32 %v1594, 16
    %v1623 = vor.u32 %v1621, %v1619
    %v1625 = vshll.u32 %v1595, 16
    %v1627 = vrot.slane %v1625, 1
    %v1628 = vsel %vm109, %v1623, %v1627
    %v1629 = vshrl.u32 %v1595, 16
    %v1631 = vor.u32 %v1629, %v1627
    %v1633 = vshll.u32 %v1596, 16
    %v1635 = vrot.slane %v1633, 1
    %v1636 = vsel %vm109, %v1631, %v1635
    %v1637 = vshrl.u32 %v1596, 16
    %v1639 = vor.u32 %v1637, %v1635
    %v1641 = vshll.u32 %v1597, 16
    %v1643 = vrot.slane %v1641, 1
    %v1644 = vsel %vm109, %v1639, %v1643
    %v1645 = vshrl.u32 %v1597, 16
    %v1647 = vor.u32 %v1645, %v1643
    %v1649 = vshll.u32 %v1598, 16
    %v1651 = vrot.slane %v1649, 1
    %v1652 = vsel %vm109, %v1647, %v1651
    %v1653 = vshrl.u32 %v1598, 16
    %v1655 = vor.u32 %v1653, %v1651
    %v1657 = vshll.u32 %v1599, 16
    %v1659 = vrot.slane %v1657, 1
    %v1660 = vsel %vm109, %v1655, %v1659
    %v1661 = vshrl.u32 %v1599, 16
    %v1663 = vor.u32 %v1661, %v1659
    %v1665 = vshll.u32 %v1600, 16
    %v1667 = vrot.slane %v1665, 1
    %v1668 = vsel %vm109, %v1663, %v1667
    %v1670 = vunpack.c.l.b16 %v1557
    %v1671 = vpack.c.b16 %v1670, %v1670
    %v1673 = vshrl.u32 %v1671, 16
    %v1675 = vrot.slane %v1673, 1
    %v1676 = vshll.u32 %v1671, 16
    %v1678 = vrot.slane %v1676, 2
    %v1679 = vor.u32 %v1675, %v1678
    %v1681 = vsel %vm189, %v1612, 0
    %v1684 = vsel %vm189, %v1620, 0
    %v1687 = vsel %vm189, %v1628, 0
    %v1690 = vsel %vm189, %v1636, 0
    %v1693 = vsel %vm189, %v1644, 0
    %v1696 = vsel %vm189, %v1652, 0
    %v1699 = vsel %vm189, %v1660, 0
    %v1702 = vsel %vm189, %v1668, 0
    %v1705 = vand.u32 %v1679, %v217
    %1707 = vmatpush.bf16.msra.mxu0 0
    %1708 = vmatpush.bf16.msra.mxu0 0
    %1709 = vmatpush.bf16.msra.mxu0 0
    %1710 = vmatpush.bf16.msra.mxu0 0
    %1711 = vmatpush.bf16.msra.mxu0 0
    %1712 = vmatpush.bf16.msra.mxu0 0
    %1713 = vmatpush.bf16.msra.mxu0 0
    %1714 = vmatpush.bf16.msra.mxu0 %v1705
    %1715 = vmatmul.bf16.gmra.mxu0 %v1681
    %v1716 = vpop.f32.mrf.mxu0
    %v1717 = vadd.f32 0.0, %v1716
    %v1718 = vpop.f32.mrf.mxu0
    %v1719 = vadd.f32 0.0, %v1718
    %1720 = vmatmul.bf16.gmra.mxu0 %v1684
    %v1721 = vpop.f32.mrf.mxu0
    %v1722 = vadd.f32 0.0, %v1721
    %v1723 = vpop.f32.mrf.mxu0
    %v1724 = vadd.f32 0.0, %v1723
    %1725 = vmatmul.bf16.gmra.mxu0 %v1687
    %v1726 = vpop.f32.mrf.mxu0
    %v1727 = vadd.f32 0.0, %v1726
    %v1728 = vpop.f32.mrf.mxu0
    %v1729 = vadd.f32 0.0, %v1728
    %1730 = vmatmul.bf16.gmra.mxu0 %v1690
    %v1731 = vpop.f32.mrf.mxu0
    %v1732 = vadd.f32 0.0, %v1731
    %v1733 = vpop.f32.mrf.mxu0
    %v1734 = vadd.f32 0.0, %v1733
    %1735 = vmatmul.bf16.gmra.mxu0 %v1693
    %v1736 = vpop.f32.mrf.mxu0
    %v1737 = vadd.f32 0.0, %v1736
    %v1738 = vpop.f32.mrf.mxu0
    %v1739 = vadd.f32 0.0, %v1738
    %1740 = vmatmul.bf16.gmra.mxu0 %v1696
    %v1741 = vpop.f32.mrf.mxu0
    %v1742 = vadd.f32 0.0, %v1741
    %v1743 = vpop.f32.mrf.mxu0
    %v1744 = vadd.f32 0.0, %v1743
    %1745 = vmatmul.bf16.gmra.mxu0 %v1699
    %v1746 = vpop.f32.mrf.mxu0
    %v1747 = vadd.f32 0.0, %v1746
    %v1748 = vpop.f32.mrf.mxu0
    %v1749 = vadd.f32 0.0, %v1748
    %1750 = vmatmul.bf16.gmra.mxu0 %v1702
    %v1751 = vpop.f32.mrf.mxu0
    %v1752 = vadd.f32 0.0, %v1751
    %v1753 = vpop.f32.mrf.mxu0
    %v1754 = vadd.f32 0.0, %v1753
    %1755 = vdwg.mxu0
    %v1756 = vsel %vm189, %v1592, 0
    %v1758 = vsel %vm189, %v1593, 0
    %v1760 = vsel %vm189, %v1594, 0
    %v1762 = vsel %vm189, %v1595, 0
    %v1764 = vsel %vm189, %v1596, 0
    %v1766 = vsel %vm189, %v1597, 0
    %v1768 = vsel %vm189, %v1598, 0
    %v1770 = vsel %vm189, %v1599, 0
    %v1773 = vand.u32 %v1555, %v217
    %1775 = vmatpush.bf16.msra.mxu0 0
    %1776 = vmatpush.bf16.msra.mxu0 0
    %1777 = vmatpush.bf16.msra.mxu0 0
    %1778 = vmatpush.bf16.msra.mxu0 0
    %1779 = vmatpush.bf16.msra.mxu0 0
    %1780 = vmatpush.bf16.msra.mxu0 0
    %1781 = vmatpush.bf16.msra.mxu0 0
    %1782 = vmatpush.bf16.msra.mxu0 %v1773
    %1783 = vmatmul.bf16.gmra.mxu0 %v1756
    %v1784 = vpop.f32.mrf.mxu0
    %v1785 = vadd.f32 %v1717, %v1784
    %v1786 = vpop.f32.mrf.mxu0
    %v1787 = vadd.f32 %v1719, %v1786
    %1788 = vmatmul.bf16.gmra.mxu0 %v1758
    %v1789 = vpop.f32.mrf.mxu0
    %v1790 = vadd.f32 %v1722, %v1789
    %v1791 = vpop.f32.mrf.mxu0
    %v1792 = vadd.f32 %v1724, %v1791
    %1793 = vmatmul.bf16.gmra.mxu0 %v1760
    %v1794 = vpop.f32.mrf.mxu0
    %v1795 = vadd.f32 %v1727, %v1794
    %v1796 = vpop.f32.mrf.mxu0
    %v1797 = vadd.f32 %v1729, %v1796
    %1798 = vmatmul.bf16.gmra.mxu0 %v1762
    %v1799 = vpop.f32.mrf.mxu0
    %v1800 = vadd.f32 %v1732, %v1799
    %v1801 = vpop.f32.mrf.mxu0
    %v1802 = vadd.f32 %v1734, %v1801
    %1803 = vmatmul.bf16.gmra.mxu0 %v1764
    %v1804 = vpop.f32.mrf.mxu0
    %v1805 = vadd.f32 %v1737, %v1804
    %v1806 = vpop.f32.mrf.mxu0
    %v1807 = vadd.f32 %v1739, %v1806
    %1808 = vmatmul.bf16.gmra.mxu0 %v1766
    %v1809 = vpop.f32.mrf.mxu0
    %v1810 = vadd.f32 %v1742, %v1809
    %v1811 = vpop.f32.mrf.mxu0
    %v1812 = vadd.f32 %v1744, %v1811
    %1813 = vmatmul.bf16.gmra.mxu0 %v1768
    %v1814 = vpop.f32.mrf.mxu0
    %v1815 = vadd.f32 %v1747, %v1814
    %v1816 = vpop.f32.mrf.mxu0
    %v1817 = vadd.f32 %v1749, %v1816
    %1818 = vmatmul.bf16.gmra.mxu0 %v1770
    %v1819 = vpop.f32.mrf.mxu0
    %v1820 = vadd.f32 %v1752, %v1819
    %v1821 = vpop.f32.mrf.mxu0
    %v1822 = vadd.f32 %v1754, %v1821
    %1823 = vdwg.mxu0
    %v1824 = vld [vmem:[%s0 + $0x40] sm:$0xe]
    %v1825 = vld [vmem:[%s1] sm:$0x8]
    %v1826 = vld [vmem:[%s1 + $0x4] sm:$0x1]
    %v1828 = vunpack.c.l.b16 %v1824
    %v1829 = vpack.c.b16 %v1576, %v1828
    %v1830 = vrot.slane %v1829, 1
    %v1831 = vrot.slane %v1593, 1
    %v1832 = vsel %vm344, %v1830, %v1831
    %v1833 = vrot.slane %v1594, 1
    %v1834 = vsel %vm344, %v1831, %v1833
    %v1835 = vrot.slane %v1595, 1
    %v1836 = vsel %vm344, %v1833, %v1835
    %v1837 = vrot.slane %v1596, 1
    %v1838 = vsel %vm344, %v1835, %v1837
    %v1839 = vrot.slane %v1597, 1
    %v1840 = vsel %vm344, %v1837, %v1839
    %v1841 = vrot.slane %v1598, 1
    %v1842 = vsel %vm344, %v1839, %v1841
    %v1843 = vrot.slane %v1599, 1
    %v1844 = vsel %vm344, %v1841, %v1843
    %v1845 = vrot.slane %v1600, 1
    %v1846 = vsel %vm344, %v1843, %v1845
    %v1849 = vunpack.c.l.b16 %v1825
    %v1850 = vunpack.c.l.b16 %v1826
    %v1851 = vpack.c.b16 %v1850, %v1849
    %v1852 = vrot.slane %v1851, 3
    %v1854 = vsel %vm189, %v1832, 0
    %v1857 = vsel %vm189, %v1834, 0
    %v1860 = vsel %vm189, %v1836, 0
    %v1863 = vsel %vm189, %v1838, 0
    %v1866 = vsel %vm189, %v1840, 0
    %v1869 = vsel %vm189, %v1842, 0
    %v1872 = vsel %vm189, %v1844, 0
    %v1875 = vsel %vm189, %v1846, 0
    %v1878 = vand.u32 %v1852, %v217
    %1880 = vmatpush.bf16.msra.mxu0 0
    %1881 = vmatpush.bf16.msra.mxu0 0
    %1882 = vmatpush.bf16.msra.mxu0 0
    %1883 = vmatpush.bf16.msra.mxu0 0
    %1884 = vmatpush.bf16.msra.mxu0 0
    %1885 = vmatpush.bf16.msra.mxu0 0
    %1886 = vmatpush.bf16.msra.mxu0 0
    %1887 = vmatpush.bf16.msra.mxu0 %v1878
    %1888 = vmatmul.bf16.gmra.mxu0 %v1854
    %v1889 = vpop.f32.mrf.mxu0
    %v1890 = vadd.f32 0.0, %v1889
    %v1891 = vpop.f32.mrf.mxu0
    %v1892 = vadd.f32 0.0, %v1891
    %1893 = vmatmul.bf16.gmra.mxu0 %v1857
    %v1894 = vpop.f32.mrf.mxu0
    %v1895 = vadd.f32 0.0, %v1894
    %v1896 = vpop.f32.mrf.mxu0
    %v1897 = vadd.f32 0.0, %v1896
    %1898 = vmatmul.bf16.gmra.mxu0 %v1860
    %v1899 = vpop.f32.mrf.mxu0
    %v1900 = vadd.f32 0.0, %v1899
    %v1901 = vpop.f32.mrf.mxu0
    %v1902 = vadd.f32 0.0, %v1901
    %1903 = vmatmul.bf16.gmra.mxu0 %v1863
    %v1904 = vpop.f32.mrf.mxu0
    %v1905 = vadd.f32 0.0, %v1904
    %v1906 = vpop.f32.mrf.mxu0
    %v1907 = vadd.f32 0.0, %v1906
    %1908 = vmatmul.bf16.gmra.mxu0 %v1866
    %v1909 = vpop.f32.mrf.mxu0
    %v1910 = vadd.f32 0.0, %v1909
    %v1911 = vpop.f32.mrf.mxu0
    %v1912 = vadd.f32 0.0, %v1911
    %1913 = vmatmul.bf16.gmra.mxu0 %v1869
    %v1914 = vpop.f32.mrf.mxu0
    %v1915 = vadd.f32 0.0, %v1914
    %v1916 = vpop.f32.mrf.mxu0
    %v1917 = vadd.f32 0.0, %v1916
    %1918 = vmatmul.bf16.gmra.mxu0 %v1872
    %v1919 = vpop.f32.mrf.mxu0
    %v1920 = vadd.f32 0.0, %v1919
    %v1921 = vpop.f32.mrf.mxu0
    %v1922 = vadd.f32 0.0, %v1921
    %1923 = vmatmul.bf16.gmra.mxu0 %v1875
    %v1924 = vpop.f32.mrf.mxu0
    %v1925 = vadd.f32 0.0, %v1924
    %v1926 = vpop.f32.mrf.mxu0
    %v1927 = vadd.f32 0.0, %v1926
    %1928 = vdwg.mxu0
    %v1929 = vadd.f32 %v1785, %v1890
    %v1930 = vadd.f32 %v1787, %v1892
    %v1931 = vadd.f32 %v1790, %v1895
    %v1932 = vadd.f32 %v1792, %v1897
    %v1933 = vadd.f32 %v1795, %v1900
    %v1934 = vadd.f32 %v1797, %v1902
    %v1935 = vadd.f32 %v1800, %v1905
    %v1936 = vadd.f32 %v1802, %v1907
    %v1937 = vadd.f32 %v1805, %v1910
    %v1938 = vadd.f32 %v1807, %v1912
    %v1939 = vadd.f32 %v1810, %v1915
    %v1940 = vadd.f32 %v1812, %v1917
    %v1941 = vadd.f32 %v1815, %v1920
    %v1942 = vadd.f32 %v1817, %v1922
    %v1943 = vadd.f32 %v1820, %v1925
    %v1944 = vadd.f32 %v1822, %v1927
    %v1945 = vld [vmem:[%s0 + $0x48] sm:$0xf]
    %v1946 = vld [vmem:[%s0 + $0x4c] sm:$0xf]
    %v1947 = vld [vmem:[%s0 + $0x50] sm:$0xf]
    %v1948 = vld [vmem:[%s0 + $0x54] sm:$0xf]
    %v1949 = vld [vmem:[%s0 + $0x58] sm:$0xf]
    %v1950 = vld [vmem:[%s0 + $0x5c] sm:$0xf]
    %v1951 = vld [vmem:[%s0 + $0x60] sm:$0xf]
    %v1952 = vld [vmem:[%s0 + $0x64] sm:$0xf]
    %v1953 = vld [vmem:[%s0 + $0x68] sm:$0xf]
    %v1954 = vld [vmem:[%s0 + $0x6c] sm:$0xf]
    %v1955 = vld [vmem:[%s0 + $0x70] sm:$0xf]
    %v1956 = vld [vmem:[%s0 + $0x74] sm:$0xf]
    %v1957 = vld [vmem:[%s0 + $0x78] sm:$0xf]
    %v1958 = vld [vmem:[%s0 + $0x7c] sm:$0xf]
    %v1959 = vld [vmem:[%s0 + $0x80] sm:$0xf]
    %v1960 = vld [vmem:[%s0 + $0x84] sm:$0xf]
    %v1961 = vld [vmem:[%s1 + $0x4] sm:$0x3]
    %v1978 = vunpack.c.l.b16 %v1945
    %v1979 = vunpack.c.l.b16 %v1946
    %v1980 = vunpack.c.l.b16 %v1947
    %v1981 = vunpack.c.l.b16 %v1948
    %v1982 = vunpack.c.l.b16 %v1949
    %v1983 = vunpack.c.l.b16 %v1950
    %v1984 = vunpack.c.l.b16 %v1951
    %v1985 = vunpack.c.l.b16 %v1952
    %v1986 = vunpack.c.l.b16 %v1953
    %v1987 = vunpack.c.l.b16 %v1954
    %v1988 = vunpack.c.l.b16 %v1955
    %v1989 = vunpack.c.l.b16 %v1956
    %v1990 = vunpack.c.l.b16 %v1957
    %v1991 = vunpack.c.l.b16 %v1958
    %v1992 = vunpack.c.l.b16 %v1959
    %v1993 = vunpack.c.l.b16 %v1960
    %v1994 = vpack.c.b16 %v1979, %v1978
    %v1995 = vpack.c.b16 %v1981, %v1980
    %v1996 = vpack.c.b16 %v1983, %v1982
    %v1997 = vpack.c.b16 %v1985, %v1984
    %v1998 = vpack.c.b16 %v1987, %v1986
    %v1999 = vpack.c.b16 %v1989, %v1988
    %v2000 = vpack.c.b16 %v1991, %v1990
    %v2001 = vpack.c.b16 %v1993, %v1992
    %v2003 = vunpack.c.l.b16 %v1961
    %v2004 = vpack.c.b16 %v2003, %v2003
    %v2006 = vshrl.u32 %v2004, 16
    %v2008 = vshll.u32 %v2004, 16
    %v2010 = vrot.slane %v2008, 1
    %v2011 = vor.u32 %v2006, %v2010
    %v2013 = vsel %vm189, %v1994, 0
    %v2016 = vsel %vm189, %v1995, 0
    %v2019 = vsel %vm189, %v1996, 0
    %v2022 = vsel %vm189, %v1997, 0
    %v2025 = vsel %vm189, %v1998, 0
    %v2028 = vsel %vm189, %v1999, 0
    %v2031 = vsel %vm189, %v2000, 0
    %v2034 = vsel %vm189, %v2001, 0
    %v2037 = vand.u32 %v2011, %v217
    %2039 = vmatpush.bf16.msra.mxu0 0
    %2040 = vmatpush.bf16.msra.mxu0 0
    %2041 = vmatpush.bf16.msra.mxu0 0
    %2042 = vmatpush.bf16.msra.mxu0 0
    %2043 = vmatpush.bf16.msra.mxu0 0
    %2044 = vmatpush.bf16.msra.mxu0 0
    %2045 = vmatpush.bf16.msra.mxu0 0
    %2046 = vmatpush.bf16.msra.mxu0 %v2037
    %2047 = vmatmul.bf16.gmra.mxu0 %v2013
    %v2048 = vpop.f32.mrf.mxu0
    %v2049 = vadd.f32 0.0, %v2048
    %v2050 = vpop.f32.mrf.mxu0
    %v2051 = vadd.f32 0.0, %v2050
    %2052 = vmatmul.bf16.gmra.mxu0 %v2016
    %v2053 = vpop.f32.mrf.mxu0
    %v2054 = vadd.f32 0.0, %v2053
    %v2055 = vpop.f32.mrf.mxu0
    %v2056 = vadd.f32 0.0, %v2055
    %2057 = vmatmul.bf16.gmra.mxu0 %v2019
    %v2058 = vpop.f32.mrf.mxu0
    %v2059 = vadd.f32 0.0, %v2058
    %v2060 = vpop.f32.mrf.mxu0
    %v2061 = vadd.f32 0.0, %v2060
    %2062 = vmatmul.bf16.gmra.mxu0 %v2022
    %v2063 = vpop.f32.mrf.mxu0
    %v2064 = vadd.f32 0.0, %v2063
    %v2065 = vpop.f32.mrf.mxu0
    %v2066 = vadd.f32 0.0, %v2065
    %2067 = vmatmul.bf16.gmra.mxu0 %v2025
    %v2068 = vpop.f32.mrf.mxu0
    %v2069 = vadd.f32 0.0, %v2068
    %v2070 = vpop.f32.mrf.mxu0
    %v2071 = vadd.f32 0.0, %v2070
    %2072 = vmatmul.bf16.gmra.mxu0 %v2028
    %v2073 = vpop.f32.mrf.mxu0
    %v2074 = vadd.f32 0.0, %v2073
    %v2075 = vpop.f32.mrf.mxu0
    %v2076 = vadd.f32 0.0, %v2075
    %2077 = vmatmul.bf16.gmra.mxu0 %v2031
    %v2078 = vpop.f32.mrf.mxu0
    %v2079 = vadd.f32 0.0, %v2078
    %v2080 = vpop.f32.mrf.mxu0
    %v2081 = vadd.f32 0.0, %v2080
    %2082 = vmatmul.bf16.gmra.mxu0 %v2034
    %v2083 = vpop.f32.mrf.mxu0
    %v2084 = vadd.f32 0.0, %v2083
    %v2085 = vpop.f32.mrf.mxu0
    %v2086 = vadd.f32 0.0, %v2085
    %2087 = vdwg.mxu0
    %v2088 = vadd.f32 %v1929, %v2049
    %v2089 = vadd.f32 %v1930, %v2051
    %v2090 = vadd.f32 %v1931, %v2054
    %v2091 = vadd.f32 %v1932, %v2056
    %v2092 = vadd.f32 %v1933, %v2059
    %v2093 = vadd.f32 %v1934, %v2061
    %v2094 = vadd.f32 %v1935, %v2064
    %v2095 = vadd.f32 %v1936, %v2066
    %v2096 = vadd.f32 %v1937, %v2069
    %v2097 = vadd.f32 %v1938, %v2071
    %v2098 = vadd.f32 %v1939, %v2074
    %v2099 = vadd.f32 %v1940, %v2076
    %v2100 = vadd.f32 %v1941, %v2079
    %v2101 = vadd.f32 %v1942, %v2081
    %v2102 = vadd.f32 %v1943, %v2084
    %v2103 = vadd.f32 %v1944, %v2086
    %v2104 = vld [vmem:[%s0 + $0x48] sm:$0xf]
    %v2105 = vld [vmem:[%s0 + $0x4c] sm:$0xf]
    %v2106 = vld [vmem:[%s0 + $0x50] sm:$0xf]
    %v2107 = vld [vmem:[%s0 + $0x54] sm:$0xf]
    %v2108 = vld [vmem:[%s0 + $0x58] sm:$0xf]
    %v2109 = vld [vmem:[%s0 + $0x5c] sm:$0xf]
    %v2110 = vld [vmem:[%s0 + $0x60] sm:$0xf]
    %v2111 = vld [vmem:[%s0 + $0x64] sm:$0xf]
    %v2112 = vld [vmem:[%s0 + $0x68] sm:$0xf]
    %v2113 = vld [vmem:[%s0 + $0x6c] sm:$0xf]
    %v2114 = vld [vmem:[%s0 + $0x70] sm:$0xf]
    %v2115 = vld [vmem:[%s0 + $0x74] sm:$0xf]
    %v2116 = vld [vmem:[%s0 + $0x78] sm:$0xf]
    %v2117 = vld [vmem:[%s0 + $0x7c] sm:$0xf]
    %v2118 = vld [vmem:[%s0 + $0x80] sm:$0xf]
    %v2119 = vld [vmem:[%s0 + $0x84] sm:$0xf]
    %v2120 = vld [vmem:[%s0 + $0x88] sm:$0x1]
    %v2121 = vld [vmem:[%s1 + $0x4] sm:$0xc]
    %v2139 = vunpack.c.l.b16 %v2104
    %v2140 = vunpack.c.l.b16 %v2105
    %v2141 = vunpack.c.l.b16 %v2106
    %v2142 = vunpack.c.l.b16 %v2107
    %v2143 = vunpack.c.l.b16 %v2108
    %v2144 = vunpack.c.l.b16 %v2109
    %v2145 = vunpack.c.l.b16 %v2110
    %v2146 = vunpack.c.l.b16 %v2111
    %v2147 = vunpack.c.l.b16 %v2112
    %v2148 = vunpack.c.l.b16 %v2113
    %v2149 = vunpack.c.l.b16 %v2114
    %v2150 = vunpack.c.l.b16 %v2115
    %v2151 = vunpack.c.l.b16 %v2116
    %v2152 = vunpack.c.l.b16 %v2117
    %v2153 = vunpack.c.l.b16 %v2118
    %v2154 = vunpack.c.l.b16 %v2119
    %v2155 = vunpack.c.l.b16 %v2120
    %v2156 = vpack.c.b16 %v2140, %v2139
    %v2157 = vpack.c.b16 %v2142, %v2141
    %v2158 = vpack.c.b16 %v2144, %v2143
    %v2159 = vpack.c.b16 %v2146, %v2145
    %v2160 = vpack.c.b16 %v2148, %v2147
    %v2161 = vpack.c.b16 %v2150, %v2149
    %v2162 = vpack.c.b16 %v2152, %v2151
    %v2163 = vpack.c.b16 %v2154, %v2153
    %v2164 = vpack.c.b16 %v2155, %v2155
    %v2166 = vshrl.u32 %v2156, 16
    %v2168 = vshll.u32 %v2156, 16
    %v2170 = vrot.slane %v2168, 1
    %v2171 = vor.u32 %v2166, %v2170
    %v2173 = vshll.u32 %v2157, 16
    %v2175 = vrot.slane %v2173, 1
    %v2176 = vsel %vm109, %v2171, %v2175
    %v2177 = vshrl.u32 %v2157, 16
    %v2179 = vor.u32 %v2177, %v2175
    %v2181 = vshll.u32 %v2158, 16
    %v2183 = vrot.slane %v2181, 1
    %v2184 = vsel %vm109, %v2179, %v2183
    %v2185 = vshrl.u32 %v2158, 16
    %v2187 = vor.u32 %v2185, %v2183
    %v2189 = vshll.u32 %v2159, 16
    %v2191 = vrot.slane %v2189, 1
    %v2192 = vsel %vm109, %v2187, %v2191
    %v2193 = vshrl.u32 %v2159, 16
    %v2195 = vor.u32 %v2193, %v2191
    %v2197 = vshll.u32 %v2160, 16
    %v2199 = vrot.slane %v2197, 1
    %v2200 = vsel %vm109, %v2195, %v2199
    %v2201 = vshrl.u32 %v2160, 16
    %v2203 = vor.u32 %v2201, %v2199
    %v2205 = vshll.u32 %v2161, 16
    %v2207 = vrot.slane %v2205, 1
    %v2208 = vsel %vm109, %v2203, %v2207
    %v2209 = vshrl.u32 %v2161, 16
    %v2211 = vor.u32 %v2209, %v2207
    %v2213 = vshll.u32 %v2162, 16
    %v2215 = vrot.slane %v2213, 1
    %v2216 = vsel %vm109, %v2211, %v2215
    %v2217 = vshrl.u32 %v2162, 16
    %v2219 = vor.u32 %v2217, %v2215
    %v2221 = vshll.u32 %v2163, 16
    %v2223 = vrot.slane %v2221, 1
    %v2224 = vsel %vm109, %v2219, %v2223
    %v2225 = vshrl.u32 %v2163, 16
    %v2227 = vor.u32 %v2225, %v2223
    %v2229 = vshll.u32 %v2164, 16
    %v2231 = vrot.slane %v2229, 1
    %v2232 = vsel %vm109, %v2227, %v2231
    %v2234 = vunpack.c.l.b16 %v2121
    %v2235 = vpack.c.b16 %v2234, %v2234
    %v2236 = vrot.slane %v2235, 2
    %v2238 = vsel %vm189, %v2176, 0
    %v2241 = vsel %vm189, %v2184, 0
    %v2244 = vsel %vm189, %v2192, 0
    %v2247 = vsel %vm189, %v2200, 0
    %v2250 = vsel %vm189, %v2208, 0
    %v2253 = vsel %vm189, %v2216, 0
    %v2256 = vsel %vm189, %v2224, 0
    %v2259 = vsel %vm189, %v2232, 0
    %v2262 = vand.u32 %v2236, %v217
    %2264 = vmatpush.bf16.msra.mxu0 0
    %2265 = vmatpush.bf16.msra.mxu0 0
    %2266 = vmatpush.bf16.msra.mxu0 0
    %2267 = vmatpush.bf16.msra.mxu0 0
    %2268 = vmatpush.bf16.msra.mxu0 0
    %2269 = vmatpush.bf16.msra.mxu0 0
    %2270 = vmatpush.bf16.msra.mxu0 0
    %2271 = vmatpush.bf16.msra.mxu0 %v2262
    %2272 = vmatmul.bf16.gmra.mxu0 %v2238
    %v2273 = vpop.f32.mrf.mxu0
    %v2274 = vadd.f32 0.0, %v2273
    %v2275 = vpop.f32.mrf.mxu0
    %v2276 = vadd.f32 0.0, %v2275
    %2277 = vmatmul.bf16.gmra.mxu0 %v2241
    %v2278 = vpop.f32.mrf.mxu0
    %v2279 = vadd.f32 0.0, %v2278
    %v2280 = vpop.f32.mrf.mxu0
    %v2281 = vadd.f32 0.0, %v2280
    %2282 = vmatmul.bf16.gmra.mxu0 %v2244
    %v2283 = vpop.f32.mrf.mxu0
    %v2284 = vadd.f32 0.0, %v2283
    %v2285 = vpop.f32.mrf.mxu0
    %v2286 = vadd.f32 0.0, %v2285
    %2287 = vmatmul.bf16.gmra.mxu0 %v2247
    %v2288 = vpop.f32.mrf.mxu0
    %v2289 = vadd.f32 0.0, %v2288
    %v2290 = vpop.f32.mrf.mxu0
    %v2291 = vadd.f32 0.0, %v2290
    %2292 = vmatmul.bf16.gmra.mxu0 %v2250
    %v2293 = vpop.f32.mrf.mxu0
    %v2294 = vadd.f32 0.0, %v2293
    %v2295 = vpop.f32.mrf.mxu0
    %v2296 = vadd.f32 0.0, %v2295
    %2297 = vmatmul.bf16.gmra.mxu0 %v2253
    %v2298 = vpop.f32.mrf.mxu0
    %v2299 = vadd.f32 0.0, %v2298
    %v2300 = vpop.f32.mrf.mxu0
    %v2301 = vadd.f32 0.0, %v2300
    %2302 = vmatmul.bf16.gmra.mxu0 %v2256
    %v2303 = vpop.f32.mrf.mxu0
    %v2304 = vadd.f32 0.0, %v2303
    %v2305 = vpop.f32.mrf.mxu0
    %v2306 = vadd.f32 0.0, %v2305
    %2307 = vmatmul.bf16.gmra.mxu0 %v2259
    %v2308 = vpop.f32.mrf.mxu0
    %v2309 = vadd.f32 0.0, %v2308
    %v2310 = vpop.f32.mrf.mxu0
    %v2311 = vadd.f32 0.0, %v2310
    %2312 = vdwg.mxu0
    %v2313 = vadd.f32 %v2088, %v2274
    %v2314 = vadd.f32 %v2089, %v2276
    %v2315 = vadd.f32 %v2090, %v2279
    %v2316 = vadd.f32 %v2091, %v2281
    %v2317 = vadd.f32 %v2092, %v2284
    %v2318 = vadd.f32 %v2093, %v2286
    %v2319 = vadd.f32 %v2094, %v2289
    %v2320 = vadd.f32 %v2095, %v2291
    %v2321 = vadd.f32 %v2096, %v2294
    %v2322 = vadd.f32 %v2097, %v2296
    %v2323 = vadd.f32 %v2098, %v2299
    %v2324 = vadd.f32 %v2099, %v2301
    %v2325 = vadd.f32 %v2100, %v2304
    %v2326 = vadd.f32 %v2101, %v2306
    %v2327 = vadd.f32 %v2102, %v2309
    %v2328 = vadd.f32 %v2103, %v2311
    %v2329 = vld [vmem:[%s0 + $0x48] sm:$0xe]
    %v2330 = vld [vmem:[%s1 + $0x4] sm:$0x8]
    %v2331 = vld [vmem:[%s1 + $0x8] sm:$0x1]
    %v2333 = vunpack.c.l.b16 %v2329
    %v2334 = vpack.c.b16 %v2140, %v2333
    %v2335 = vrot.slane %v2334, 1
    %v2336 = vrot.slane %v2157, 1
    %v2337 = vsel %vm344, %v2335, %v2336
    %v2338 = vrot.slane %v2158, 1
    %v2339 = vsel %vm344, %v2336, %v2338
    %v2340 = vrot.slane %v2159, 1
    %v2341 = vsel %vm344, %v2338, %v2340
    %v2342 = vrot.slane %v2160, 1
    %v2343 = vsel %vm344, %v2340, %v2342
    %v2344 = vrot.slane %v2161, 1
    %v2345 = vsel %vm344, %v2342, %v2344
    %v2346 = vrot.slane %v2162, 1
    %v2347 = vsel %vm344, %v2344, %v2346
    %v2348 = vrot.slane %v2163, 1
    %v2349 = vsel %vm344, %v2346, %v2348
    %v2350 = vrot.slane %v2164, 1
    %v2351 = vsel %vm344, %v2348, %v2350
    %v2354 = vunpack.c.l.b16 %v2330
    %v2355 = vunpack.c.l.b16 %v2331
    %v2356 = vpack.c.b16 %v2355, %v2354
    %v2358 = vshrl.u32 %v2356, 16
    %v2360 = vrot.slane %v2358, 3
    %v2361 = vshll.u32 %v2356, 16
    %v2363 = vrot.slane %v2361, 4
    %v2364 = vor.u32 %v2360, %v2363
    %v2366 = vsel %vm189, %v2337, 0
    %v2369 = vsel %vm189, %v2339, 0
    %v2372 = vsel %vm189, %v2341, 0
    %v2375 = vsel %vm189, %v2343, 0
    %v2378 = vsel %vm189, %v2345, 0
    %v2381 = vsel %vm189, %v2347, 0
    %v2384 = vsel %vm189, %v2349, 0
    %v2387 = vsel %vm189, %v2351, 0
    %v2390 = vand.u32 %v2364, %v217
    %2392 = vmatpush.bf16.msra.mxu0 0
    %2393 = vmatpush.bf16.msra.mxu0 0
    %2394 = vmatpush.bf16.msra.mxu0 0
    %2395 = vmatpush.bf16.msra.mxu0 0
    %2396 = vmatpush.bf16.msra.mxu0 0
    %2397 = vmatpush.bf16.msra.mxu0 0
    %2398 = vmatpush.bf16.msra.mxu0 0
    %2399 = vmatpush.bf16.msra.mxu0 %v2390
    %2400 = vmatmul.bf16.gmra.mxu0 %v2366
    %v2401 = vpop.f32.mrf.mxu0
    %v2402 = vadd.f32 0.0, %v2401
    %v2403 = vpop.f32.mrf.mxu0
    %v2404 = vadd.f32 0.0, %v2403
    %2405 = vmatmul.bf16.gmra.mxu0 %v2369
    %v2406 = vpop.f32.mrf.mxu0
    %v2407 = vadd.f32 0.0, %v2406
    %v2408 = vpop.f32.mrf.mxu0
    %v2409 = vadd.f32 0.0, %v2408
    %2410 = vmatmul.bf16.gmra.mxu0 %v2372
    %v2411 = vpop.f32.mrf.mxu0
    %v2412 = vadd.f32 0.0, %v2411
    %v2413 = vpop.f32.mrf.mxu0
    %v2414 = vadd.f32 0.0, %v2413
    %2415 = vmatmul.bf16.gmra.mxu0 %v2375
    %v2416 = vpop.f32.mrf.mxu0
    %v2417 = vadd.f32 0.0, %v2416
    %v2418 = vpop.f32.mrf.mxu0
    %v2419 = vadd.f32 0.0, %v2418
    %2420 = vmatmul.bf16.gmra.mxu0 %v2378
    %v2421 = vpop.f32.mrf.mxu0
    %v2422 = vadd.f32 0.0, %v2421
    %v2423 = vpop.f32.mrf.mxu0
    %v2424 = vadd.f32 0.0, %v2423
    %2425 = vmatmul.bf16.gmra.mxu0 %v2381
    %v2426 = vpop.f32.mrf.mxu0
    %v2427 = vadd.f32 0.0, %v2426
    %v2428 = vpop.f32.mrf.mxu0
    %v2429 = vadd.f32 0.0, %v2428
    %2430 = vmatmul.bf16.gmra.mxu0 %v2384
    %v2431 = vpop.f32.mrf.mxu0
    %v2432 = vadd.f32 0.0, %v2431
    %v2433 = vpop.f32.mrf.mxu0
    %v2434 = vadd.f32 0.0, %v2433
    %2435 = vmatmul.bf16.gmra.mxu0 %v2387
    %v2436 = vpop.f32.mrf.mxu0
    %v2437 = vadd.f32 0.0, %v2436
    %v2438 = vpop.f32.mrf.mxu0
    %v2439 = vadd.f32 0.0, %v2438
    %2440 = vdwg.mxu0
    %v2441 = vadd.f32 %v2313, %v2402
    %v2442 = vadd.f32 %v2314, %v2404
    %v2443 = vadd.f32 %v2315, %v2407
    %v2444 = vadd.f32 %v2316, %v2409
    %v2445 = vadd.f32 %v2317, %v2412
    %v2446 = vadd.f32 %v2318, %v2414
    %v2447 = vadd.f32 %v2319, %v2417
    %v2448 = vadd.f32 %v2320, %v2419
    %v2449 = vadd.f32 %v2321, %v2422
    %v2450 = vadd.f32 %v2322, %v2424
    %v2451 = vadd.f32 %v2323, %v2427
    %v2452 = vadd.f32 %v2324, %v2429
    %v2453 = vadd.f32 %v2325, %v2432
    %v2454 = vadd.f32 %v2326, %v2434
    %v2455 = vadd.f32 %v2327, %v2437
    %v2456 = vadd.f32 %v2328, %v2439
    %v2457 = vld [vmem:[%s0 + $0x50] sm:$0xf]
    %v2458 = vld [vmem:[%s0 + $0x54] sm:$0xf]
    %v2459 = vld [vmem:[%s0 + $0x58] sm:$0xf]
    %v2460 = vld [vmem:[%s0 + $0x5c] sm:$0xf]
    %v2461 = vld [vmem:[%s0 + $0x60] sm:$0xf]
    %v2462 = vld [vmem:[%s0 + $0x64] sm:$0xf]
    %v2463 = vld [vmem:[%s0 + $0x68] sm:$0xf]
    %v2464 = vld [vmem:[%s0 + $0x6c] sm:$0xf]
    %v2465 = vld [vmem:[%s0 + $0x70] sm:$0xf]
    %v2466 = vld [vmem:[%s0 + $0x74] sm:$0xf]
    %v2467 = vld [vmem:[%s0 + $0x78] sm:$0xf]
    %v2468 = vld [vmem:[%s0 + $0x7c] sm:$0xf]
    %v2469 = vld [vmem:[%s0 + $0x80] sm:$0xf]
    %v2470 = vld [vmem:[%s0 + $0x84] sm:$0xf]
    %v2471 = vld [vmem:[%s0 + $0x88] sm:$0xf]
    %v2472 = vld [vmem:[%s0 + $0x8c] sm:$0xf]
    %v2473 = vld [vmem:[%s1 + $0x8] sm:$0x6]
    %v2490 = vunpack.c.l.b16 %v2457
    %v2491 = vunpack.c.l.b16 %v2458
    %v2492 = vunpack.c.l.b16 %v2459
    %v2493 = vunpack.c.l.b16 %v2460
    %v2494 = vunpack.c.l.b16 %v2461
    %v2495 = vunpack.c.l.b16 %v2462
    %v2496 = vunpack.c.l.b16 %v2463
    %v2497 = vunpack.c.l.b16 %v2464
    %v2498 = vunpack.c.l.b16 %v2465
    %v2499 = vunpack.c.l.b16 %v2466
    %v2500 = vunpack.c.l.b16 %v2467
    %v2501 = vunpack.c.l.b16 %v2468
    %v2502 = vunpack.c.l.b16 %v2469
    %v2503 = vunpack.c.l.b16 %v2470
    %v2504 = vunpack.c.l.b16 %v2471
    %v2505 = vunpack.c.l.b16 %v2472
    %v2506 = vpack.c.b16 %v2491, %v2490
    %v2507 = vpack.c.b16 %v2493, %v2492
    %v2508 = vpack.c.b16 %v2495, %v2494
    %v2509 = vpack.c.b16 %v2497, %v2496
    %v2510 = vpack.c.b16 %v2499, %v2498
    %v2511 = vpack.c.b16 %v2501, %v2500
    %v2512 = vpack.c.b16 %v2503, %v2502
    %v2513 = vpack.c.b16 %v2505, %v2504
    %v2515 = vunpack.c.l.b16 %v2473
    %v2516 = vpack.c.b16 %v2515, %v2515
    %v2517 = vrot.slane %v2516, 1
    %v2519 = vsel %vm189, %v2506, 0
    %v2522 = vsel %vm189, %v2507, 0
    %v2525 = vsel %vm189, %v2508, 0
    %v2528 = vsel %vm189, %v2509, 0
    %v2531 = vsel %vm189, %v2510, 0
    %v2534 = vsel %vm189, %v2511, 0
    %v2537 = vsel %vm189, %v2512, 0
    %v2540 = vsel %vm189, %v2513, 0
    %v2543 = vand.u32 %v2517, %v217
    %2545 = vmatpush.bf16.msra.mxu0 0
    %2546 = vmatpush.bf16.msra.mxu0 0
    %2547 = vmatpush.bf16.msra.mxu0 0
    %2548 = vmatpush.bf16.msra.mxu0 0
    %2549 = vmatpush.bf16.msra.mxu0 0
    %2550 = vmatpush.bf16.msra.mxu0 0
    %2551 = vmatpush.bf16.msra.mxu0 0
    %2552 = vmatpush.bf16.msra.mxu0 %v2543
    %2553 = vmatmul.bf16.gmra.mxu0 %v2519
    %v2554 = vpop.f32.mrf.mxu0
    %v2555 = vadd.f32 0.0, %v2554
    %v2556 = vpop.f32.mrf.mxu0
    %v2557 = vadd.f32 0.0, %v2556
    %2558 = vmatmul.bf16.gmra.mxu0 %v2522
    %v2559 = vpop.f32.mrf.mxu0
    %v2560 = vadd.f32 0.0, %v2559
    %v2561 = vpop.f32.mrf.mxu0
    %v2562 = vadd.f32 0.0, %v2561
    %2563 = vmatmul.bf16.gmra.mxu0 %v2525
    %v2564 = vpop.f32.mrf.mxu0
    %v2565 = vadd.f32 0.0, %v2564
    %v2566 = vpop.f32.mrf.mxu0
    %v2567 = vadd.f32 0.0, %v2566
    %2568 = vmatmul.bf16.gmra.mxu0 %v2528
    %v2569 = vpop.f32.mrf.mxu0
    %v2570 = vadd.f32 0.0, %v2569
    %v2571 = vpop.f32.mrf.mxu0
    %v2572 = vadd.f32 0.0, %v2571
    %2573 = vmatmul.bf16.gmra.mxu0 %v2531
    %v2574 = vpop.f32.mrf.mxu0
    %v2575 = vadd.f32 0.0, %v2574
    %v2576 = vpop.f32.mrf.mxu0
    %v2577 = vadd.f32 0.0, %v2576
    %2578 = vmatmul.bf16.gmra.mxu0 %v2534
    %v2579 = vpop.f32.mrf.mxu0
    %v2580 = vadd.f32 0.0, %v2579
    %v2581 = vpop.f32.mrf.mxu0
    %v2582 = vadd.f32 0.0, %v2581
    %2583 = vmatmul.bf16.gmra.mxu0 %v2537
    %v2584 = vpop.f32.mrf.mxu0
    %v2585 = vadd.f32 0.0, %v2584
    %v2586 = vpop.f32.mrf.mxu0
    %v2587 = vadd.f32 0.0, %v2586
    %2588 = vmatmul.bf16.gmra.mxu0 %v2540
    %v2589 = vpop.f32.mrf.mxu0
    %v2590 = vadd.f32 0.0, %v2589
    %v2591 = vpop.f32.mrf.mxu0
    %v2592 = vadd.f32 0.0, %v2591
    %2593 = vdwg.mxu0
    %v2594 = vadd.f32 %v2441, %v2555
    %v2595 = vadd.f32 %v2442, %v2557
    %v2596 = vadd.f32 %v2443, %v2560
    %v2597 = vadd.f32 %v2444, %v2562
    %v2598 = vadd.f32 %v2445, %v2565
    %v2599 = vadd.f32 %v2446, %v2567
    %v2600 = vadd.f32 %v2447, %v2570
    %v2601 = vadd.f32 %v2448, %v2572
    %v2602 = vadd.f32 %v2449, %v2575
    %v2603 = vadd.f32 %v2450, %v2577
    %v2604 = vadd.f32 %v2451, %v2580
    %v2605 = vadd.f32 %v2452, %v2582
    %v2606 = vadd.f32 %v2453, %v2585
    %v2607 = vadd.f32 %v2454, %v2587
    %v2608 = vadd.f32 %v2455, %v2590
    %v2609 = vadd.f32 %v2456, %v2592
    %v2610 = vld [vmem:[%s0 + $0x50] sm:$0xf]
    %v2611 = vld [vmem:[%s0 + $0x54] sm:$0xf]
    %v2612 = vld [vmem:[%s0 + $0x58] sm:$0xf]
    %v2613 = vld [vmem:[%s0 + $0x5c] sm:$0xf]
    %v2614 = vld [vmem:[%s0 + $0x60] sm:$0xf]
    %v2615 = vld [vmem:[%s0 + $0x64] sm:$0xf]
    %v2616 = vld [vmem:[%s0 + $0x68] sm:$0xf]
    %v2617 = vld [vmem:[%s0 + $0x6c] sm:$0xf]
    %v2618 = vld [vmem:[%s0 + $0x70] sm:$0xf]
    %v2619 = vld [vmem:[%s0 + $0x74] sm:$0xf]
    %v2620 = vld [vmem:[%s0 + $0x78] sm:$0xf]
    %v2621 = vld [vmem:[%s0 + $0x7c] sm:$0xf]
    %v2622 = vld [vmem:[%s0 + $0x80] sm:$0xf]
    %v2623 = vld [vmem:[%s0 + $0x84] sm:$0xf]
    %v2624 = vld [vmem:[%s0 + $0x88] sm:$0xf]
    %v2625 = vld [vmem:[%s0 + $0x8c] sm:$0xf]
    %v2626 = vld [vmem:[%s0 + $0x90] sm:$0x1]
    %v2627 = vld [vmem:[%s1 + $0x8] sm:$0xc]
    %v2645 = vunpack.c.l.b16 %v2610
    %v2646 = vunpack.c.l.b16 %v2611
    %v2647 = vunpack.c.l.b16 %v2612
    %v2648 = vunpack.c.l.b16 %v2613
    %v2649 = vunpack.c.l.b16 %v2614
    %v2650 = vunpack.c.l.b16 %v2615
    %v2651 = vunpack.c.l.b16 %v2616
    %v2652 = vunpack.c.l.b16 %v2617
    %v2653 = vunpack.c.l.b16 %v2618
    %v2654 = vunpack.c.l.b16 %v2619
    %v2655 = vunpack.c.l.b16 %v2620
    %v2656 = vunpack.c.l.b16 %v2621
    %v2657 = vunpack.c.l.b16 %v2622
    %v2658 = vunpack.c.l.b16 %v2623
    %v2659 = vunpack.c.l.b16 %v2624
    %v2660 = vunpack.c.l.b16 %v2625
    %v2661 = vunpack.c.l.b16 %v2626
    %v2662 = vpack.c.b16 %v2646, %v2645
    %v2663 = vpack.c.b16 %v2648, %v2647
    %v2664 = vpack.c.b16 %v2650, %v2649
    %v2665 = vpack.c.b16 %v2652, %v2651
    %v2666 = vpack.c.b16 %v2654, %v2653
    %v2667 = vpack.c.b16 %v2656, %v2655
    %v2668 = vpack.c.b16 %v2658, %v2657
    %v2669 = vpack.c.b16 %v2660, %v2659
    %v2670 = vpack.c.b16 %v2661, %v2661
    %v2672 = vshrl.u32 %v2662, 16
    %v2674 = vshll.u32 %v2662, 16
    %v2676 = vrot.slane %v2674, 1
    %v2677 = vor.u32 %v2672, %v2676
    %v2679 = vshll.u32 %v2663, 16
    %v2681 = vrot.slane %v2679, 1
    %v2682 = vsel %vm109, %v2677, %v2681
    %v2683 = vshrl.u32 %v2663, 16
    %v2685 = vor.u32 %v2683, %v2681
    %v2687 = vshll.u32 %v2664, 16
    %v2689 = vrot.slane %v2687, 1
    %v2690 = vsel %vm109, %v2685, %v2689
    %v2691 = vshrl.u32 %v2664, 16
    %v2693 = vor.u32 %v2691, %v2689
    %v2695 = vshll.u32 %v2665, 16
    %v2697 = vrot.slane %v2695, 1
    %v2698 = vsel %vm109, %v2693, %v2697
    %v2699 = vshrl.u32 %v2665, 16
    %v2701 = vor.u32 %v2699, %v2697
    %v2703 = vshll.u32 %v2666, 16
    %v2705 = vrot.slane %v2703, 1
    %v2706 = vsel %vm109, %v2701, %v2705
    %v2707 = vshrl.u32 %v2666, 16
    %v2709 = vor.u32 %v2707, %v2705
    %v2711 = vshll.u32 %v2667, 16
    %v2713 = vrot.slane %v2711, 1
    %v2714 = vsel %vm109, %v2709, %v2713
    %v2715 = vshrl.u32 %v2667, 16
    %v2717 = vor.u32 %v2715, %v2713
    %v2719 = vshll.u32 %v2668, 16
    %v2721 = vrot.slane %v2719, 1
    %v2722 = vsel %vm109, %v2717, %v2721
    %v2723 = vshrl.u32 %v2668, 16
    %v2725 = vor.u32 %v2723, %v2721
    %v2727 = vshll.u32 %v2669, 16
    %v2729 = vrot.slane %v2727, 1
    %v2730 = vsel %vm109, %v2725, %v2729
    %v2731 = vshrl.u32 %v2669, 16
    %v2733 = vor.u32 %v2731, %v2729
    %v2735 = vshll.u32 %v2670, 16
    %v2737 = vrot.slane %v2735, 1
    %v2738 = vsel %vm109, %v2733, %v2737
    %v2740 = vunpack.c.l.b16 %v2627
    %v2741 = vpack.c.b16 %v2740, %v2740
    %v2743 = vshrl.u32 %v2741, 16
    %v2745 = vrot.slane %v2743, 2
    %v2746 = vshll.u32 %v2741, 16
    %v2748 = vrot.slane %v2746, 3
    %v2749 = vor.u32 %v2745, %v2748
    %v2751 = vsel %vm189, %v2682, 0
    %v2754 = vsel %vm189, %v2690, 0
    %v2757 = vsel %vm189, %v2698, 0
    %v2760 = vsel %vm189, %v2706, 0
    %v2763 = vsel %vm189, %v2714, 0
    %v2766 = vsel %vm189, %v2722, 0
    %v2769 = vsel %vm189, %v2730, 0
    %v2772 = vsel %vm189, %v2738, 0
    %v2775 = vand.u32 %v2749, %v217
    %2777 = vmatpush.bf16.msra.mxu0 0
    %2778 = vmatpush.bf16.msra.mxu0 0
    %2779 = vmatpush.bf16.msra.mxu0 0
    %2780 = vmatpush.bf16.msra.mxu0 0
    %2781 = vmatpush.bf16.msra.mxu0 0
    %2782 = vmatpush.bf16.msra.mxu0 0
    %2783 = vmatpush.bf16.msra.mxu0 0
    %2784 = vmatpush.bf16.msra.mxu0 %v2775
    %2785 = vmatmul.bf16.gmra.mxu0 %v2751
    %v2786 = vpop.f32.mrf.mxu0
    %v2787 = vadd.f32 0.0, %v2786
    %v2788 = vpop.f32.mrf.mxu0
    %v2789 = vadd.f32 0.0, %v2788
    %2790 = vmatmul.bf16.gmra.mxu0 %v2754
    %v2791 = vpop.f32.mrf.mxu0
    %v2792 = vadd.f32 0.0, %v2791
    %v2793 = vpop.f32.mrf.mxu0
    %v2794 = vadd.f32 0.0, %v2793
    %2795 = vmatmul.bf16.gmra.mxu0 %v2757
    %v2796 = vpop.f32.mrf.mxu0
    %v2797 = vadd.f32 0.0, %v2796
    %v2798 = vpop.f32.mrf.mxu0
    %v2799 = vadd.f32 0.0, %v2798
    %2800 = vmatmul.bf16.gmra.mxu0 %v2760
    %v2801 = vpop.f32.mrf.mxu0
    %v2802 = vadd.f32 0.0, %v2801
    %v2803 = vpop.f32.mrf.mxu0
    %v2804 = vadd.f32 0.0, %v2803
    %2805 = vmatmul.bf16.gmra.mxu0 %v2763
    %v2806 = vpop.f32.mrf.mxu0
    %v2807 = vadd.f32 0.0, %v2806
    %v2808 = vpop.f32.mrf.mxu0
    %v2809 = vadd.f32 0.0, %v2808
    %2810 = vmatmul.bf16.gmra.mxu0 %v2766
    %v2811 = vpop.f32.mrf.mxu0
    %v2812 = vadd.f32 0.0, %v2811
    %v2813 = vpop.f32.mrf.mxu0
    %v2814 = vadd.f32 0.0, %v2813
    %2815 = vmatmul.bf16.gmra.mxu0 %v2769
    %v2816 = vpop.f32.mrf.mxu0
    %v2817 = vadd.f32 0.0, %v2816
    %v2818 = vpop.f32.mrf.mxu0
    %v2819 = vadd.f32 0.0, %v2818
    %2820 = vmatmul.bf16.gmra.mxu0 %v2772
    %v2821 = vpop.f32.mrf.mxu0
    %v2822 = vadd.f32 0.0, %v2821
    %v2823 = vpop.f32.mrf.mxu0
    %v2824 = vadd.f32 0.0, %v2823
    %2825 = vdwg.mxu0
    %v2826 = vadd.f32 %v2594, %v2787
    %v2827 = vadd.f32 %v2595, %v2789
    %v2828 = vadd.f32 %v2596, %v2792
    %v2829 = vadd.f32 %v2597, %v2794
    %v2830 = vadd.f32 %v2598, %v2797
    %v2831 = vadd.f32 %v2599, %v2799
    %v2832 = vadd.f32 %v2600, %v2802
    %v2833 = vadd.f32 %v2601, %v2804
    %v2834 = vadd.f32 %v2602, %v2807
    %v2835 = vadd.f32 %v2603, %v2809
    %v2836 = vadd.f32 %v2604, %v2812
    %v2837 = vadd.f32 %v2605, %v2814
    %v2838 = vadd.f32 %v2606, %v2817
    %v2839 = vadd.f32 %v2607, %v2819
    %v2840 = vadd.f32 %v2608, %v2822
    %v2841 = vadd.f32 %v2609, %v2824
    %v2842 = vld [vmem:[%s0 + $0x50] sm:$0xe]
    %v2843 = vld [vmem:[%s1 + $0xc] sm:$0x3]
    %v2845 = vunpack.c.l.b16 %v2842
    %v2846 = vpack.c.b16 %v2646, %v2845
    %v2847 = vrot.slane %v2846, 1
    %v2848 = vrot.slane %v2663, 1
    %v2849 = vsel %vm344, %v2847, %v2848
    %v2850 = vrot.slane %v2664, 1
    %v2851 = vsel %vm344, %v2848, %v2850
    %v2852 = vrot.slane %v2665, 1
    %v2853 = vsel %vm344, %v2850, %v2852
    %v2854 = vrot.slane %v2666, 1
    %v2855 = vsel %vm344, %v2852, %v2854
    %v2856 = vrot.slane %v2667, 1
    %v2857 = vsel %vm344, %v2854, %v2856
    %v2858 = vrot.slane %v2668, 1
    %v2859 = vsel %vm344, %v2856, %v2858
    %v2860 = vrot.slane %v2669, 1
    %v2861 = vsel %vm344, %v2858, %v2860
    %v2862 = vrot.slane %v2670, 1
    %v2863 = vsel %vm344, %v2860, %v2862
    %v2865 = vsel %vm189, %v2849, 0
    %v2868 = vsel %vm189, %v2851, 0
    %v2871 = vsel %vm189, %v2853, 0
    %v2874 = vsel %vm189, %v2855, 0
    %v2877 = vsel %vm189, %v2857, 0
    %v2880 = vsel %vm189, %v2859, 0
    %v2883 = vsel %vm189, %v2861, 0
    %v2886 = vsel %vm189, %v2863, 0
    %v2889 = vand.u32 %v2843, %v217
    %2891 = vmatpush.bf16.msra.mxu0 0
    %2892 = vmatpush.bf16.msra.mxu0 0
    %2893 = vmatpush.bf16.msra.mxu0 0
    %2894 = vmatpush.bf16.msra.mxu0 0
    %2895 = vmatpush.bf16.msra.mxu0 0
    %2896 = vmatpush.bf16.msra.mxu0 0
    %2897 = vmatpush.bf16.msra.mxu0 0
    %2898 = vmatpush.bf16.msra.mxu0 %v2889
    %2899 = vmatmul.bf16.gmra.mxu0 %v2865
    %v2900 = vpop.f32.mrf.mxu0
    %v2901 = vadd.f32 0.0, %v2900
    %v2902 = vpop.f32.mrf.mxu0
    %v2903 = vadd.f32 0.0, %v2902
    %2904 = vmatmul.bf16.gmra.mxu0 %v2868
    %v2905 = vpop.f32.mrf.mxu0
    %v2906 = vadd.f32 0.0, %v2905
    %v2907 = vpop.f32.mrf.mxu0
    %v2908 = vadd.f32 0.0, %v2907
    %2909 = vmatmul.bf16.gmra.mxu0 %v2871
    %v2910 = vpop.f32.mrf.mxu0
    %v2911 = vadd.f32 0.0, %v2910
    %v2912 = vpop.f32.mrf.mxu0
    %v2913 = vadd.f32 0.0, %v2912
    %2914 = vmatmul.bf16.gmra.mxu0 %v2874
    %v2915 = vpop.f32.mrf.mxu0
    %v2916 = vadd.f32 0.0, %v2915
    %v2917 = vpop.f32.mrf.mxu0
    %v2918 = vadd.f32 0.0, %v2917
    %2919 = vmatmul.bf16.gmra.mxu0 %v2877
    %v2920 = vpop.f32.mrf.mxu0
    %v2921 = vadd.f32 0.0, %v2920
    %v2922 = vpop.f32.mrf.mxu0
    %v2923 = vadd.f32 0.0, %v2922
    %2924 = vmatmul.bf16.gmra.mxu0 %v2880
    %v2925 = vpop.f32.mrf.mxu0
    %v2926 = vadd.f32 0.0, %v2925
    %v2927 = vpop.f32.mrf.mxu0
    %v2928 = vadd.f32 0.0, %v2927
    %2929 = vmatmul.bf16.gmra.mxu0 %v2883
    %v2930 = vpop.f32.mrf.mxu0
    %v2931 = vadd.f32 0.0, %v2930
    %v2932 = vpop.f32.mrf.mxu0
    %v2933 = vadd.f32 0.0, %v2932
    %2934 = vmatmul.bf16.gmra.mxu0 %v2886
    %v2935 = vpop.f32.mrf.mxu0
    %v2936 = vadd.f32 0.0, %v2935
    %v2937 = vpop.f32.mrf.mxu0
    %v2938 = vadd.f32 0.0, %v2937
    %2939 = vdwg.mxu0
    %v2940 = vadd.f32 %v2826, %v2901
    %v2941 = vadd.f32 %v2827, %v2903
    %v2942 = vadd.f32 %v2828, %v2906
    %v2943 = vadd.f32 %v2829, %v2908
    %v2944 = vadd.f32 %v2830, %v2911
    %v2945 = vadd.f32 %v2831, %v2913
    %v2946 = vadd.f32 %v2832, %v2916
    %v2947 = vadd.f32 %v2833, %v2918
    %v2948 = vadd.f32 %v2834, %v2921
    %v2949 = vadd.f32 %v2835, %v2923
    %v2950 = vadd.f32 %v2836, %v2926
    %v2951 = vadd.f32 %v2837, %v2928
    %v2952 = vadd.f32 %v2838, %v2931
    %v2953 = vadd.f32 %v2839, %v2933
    %v2954 = vadd.f32 %v2840, %v2936
    %v2955 = vadd.f32 %v2841, %v2938
    %v2956 = vadd.f32 %v2940, %v1472
    %v2957 = vadd.f32 %v2941, %v1472
    %v2958 = vadd.f32 %v2942, %v1472
    %v2959 = vadd.f32 %v2943, %v1472
    %v2960 = vadd.f32 %v2944, %v1472
    %v2961 = vadd.f32 %v2945, %v1472
    %v2962 = vadd.f32 %v2946, %v1472
    %v2963 = vadd.f32 %v2947, %v1472
    %v2964 = vadd.f32 %v2948, %v1472
    %v2965 = vadd.f32 %v2949, %v1472
    %v2966 = vadd.f32 %v2950, %v1472
    %v2967 = vadd.f32 %v2951, %v1472
    %v2968 = vadd.f32 %v2952, %v1472
    %v2969 = vadd.f32 %v2953, %v1472
    %v2970 = vadd.f32 %v2954, %v1472
    %v2971 = vadd.f32 %v2955, %v1472
    %v2972 = vmax.f32 %v2956, 0.0
    %v2973 = vmax.f32 %v2957, 0.0
    %v2974 = vmax.f32 %v2958, 0.0
    %v2975 = vmax.f32 %v2959, 0.0
    %v2976 = vmax.f32 %v2960, 0.0
    %v2977 = vmax.f32 %v2961, 0.0
    %v2978 = vmax.f32 %v2962, 0.0
    %v2979 = vmax.f32 %v2963, 0.0
    %v2980 = vmax.f32 %v2964, 0.0
    %v2981 = vmax.f32 %v2965, 0.0
    %v2982 = vmax.f32 %v2966, 0.0
    %v2983 = vmax.f32 %v2967, 0.0
    %v2984 = vmax.f32 %v2968, 0.0
    %v2985 = vmax.f32 %v2969, 0.0
    %v2986 = vmax.f32 %v2970, 0.0
    %v2987 = vmax.f32 %v2971, 0.0
    %v2988 = vpack.c.bf16 %v2972, %v2972
    %v2989 = vpack.c.bf16 %v2973, %v2973
    %v2990 = vpack.c.bf16 %v2974, %v2974
    %v2991 = vpack.c.bf16 %v2975, %v2975
    %v2992 = vpack.c.bf16 %v2976, %v2976
    %v2993 = vpack.c.bf16 %v2977, %v2977
    %v2994 = vpack.c.bf16 %v2978, %v2978
    %v2995 = vpack.c.bf16 %v2979, %v2979
    %v2996 = vpack.c.bf16 %v2980, %v2980
    %v2997 = vpack.c.bf16 %v2981, %v2981
    %v2998 = vpack.c.bf16 %v2982, %v2982
    %v2999 = vpack.c.bf16 %v2983, %v2983
    %v3000 = vpack.c.bf16 %v2984, %v2984
    %v3001 = vpack.c.bf16 %v2985, %v2985
    %v3002 = vpack.c.bf16 %v2986, %v2986
    %v3003 = vpack.c.bf16 %v2987, %v2987
    %3004 = vst.msk [vmem:[#allocation2 + $0x40] sm:$0xf] %vm1522, %v2988
    %3005 = vst.msk [vmem:[#allocation2 + $0x44] sm:$0xf] %vm1522, %v2989
    %3006 = vst.msk [vmem:[#allocation2 + $0x48] sm:$0xf] %vm1522, %v2990
    %3007 = vst.msk [vmem:[#allocation2 + $0x4c] sm:$0xf] %vm1522, %v2991
    %3008 = vst.msk [vmem:[#allocation2 + $0x50] sm:$0xf] %vm1522, %v2992
    %3009 = vst.msk [vmem:[#allocation2 + $0x54] sm:$0xf] %vm1522, %v2993
    %3010 = vst.msk [vmem:[#allocation2 + $0x58] sm:$0xf] %vm1522, %v2994
    %3011 = vst.msk [vmem:[#allocation2 + $0x5c] sm:$0xf] %vm1522, %v2995
    %3012 = vst.msk [vmem:[#allocation2 + $0x60] sm:$0xf] %vm1522, %v2996
    %3013 = vst.msk [vmem:[#allocation2 + $0x64] sm:$0xf] %vm1522, %v2997
    %3014 = vst.msk [vmem:[#allocation2 + $0x68] sm:$0xf] %vm1522, %v2998
    %3015 = vst.msk [vmem:[#allocation2 + $0x6c] sm:$0xf] %vm1522, %v2999
    %3016 = vst.msk [vmem:[#allocation2 + $0x70] sm:$0xf] %vm1522, %v3000
    %3017 = vst.msk [vmem:[#allocation2 + $0x74] sm:$0xf] %vm1522, %v3001
    %3018 = vst.msk [vmem:[#allocation2 + $0x78] sm:$0xf] %vm1522, %v3002
    %3019 = vst.msk [vmem:[#allocation2 + $0x7c] sm:$0xf] %vm1522, %v3003
    %v3020 = vld [vmem:[%s0 + $0x80] sm:$0xf]
    %v3021 = vld [vmem:[%s0 + $0x84] sm:$0xf]
    %v3022 = vld [vmem:[%s0 + $0x88] sm:$0xf]
    %v3023 = vld [vmem:[%s0 + $0x8c] sm:$0xf]
    %v3024 = vld [vmem:[%s0 + $0x90] sm:$0xf]
    %v3025 = vld [vmem:[%s0 + $0x94] sm:$0xf]
    %v3026 = vld [vmem:[%s0 + $0x98] sm:$0xf]
    %v3027 = vld [vmem:[%s0 + $0x9c] sm:$0xf]
    %v3028 = vld [vmem:[%s0 + $0xa0] sm:$0xf]
    %v3029 = vld [vmem:[%s0 + $0xa4] sm:$0xf]
    %v3030 = vld [vmem:[%s0 + $0xa8] sm:$0xf]
    %v3031 = vld [vmem:[%s0 + $0xac] sm:$0xf]
    %v3032 = vld [vmem:[%s0 + $0xb0] sm:$0xf]
    %v3033 = vld [vmem:[%s0 + $0xb4] sm:$0xf]
    %v3034 = vld [vmem:[%s0 + $0xb8] sm:$0xf]
    %v3035 = vld [vmem:[%s0 + $0xbc] sm:$0xf]
    %v3036 = vld [vmem:[%s1] sm:$0x3]
    %v3037 = vld [vmem:[%s0 + $0xc0] sm:$0x1]
    %v3038 = vld [vmem:[%s1] sm:$0x6]
    %v3056 = vunpack.c.l.b16 %v3020
    %v3057 = vunpack.c.l.b16 %v3021
    %v3058 = vunpack.c.l.b16 %v3022
    %v3059 = vunpack.c.l.b16 %v3023
    %v3060 = vunpack.c.l.b16 %v3024
    %v3061 = vunpack.c.l.b16 %v3025
    %v3062 = vunpack.c.l.b16 %v3026
    %v3063 = vunpack.c.l.b16 %v3027
    %v3064 = vunpack.c.l.b16 %v3028
    %v3065 = vunpack.c.l.b16 %v3029
    %v3066 = vunpack.c.l.b16 %v3030
    %v3067 = vunpack.c.l.b16 %v3031
    %v3068 = vunpack.c.l.b16 %v3032
    %v3069 = vunpack.c.l.b16 %v3033
    %v3070 = vunpack.c.l.b16 %v3034
    %v3071 = vunpack.c.l.b16 %v3035
    %v3072 = vunpack.c.l.b16 %v3037
    %v3073 = vpack.c.b16 %v3057, %v3056
    %v3074 = vpack.c.b16 %v3059, %v3058
    %v3075 = vpack.c.b16 %v3061, %v3060
    %v3076 = vpack.c.b16 %v3063, %v3062
    %v3077 = vpack.c.b16 %v3065, %v3064
    %v3078 = vpack.c.b16 %v3067, %v3066
    %v3079 = vpack.c.b16 %v3069, %v3068
    %v3080 = vpack.c.b16 %v3071, %v3070
    %v3081 = vpack.c.b16 %v3072, %v3072
    %v3083 = vshrl.u32 %v3073, 16
    %v3085 = vshll.u32 %v3073, 16
    %v3087 = vrot.slane %v3085, 1
    %v3088 = vor.u32 %v3083, %v3087
    %v3090 = vshll.u32 %v3074, 16
    %v3092 = vrot.slane %v3090, 1
    %v3093 = vsel %vm109, %v3088, %v3092
    %v3094 = vshrl.u32 %v3074, 16
    %v3096 = vor.u32 %v3094, %v3092
    %v3098 = vshll.u32 %v3075, 16
    %v3100 = vrot.slane %v3098, 1
    %v3101 = vsel %vm109, %v3096, %v3100
    %v3102 = vshrl.u32 %v3075, 16
    %v3104 = vor.u32 %v3102, %v3100
    %v3106 = vshll.u32 %v3076, 16
    %v3108 = vrot.slane %v3106, 1
    %v3109 = vsel %vm109, %v3104, %v3108
    %v3110 = vshrl.u32 %v3076, 16
    %v3112 = vor.u32 %v3110, %v3108
    %v3114 = vshll.u32 %v3077, 16
    %v3116 = vrot.slane %v3114, 1
    %v3117 = vsel %vm109, %v3112, %v3116
    %v3118 = vshrl.u32 %v3077, 16
    %v3120 = vor.u32 %v3118, %v3116
    %v3122 = vshll.u32 %v3078, 16
    %v3124 = vrot.slane %v3122, 1
    %v3125 = vsel %vm109, %v3120, %v3124
    %v3126 = vshrl.u32 %v3078, 16
    %v3128 = vor.u32 %v3126, %v3124
    %v3130 = vshll.u32 %v3079, 16
    %v3132 = vrot.slane %v3130, 1
    %v3133 = vsel %vm109, %v3128, %v3132
    %v3134 = vshrl.u32 %v3079, 16
    %v3136 = vor.u32 %v3134, %v3132
    %v3138 = vshll.u32 %v3080, 16
    %v3140 = vrot.slane %v3138, 1
    %v3141 = vsel %vm109, %v3136, %v3140
    %v3142 = vshrl.u32 %v3080, 16
    %v3144 = vor.u32 %v3142, %v3140
    %v3146 = vshll.u32 %v3081, 16
    %v3148 = vrot.slane %v3146, 1
    %v3149 = vsel %vm109, %v3144, %v3148
    %v3151 = vunpack.c.l.b16 %v3038
    %v3152 = vpack.c.b16 %v3151, %v3151
    %v3154 = vshrl.u32 %v3152, 16
    %v3156 = vrot.slane %v3154, 1
    %v3157 = vshll.u32 %v3152, 16
    %v3159 = vrot.slane %v3157, 2
    %v3160 = vor.u32 %v3156, %v3159
    %v3162 = vsel %vm189, %v3093, 0
    %v3165 = vsel %vm189, %v3101, 0
    %v3168 = vsel %vm189, %v3109, 0
    %v3171 = vsel %vm189, %v3117, 0
    %v3174 = vsel %vm189, %v3125, 0
    %v3177 = vsel %vm189, %v3133, 0
    %v3180 = vsel %vm189, %v3141, 0
    %v3183 = vsel %vm189, %v3149, 0
    %v3186 = vand.u32 %v3160, %v217
    %3188 = vmatpush.bf16.msra.mxu0 0
    %3189 = vmatpush.bf16.msra.mxu0 0
    %3190 = vmatpush.bf16.msra.mxu0 0
    %3191 = vmatpush.bf16.msra.mxu0 0
    %3192 = vmatpush.bf16.msra.mxu0 0
    %3193 = vmatpush.bf16.msra.mxu0 0
    %3194 = vmatpush.bf16.msra.mxu0 0
    %3195 = vmatpush.bf16.msra.mxu0 %v3186
    %3196 = vmatmul.bf16.gmra.mxu0 %v3162
    %v3197 = vpop.f32.mrf.mxu0
    %v3198 = vadd.f32 0.0, %v3197
    %v3199 = vpop.f32.mrf.mxu0
    %v3200 = vadd.f32 0.0, %v3199
    %3201 = vmatmul.bf16.gmra.mxu0 %v3165
    %v3202 = vpop.f32.mrf.mxu0
    %v3203 = vadd.f32 0.0, %v3202
    %v3204 = vpop.f32.mrf.mxu0
    %v3205 = vadd.f32 0.0, %v3204
    %3206 = vmatmul.bf16.gmra.mxu0 %v3168
    %v3207 = vpop.f32.mrf.mxu0
    %v3208 = vadd.f32 0.0, %v3207
    %v3209 = vpop.f32.mrf.mxu0
    %v3210 = vadd.f32 0.0, %v3209
    %3211 = vmatmul.bf16.gmra.mxu0 %v3171
    %v3212 = vpop.f32.mrf.mxu0
    %v3213 = vadd.f32 0.0, %v3212
    %v3214 = vpop.f32.mrf.mxu0
    %v3215 = vadd.f32 0.0, %v3214
    %3216 = vmatmul.bf16.gmra.mxu0 %v3174
    %v3217 = vpop.f32.mrf.mxu0
    %v3218 = vadd.f32 0.0, %v3217
    %v3219 = vpop.f32.mrf.mxu0
    %v3220 = vadd.f32 0.0, %v3219
    %3221 = vmatmul.bf16.gmra.mxu0 %v3177
    %v3222 = vpop.f32.mrf.mxu0
    %v3223 = vadd.f32 0.0, %v3222
    %v3224 = vpop.f32.mrf.mxu0
    %v3225 = vadd.f32 0.0, %v3224
    %3226 = vmatmul.bf16.gmra.mxu0 %v3180
    %v3227 = vpop.f32.mrf.mxu0
    %v3228 = vadd.f32 0.0, %v3227
    %v3229 = vpop.f32.mrf.mxu0
    %v3230 = vadd.f32 0.0, %v3229
    %3231 = vmatmul.bf16.gmra.mxu0 %v3183
    %v3232 = vpop.f32.mrf.mxu0
    %v3233 = vadd.f32 0.0, %v3232
    %v3234 = vpop.f32.mrf.mxu0
    %v3235 = vadd.f32 0.0, %v3234
    %3236 = vdwg.mxu0
    %v3237 = vsel %vm189, %v3073, 0
    %v3239 = vsel %vm189, %v3074, 0
    %v3241 = vsel %vm189, %v3075, 0
    %v3243 = vsel %vm189, %v3076, 0
    %v3245 = vsel %vm189, %v3077, 0
    %v3247 = vsel %vm189, %v3078, 0
    %v3249 = vsel %vm189, %v3079, 0
    %v3251 = vsel %vm189, %v3080, 0
    %v3254 = vand.u32 %v3036, %v217
    %3256 = vmatpush.bf16.msra.mxu0 0
    %3257 = vmatpush.bf16.msra.mxu0 0
    %3258 = vmatpush.bf16.msra.mxu0 0
    %3259 = vmatpush.bf16.msra.mxu0 0
    %3260 = vmatpush.bf16.msra.mxu0 0
    %3261 = vmatpush.bf16.msra.mxu0 0
    %3262 = vmatpush.bf16.msra.mxu0 0
    %3263 = vmatpush.bf16.msra.mxu0 %v3254
    %3264 = vmatmul.bf16.gmra.mxu0 %v3237
    %v3265 = vpop.f32.mrf.mxu0
    %v3266 = vadd.f32 %v3198, %v3265
    %v3267 = vpop.f32.mrf.mxu0
    %v3268 = vadd.f32 %v3200, %v3267
    %3269 = vmatmul.bf16.gmra.mxu0 %v3239
    %v3270 = vpop.f32.mrf.mxu0
    %v3271 = vadd.f32 %v3203, %v3270
    %v3272 = vpop.f32.mrf.mxu0
    %v3273 = vadd.f32 %v3205, %v3272
    %3274 = vmatmul.bf16.gmra.mxu0 %v3241
    %v3275 = vpop.f32.mrf.mxu0
    %v3276 = vadd.f32 %v3208, %v3275
    %v3277 = vpop.f32.mrf.mxu0
    %v3278 = vadd.f32 %v3210, %v3277
    %3279 = vmatmul.bf16.gmra.mxu0 %v3243
    %v3280 = vpop.f32.mrf.mxu0
    %v3281 = vadd.f32 %v3213, %v3280
    %v3282 = vpop.f32.mrf.mxu0
    %v3283 = vadd.f32 %v3215, %v3282
    %3284 = vmatmul.bf16.gmra.mxu0 %v3245
    %v3285 = vpop.f32.mrf.mxu0
    %v3286 = vadd.f32 %v3218, %v3285
    %v3287 = vpop.f32.mrf.mxu0
    %v3288 = vadd.f32 %v3220, %v3287
    %3289 = vmatmul.bf16.gmra.mxu0 %v3247
    %v3290 = vpop.f32.mrf.mxu0
    %v3291 = vadd.f32 %v3223, %v3290
    %v3292 = vpop.f32.mrf.mxu0
    %v3293 = vadd.f32 %v3225, %v3292
    %3294 = vmatmul.bf16.gmra.mxu0 %v3249
    %v3295 = vpop.f32.mrf.mxu0
    %v3296 = vadd.f32 %v3228, %v3295
    %v3297 = vpop.f32.mrf.mxu0
    %v3298 = vadd.f32 %v3230, %v3297
    %3299 = vmatmul.bf16.gmra.mxu0 %v3251
    %v3300 = vpop.f32.mrf.mxu0
    %v3301 = vadd.f32 %v3233, %v3300
    %v3302 = vpop.f32.mrf.mxu0
    %v3303 = vadd.f32 %v3235, %v3302
    %3304 = vdwg.mxu0
    %v3305 = vld [vmem:[%s0 + $0x80] sm:$0xe]
    %v3306 = vld [vmem:[%s1] sm:$0x8]
    %v3307 = vld [vmem:[%s1 + $0x4] sm:$0x1]
    %v3309 = vunpack.c.l.b16 %v3305
    %v3310 = vpack.c.b16 %v3057, %v3309
    %v3311 = vrot.slane %v3310, 1
    %v3312 = vrot.slane %v3074, 1
    %v3313 = vsel %vm344, %v3311, %v3312
    %v3314 = vrot.slane %v3075, 1
    %v3315 = vsel %vm344, %v3312, %v3314
    %v3316 = vrot.slane %v3076, 1
    %v3317 = vsel %vm344, %v3314, %v3316
    %v3318 = vrot.slane %v3077, 1
    %v3319 = vsel %vm344, %v3316, %v3318
    %v3320 = vrot.slane %v3078, 1
    %v3321 = vsel %vm344, %v3318, %v3320
    %v3322 = vrot.slane %v3079, 1
    %v3323 = vsel %vm344, %v3320, %v3322
    %v3324 = vrot.slane %v3080, 1
    %v3325 = vsel %vm344, %v3322, %v3324
    %v3326 = vrot.slane %v3081, 1
    %v3327 = vsel %vm344, %v3324, %v3326
    %v3330 = vunpack.c.l.b16 %v3306
    %v3331 = vunpack.c.l.b16 %v3307
    %v3332 = vpack.c.b16 %v3331, %v3330
    %v3333 = vrot.slane %v3332, 3
    %v3335 = vsel %vm189, %v3313, 0
    %v3338 = vsel %vm189, %v3315, 0
    %v3341 = vsel %vm189, %v3317, 0
    %v3344 = vsel %vm189, %v3319, 0
    %v3347 = vsel %vm189, %v3321, 0
    %v3350 = vsel %vm189, %v3323, 0
    %v3353 = vsel %vm189, %v3325, 0
    %v3356 = vsel %vm189, %v3327, 0
    %v3359 = vand.u32 %v3333, %v217
    %3361 = vmatpush.bf16.msra.mxu0 0
    %3362 = vmatpush.bf16.msra.mxu0 0
    %3363 = vmatpush.bf16.msra.mxu0 0
    %3364 = vmatpush.bf16.msra.mxu0 0
    %3365 = vmatpush.bf16.msra.mxu0 0
    %3366 = vmatpush.bf16.msra.mxu0 0
    %3367 = vmatpush.bf16.msra.mxu0 0
    %3368 = vmatpush.bf16.msra.mxu0 %v3359
    %3369 = vmatmul.bf16.gmra.mxu0 %v3335
    %v3370 = vpop.f32.mrf.mxu0
    %v3371 = vadd.f32 0.0, %v3370
    %v3372 = vpop.f32.mrf.mxu0
    %v3373 = vadd.f32 0.0, %v3372
    %3374 = vmatmul.bf16.gmra.mxu0 %v3338
    %v3375 = vpop.f32.mrf.mxu0
    %v3376 = vadd.f32 0.0, %v3375
    %v3377 = vpop.f32.mrf.mxu0
    %v3378 = vadd.f32 0.0, %v3377
    %3379 = vmatmul.bf16.gmra.mxu0 %v3341
    %v3380 = vpop.f32.mrf.mxu0
    %v3381 = vadd.f32 0.0, %v3380
    %v3382 = vpop.f32.mrf.mxu0
    %v3383 = vadd.f32 0.0, %v3382
    %3384 = vmatmul.bf16.gmra.mxu0 %v3344
    %v3385 = vpop.f32.mrf.mxu0
    %v3386 = vadd.f32 0.0, %v3385
    %v3387 = vpop.f32.mrf.mxu0
    %v3388 = vadd.f32 0.0, %v3387
    %3389 = vmatmul.bf16.gmra.mxu0 %v3347
    %v3390 = vpop.f32.mrf.mxu0
    %v3391 = vadd.f32 0.0, %v3390
    %v3392 = vpop.f32.mrf.mxu0
    %v3393 = vadd.f32 0.0, %v3392
    %3394 = vmatmul.bf16.gmra.mxu0 %v3350
    %v3395 = vpop.f32.mrf.mxu0
    %v3396 = vadd.f32 0.0, %v3395
    %v3397 = vpop.f32.mrf.mxu0
    %v3398 = vadd.f32 0.0, %v3397
    %3399 = vmatmul.bf16.gmra.mxu0 %v3353
    %v3400 = vpop.f32.mrf.mxu0
    %v3401 = vadd.f32 0.0, %v3400
    %v3402 = vpop.f32.mrf.mxu0
    %v3403 = vadd.f32 0.0, %v3402
    %3404 = vmatmul.bf16.gmra.mxu0 %v3356
    %v3405 = vpop.f32.mrf.mxu0
    %v3406 = vadd.f32 0.0, %v3405
    %v3407 = vpop.f32.mrf.mxu0
    %v3408 = vadd.f32 0.0, %v3407
    %3409 = vdwg.mxu0
    %v3410 = vadd.f32 %v3266, %v3371
    %v3411 = vadd.f32 %v3268, %v3373
    %v3412 = vadd.f32 %v3271, %v3376
    %v3413 = vadd.f32 %v3273, %v3378
    %v3414 = vadd.f32 %v3276, %v3381
    %v3415 = vadd.f32 %v3278, %v3383
    %v3416 = vadd.f32 %v3281, %v3386
    %v3417 = vadd.f32 %v3283, %v3388
    %v3418 = vadd.f32 %v3286, %v3391
    %v3419 = vadd.f32 %v3288, %v3393
    %v3420 = vadd.f32 %v3291, %v3396
    %v3421 = vadd.f32 %v3293, %v3398
    %v3422 = vadd.f32 %v3296, %v3401
    %v3423 = vadd.f32 %v3298, %v3403
    %v3424 = vadd.f32 %v3301, %v3406
    %v3425 = vadd.f32 %v3303, %v3408
    %v3426 = vld [vmem:[%s0 + $0x88] sm:$0xf]
    %v3427 = vld [vmem:[%s0 + $0x8c] sm:$0xf]
    %v3428 = vld [vmem:[%s0 + $0x90] sm:$0xf]
    %v3429 = vld [vmem:[%s0 + $0x94] sm:$0xf]
    %v3430 = vld [vmem:[%s0 + $0x98] sm:$0xf]
    %v3431 = vld [vmem:[%s0 + $0x9c] sm:$0xf]
    %v3432 = vld [vmem:[%s0 + $0xa0] sm:$0xf]
    %v3433 = vld [vmem:[%s0 + $0xa4] sm:$0xf]
    %v3434 = vld [vmem:[%s0 + $0xa8] sm:$0xf]
    %v3435 = vld [vmem:[%s0 + $0xac] sm:$0xf]
    %v3436 = vld [vmem:[%s0 + $0xb0] sm:$0xf]
    %v3437 = vld [vmem:[%s0 + $0xb4] sm:$0xf]
    %v3438 = vld [vmem:[%s0 + $0xb8] sm:$0xf]
    %v3439 = vld [vmem:[%s0 + $0xbc] sm:$0xf]
    %v3440 = vld [vmem:[%s0 + $0xc0] sm:$0xf]
    %v3441 = vld [vmem:[%s0 + $0xc4] sm:$0xf]
    %v3442 = vld [vmem:[%s1 + $0x4] sm:$0x3]
    %v3459 = vunpack.c.l.b16 %v3426
    %v3460 = vunpack.c.l.b16 %v3427
    %v3461 = vunpack.c.l.b16 %v3428
    %v3462 = vunpack.c.l.b16 %v3429
    %v3463 = vunpack.c.l.b16 %v3430
    %v3464 = vunpack.c.l.b16 %v3431
    %v3465 = vunpack.c.l.b16 %v3432
    %v3466 = vunpack.c.l.b16 %v3433
    %v3467 = vunpack.c.l.b16 %v3434
    %v3468 = vunpack.c.l.b16 %v3435
    %v3469 = vunpack.c.l.b16 %v3436
    %v3470 = vunpack.c.l.b16 %v3437
    %v3471 = vunpack.c.l.b16 %v3438
    %v3472 = vunpack.c.l.b16 %v3439
    %v3473 = vunpack.c.l.b16 %v3440
    %v3474 = vunpack.c.l.b16 %v3441
    %v3475 = vpack.c.b16 %v3460, %v3459
    %v3476 = vpack.c.b16 %v3462, %v3461
    %v3477 = vpack.c.b16 %v3464, %v3463
    %v3478 = vpack.c.b16 %v3466, %v3465
    %v3479 = vpack.c.b16 %v3468, %v3467
    %v3480 = vpack.c.b16 %v3470, %v3469
    %v3481 = vpack.c.b16 %v3472, %v3471
    %v3482 = vpack.c.b16 %v3474, %v3473
    %v3484 = vunpack.c.l.b16 %v3442
    %v3485 = vpack.c.b16 %v3484, %v3484
    %v3487 = vshrl.u32 %v3485, 16
    %v3489 = vshll.u32 %v3485, 16
    %v3491 = vrot.slane %v3489, 1
    %v3492 = vor.u32 %v3487, %v3491
    %v3494 = vsel %vm189, %v3475, 0
    %v3497 = vsel %vm189, %v3476, 0
    %v3500 = vsel %vm189, %v3477, 0
    %v3503 = vsel %vm189, %v3478, 0
    %v3506 = vsel %vm189, %v3479, 0
    %v3509 = vsel %vm189, %v3480, 0
    %v3512 = vsel %vm189, %v3481, 0
    %v3515 = vsel %vm189, %v3482, 0
    %v3518 = vand.u32 %v3492, %v217
    %3520 = vmatpush.bf16.msra.mxu0 0
    %3521 = vmatpush.bf16.msra.mxu0 0
    %3522 = vmatpush.bf16.msra.mxu0 0
    %3523 = vmatpush.bf16.msra.mxu0 0
    %3524 = vmatpush.bf16.msra.mxu0 0
    %3525 = vmatpush.bf16.msra.mxu0 0
    %3526 = vmatpush.bf16.msra.mxu0 0
    %3527 = vmatpush.bf16.msra.mxu0 %v3518
    %3528 = vmatmul.bf16.gmra.mxu0 %v3494
    %v3529 = vpop.f32.mrf.mxu0
    %v3530 = vadd.f32 0.0, %v3529
    %v3531 = vpop.f32.mrf.mxu0
    %v3532 = vadd.f32 0.0, %v3531
    %3533 = vmatmul.bf16.gmra.mxu0 %v3497
    %v3534 = vpop.f32.mrf.mxu0
    %v3535 = vadd.f32 0.0, %v3534
    %v3536 = vpop.f32.mrf.mxu0
    %v3537 = vadd.f32 0.0, %v3536
    %3538 = vmatmul.bf16.gmra.mxu0 %v3500
    %v3539 = vpop.f32.mrf.mxu0
    %v3540 = vadd.f32 0.0, %v3539
    %v3541 = vpop.f32.mrf.mxu0
    %v3542 = vadd.f32 0.0, %v3541
    %3543 = vmatmul.bf16.gmra.mxu0 %v3503
    %v3544 = vpop.f32.mrf.mxu0
    %v3545 = vadd.f32 0.0, %v3544
    %v3546 = vpop.f32.mrf.mxu0
    %v3547 = vadd.f32 0.0, %v3546
    %3548 = vmatmul.bf16.gmra.mxu0 %v3506
    %v3549 = vpop.f32.mrf.mxu0
    %v3550 = vadd.f32 0.0, %v3549
    %v3551 = vpop.f32.mrf.mxu0
    %v3552 = vadd.f32 0.0, %v3551
    %3553 = vmatmul.bf16.gmra.mxu0 %v3509
    %v3554 = vpop.f32.mrf.mxu0
    %v3555 = vadd.f32 0.0, %v3554
    %v3556 = vpop.f32.mrf.mxu0
    %v3557 = vadd.f32 0.0, %v3556
    %3558 = vmatmul.bf16.gmra.mxu0 %v3512
    %v3559 = vpop.f32.mrf.mxu0
    %v3560 = vadd.f32 0.0, %v3559
    %v3561 = vpop.f32.mrf.mxu0
    %v3562 = vadd.f32 0.0, %v3561
    %3563 = vmatmul.bf16.gmra.mxu0 %v3515
    %v3564 = vpop.f32.mrf.mxu0
    %v3565 = vadd.f32 0.0, %v3564
    %v3566 = vpop.f32.mrf.mxu0
    %v3567 = vadd.f32 0.0, %v3566
    %3568 = vdwg.mxu0
    %v3569 = vadd.f32 %v3410, %v3530
    %v3570 = vadd.f32 %v3411, %v3532
    %v3571 = vadd.f32 %v3412, %v3535
    %v3572 = vadd.f32 %v3413, %v3537
    %v3573 = vadd.f32 %v3414, %v3540
    %v3574 = vadd.f32 %v3415, %v3542
    %v3575 = vadd.f32 %v3416, %v3545
    %v3576 = vadd.f32 %v3417, %v3547
    %v3577 = vadd.f32 %v3418, %v3550
    %v3578 = vadd.f32 %v3419, %v3552
    %v3579 = vadd.f32 %v3420, %v3555
    %v3580 = vadd.f32 %v3421, %v3557
    %v3581 = vadd.f32 %v3422, %v3560
    %v3582 = vadd.f32 %v3423, %v3562
    %v3583 = vadd.f32 %v3424, %v3565
    %v3584 = vadd.f32 %v3425, %v3567
    %v3585 = vld [vmem:[%s0 + $0x88] sm:$0xf]
    %v3586 = vld [vmem:[%s0 + $0x8c] sm:$0xf]
    %v3587 = vld [vmem:[%s0 + $0x90] sm:$0xf]
    %v3588 = vld [vmem:[%s0 + $0x94] sm:$0xf]
    %v3589 = vld [vmem:[%s0 + $0x98] sm:$0xf]
    %v3590 = vld [vmem:[%s0 + $0x9c] sm:$0xf]
    %v3591 = vld [vmem:[%s0 + $0xa0] sm:$0xf]
    %v3592 = vld [vmem:[%s0 + $0xa4] sm:$0xf]
    %v3593 = vld [vmem:[%s0 + $0xa8] sm:$0xf]
    %v3594 = vld [vmem:[%s0 + $0xac] sm:$0xf]
    %v3595 = vld [vmem:[%s0 + $0xb0] sm:$0xf]
    %v3596 = vld [vmem:[%s0 + $0xb4] sm:$0xf]
    %v3597 = vld [vmem:[%s0 + $0xb8] sm:$0xf]
    %v3598 = vld [vmem:[%s0 + $0xbc] sm:$0xf]
    %v3599 = vld [vmem:[%s0 + $0xc0] sm:$0xf]
    %v3600 = vld [vmem:[%s0 + $0xc4] sm:$0xf]
    %v3601 = vld [vmem:[%s0 + $0xc8] sm:$0x1]
    %v3602 = vld [vmem:[%s1 + $0x4] sm:$0xc]
    %v3620 = vunpack.c.l.b16 %v3585
    %v3621 = vunpack.c.l.b16 %v3586
    %v3622 = vunpack.c.l.b16 %v3587
    %v3623 = vunpack.c.l.b16 %v3588
    %v3624 = vunpack.c.l.b16 %v3589
    %v3625 = vunpack.c.l.b16 %v3590
    %v3626 = vunpack.c.l.b16 %v3591
    %v3627 = vunpack.c.l.b16 %v3592
    %v3628 = vunpack.c.l.b16 %v3593
    %v3629 = vunpack.c.l.b16 %v3594
    %v3630 = vunpack.c.l.b16 %v3595
    %v3631 = vunpack.c.l.b16 %v3596
    %v3632 = vunpack.c.l.b16 %v3597
    %v3633 = vunpack.c.l.b16 %v3598
    %v3634 = vunpack.c.l.b16 %v3599
    %v3635 = vunpack.c.l.b16 %v3600
    %v3636 = vunpack.c.l.b16 %v3601
    %v3637 = vpack.c.b16 %v3621, %v3620
    %v3638 = vpack.c.b16 %v3623, %v3622
    %v3639 = vpack.c.b16 %v3625, %v3624
    %v3640 = vpack.c.b16 %v3627, %v3626
    %v3641 = vpack.c.b16 %v3629, %v3628
    %v3642 = vpack.c.b16 %v3631, %v3630
    %v3643 = vpack.c.b16 %v3633, %v3632
    %v3644 = vpack.c.b16 %v3635, %v3634
    %v3645 = vpack.c.b16 %v3636, %v3636
    %v3647 = vshrl.u32 %v3637, 16
    %v3649 = vshll.u32 %v3637, 16
    %v3651 = vrot.slane %v3649, 1
    %v3652 = vor.u32 %v3647, %v3651
    %v3654 = vshll.u32 %v3638, 16
    %v3656 = vrot.slane %v3654, 1
    %v3657 = vsel %vm109, %v3652, %v3656
    %v3658 = vshrl.u32 %v3638, 16
    %v3660 = vor.u32 %v3658, %v3656
    %v3662 = vshll.u32 %v3639, 16
    %v3664 = vrot.slane %v3662, 1
    %v3665 = vsel %vm109, %v3660, %v3664
    %v3666 = vshrl.u32 %v3639, 16
    %v3668 = vor.u32 %v3666, %v3664
    %v3670 = vshll.u32 %v3640, 16
    %v3672 = vrot.slane %v3670, 1
    %v3673 = vsel %vm109, %v3668, %v3672
    %v3674 = vshrl.u32 %v3640, 16
    %v3676 = vor.u32 %v3674, %v3672
    %v3678 = vshll.u32 %v3641, 16
    %v3680 = vrot.slane %v3678, 1
    %v3681 = vsel %vm109, %v3676, %v3680
    %v3682 = vshrl.u32 %v3641, 16
    %v3684 = vor.u32 %v3682, %v3680
    %v3686 = vshll.u32 %v3642, 16
    %v3688 = vrot.slane %v3686, 1
    %v3689 = vsel %vm109, %v3684, %v3688
    %v3690 = vshrl.u32 %v3642, 16
    %v3692 = vor.u32 %v3690, %v3688
    %v3694 = vshll.u32 %v3643, 16
    %v3696 = vrot.slane %v3694, 1
    %v3697 = vsel %vm109, %v3692, %v3696
    %v3698 = vshrl.u32 %v3643, 16
    %v3700 = vor.u32 %v3698, %v3696
    %v3702 = vshll.u32 %v3644, 16
    %v3704 = vrot.slane %v3702, 1
    %v3705 = vsel %vm109, %v3700, %v3704
    %v3706 = vshrl.u32 %v3644, 16
    %v3708 = vor.u32 %v3706, %v3704
    %v3710 = vshll.u32 %v3645, 16
    %v3712 = vrot.slane %v3710, 1
    %v3713 = vsel %vm109, %v3708, %v3712
    %v3715 = vunpack.c.l.b16 %v3602
    %v3716 = vpack.c.b16 %v3715, %v3715
    %v3717 = vrot.slane %v3716, 2
    %v3719 = vsel %vm189, %v3657, 0
    %v3722 = vsel %vm189, %v3665, 0
    %v3725 = vsel %vm189, %v3673, 0
    %v3728 = vsel %vm189, %v3681, 0
    %v3731 = vsel %vm189, %v3689, 0
    %v3734 = vsel %vm189, %v3697, 0
    %v3737 = vsel %vm189, %v3705, 0
    %v3740 = vsel %vm189, %v3713, 0
    %v3743 = vand.u32 %v3717, %v217
    %3745 = vmatpush.bf16.msra.mxu0 0
    %3746 = vmatpush.bf16.msra.mxu0 0
    %3747 = vmatpush.bf16.msra.mxu0 0
    %3748 = vmatpush.bf16.msra.mxu0 0
    %3749 = vmatpush.bf16.msra.mxu0 0
    %3750 = vmatpush.bf16.msra.mxu0 0
    %3751 = vmatpush.bf16.msra.mxu0 0
    %3752 = vmatpush.bf16.msra.mxu0 %v3743
    %3753 = vmatmul.bf16.gmra.mxu0 %v3719
    %v3754 = vpop.f32.mrf.mxu0
    %v3755 = vadd.f32 0.0, %v3754
    %v3756 = vpop.f32.mrf.mxu0
    %v3757 = vadd.f32 0.0, %v3756
    %3758 = vmatmul.bf16.gmra.mxu0 %v3722
    %v3759 = vpop.f32.mrf.mxu0
    %v3760 = vadd.f32 0.0, %v3759
    %v3761 = vpop.f32.mrf.mxu0
    %v3762 = vadd.f32 0.0, %v3761
    %3763 = vmatmul.bf16.gmra.mxu0 %v3725
    %v3764 = vpop.f32.mrf.mxu0
    %v3765 = vadd.f32 0.0, %v3764
    %v3766 = vpop.f32.mrf.mxu0
    %v3767 = vadd.f32 0.0, %v3766
    %3768 = vmatmul.bf16.gmra.mxu0 %v3728
    %v3769 = vpop.f32.mrf.mxu0
    %v3770 = vadd.f32 0.0, %v3769
    %v3771 = vpop.f32.mrf.mxu0
    %v3772 = vadd.f32 0.0, %v3771
    %3773 = vmatmul.bf16.gmra.mxu0 %v3731
    %v3774 = vpop.f32.mrf.mxu0
    %v3775 = vadd.f32 0.0, %v3774
    %v3776 = vpop.f32.mrf.mxu0
    %v3777 = vadd.f32 0.0, %v3776
    %3778 = vmatmul.bf16.gmra.mxu0 %v3734
    %v3779 = vpop.f32.mrf.mxu0
    %v3780 = vadd.f32 0.0, %v3779
    %v3781 = vpop.f32.mrf.mxu0
    %v3782 = vadd.f32 0.0, %v3781
    %3783 = vmatmul.bf16.gmra.mxu0 %v3737
    %v3784 = vpop.f32.mrf.mxu0
    %v3785 = vadd.f32 0.0, %v3784
    %v3786 = vpop.f32.mrf.mxu0
    %v3787 = vadd.f32 0.0, %v3786
    %3788 = vmatmul.bf16.gmra.mxu0 %v3740
    %v3789 = vpop.f32.mrf.mxu0
    %v3790 = vadd.f32 0.0, %v3789
    %v3791 = vpop.f32.mrf.mxu0
    %v3792 = vadd.f32 0.0, %v3791
    %3793 = vdwg.mxu0
    %v3794 = vadd.f32 %v3569, %v3755
    %v3795 = vadd.f32 %v3570, %v3757
    %v3796 = vadd.f32 %v3571, %v3760
    %v3797 = vadd.f32 %v3572, %v3762
    %v3798 = vadd.f32 %v3573, %v3765
    %v3799 = vadd.f32 %v3574, %v3767
    %v3800 = vadd.f32 %v3575, %v3770
    %v3801 = vadd.f32 %v3576, %v3772
    %v3802 = vadd.f32 %v3577, %v3775
    %v3803 = vadd.f32 %v3578, %v3777
    %v3804 = vadd.f32 %v3579, %v3780
    %v3805 = vadd.f32 %v3580, %v3782
    %v3806 = vadd.f32 %v3581, %v3785
    %v3807 = vadd.f32 %v3582, %v3787
    %v3808 = vadd.f32 %v3583, %v3790
    %v3809 = vadd.f32 %v3584, %v3792
    %v3810 = vld [vmem:[%s0 + $0x88] sm:$0xe]
    %v3811 = vld [vmem:[%s1 + $0x4] sm:$0x8]
    %v3812 = vld [vmem:[%s1 + $0x8] sm:$0x1]
    %v3814 = vunpack.c.l.b16 %v3810
    %v3815 = vpack.c.b16 %v3621, %v3814
    %v3816 = vrot.slane %v3815, 1
    %v3817 = vrot.slane %v3638, 1
    %v3818 = vsel %vm344, %v3816, %v3817
    %v3819 = vrot.slane %v3639, 1
    %v3820 = vsel %vm344, %v3817, %v3819
    %v3821 = vrot.slane %v3640, 1
    %v3822 = vsel %vm344, %v3819, %v3821
    %v3823 = vrot.slane %v3641, 1
    %v3824 = vsel %vm344, %v3821, %v3823
    %v3825 = vrot.slane %v3642, 1
    %v3826 = vsel %vm344, %v3823, %v3825
    %v3827 = vrot.slane %v3643, 1
    %v3828 = vsel %vm344, %v3825, %v3827
    %v3829 = vrot.slane %v3644, 1
    %v3830 = vsel %vm344, %v3827, %v3829
    %v3831 = vrot.slane %v3645, 1
    %v3832 = vsel %vm344, %v3829, %v3831
    %v3835 = vunpack.c.l.b16 %v3811
    %v3836 = vunpack.c.l.b16 %v3812
    %v3837 = vpack.c.b16 %v3836, %v3835
    %v3839 = vshrl.u32 %v3837, 16
    %v3841 = vrot.slane %v3839, 3
    %v3842 = vshll.u32 %v3837, 16
    %v3844 = vrot.slane %v3842, 4
    %v3845 = vor.u32 %v3841, %v3844
    %v3847 = vsel %vm189, %v3818, 0
    %v3850 = vsel %vm189, %v3820, 0
    %v3853 = vsel %vm189, %v3822, 0
    %v3856 = vsel %vm189, %v3824, 0
    %v3859 = vsel %vm189, %v3826, 0
    %v3862 = vsel %vm189, %v3828, 0
    %v3865 = vsel %vm189, %v3830, 0
    %v3868 = vsel %vm189, %v3832, 0
    %v3871 = vand.u32 %v3845, %v217
    %3873 = vmatpush.bf16.msra.mxu0 0
    %3874 = vmatpush.bf16.msra.mxu0 0
    %3875 = vmatpush.bf16.msra.mxu0 0
    %3876 = vmatpush.bf16.msra.mxu0 0
    %3877 = vmatpush.bf16.msra.mxu0 0
    %3878 = vmatpush.bf16.msra.mxu0 0
    %3879 = vmatpush.bf16.msra.mxu0 0
    %3880 = vmatpush.bf16.msra.mxu0 %v3871
    %3881 = vmatmul.bf16.gmra.mxu0 %v3847
    %v3882 = vpop.f32.mrf.mxu0
    %v3883 = vadd.f32 0.0, %v3882
    %v3884 = vpop.f32.mrf.mxu0
    %v3885 = vadd.f32 0.0, %v3884
    %3886 = vmatmul.bf16.gmra.mxu0 %v3850
    %v3887 = vpop.f32.mrf.mxu0
    %v3888 = vadd.f32 0.0, %v3887
    %v3889 = vpop.f32.mrf.mxu0
    %v3890 = vadd.f32 0.0, %v3889
    %3891 = vmatmul.bf16.gmra.mxu0 %v3853
    %v3892 = vpop.f32.mrf.mxu0
    %v3893 = vadd.f32 0.0, %v3892
    %v3894 = vpop.f32.mrf.mxu0
    %v3895 = vadd.f32 0.0, %v3894
    %3896 = vmatmul.bf16.gmra.mxu0 %v3856
    %v3897 = vpop.f32.mrf.mxu0
    %v3898 = vadd.f32 0.0, %v3897
    %v3899 = vpop.f32.mrf.mxu0
    %v3900 = vadd.f32 0.0, %v3899
    %3901 = vmatmul.bf16.gmra.mxu0 %v3859
    %v3902 = vpop.f32.mrf.mxu0
    %v3903 = vadd.f32 0.0, %v3902
    %v3904 = vpop.f32.mrf.mxu0
    %v3905 = vadd.f32 0.0, %v3904
    %3906 = vmatmul.bf16.gmra.mxu0 %v3862
    %v3907 = vpop.f32.mrf.mxu0
    %v3908 = vadd.f32 0.0, %v3907
    %v3909 = vpop.f32.mrf.mxu0
    %v3910 = vadd.f32 0.0, %v3909
    %3911 = vmatmul.bf16.gmra.mxu0 %v3865
    %v3912 = vpop.f32.mrf.mxu0
    %v3913 = vadd.f32 0.0, %v3912
    %v3914 = vpop.f32.mrf.mxu0
    %v3915 = vadd.f32 0.0, %v3914
    %3916 = vmatmul.bf16.gmra.mxu0 %v3868
    %v3917 = vpop.f32.mrf.mxu0
    %v3918 = vadd.f32 0.0, %v3917
    %v3919 = vpop.f32.mrf.mxu0
    %v3920 = vadd.f32 0.0, %v3919
    %3921 = vdwg.mxu0
    %v3922 = vadd.f32 %v3794, %v3883
    %v3923 = vadd.f32 %v3795, %v3885
    %v3924 = vadd.f32 %v3796, %v3888
    %v3925 = vadd.f32 %v3797, %v3890
    %v3926 = vadd.f32 %v3798, %v3893
    %v3927 = vadd.f32 %v3799, %v3895
    %v3928 = vadd.f32 %v3800, %v3898
    %v3929 = vadd.f32 %v3801, %v3900
    %v3930 = vadd.f32 %v3802, %v3903
    %v3931 = vadd.f32 %v3803, %v3905
    %v3932 = vadd.f32 %v3804, %v3908
    %v3933 = vadd.f32 %v3805, %v3910
    %v3934 = vadd.f32 %v3806, %v3913
    %v3935 = vadd.f32 %v3807, %v3915
    %v3936 = vadd.f32 %v3808, %v3918
    %v3937 = vadd.f32 %v3809, %v3920
    %v3938 = vld [vmem:[%s0 + $0x90] sm:$0xf]
    %v3939 = vld [vmem:[%s0 + $0x94] sm:$0xf]
    %v3940 = vld [vmem:[%s0 + $0x98] sm:$0xf]
    %v3941 = vld [vmem:[%s0 + $0x9c] sm:$0xf]
    %v3942 = vld [vmem:[%s0 + $0xa0] sm:$0xf]
    %v3943 = vld [vmem:[%s0 + $0xa4] sm:$0xf]
    %v3944 = vld [vmem:[%s0 + $0xa8] sm:$0xf]
    %v3945 = vld [vmem:[%s0 + $0xac] sm:$0xf]
    %v3946 = vld [vmem:[%s0 + $0xb0] sm:$0xf]
    %v3947 = vld [vmem:[%s0 + $0xb4] sm:$0xf]
    %v3948 = vld [vmem:[%s0 + $0xb8] sm:$0xf]
    %v3949 = vld [vmem:[%s0 + $0xbc] sm:$0xf]
    %v3950 = vld [vmem:[%s0 + $0xc0] sm:$0xf]
    %v3951 = vld [vmem:[%s0 + $0xc4] sm:$0xf]
    %v3952 = vld [vmem:[%s0 + $0xc8] sm:$0xf]
    %v3953 = vld [vmem:[%s0 + $0xcc] sm:$0xf]
    %v3954 = vld [vmem:[%s1 + $0x8] sm:$0x6]
    %v3971 = vunpack.c.l.b16 %v3938
    %v3972 = vunpack.c.l.b16 %v3939
    %v3973 = vunpack.c.l.b16 %v3940
    %v3974 = vunpack.c.l.b16 %v3941
    %v3975 = vunpack.c.l.b16 %v3942
    %v3976 = vunpack.c.l.b16 %v3943
    %v3977 = vunpack.c.l.b16 %v3944
    %v3978 = vunpack.c.l.b16 %v3945
    %v3979 = vunpack.c.l.b16 %v3946
    %v3980 = vunpack.c.l.b16 %v3947
    %v3981 = vunpack.c.l.b16 %v3948
    %v3982 = vunpack.c.l.b16 %v3949
    %v3983 = vunpack.c.l.b16 %v3950
    %v3984 = vunpack.c.l.b16 %v3951
    %v3985 = vunpack.c.l.b16 %v3952
    %v3986 = vunpack.c.l.b16 %v3953
    %v3987 = vpack.c.b16 %v3972, %v3971
    %v3988 = vpack.c.b16 %v3974, %v3973
    %v3989 = vpack.c.b16 %v3976, %v3975
    %v3990 = vpack.c.b16 %v3978, %v3977
    %v3991 = vpack.c.b16 %v3980, %v3979
    %v3992 = vpack.c.b16 %v3982, %v3981
    %v3993 = vpack.c.b16 %v3984, %v3983
    %v3994 = vpack.c.b16 %v3986, %v3985
    %v3996 = vunpack.c.l.b16 %v3954
    %v3997 = vpack.c.b16 %v3996, %v3996
    %v3998 = vrot.slane %v3997, 1
    %v4000 = vsel %vm189, %v3987, 0
    %v4003 = vsel %vm189, %v3988, 0
    %v4006 = vsel %vm189, %v3989, 0
    %v4009 = vsel %vm189, %v3990, 0
    %v4012 = vsel %vm189, %v3991, 0
    %v4015 = vsel %vm189, %v3992, 0
    %v4018 = vsel %vm189, %v3993, 0
    %v4021 = vsel %vm189, %v3994, 0
    %v4024 = vand.u32 %v3998, %v217
    %4026 = vmatpush.bf16.msra.mxu0 0
    %4027 = vmatpush.bf16.msra.mxu0 0
    %4028 = vmatpush.bf16.msra.mxu0 0
    %4029 = vmatpush.bf16.msra.mxu0 0
    %4030 = vmatpush.bf16.msra.mxu0 0
    %4031 = vmatpush.bf16.msra.mxu0 0
    %4032 = vmatpush.bf16.msra.mxu0 0
    %4033 = vmatpush.bf16.msra.mxu0 %v4024
    %4034 = vmatmul.bf16.gmra.mxu0 %v4000
    %v4035 = vpop.f32.mrf.mxu0
    %v4036 = vadd.f32 0.0, %v4035
    %v4037 = vpop.f32.mrf.mxu0
    %v4038 = vadd.f32 0.0, %v4037
    %4039 = vmatmul.bf16.gmra.mxu0 %v4003
    %v4040 = vpop.f32.mrf.mxu0
    %v4041 = vadd.f32 0.0, %v4040
    %v4042 = vpop.f32.mrf.mxu0
    %v4043 = vadd.f32 0.0, %v4042
    %4044 = vmatmul.bf16.gmra.mxu0 %v4006
    %v4045 = vpop.f32.mrf.mxu0
    %v4046 = vadd.f32 0.0, %v4045
    %v4047 = vpop.f32.mrf.mxu0
    %v4048 = vadd.f32 0.0, %v4047
    %4049 = vmatmul.bf16.gmra.mxu0 %v4009
    %v4050 = vpop.f32.mrf.mxu0
    %v4051 = vadd.f32 0.0, %v4050
    %v4052 = vpop.f32.mrf.mxu0
    %v4053 = vadd.f32 0.0, %v4052
    %4054 = vmatmul.bf16.gmra.mxu0 %v4012
    %v4055 = vpop.f32.mrf.mxu0
    %v4056 = vadd.f32 0.0, %v4055
    %v4057 = vpop.f32.mrf.mxu0
    %v4058 = vadd.f32 0.0, %v4057
    %4059 = vmatmul.bf16.gmra.mxu0 %v4015
    %v4060 = vpop.f32.mrf.mxu0
    %v4061 = vadd.f32 0.0, %v4060
    %v4062 = vpop.f32.mrf.mxu0
    %v4063 = vadd.f32 0.0, %v4062
    %4064 = vmatmul.bf16.gmra.mxu0 %v4018
    %v4065 = vpop.f32.mrf.mxu0
    %v4066 = vadd.f32 0.0, %v4065
    %v4067 = vpop.f32.mrf.mxu0
    %v4068 = vadd.f32 0.0, %v4067
    %4069 = vmatmul.bf16.gmra.mxu0 %v4021
    %v4070 = vpop.f32.mrf.mxu0
    %v4071 = vadd.f32 0.0, %v4070
    %v4072 = vpop.f32.mrf.mxu0
    %v4073 = vadd.f32 0.0, %v4072
    %4074 = vdwg.mxu0
    %v4075 = vadd.f32 %v3922, %v4036
    %v4076 = vadd.f32 %v3923, %v4038
    %v4077 = vadd.f32 %v3924, %v4041
    %v4078 = vadd.f32 %v3925, %v4043
    %v4079 = vadd.f32 %v3926, %v4046
    %v4080 = vadd.f32 %v3927, %v4048
    %v4081 = vadd.f32 %v3928, %v4051
    %v4082 = vadd.f32 %v3929, %v4053
    %v4083 = vadd.f32 %v3930, %v4056
    %v4084 = vadd.f32 %v3931, %v4058
    %v4085 = vadd.f32 %v3932, %v4061
    %v4086 = vadd.f32 %v3933, %v4063
    %v4087 = vadd.f32 %v3934, %v4066
    %v4088 = vadd.f32 %v3935, %v4068
    %v4089 = vadd.f32 %v3936, %v4071
    %v4090 = vadd.f32 %v3937, %v4073
    %v4091 = vld [vmem:[%s0 + $0x90] sm:$0xf]
    %v4092 = vld [vmem:[%s0 + $0x94] sm:$0xf]
    %v4093 = vld [vmem:[%s0 + $0x98] sm:$0xf]
    %v4094 = vld [vmem:[%s0 + $0x9c] sm:$0xf]
    %v4095 = vld [vmem:[%s0 + $0xa0] sm:$0xf]
    %v4096 = vld [vmem:[%s0 + $0xa4] sm:$0xf]
    %v4097 = vld [vmem:[%s0 + $0xa8] sm:$0xf]
    %v4098 = vld [vmem:[%s0 + $0xac] sm:$0xf]
    %v4099 = vld [vmem:[%s0 + $0xb0] sm:$0xf]
    %v4100 = vld [vmem:[%s0 + $0xb4] sm:$0xf]
    %v4101 = vld [vmem:[%s0 + $0xb8] sm:$0xf]
    %v4102 = vld [vmem:[%s0 + $0xbc] sm:$0xf]
    %v4103 = vld [vmem:[%s0 + $0xc0] sm:$0xf]
    %v4104 = vld [vmem:[%s0 + $0xc4] sm:$0xf]
    %v4105 = vld [vmem:[%s0 + $0xc8] sm:$0xf]
    %v4106 = vld [vmem:[%s0 + $0xcc] sm:$0xf]
    %v4107 = vld [vmem:[%s0 + $0xd0] sm:$0x1]
    %v4108 = vld [vmem:[%s1 + $0x8] sm:$0xc]
    %v4126 = vunpack.c.l.b16 %v4091
    %v4127 = vunpack.c.l.b16 %v4092
    %v4128 = vunpack.c.l.b16 %v4093
    %v4129 = vunpack.c.l.b16 %v4094
    %v4130 = vunpack.c.l.b16 %v4095
    %v4131 = vunpack.c.l.b16 %v4096
    %v4132 = vunpack.c.l.b16 %v4097
    %v4133 = vunpack.c.l.b16 %v4098
    %v4134 = vunpack.c.l.b16 %v4099
    %v4135 = vunpack.c.l.b16 %v4100
    %v4136 = vunpack.c.l.b16 %v4101
    %v4137 = vunpack.c.l.b16 %v4102
    %v4138 = vunpack.c.l.b16 %v4103
    %v4139 = vunpack.c.l.b16 %v4104
    %v4140 = vunpack.c.l.b16 %v4105
    %v4141 = vunpack.c.l.b16 %v4106
    %v4142 = vunpack.c.l.b16 %v4107
    %v4143 = vpack.c.b16 %v4127, %v4126
    %v4144 = vpack.c.b16 %v4129, %v4128
    %v4145 = vpack.c.b16 %v4131, %v4130
    %v4146 = vpack.c.b16 %v4133, %v4132
    %v4147 = vpack.c.b16 %v4135, %v4134
    %v4148 = vpack.c.b16 %v4137, %v4136
    %v4149 = vpack.c.b16 %v4139, %v4138
    %v4150 = vpack.c.b16 %v4141, %v4140
    %v4151 = vpack.c.b16 %v4142, %v4142
    %v4153 = vshrl.u32 %v4143, 16
    %v4155 = vshll.u32 %v4143, 16
    %v4157 = vrot.slane %v4155, 1
    %v4158 = vor.u32 %v4153, %v4157
    %v4160 = vshll.u32 %v4144, 16
    %v4162 = vrot.slane %v4160, 1
    %v4163 = vsel %vm109, %v4158, %v4162
    %v4164 = vshrl.u32 %v4144, 16
    %v4166 = vor.u32 %v4164, %v4162
    %v4168 = vshll.u32 %v4145, 16
    %v4170 = vrot.slane %v4168, 1
    %v4171 = vsel %vm109, %v4166, %v4170
    %v4172 = vshrl.u32 %v4145, 16
    %v4174 = vor.u32 %v4172, %v4170
    %v4176 = vshll.u32 %v4146, 16
    %v4178 = vrot.slane %v4176, 1
    %v4179 = vsel %vm109, %v4174, %v4178
    %v4180 = vshrl.u32 %v4146, 16
    %v4182 = vor.u32 %v4180, %v4178
    %v4184 = vshll.u32 %v4147, 16
    %v4186 = vrot.slane %v4184, 1
    %v4187 = vsel %vm109, %v4182, %v4186
    %v4188 = vshrl.u32 %v4147, 16
    %v4190 = vor.u32 %v4188, %v4186
    %v4192 = vshll.u32 %v4148, 16
    %v4194 = vrot.slane %v4192, 1
    %v4195 = vsel %vm109, %v4190, %v4194
    %v4196 = vshrl.u32 %v4148, 16
    %v4198 = vor.u32 %v4196, %v4194
    %v4200 = vshll.u32 %v4149, 16
    %v4202 = vrot.slane %v4200, 1
    %v4203 = vsel %vm109, %v4198, %v4202
    %v4204 = vshrl.u32 %v4149, 16
    %v4206 = vor.u32 %v4204, %v4202
    %v4208 = vshll.u32 %v4150, 16
    %v4210 = vrot.slane %v4208, 1
    %v4211 = vsel %vm109, %v4206, %v4210
    %v4212 = vshrl.u32 %v4150, 16
    %v4214 = vor.u32 %v4212, %v4210
    %v4216 = vshll.u32 %v4151, 16
    %v4218 = vrot.slane %v4216, 1
    %v4219 = vsel %vm109, %v4214, %v4218
    %v4221 = vunpack.c.l.b16 %v4108
    %v4222 = vpack.c.b16 %v4221, %v4221
    %v4224 = vshrl.u32 %v4222, 16
    %v4226 = vrot.slane %v4224, 2
    %v4227 = vshll.u32 %v4222, 16
    %v4229 = vrot.slane %v4227, 3
    %v4230 = vor.u32 %v4226, %v4229
    %v4232 = vsel %vm189, %v4163, 0
    %v4235 = vsel %vm189, %v4171, 0
    %v4238 = vsel %vm189, %v4179, 0
    %v4241 = vsel %vm189, %v4187, 0
    %v4244 = vsel %vm189, %v4195, 0
    %v4247 = vsel %vm189, %v4203, 0
    %v4250 = vsel %vm189, %v4211, 0
    %v4253 = vsel %vm189, %v4219, 0
    %v4256 = vand.u32 %v4230, %v217
    %4258 = vmatpush.bf16.msra.mxu0 0
    %4259 = vmatpush.bf16.msra.mxu0 0
    %4260 = vmatpush.bf16.msra.mxu0 0
    %4261 = vmatpush.bf16.msra.mxu0 0
    %4262 = vmatpush.bf16.msra.mxu0 0
    %4263 = vmatpush.bf16.msra.mxu0 0
    %4264 = vmatpush.bf16.msra.mxu0 0
    %4265 = vmatpush.bf16.msra.mxu0 %v4256
    %4266 = vmatmul.bf16.gmra.mxu0 %v4232
    %v4267 = vpop.f32.mrf.mxu0
    %v4268 = vadd.f32 0.0, %v4267
    %v4269 = vpop.f32.mrf.mxu0
    %v4270 = vadd.f32 0.0, %v4269
    %4271 = vmatmul.bf16.gmra.mxu0 %v4235
    %v4272 = vpop.f32.mrf.mxu0
    %v4273 = vadd.f32 0.0, %v4272
    %v4274 = vpop.f32.mrf.mxu0
    %v4275 = vadd.f32 0.0, %v4274
    %4276 = vmatmul.bf16.gmra.mxu0 %v4238
    %v4277 = vpop.f32.mrf.mxu0
    %v4278 = vadd.f32 0.0, %v4277
    %v4279 = vpop.f32.mrf.mxu0
    %v4280 = vadd.f32 0.0, %v4279
    %4281 = vmatmul.bf16.gmra.mxu0 %v4241
    %v4282 = vpop.f32.mrf.mxu0
    %v4283 = vadd.f32 0.0, %v4282
    %v4284 = vpop.f32.mrf.mxu0
    %v4285 = vadd.f32 0.0, %v4284
    %4286 = vmatmul.bf16.gmra.mxu0 %v4244
    %v4287 = vpop.f32.mrf.mxu0
    %v4288 = vadd.f32 0.0, %v4287
    %v4289 = vpop.f32.mrf.mxu0
    %v4290 = vadd.f32 0.0, %v4289
    %4291 = vmatmul.bf16.gmra.mxu0 %v4247
    %v4292 = vpop.f32.mrf.mxu0
    %v4293 = vadd.f32 0.0, %v4292
    %v4294 = vpop.f32.mrf.mxu0
    %v4295 = vadd.f32 0.0, %v4294
    %4296 = vmatmul.bf16.gmra.mxu0 %v4250
    %v4297 = vpop.f32.mrf.mxu0
    %v4298 = vadd.f32 0.0, %v4297
    %v4299 = vpop.f32.mrf.mxu0
    %v4300 = vadd.f32 0.0, %v4299
    %4301 = vmatmul.bf16.gmra.mxu0 %v4253
    %v4302 = vpop.f32.mrf.mxu0
    %v4303 = vadd.f32 0.0, %v4302
    %v4304 = vpop.f32.mrf.mxu0
    %v4305 = vadd.f32 0.0, %v4304
    %4306 = vdwg.mxu0
    %v4307 = vadd.f32 %v4075, %v4268
    %v4308 = vadd.f32 %v4076, %v4270
    %v4309 = vadd.f32 %v4077, %v4273
    %v4310 = vadd.f32 %v4078, %v4275
    %v4311 = vadd.f32 %v4079, %v4278
    %v4312 = vadd.f32 %v4080, %v4280
    %v4313 = vadd.f32 %v4081, %v4283
    %v4314 = vadd.f32 %v4082, %v4285
    %v4315 = vadd.f32 %v4083, %v4288
    %v4316 = vadd.f32 %v4084, %v4290
    %v4317 = vadd.f32 %v4085, %v4293
    %v4318 = vadd.f32 %v4086, %v4295
    %v4319 = vadd.f32 %v4087, %v4298
    %v4320 = vadd.f32 %v4088, %v4300
    %v4321 = vadd.f32 %v4089, %v4303
    %v4322 = vadd.f32 %v4090, %v4305
    %v4323 = vld [vmem:[%s0 + $0x90] sm:$0xe]
    %v4324 = vld [vmem:[%s1 + $0xc] sm:$0x3]
    %v4326 = vunpack.c.l.b16 %v4323
    %v4327 = vpack.c.b16 %v4127, %v4326
    %v4328 = vrot.slane %v4327, 1
    %v4329 = vrot.slane %v4144, 1
    %v4330 = vsel %vm344, %v4328, %v4329
    %v4331 = vrot.slane %v4145, 1
    %v4332 = vsel %vm344, %v4329, %v4331
    %v4333 = vrot.slane %v4146, 1
    %v4334 = vsel %vm344, %v4331, %v4333
    %v4335 = vrot.slane %v4147, 1
    %v4336 = vsel %vm344, %v4333, %v4335
    %v4337 = vrot.slane %v4148, 1
    %v4338 = vsel %vm344, %v4335, %v4337
    %v4339 = vrot.slane %v4149, 1
    %v4340 = vsel %vm344, %v4337, %v4339
    %v4341 = vrot.slane %v4150, 1
    %v4342 = vsel %vm344, %v4339, %v4341
    %v4343 = vrot.slane %v4151, 1
    %v4344 = vsel %vm344, %v4341, %v4343
    %v4346 = vsel %vm189, %v4330, 0
    %v4349 = vsel %vm189, %v4332, 0
    %v4352 = vsel %vm189, %v4334, 0
    %v4355 = vsel %vm189, %v4336, 0
    %v4358 = vsel %vm189, %v4338, 0
    %v4361 = vsel %vm189, %v4340, 0
    %v4364 = vsel %vm189, %v4342, 0
    %v4367 = vsel %vm189, %v4344, 0
    %v4370 = vand.u32 %v4324, %v217
    %4372 = vmatpush.bf16.msra.mxu0 0
    %4373 = vmatpush.bf16.msra.mxu0 0
    %4374 = vmatpush.bf16.msra.mxu0 0
    %4375 = vmatpush.bf16.msra.mxu0 0
    %4376 = vmatpush.bf16.msra.mxu0 0
    %4377 = vmatpush.bf16.msra.mxu0 0
    %4378 = vmatpush.bf16.msra.mxu0 0
    %4379 = vmatpush.bf16.msra.mxu0 %v4370
    %4380 = vmatmul.bf16.gmra.mxu0 %v4346
    %v4381 = vpop.f32.mrf.mxu0
    %v4382 = vadd.f32 0.0, %v4381
    %v4383 = vpop.f32.mrf.mxu0
    %v4384 = vadd.f32 0.0, %v4383
    %4385 = vmatmul.bf16.gmra.mxu0 %v4349
    %v4386 = vpop.f32.mrf.mxu0
    %v4387 = vadd.f32 0.0, %v4386
    %v4388 = vpop.f32.mrf.mxu0
    %v4389 = vadd.f32 0.0, %v4388
    %4390 = vmatmul.bf16.gmra.mxu0 %v4352
    %v4391 = vpop.f32.mrf.mxu0
    %v4392 = vadd.f32 0.0, %v4391
    %v4393 = vpop.f32.mrf.mxu0
    %v4394 = vadd.f32 0.0, %v4393
    %4395 = vmatmul.bf16.gmra.mxu0 %v4355
    %v4396 = vpop.f32.mrf.mxu0
    %v4397 = vadd.f32 0.0, %v4396
    %v4398 = vpop.f32.mrf.mxu0
    %v4399 = vadd.f32 0.0, %v4398
    %4400 = vmatmul.bf16.gmra.mxu0 %v4358
    %v4401 = vpop.f32.mrf.mxu0
    %v4402 = vadd.f32 0.0, %v4401
    %v4403 = vpop.f32.mrf.mxu0
    %v4404 = vadd.f32 0.0, %v4403
    %4405 = vmatmul.bf16.gmra.mxu0 %v4361
    %v4406 = vpop.f32.mrf.mxu0
    %v4407 = vadd.f32 0.0, %v4406
    %v4408 = vpop.f32.mrf.mxu0
    %v4409 = vadd.f32 0.0, %v4408
    %4410 = vmatmul.bf16.gmra.mxu0 %v4364
    %v4411 = vpop.f32.mrf.mxu0
    %v4412 = vadd.f32 0.0, %v4411
    %v4413 = vpop.f32.mrf.mxu0
    %v4414 = vadd.f32 0.0, %v4413
    %4415 = vmatmul.bf16.gmra.mxu0 %v4367
    %v4416 = vpop.f32.mrf.mxu0
    %v4417 = vadd.f32 0.0, %v4416
    %v4418 = vpop.f32.mrf.mxu0
    %v4419 = vadd.f32 0.0, %v4418
    %4420 = vdwg.mxu0
    %v4421 = vadd.f32 %v4307, %v4382
    %v4422 = vadd.f32 %v4308, %v4384
    %v4423 = vadd.f32 %v4309, %v4387
    %v4424 = vadd.f32 %v4310, %v4389
    %v4425 = vadd.f32 %v4311, %v4392
    %v4426 = vadd.f32 %v4312, %v4394
    %v4427 = vadd.f32 %v4313, %v4397
    %v4428 = vadd.f32 %v4314, %v4399
    %v4429 = vadd.f32 %v4315, %v4402
    %v4430 = vadd.f32 %v4316, %v4404
    %v4431 = vadd.f32 %v4317, %v4407
    %v4432 = vadd.f32 %v4318, %v4409
    %v4433 = vadd.f32 %v4319, %v4412
    %v4434 = vadd.f32 %v4320, %v4414
    %v4435 = vadd.f32 %v4321, %v4417
    %v4436 = vadd.f32 %v4322, %v4419
    %v4437 = vadd.f32 %v4421, %v1472
    %v4438 = vadd.f32 %v4422, %v1472
    %v4439 = vadd.f32 %v4423, %v1472
    %v4440 = vadd.f32 %v4424, %v1472
    %v4441 = vadd.f32 %v4425, %v1472
    %v4442 = vadd.f32 %v4426, %v1472
    %v4443 = vadd.f32 %v4427, %v1472
    %v4444 = vadd.f32 %v4428, %v1472
    %v4445 = vadd.f32 %v4429, %v1472
    %v4446 = vadd.f32 %v4430, %v1472
    %v4447 = vadd.f32 %v4431, %v1472
    %v4448 = vadd.f32 %v4432, %v1472
    %v4449 = vadd.f32 %v4433, %v1472
    %v4450 = vadd.f32 %v4434, %v1472
    %v4451 = vadd.f32 %v4435, %v1472
    %v4452 = vadd.f32 %v4436, %v1472
    %v4453 = vmax.f32 %v4437, 0.0
    %v4454 = vmax.f32 %v4438, 0.0
    %v4455 = vmax.f32 %v4439, 0.0
    %v4456 = vmax.f32 %v4440, 0.0
    %v4457 = vmax.f32 %v4441, 0.0
    %v4458 = vmax.f32 %v4442, 0.0
    %v4459 = vmax.f32 %v4443, 0.0
    %v4460 = vmax.f32 %v4444, 0.0
    %v4461 = vmax.f32 %v4445, 0.0
    %v4462 = vmax.f32 %v4446, 0.0
    %v4463 = vmax.f32 %v4447, 0.0
    %v4464 = vmax.f32 %v4448, 0.0
    %v4465 = vmax.f32 %v4449, 0.0
    %v4466 = vmax.f32 %v4450, 0.0
    %v4467 = vmax.f32 %v4451, 0.0
    %v4468 = vmax.f32 %v4452, 0.0
    %v4469 = vpack.c.bf16 %v4453, %v4453
    %v4470 = vpack.c.bf16 %v4454, %v4454
    %v4471 = vpack.c.bf16 %v4455, %v4455
    %v4472 = vpack.c.bf16 %v4456, %v4456
    %v4473 = vpack.c.bf16 %v4457, %v4457
    %v4474 = vpack.c.bf16 %v4458, %v4458
    %v4475 = vpack.c.bf16 %v4459, %v4459
    %v4476 = vpack.c.bf16 %v4460, %v4460
    %v4477 = vpack.c.bf16 %v4461, %v4461
    %v4478 = vpack.c.bf16 %v4462, %v4462
    %v4479 = vpack.c.bf16 %v4463, %v4463
    %v4480 = vpack.c.bf16 %v4464, %v4464
    %v4481 = vpack.c.bf16 %v4465, %v4465
    %v4482 = vpack.c.bf16 %v4466, %v4466
    %v4483 = vpack.c.bf16 %v4467, %v4467
    %v4484 = vpack.c.bf16 %v4468, %v4468
    %4485 = vst.msk [vmem:[#allocation2 + $0x80] sm:$0xf] %vm1522, %v4469
    %4486 = vst.msk [vmem:[#allocation2 + $0x84] sm:$0xf] %vm1522, %v4470
    %4487 = vst.msk [vmem:[#allocation2 + $0x88] sm:$0xf] %vm1522, %v4471
    %4488 = vst.msk [vmem:[#allocation2 + $0x8c] sm:$0xf] %vm1522, %v4472
    %4489 = vst.msk [vmem:[#allocation2 + $0x90] sm:$0xf] %vm1522, %v4473
    %4490 = vst.msk [vmem:[#allocation2 + $0x94] sm:$0xf] %vm1522, %v4474
    %4491 = vst.msk [vmem:[#allocation2 + $0x98] sm:$0xf] %vm1522, %v4475
    %4492 = vst.msk [vmem:[#allocation2 + $0x9c] sm:$0xf] %vm1522, %v4476
    %4493 = vst.msk [vmem:[#allocation2 + $0xa0] sm:$0xf] %vm1522, %v4477
    %4494 = vst.msk [vmem:[#allocation2 + $0xa4] sm:$0xf] %vm1522, %v4478
    %4495 = vst.msk [vmem:[#allocation2 + $0xa8] sm:$0xf] %vm1522, %v4479
    %4496 = vst.msk [vmem:[#allocation2 + $0xac] sm:$0xf] %vm1522, %v4480
    %4497 = vst.msk [vmem:[#allocation2 + $0xb0] sm:$0xf] %vm1522, %v4481
    %4498 = vst.msk [vmem:[#allocation2 + $0xb4] sm:$0xf] %vm1522, %v4482
    %4499 = vst.msk [vmem:[#allocation2 + $0xb8] sm:$0xf] %vm1522, %v4483
    %4500 = vst.msk [vmem:[#allocation2 + $0xbc] sm:$0xf] %vm1522, %v4484
    %v4501 = vld [vmem:[%s0 + $0xc0] sm:$0xf]
    %v4502 = vld [vmem:[%s0 + $0xc4] sm:$0xf]
    %v4503 = vld [vmem:[%s0 + $0xc8] sm:$0xf]
    %v4504 = vld [vmem:[%s0 + $0xcc] sm:$0xf]
    %v4505 = vld [vmem:[%s0 + $0xd0] sm:$0xf]
    %v4506 = vld [vmem:[%s0 + $0xd4] sm:$0xf]
    %v4507 = vld [vmem:[%s0 + $0xd8] sm:$0xf]
    %v4508 = vld [vmem:[%s0 + $0xdc] sm:$0xf]
    %v4509 = vld [vmem:[%s0 + $0xe0] sm:$0xf]
    %v4510 = vld [vmem:[%s0 + $0xe4] sm:$0xf]
    %v4511 = vld [vmem:[%s0 + $0xe8] sm:$0xf]
    %v4512 = vld [vmem:[%s0 + $0xec] sm:$0x7]
    %v4513 = vld [vmem:[%s1] sm:$0x3]
    %v4514 = vld [vmem:[%s0 + $0xec] sm:$0xf]
    %v4515 = vld [vmem:[%s1] sm:$0x6]
    %v4528 = vunpack.c.l.b16 %v4501
    %v4529 = vunpack.c.l.b16 %v4502
    %v4530 = vunpack.c.l.b16 %v4503
    %v4531 = vunpack.c.l.b16 %v4504
    %v4532 = vunpack.c.l.b16 %v4505
    %v4533 = vunpack.c.l.b16 %v4506
    %v4534 = vunpack.c.l.b16 %v4507
    %v4535 = vunpack.c.l.b16 %v4508
    %v4536 = vunpack.c.l.b16 %v4509
    %v4537 = vunpack.c.l.b16 %v4510
    %v4538 = vunpack.c.l.b16 %v4511
    %v4539 = vunpack.c.l.b16 %v4514
    %v4540 = vpack.c.b16 %v4529, %v4528
    %v4541 = vpack.c.b16 %v4531, %v4530
    %v4542 = vpack.c.b16 %v4533, %v4532
    %v4543 = vpack.c.b16 %v4535, %v4534
    %v4544 = vpack.c.b16 %v4537, %v4536
    %v4545 = vpack.c.b16 %v4539, %v4538
    %v4547 = vshrl.u32 %v4540, 16
    %v4549 = vshll.u32 %v4540, 16
    %v4551 = vrot.slane %v4549, 1
    %v4552 = vor.u32 %v4547, %v4551
    %v4554 = vshll.u32 %v4541, 16
    %v4556 = vrot.slane %v4554, 1
    %v4557 = vsel %vm109, %v4552, %v4556
    %v4558 = vshrl.u32 %v4541, 16
    %v4560 = vor.u32 %v4558, %v4556
    %v4562 = vshll.u32 %v4542, 16
    %v4564 = vrot.slane %v4562, 1
    %v4565 = vsel %vm109, %v4560, %v4564
    %v4566 = vshrl.u32 %v4542, 16
    %v4568 = vor.u32 %v4566, %v4564
    %v4570 = vshll.u32 %v4543, 16
    %v4572 = vrot.slane %v4570, 1
    %v4573 = vsel %vm109, %v4568, %v4572
    %v4574 = vshrl.u32 %v4543, 16
    %v4576 = vor.u32 %v4574, %v4572
    %v4578 = vshll.u32 %v4544, 16
    %v4580 = vrot.slane %v4578, 1
    %v4581 = vsel %vm109, %v4576, %v4580
    %v4582 = vshrl.u32 %v4544, 16
    %v4584 = vor.u32 %v4582, %v4580
    %v4586 = vshll.u32 %v4545, 16
    %v4588 = vrot.slane %v4586, 1
    %v4589 = vsel %vm109, %v4584, %v4588
    %v4590 = vshrl.u32 %v4545, 16
    %v4592 = vor.u32 %v4590, %v4588
    %v4594 = vunpack.c.l.b16 %v4515
    %v4595 = vpack.c.b16 %v4594, %v4594
    %v4597 = vshrl.u32 %v4595, 16
    %v4599 = vrot.slane %v4597, 1
    %v4600 = vshll.u32 %v4595, 16
    %v4602 = vrot.slane %v4600, 2
    %v4603 = vor.u32 %v4599, %v4602
    %v4605 = vsel %vm189, %v4557, 0
    %v4608 = vsel %vm189, %v4565, 0
    %v4611 = vsel %vm189, %v4573, 0
    %v4614 = vsel %vm189, %v4581, 0
    %v4617 = vsel %vm189, %v4589, 0
    %v4620 = vsel %vm189, %v4592, 0
    %v4623 = vand.u32 %v4603, %v217
    %4625 = vmatpush.bf16.msra.mxu0 0
    %4626 = vmatpush.bf16.msra.mxu0 0
    %4627 = vmatpush.bf16.msra.mxu0 0
    %4628 = vmatpush.bf16.msra.mxu0 0
    %4629 = vmatpush.bf16.msra.mxu0 0
    %4630 = vmatpush.bf16.msra.mxu0 0
    %4631 = vmatpush.bf16.msra.mxu0 0
    %4632 = vmatpush.bf16.msra.mxu0 %v4623
    %4633 = vmatmul.bf16.gmra.mxu0 %v4605
    %v4634 = vpop.f32.mrf.mxu0
    %v4635 = vadd.f32 0.0, %v4634
    %v4636 = vpop.f32.mrf.mxu0
    %v4637 = vadd.f32 0.0, %v4636
    %4638 = vmatmul.bf16.gmra.mxu0 %v4608
    %v4639 = vpop.f32.mrf.mxu0
    %v4640 = vadd.f32 0.0, %v4639
    %v4641 = vpop.f32.mrf.mxu0
    %v4642 = vadd.f32 0.0, %v4641
    %4643 = vmatmul.bf16.gmra.mxu0 %v4611
    %v4644 = vpop.f32.mrf.mxu0
    %v4645 = vadd.f32 0.0, %v4644
    %v4646 = vpop.f32.mrf.mxu0
    %v4647 = vadd.f32 0.0, %v4646
    %4648 = vmatmul.bf16.gmra.mxu0 %v4614
    %v4649 = vpop.f32.mrf.mxu0
    %v4650 = vadd.f32 0.0, %v4649
    %v4651 = vpop.f32.mrf.mxu0
    %v4652 = vadd.f32 0.0, %v4651
    %4653 = vmatmul.bf16.gmra.mxu0 %v4617
    %v4654 = vpop.f32.mrf.mxu0
    %v4655 = vadd.f32 0.0, %v4654
    %v4656 = vpop.f32.mrf.mxu0
    %v4657 = vadd.f32 0.0, %v4656
    %4658 = vmatmul.bf16.gmra.mxu0 %v4620
    %v4659 = vpop.f32.mrf.mxu0
    %v4660 = vadd.f32 0.0, %v4659
    %v4661 = vpop.f32.mrf.mxu0
    %v4662 = vadd.f32 0.0, %v4661
    %4663 = vdwg.mxu0
    %v4665 = vunpack.c.l.b16 %v4512
    %v4666 = vpack.c.b16 %v4665, %v4538
    %v4667 = vsel %vm189, %v4540, 0
    %v4669 = vsel %vm189, %v4541, 0
    %v4671 = vsel %vm189, %v4542, 0
    %v4673 = vsel %vm189, %v4543, 0
    %v4675 = vsel %vm189, %v4544, 0
    %v4678 = vsel %vm189, %v4666, 0
    %v4681 = vand.u32 %v4513, %v217
    %4683 = vmatpush.bf16.msra.mxu0 0
    %4684 = vmatpush.bf16.msra.mxu0 0
    %4685 = vmatpush.bf16.msra.mxu0 0
    %4686 = vmatpush.bf16.msra.mxu0 0
    %4687 = vmatpush.bf16.msra.mxu0 0
    %4688 = vmatpush.bf16.msra.mxu0 0
    %4689 = vmatpush.bf16.msra.mxu0 0
    %4690 = vmatpush.bf16.msra.mxu0 %v4681
    %4691 = vmatmul.bf16.gmra.mxu0 %v4667
    %v4692 = vpop.f32.mrf.mxu0
    %v4693 = vadd.f32 %v4635, %v4692
    %v4694 = vpop.f32.mrf.mxu0
    %v4695 = vadd.f32 %v4637, %v4694
    %4696 = vmatmul.bf16.gmra.mxu0 %v4669
    %v4697 = vpop.f32.mrf.mxu0
    %v4698 = vadd.f32 %v4640, %v4697
    %v4699 = vpop.f32.mrf.mxu0
    %v4700 = vadd.f32 %v4642, %v4699
    %4701 = vmatmul.bf16.gmra.mxu0 %v4671
    %v4702 = vpop.f32.mrf.mxu0
    %v4703 = vadd.f32 %v4645, %v4702
    %v4704 = vpop.f32.mrf.mxu0
    %v4705 = vadd.f32 %v4647, %v4704
    %4706 = vmatmul.bf16.gmra.mxu0 %v4673
    %v4707 = vpop.f32.mrf.mxu0
    %v4708 = vadd.f32 %v4650, %v4707
    %v4709 = vpop.f32.mrf.mxu0
    %v4710 = vadd.f32 %v4652, %v4709
    %4711 = vmatmul.bf16.gmra.mxu0 %v4675
    %v4712 = vpop.f32.mrf.mxu0
    %v4713 = vadd.f32 %v4655, %v4712
    %v4714 = vpop.f32.mrf.mxu0
    %v4715 = vadd.f32 %v4657, %v4714
    %4716 = vmatmul.bf16.gmra.mxu0 %v4678
    %v4717 = vpop.f32.mrf.mxu0
    %v4718 = vadd.f32 %v4660, %v4717
    %v4719 = vpop.f32.mrf.mxu0
    %v4720 = vadd.f32 %v4662, %v4719
    %4721 = vdwg.mxu0
    %v4722 = vld [vmem:[%s0 + $0xc0] sm:$0xe]
    %v4723 = vld [vmem:[%s1] sm:$0x8]
    %v4724 = vld [vmem:[%s1 + $0x4] sm:$0x1]
    %v4726 = vunpack.c.l.b16 %v4722
    %v4727 = vpack.c.b16 %v4529, %v4726
    %v4728 = vrot.slane %v4727, 1
    %v4729 = vrot.slane %v4541, 1
    %v4730 = vsel %vm344, %v4728, %v4729
    %v4731 = vrot.slane %v4542, 1
    %v4732 = vsel %vm344, %v4729, %v4731
    %v4733 = vrot.slane %v4543, 1
    %v4734 = vsel %vm344, %v4731, %v4733
    %v4735 = vrot.slane %v4544, 1
    %v4736 = vsel %vm344, %v4733, %v4735
    %v4737 = vrot.slane %v4545, 1
    %v4738 = vsel %vm344, %v4735, %v4737
    %v4741 = vunpack.c.l.b16 %v4723
    %v4742 = vunpack.c.l.b16 %v4724
    %v4743 = vpack.c.b16 %v4742, %v4741
    %v4744 = vrot.slane %v4743, 3
    %v4746 = vsel %vm189, %v4730, 0
    %v4749 = vsel %vm189, %v4732, 0
    %v4752 = vsel %vm189, %v4734, 0
    %v4755 = vsel %vm189, %v4736, 0
    %v4758 = vsel %vm189, %v4738, 0
    %v4761 = vsel %vm189, %v4737, 0
    %v4764 = vand.u32 %v4744, %v217
    %4766 = vmatpush.bf16.msra.mxu0 0
    %4767 = vmatpush.bf16.msra.mxu0 0
    %4768 = vmatpush.bf16.msra.mxu0 0
    %4769 = vmatpush.bf16.msra.mxu0 0
    %4770 = vmatpush.bf16.msra.mxu0 0
    %4771 = vmatpush.bf16.msra.mxu0 0
    %4772 = vmatpush.bf16.msra.mxu0 0
    %4773 = vmatpush.bf16.msra.mxu0 %v4764
    %4774 = vmatmul.bf16.gmra.mxu0 %v4746
    %v4775 = vpop.f32.mrf.mxu0
    %v4776 = vadd.f32 0.0, %v4775
    %v4777 = vpop.f32.mrf.mxu0
    %v4778 = vadd.f32 0.0, %v4777
    %4779 = vmatmul.bf16.gmra.mxu0 %v4749
    %v4780 = vpop.f32.mrf.mxu0
    %v4781 = vadd.f32 0.0, %v4780
    %v4782 = vpop.f32.mrf.mxu0
    %v4783 = vadd.f32 0.0, %v4782
    %4784 = vmatmul.bf16.gmra.mxu0 %v4752
    %v4785 = vpop.f32.mrf.mxu0
    %v4786 = vadd.f32 0.0, %v4785
    %v4787 = vpop.f32.mrf.mxu0
    %v4788 = vadd.f32 0.0, %v4787
    %4789 = vmatmul.bf16.gmra.mxu0 %v4755
    %v4790 = vpop.f32.mrf.mxu0
    %v4791 = vadd.f32 0.0, %v4790
    %v4792 = vpop.f32.mrf.mxu0
    %v4793 = vadd.f32 0.0, %v4792
    %4794 = vmatmul.bf16.gmra.mxu0 %v4758
    %v4795 = vpop.f32.mrf.mxu0
    %v4796 = vadd.f32 0.0, %v4795
    %v4797 = vpop.f32.mrf.mxu0
    %v4798 = vadd.f32 0.0, %v4797
    %4799 = vmatmul.bf16.gmra.mxu0 %v4761
    %v4800 = vpop.f32.mrf.mxu0
    %v4801 = vadd.f32 0.0, %v4800
    %v4802 = vpop.f32.mrf.mxu0
    %v4803 = vadd.f32 0.0, %v4802
    %4804 = vdwg.mxu0
    %v4805 = vadd.f32 %v4693, %v4776
    %v4806 = vadd.f32 %v4695, %v4778
    %v4807 = vadd.f32 %v4698, %v4781
    %v4808 = vadd.f32 %v4700, %v4783
    %v4809 = vadd.f32 %v4703, %v4786
    %v4810 = vadd.f32 %v4705, %v4788
    %v4811 = vadd.f32 %v4708, %v4791
    %v4812 = vadd.f32 %v4710, %v4793
    %v4813 = vadd.f32 %v4713, %v4796
    %v4814 = vadd.f32 %v4715, %v4798
    %v4815 = vadd.f32 %v4718, %v4801
    %v4816 = vadd.f32 %v4720, %v4803
    %v4817 = vld [vmem:[%s0 + $0xc8] sm:$0xf]
    %v4818 = vld [vmem:[%s0 + $0xcc] sm:$0xf]
    %v4819 = vld [vmem:[%s0 + $0xd0] sm:$0xf]
    %v4820 = vld [vmem:[%s0 + $0xd4] sm:$0xf]
    %v4821 = vld [vmem:[%s0 + $0xd8] sm:$0xf]
    %v4822 = vld [vmem:[%s0 + $0xdc] sm:$0xf]
    %v4823 = vld [vmem:[%s0 + $0xe0] sm:$0xf]
    %v4824 = vld [vmem:[%s0 + $0xe4] sm:$0xf]
    %v4825 = vld [vmem:[%s0 + $0xe8] sm:$0xf]
    %v4826 = vld [vmem:[%s0 + $0xec] sm:$0xf]
    %v4827 = vld [vmem:[%s0 + $0xf0] sm:$0xf]
    %v4828 = vld [vmem:[%s0 + $0xf4] sm:$0x7]
    %v4829 = vld [vmem:[%s1 + $0x4] sm:$0x3]
    %v4842 = vunpack.c.l.b16 %v4817
    %v4843 = vunpack.c.l.b16 %v4818
    %v4844 = vunpack.c.l.b16 %v4819
    %v4845 = vunpack.c.l.b16 %v4820
    %v4846 = vunpack.c.l.b16 %v4821
    %v4847 = vunpack.c.l.b16 %v4822
    %v4848 = vunpack.c.l.b16 %v4823
    %v4849 = vunpack.c.l.b16 %v4824
    %v4850 = vunpack.c.l.b16 %v4825
    %v4851 = vunpack.c.l.b16 %v4826
    %v4852 = vunpack.c.l.b16 %v4827
    %v4853 = vunpack.c.l.b16 %v4828
    %v4854 = vpack.c.b16 %v4843, %v4842
    %v4855 = vpack.c.b16 %v4845, %v4844
    %v4856 = vpack.c.b16 %v4847, %v4846
    %v4857 = vpack.c.b16 %v4849, %v4848
    %v4858 = vpack.c.b16 %v4851, %v4850
    %v4859 = vpack.c.b16 %v4853, %v4852
    %v4861 = vunpack.c.l.b16 %v4829
    %v4862 = vpack.c.b16 %v4861, %v4861
    %v4864 = vshrl.u32 %v4862, 16
    %v4866 = vshll.u32 %v4862, 16
    %v4868 = vrot.slane %v4866, 1
    %v4869 = vor.u32 %v4864, %v4868
    %v4871 = vsel %vm189, %v4854, 0
    %v4874 = vsel %vm189, %v4855, 0
    %v4877 = vsel %vm189, %v4856, 0
    %v4880 = vsel %vm189, %v4857, 0
    %v4883 = vsel %vm189, %v4858, 0
    %v4886 = vsel %vm189, %v4859, 0
    %v4889 = vand.u32 %v4869, %v217
    %4891 = vmatpush.bf16.msra.mxu0 0
    %4892 = vmatpush.bf16.msra.mxu0 0
    %4893 = vmatpush.bf16.msra.mxu0 0
    %4894 = vmatpush.bf16.msra.mxu0 0
    %4895 = vmatpush.bf16.msra.mxu0 0
    %4896 = vmatpush.bf16.msra.mxu0 0
    %4897 = vmatpush.bf16.msra.mxu0 0
    %4898 = vmatpush.bf16.msra.mxu0 %v4889
    %4899 = vmatmul.bf16.gmra.mxu0 %v4871
    %v4900 = vpop.f32.mrf.mxu0
    %v4901 = vadd.f32 0.0, %v4900
    %v4902 = vpop.f32.mrf.mxu0
    %v4903 = vadd.f32 0.0, %v4902
    %4904 = vmatmul.bf16.gmra.mxu0 %v4874
    %v4905 = vpop.f32.mrf.mxu0
    %v4906 = vadd.f32 0.0, %v4905
    %v4907 = vpop.f32.mrf.mxu0
    %v4908 = vadd.f32 0.0, %v4907
    %4909 = vmatmul.bf16.gmra.mxu0 %v4877
    %v4910 = vpop.f32.mrf.mxu0
    %v4911 = vadd.f32 0.0, %v4910
    %v4912 = vpop.f32.mrf.mxu0
    %v4913 = vadd.f32 0.0, %v4912
    %4914 = vmatmul.bf16.gmra.mxu0 %v4880
    %v4915 = vpop.f32.mrf.mxu0
    %v4916 = vadd.f32 0.0, %v4915
    %v4917 = vpop.f32.mrf.mxu0
    %v4918 = vadd.f32 0.0, %v4917
    %4919 = vmatmul.bf16.gmra.mxu0 %v4883
    %v4920 = vpop.f32.mrf.mxu0
    %v4921 = vadd.f32 0.0, %v4920
    %v4922 = vpop.f32.mrf.mxu0
    %v4923 = vadd.f32 0.0, %v4922
    %4924 = vmatmul.bf16.gmra.mxu0 %v4886
    %v4925 = vpop.f32.mrf.mxu0
    %v4926 = vadd.f32 0.0, %v4925
    %v4927 = vpop.f32.mrf.mxu0
    %v4928 = vadd.f32 0.0, %v4927
    %4929 = vdwg.mxu0
    %v4930 = vadd.f32 %v4805, %v4901
    %v4931 = vadd.f32 %v4806, %v4903
    %v4932 = vadd.f32 %v4807, %v4906
    %v4933 = vadd.f32 %v4808, %v4908
    %v4934 = vadd.f32 %v4809, %v4911
    %v4935 = vadd.f32 %v4810, %v4913
    %v4936 = vadd.f32 %v4811, %v4916
    %v4937 = vadd.f32 %v4812, %v4918
    %v4938 = vadd.f32 %v4813, %v4921
    %v4939 = vadd.f32 %v4814, %v4923
    %v4940 = vadd.f32 %v4815, %v4926
    %v4941 = vadd.f32 %v4816, %v4928
    %v4942 = vld [vmem:[%s0 + $0xf4] sm:$0xf]
    %v4943 = vld [vmem:[%s1 + $0x4] sm:$0xc]
    %v4945 = vunpack.c.l.b16 %v4942
    %v4946 = vpack.c.b16 %v4945, %v4852
    %v4947 = vshrl.u32 %v4854, 16
    %v4949 = vshll.u32 %v4854, 16
    %v4951 = vrot.slane %v4949, 1
    %v4952 = vor.u32 %v4947, %v4951
    %v4953 = vshll.u32 %v4855, 16
    %v4955 = vrot.slane %v4953, 1
    %v4956 = vsel %vm109, %v4952, %v4955
    %v4957 = vshrl.u32 %v4855, 16
    %v4959 = vor.u32 %v4957, %v4955
    %v4960 = vshll.u32 %v4856, 16
    %v4962 = vrot.slane %v4960, 1
    %v4963 = vsel %vm109, %v4959, %v4962
    %v4964 = vshrl.u32 %v4856, 16
    %v4966 = vor.u32 %v4964, %v4962
    %v4967 = vshll.u32 %v4857, 16
    %v4969 = vrot.slane %v4967, 1
    %v4970 = vsel %vm109, %v4966, %v4969
    %v4971 = vshrl.u32 %v4857, 16
    %v4973 = vor.u32 %v4971, %v4969
    %v4974 = vshll.u32 %v4858, 16
    %v4976 = vrot.slane %v4974, 1
    %v4977 = vsel %vm109, %v4973, %v4976
    %v4978 = vshrl.u32 %v4858, 16
    %v4980 = vor.u32 %v4978, %v4976
    %v4982 = vshll.u32 %v4946, 16
    %v4984 = vrot.slane %v4982, 1
    %v4985 = vsel %vm109, %v4980, %v4984
    %v4986 = vshrl.u32 %v4946, 16
    %v4988 = vor.u32 %v4986, %v4984
    %v4990 = vunpack.c.l.b16 %v4943
    %v4991 = vpack.c.b16 %v4990, %v4990
    %v4992 = vrot.slane %v4991, 2
    %v4994 = vsel %vm189, %v4956, 0
    %v4997 = vsel %vm189, %v4963, 0
    %v5000 = vsel %vm189, %v4970, 0
    %v5003 = vsel %vm189, %v4977, 0
    %v5006 = vsel %vm189, %v4985, 0
    %v5009 = vsel %vm189, %v4988, 0
    %v5012 = vand.u32 %v4992, %v217
    %5014 = vmatpush.bf16.msra.mxu0 0
    %5015 = vmatpush.bf16.msra.mxu0 0
    %5016 = vmatpush.bf16.msra.mxu0 0
    %5017 = vmatpush.bf16.msra.mxu0 0
    %5018 = vmatpush.bf16.msra.mxu0 0
    %5019 = vmatpush.bf16.msra.mxu0 0
    %5020 = vmatpush.bf16.msra.mxu0 0
    %5021 = vmatpush.bf16.msra.mxu0 %v5012
    %5022 = vmatmul.bf16.gmra.mxu0 %v4994
    %v5023 = vpop.f32.mrf.mxu0
    %v5024 = vadd.f32 0.0, %v5023
    %v5025 = vpop.f32.mrf.mxu0
    %v5026 = vadd.f32 0.0, %v5025
    %5027 = vmatmul.bf16.gmra.mxu0 %v4997
    %v5028 = vpop.f32.mrf.mxu0
    %v5029 = vadd.f32 0.0, %v5028
    %v5030 = vpop.f32.mrf.mxu0
    %v5031 = vadd.f32 0.0, %v5030
    %5032 = vmatmul.bf16.gmra.mxu0 %v5000
    %v5033 = vpop.f32.mrf.mxu0
    %v5034 = vadd.f32 0.0, %v5033
    %v5035 = vpop.f32.mrf.mxu0
    %v5036 = vadd.f32 0.0, %v5035
    %5037 = vmatmul.bf16.gmra.mxu0 %v5003
    %v5038 = vpop.f32.mrf.mxu0
    %v5039 = vadd.f32 0.0, %v5038
    %v5040 = vpop.f32.mrf.mxu0
    %v5041 = vadd.f32 0.0, %v5040
    %5042 = vmatmul.bf16.gmra.mxu0 %v5006
    %v5043 = vpop.f32.mrf.mxu0
    %v5044 = vadd.f32 0.0, %v5043
    %v5045 = vpop.f32.mrf.mxu0
    %v5046 = vadd.f32 0.0, %v5045
    %5047 = vmatmul.bf16.gmra.mxu0 %v5009
    %v5048 = vpop.f32.mrf.mxu0
    %v5049 = vadd.f32 0.0, %v5048
    %v5050 = vpop.f32.mrf.mxu0
    %v5051 = vadd.f32 0.0, %v5050
    %5052 = vdwg.mxu0
    %v5053 = vadd.f32 %v4930, %v5024
    %v5054 = vadd.f32 %v4931, %v5026
    %v5055 = vadd.f32 %v4932, %v5029
    %v5056 = vadd.f32 %v4933, %v5031
    %v5057 = vadd.f32 %v4934, %v5034
    %v5058 = vadd.f32 %v4935, %v5036
    %v5059 = vadd.f32 %v4936, %v5039
    %v5060 = vadd.f32 %v4937, %v5041
    %v5061 = vadd.f32 %v4938, %v5044
    %v5062 = vadd.f32 %v4939, %v5046
    %v5063 = vadd.f32 %v4940, %v5049
    %v5064 = vadd.f32 %v4941, %v5051
    %v5065 = vld [vmem:[%s0 + $0xc8] sm:$0xe]
    %v5066 = vld [vmem:[%s1 + $0x4] sm:$0x8]
    %v5067 = vld [vmem:[%s1 + $0x8] sm:$0x1]
    %v5069 = vunpack.c.l.b16 %v5065
    %v5070 = vpack.c.b16 %v4843, %v5069
    %v5071 = vrot.slane %v5070, 1
    %v5072 = vrot.slane %v4855, 1
    %v5073 = vsel %vm344, %v5071, %v5072
    %v5074 = vrot.slane %v4856, 1
    %v5075 = vsel %vm344, %v5072, %v5074
    %v5076 = vrot.slane %v4857, 1
    %v5077 = vsel %vm344, %v5074, %v5076
    %v5078 = vrot.slane %v4858, 1
    %v5079 = vsel %vm344, %v5076, %v5078
    %v5080 = vrot.slane %v4946, 1
    %v5081 = vsel %vm344, %v5078, %v5080
    %v5084 = vunpack.c.l.b16 %v5066
    %v5085 = vunpack.c.l.b16 %v5067
    %v5086 = vpack.c.b16 %v5085, %v5084
    %v5088 = vshrl.u32 %v5086, 16
    %v5090 = vrot.slane %v5088, 3
    %v5091 = vshll.u32 %v5086, 16
    %v5093 = vrot.slane %v5091, 4
    %v5094 = vor.u32 %v5090, %v5093
    %v5096 = vsel %vm189, %v5073, 0
    %v5099 = vsel %vm189, %v5075, 0
    %v5102 = vsel %vm189, %v5077, 0
    %v5105 = vsel %vm189, %v5079, 0
    %v5108 = vsel %vm189, %v5081, 0
    %v5111 = vsel %vm189, %v5080, 0
    %v5114 = vand.u32 %v5094, %v217
    %5116 = vmatpush.bf16.msra.mxu0 0
    %5117 = vmatpush.bf16.msra.mxu0 0
    %5118 = vmatpush.bf16.msra.mxu0 0
    %5119 = vmatpush.bf16.msra.mxu0 0
    %5120 = vmatpush.bf16.msra.mxu0 0
    %5121 = vmatpush.bf16.msra.mxu0 0
    %5122 = vmatpush.bf16.msra.mxu0 0
    %5123 = vmatpush.bf16.msra.mxu0 %v5114
    %5124 = vmatmul.bf16.gmra.mxu0 %v5096
    %v5125 = vpop.f32.mrf.mxu0
    %v5126 = vadd.f32 0.0, %v5125
    %v5127 = vpop.f32.mrf.mxu0
    %v5128 = vadd.f32 0.0, %v5127
    %5129 = vmatmul.bf16.gmra.mxu0 %v5099
    %v5130 = vpop.f32.mrf.mxu0
    %v5131 = vadd.f32 0.0, %v5130
    %v5132 = vpop.f32.mrf.mxu0
    %v5133 = vadd.f32 0.0, %v5132
    %5134 = vmatmul.bf16.gmra.mxu0 %v5102
    %v5135 = vpop.f32.mrf.mxu0
    %v5136 = vadd.f32 0.0, %v5135
    %v5137 = vpop.f32.mrf.mxu0
    %v5138 = vadd.f32 0.0, %v5137
    %5139 = vmatmul.bf16.gmra.mxu0 %v5105
    %v5140 = vpop.f32.mrf.mxu0
    %v5141 = vadd.f32 0.0, %v5140
    %v5142 = vpop.f32.mrf.mxu0
    %v5143 = vadd.f32 0.0, %v5142
    %5144 = vmatmul.bf16.gmra.mxu0 %v5108
    %v5145 = vpop.f32.mrf.mxu0
    %v5146 = vadd.f32 0.0, %v5145
    %v5147 = vpop.f32.mrf.mxu0
    %v5148 = vadd.f32 0.0, %v5147
    %5149 = vmatmul.bf16.gmra.mxu0 %v5111
    %v5150 = vpop.f32.mrf.mxu0
    %v5151 = vadd.f32 0.0, %v5150
    %v5152 = vpop.f32.mrf.mxu0
    %v5153 = vadd.f32 0.0, %v5152
    %5154 = vdwg.mxu0
    %v5155 = vadd.f32 %v5053, %v5126
    %v5156 = vadd.f32 %v5054, %v5128
    %v5157 = vadd.f32 %v5055, %v5131
    %v5158 = vadd.f32 %v5056, %v5133
    %v5159 = vadd.f32 %v5057, %v5136
    %v5160 = vadd.f32 %v5058, %v5138
    %v5161 = vadd.f32 %v5059, %v5141
    %v5162 = vadd.f32 %v5060, %v5143
    %v5163 = vadd.f32 %v5061, %v5146
    %v5164 = vadd.f32 %v5062, %v5148
    %v5165 = vadd.f32 %v5063, %v5151
    %v5166 = vadd.f32 %v5064, %v5153
    %v5167 = vld [vmem:[%s0 + $0xd0] sm:$0xf]
    %v5168 = vld [vmem:[%s0 + $0xd4] sm:$0xf]
    %v5169 = vld [vmem:[%s0 + $0xd8] sm:$0xf]
    %v5170 = vld [vmem:[%s0 + $0xdc] sm:$0xf]
    %v5171 = vld [vmem:[%s0 + $0xe0] sm:$0xf]
    %v5172 = vld [vmem:[%s0 + $0xe4] sm:$0xf]
    %v5173 = vld [vmem:[%s0 + $0xe8] sm:$0xf]
    %v5174 = vld [vmem:[%s0 + $0xec] sm:$0xf]
    %v5175 = vld [vmem:[%s0 + $0xf0] sm:$0xf]
    %v5176 = vld [vmem:[%s0 + $0xf4] sm:$0xf]
    %v5177 = vld [vmem:[%s0 + $0xf8] sm:$0xf]
    %v5178 = vld [vmem:[%s0 + $0xfc] sm:$0x7]
    %v5179 = vld [vmem:[%s1 + $0x8] sm:$0x6]
    %v5192 = vunpack.c.l.b16 %v5167
    %v5193 = vunpack.c.l.b16 %v5168
    %v5194 = vunpack.c.l.b16 %v5169
    %v5195 = vunpack.c.l.b16 %v5170
    %v5196 = vunpack.c.l.b16 %v5171
    %v5197 = vunpack.c.l.b16 %v5172
    %v5198 = vunpack.c.l.b16 %v5173
    %v5199 = vunpack.c.l.b16 %v5174
    %v5200 = vunpack.c.l.b16 %v5175
    %v5201 = vunpack.c.l.b16 %v5176
    %v5202 = vunpack.c.l.b16 %v5177
    %v5203 = vunpack.c.l.b16 %v5178
    %v5204 = vpack.c.b16 %v5193, %v5192
    %v5205 = vpack.c.b16 %v5195, %v5194
    %v5206 = vpack.c.b16 %v5197, %v5196
    %v5207 = vpack.c.b16 %v5199, %v5198
    %v5208 = vpack.c.b16 %v5201, %v5200
    %v5209 = vpack.c.b16 %v5203, %v5202
    %v5211 = vunpack.c.l.b16 %v5179
    %v5212 = vpack.c.b16 %v5211, %v5211
    %v5213 = vrot.slane %v5212, 1
    %v5215 = vsel %vm189, %v5204, 0
    %v5218 = vsel %vm189, %v5205, 0
    %v5221 = vsel %vm189, %v5206, 0
    %v5224 = vsel %vm189, %v5207, 0
    %v5227 = vsel %vm189, %v5208, 0
    %v5230 = vsel %vm189, %v5209, 0
    %v5233 = vand.u32 %v5213, %v217
    %5235 = vmatpush.bf16.msra.mxu0 0
    %5236 = vmatpush.bf16.msra.mxu0 0
    %5237 = vmatpush.bf16.msra.mxu0 0
    %5238 = vmatpush.bf16.msra.mxu0 0
    %5239 = vmatpush.bf16.msra.mxu0 0
    %5240 = vmatpush.bf16.msra.mxu0 0
    %5241 = vmatpush.bf16.msra.mxu0 0
    %5242 = vmatpush.bf16.msra.mxu0 %v5233
    %5243 = vmatmul.bf16.gmra.mxu0 %v5215
    %v5244 = vpop.f32.mrf.mxu0
    %v5245 = vadd.f32 0.0, %v5244
    %v5246 = vpop.f32.mrf.mxu0
    %v5247 = vadd.f32 0.0, %v5246
    %5248 = vmatmul.bf16.gmra.mxu0 %v5218
    %v5249 = vpop.f32.mrf.mxu0
    %v5250 = vadd.f32 0.0, %v5249
    %v5251 = vpop.f32.mrf.mxu0
    %v5252 = vadd.f32 0.0, %v5251
    %5253 = vmatmul.bf16.gmra.mxu0 %v5221
    %v5254 = vpop.f32.mrf.mxu0
    %v5255 = vadd.f32 0.0, %v5254
    %v5256 = vpop.f32.mrf.mxu0
    %v5257 = vadd.f32 0.0, %v5256
    %5258 = vmatmul.bf16.gmra.mxu0 %v5224
    %v5259 = vpop.f32.mrf.mxu0
    %v5260 = vadd.f32 0.0, %v5259
    %v5261 = vpop.f32.mrf.mxu0
    %v5262 = vadd.f32 0.0, %v5261
    %5263 = vmatmul.bf16.gmra.mxu0 %v5227
    %v5264 = vpop.f32.mrf.mxu0
    %v5265 = vadd.f32 0.0, %v5264
    %v5266 = vpop.f32.mrf.mxu0
    %v5267 = vadd.f32 0.0, %v5266
    %5268 = vmatmul.bf16.gmra.mxu0 %v5230
    %v5269 = vpop.f32.mrf.mxu0
    %v5270 = vadd.f32 0.0, %v5269
    %v5271 = vpop.f32.mrf.mxu0
    %v5272 = vadd.f32 0.0, %v5271
    %5273 = vdwg.mxu0
    %v5274 = vadd.f32 %v5155, %v5245
    %v5275 = vadd.f32 %v5156, %v5247
    %v5276 = vadd.f32 %v5157, %v5250
    %v5277 = vadd.f32 %v5158, %v5252
    %v5278 = vadd.f32 %v5159, %v5255
    %v5279 = vadd.f32 %v5160, %v5257
    %v5280 = vadd.f32 %v5161, %v5260
    %v5281 = vadd.f32 %v5162, %v5262
    %v5282 = vadd.f32 %v5163, %v5265
    %v5283 = vadd.f32 %v5164, %v5267
    %v5284 = vadd.f32 %v5165, %v5270
    %v5285 = vadd.f32 %v5166, %v5272
    %v5286 = vld [vmem:[%s0 + $0xfc] sm:$0xf]
    %v5287 = vld [vmem:[%s1 + $0x8] sm:$0xc]
    %v5289 = vunpack.c.l.b16 %v5286
    %v5290 = vpack.c.b16 %v5289, %v5202
    %v5291 = vshrl.u32 %v5204, 16
    %v5293 = vshll.u32 %v5204, 16
    %v5295 = vrot.slane %v5293, 1
    %v5296 = vor.u32 %v5291, %v5295
    %v5297 = vshll.u32 %v5205, 16
    %v5299 = vrot.slane %v5297, 1
    %v5300 = vsel %vm109, %v5296, %v5299
    %v5301 = vshrl.u32 %v5205, 16
    %v5303 = vor.u32 %v5301, %v5299
    %v5304 = vshll.u32 %v5206, 16
    %v5306 = vrot.slane %v5304, 1
    %v5307 = vsel %vm109, %v5303, %v5306
    %v5308 = vshrl.u32 %v5206, 16
    %v5310 = vor.u32 %v5308, %v5306
    %v5311 = vshll.u32 %v5207, 16
    %v5313 = vrot.slane %v5311, 1
    %v5314 = vsel %vm109, %v5310, %v5313
    %v5315 = vshrl.u32 %v5207, 16
    %v5317 = vor.u32 %v5315, %v5313
    %v5318 = vshll.u32 %v5208, 16
    %v5320 = vrot.slane %v5318, 1
    %v5321 = vsel %vm109, %v5317, %v5320
    %v5322 = vshrl.u32 %v5208, 16
    %v5324 = vor.u32 %v5322, %v5320
    %v5326 = vshll.u32 %v5290, 16
    %v5328 = vrot.slane %v5326, 1
    %v5329 = vsel %vm109, %v5324, %v5328
    %v5330 = vshrl.u32 %v5290, 16
    %v5332 = vor.u32 %v5330, %v5328
    %v5334 = vunpack.c.l.b16 %v5287
    %v5335 = vpack.c.b16 %v5334, %v5334
    %v5337 = vshrl.u32 %v5335, 16
    %v5339 = vrot.slane %v5337, 2
    %v5340 = vshll.u32 %v5335, 16
    %v5342 = vrot.slane %v5340, 3
    %v5343 = vor.u32 %v5339, %v5342
    %v5345 = vsel %vm189, %v5300, 0
    %v5348 = vsel %vm189, %v5307, 0
    %v5351 = vsel %vm189, %v5314, 0
    %v5354 = vsel %vm189, %v5321, 0
    %v5357 = vsel %vm189, %v5329, 0
    %v5360 = vsel %vm189, %v5332, 0
    %v5363 = vand.u32 %v5343, %v217
    %5365 = vmatpush.bf16.msra.mxu0 0
    %5366 = vmatpush.bf16.msra.mxu0 0
    %5367 = vmatpush.bf16.msra.mxu0 0
    %5368 = vmatpush.bf16.msra.mxu0 0
    %5369 = vmatpush.bf16.msra.mxu0 0
    %5370 = vmatpush.bf16.msra.mxu0 0
    %5371 = vmatpush.bf16.msra.mxu0 0
    %5372 = vmatpush.bf16.msra.mxu0 %v5363
    %5373 = vmatmul.bf16.gmra.mxu0 %v5345
    %v5374 = vpop.f32.mrf.mxu0
    %v5375 = vadd.f32 0.0, %v5374
    %v5376 = vpop.f32.mrf.mxu0
    %v5377 = vadd.f32 0.0, %v5376
    %5378 = vmatmul.bf16.gmra.mxu0 %v5348
    %v5379 = vpop.f32.mrf.mxu0
    %v5380 = vadd.f32 0.0, %v5379
    %v5381 = vpop.f32.mrf.mxu0
    %v5382 = vadd.f32 0.0, %v5381
    %5383 = vmatmul.bf16.gmra.mxu0 %v5351
    %v5384 = vpop.f32.mrf.mxu0
    %v5385 = vadd.f32 0.0, %v5384
    %v5386 = vpop.f32.mrf.mxu0
    %v5387 = vadd.f32 0.0, %v5386
    %5388 = vmatmul.bf16.gmra.mxu0 %v5354
    %v5389 = vpop.f32.mrf.mxu0
    %v5390 = vadd.f32 0.0, %v5389
    %v5391 = vpop.f32.mrf.mxu0
    %v5392 = vadd.f32 0.0, %v5391
    %5393 = vmatmul.bf16.gmra.mxu0 %v5357
    %v5394 = vpop.f32.mrf.mxu0
    %v5395 = vadd.f32 0.0, %v5394
    %v5396 = vpop.f32.mrf.mxu0
    %v5397 = vadd.f32 0.0, %v5396
    %5398 = vmatmul.bf16.gmra.mxu0 %v5360
    %v5399 = vpop.f32.mrf.mxu0
    %v5400 = vadd.f32 0.0, %v5399
    %v5401 = vpop.f32.mrf.mxu0
    %v5402 = vadd.f32 0.0, %v5401
    %5403 = vdwg.mxu0
    %v5404 = vadd.f32 %v5274, %v5375
    %v5405 = vadd.f32 %v5275, %v5377
    %v5406 = vadd.f32 %v5276, %v5380
    %v5407 = vadd.f32 %v5277, %v5382
    %v5408 = vadd.f32 %v5278, %v5385
    %v5409 = vadd.f32 %v5279, %v5387
    %v5410 = vadd.f32 %v5280, %v5390
    %v5411 = vadd.f32 %v5281, %v5392
    %v5412 = vadd.f32 %v5282, %v5395
    %v5413 = vadd.f32 %v5283, %v5397
    %v5414 = vadd.f32 %v5284, %v5400
    %v5415 = vadd.f32 %v5285, %v5402
    %v5416 = vld [vmem:[%s0 + $0xd0] sm:$0xe]
    %v5417 = vld [vmem:[%s1 + $0xc] sm:$0x3]
    %v5419 = vunpack.c.l.b16 %v5416
    %v5420 = vpack.c.b16 %v5193, %v5419
    %v5421 = vrot.slane %v5420, 1
    %v5422 = vrot.slane %v5205, 1
    %v5423 = vsel %vm344, %v5421, %v5422
    %v5424 = vrot.slane %v5206, 1
    %v5425 = vsel %vm344, %v5422, %v5424
    %v5426 = vrot.slane %v5207, 1
    %v5427 = vsel %vm344, %v5424, %v5426
    %v5428 = vrot.slane %v5208, 1
    %v5429 = vsel %vm344, %v5426, %v5428
    %v5430 = vrot.slane %v5290, 1
    %v5431 = vsel %vm344, %v5428, %v5430
    %v5433 = vsel %vm189, %v5423, 0
    %v5436 = vsel %vm189, %v5425, 0
    %v5439 = vsel %vm189, %v5427, 0
    %v5442 = vsel %vm189, %v5429, 0
    %v5445 = vsel %vm189, %v5431, 0
    %v5448 = vsel %vm189, %v5430, 0
    %v5451 = vand.u32 %v5417, %v217
    %5453 = vmatpush.bf16.msra.mxu0 0
    %5454 = vmatpush.bf16.msra.mxu0 0
    %5455 = vmatpush.bf16.msra.mxu0 0
    %5456 = vmatpush.bf16.msra.mxu0 0
    %5457 = vmatpush.bf16.msra.mxu0 0
    %5458 = vmatpush.bf16.msra.mxu0 0
    %5459 = vmatpush.bf16.msra.mxu0 0
    %5460 = vmatpush.bf16.msra.mxu0 %v5451
    %5461 = vmatmul.bf16.gmra.mxu0 %v5433
    %v5462 = vpop.f32.mrf.mxu0
    %v5463 = vadd.f32 0.0, %v5462
    %v5464 = vpop.f32.mrf.mxu0
    %v5465 = vadd.f32 0.0, %v5464
    %5466 = vmatmul.bf16.gmra.mxu0 %v5436
    %v5467 = vpop.f32.mrf.mxu0
    %v5468 = vadd.f32 0.0, %v5467
    %v5469 = vpop.f32.mrf.mxu0
    %v5470 = vadd.f32 0.0, %v5469
    %5471 = vmatmul.bf16.gmra.mxu0 %v5439
    %v5472 = vpop.f32.mrf.mxu0
    %v5473 = vadd.f32 0.0, %v5472
    %v5474 = vpop.f32.mrf.mxu0
    %v5475 = vadd.f32 0.0, %v5474
    %5476 = vmatmul.bf16.gmra.mxu0 %v5442
    %v5477 = vpop.f32.mrf.mxu0
    %v5478 = vadd.f32 0.0, %v5477
    %v5479 = vpop.f32.mrf.mxu0
    %v5480 = vadd.f32 0.0, %v5479
    %5481 = vmatmul.bf16.gmra.mxu0 %v5445
    %v5482 = vpop.f32.mrf.mxu0
    %v5483 = vadd.f32 0.0, %v5482
    %v5484 = vpop.f32.mrf.mxu0
    %v5485 = vadd.f32 0.0, %v5484
    %5486 = vmatmul.bf16.gmra.mxu0 %v5448
    %v5487 = vpop.f32.mrf.mxu0
    %v5488 = vadd.f32 0.0, %v5487
    %v5489 = vpop.f32.mrf.mxu0
    %v5490 = vadd.f32 0.0, %v5489
    %5491 = vdwg.mxu0
    %v5492 = vadd.f32 %v5404, %v5463
    %v5493 = vadd.f32 %v5405, %v5465
    %v5494 = vadd.f32 %v5406, %v5468
    %v5495 = vadd.f32 %v5407, %v5470
    %v5496 = vadd.f32 %v5408, %v5473
    %v5497 = vadd.f32 %v5409, %v5475
    %v5498 = vadd.f32 %v5410, %v5478
    %v5499 = vadd.f32 %v5411, %v5480
    %v5500 = vadd.f32 %v5412, %v5483
    %v5501 = vadd.f32 %v5413, %v5485
    %v5502 = vadd.f32 %v5414, %v5488
    %v5503 = vadd.f32 %v5415, %v5490
    %v5504 = vadd.f32 %v5492, %v1472
    %v5505 = vadd.f32 %v5493, %v1472
    %v5506 = vadd.f32 %v5494, %v1472
    %v5507 = vadd.f32 %v5495, %v1472
    %v5508 = vadd.f32 %v5496, %v1472
    %v5509 = vadd.f32 %v5497, %v1472
    %v5510 = vadd.f32 %v5498, %v1472
    %v5511 = vadd.f32 %v5499, %v1472
    %v5512 = vadd.f32 %v5500, %v1472
    %v5513 = vadd.f32 %v5501, %v1472
    %v5514 = vadd.f32 %v5502, %v1472
    %v5515 = vadd.f32 %v5503, %v1472
    %v5516 = vmax.f32 %v5504, 0.0
    %v5517 = vmax.f32 %v5505, 0.0
    %v5518 = vmax.f32 %v5506, 0.0
    %v5519 = vmax.f32 %v5507, 0.0
    %v5520 = vmax.f32 %v5508, 0.0
    %v5521 = vmax.f32 %v5509, 0.0
    %v5522 = vmax.f32 %v5510, 0.0
    %v5523 = vmax.f32 %v5511, 0.0
    %v5524 = vmax.f32 %v5512, 0.0
    %v5525 = vmax.f32 %v5513, 0.0
    %v5526 = vmax.f32 %v5514, 0.0
    %v5527 = vmax.f32 %v5515, 0.0
    %v5528 = vpack.c.bf16 %v5516, %v5516
    %v5529 = vpack.c.bf16 %v5517, %v5517
    %v5530 = vpack.c.bf16 %v5518, %v5518
    %v5531 = vpack.c.bf16 %v5519, %v5519
    %v5532 = vpack.c.bf16 %v5520, %v5520
    %v5533 = vpack.c.bf16 %v5521, %v5521
    %v5534 = vpack.c.bf16 %v5522, %v5522
    %v5535 = vpack.c.bf16 %v5523, %v5523
    %v5536 = vpack.c.bf16 %v5524, %v5524
    %v5537 = vpack.c.bf16 %v5525, %v5525
    %v5538 = vpack.c.bf16 %v5526, %v5526
    %v5539 = vpack.c.bf16 %v5527, %v5527
    %5540 = vst.msk [vmem:[#allocation2 + $0xc0] sm:$0xf] %vm1522, %v5528
    %5541 = vst.msk [vmem:[#allocation2 + $0xc4] sm:$0xf] %vm1522, %v5529
    %5542 = vst.msk [vmem:[#allocation2 + $0xc8] sm:$0xf] %vm1522, %v5530
    %5543 = vst.msk [vmem:[#allocation2 + $0xcc] sm:$0xf] %vm1522, %v5531
    %5544 = vst.msk [vmem:[#allocation2 + $0xd0] sm:$0xf] %vm1522, %v5532
    %5545 = vst.msk [vmem:[#allocation2 + $0xd4] sm:$0xf] %vm1522, %v5533
    %5546 = vst.msk [vmem:[#allocation2 + $0xd8] sm:$0xf] %vm1522, %v5534
    %5547 = vst.msk [vmem:[#allocation2 + $0xdc] sm:$0xf] %vm1522, %v5535
    %5548 = vst.msk [vmem:[#allocation2 + $0xe0] sm:$0xf] %vm1522, %v5536
    %5549 = vst.msk [vmem:[#allocation2 + $0xe4] sm:$0xf] %vm1522, %v5537
    %5550 = vst.msk [vmem:[#allocation2 + $0xe8] sm:$0xf] %vm1522, %v5538
    %vm5551 = vcmask 124928
    %5552 = vst.msk [vmem:[#allocation2 + $0xec] sm:$0x7] %vm5551, %v5539
    %v5553 = vld [vmem:[#allocation2] sm:$0xf]
    %v5554 = vld [vmem:[#allocation2 + $0x4] sm:$0xf]
    %v5555 = vld [vmem:[#allocation2 + $0x8] sm:$0xf]
    %v5556 = vld [vmem:[#allocation2 + $0xc] sm:$0xf]
    %v5557 = vld [vmem:[#allocation2 + $0x10] sm:$0xf]
    %v5558 = vld [vmem:[#allocation2 + $0x14] sm:$0xf]
    %v5559 = vld [vmem:[#allocation2 + $0x18] sm:$0xf]
    %v5560 = vld [vmem:[#allocation2 + $0x1c] sm:$0xf]
    %v5561 = vld [vmem:[#allocation2 + $0x20] sm:$0xf]
    %v5562 = vld [vmem:[#allocation2 + $0x24] sm:$0xf]
    %v5563 = vld [vmem:[#allocation2 + $0x28] sm:$0xf]
    %v5564 = vld [vmem:[#allocation2 + $0x2c] sm:$0xf]
    %v5565 = vld [vmem:[#allocation2 + $0x30] sm:$0xf]
    %v5566 = vld [vmem:[#allocation2 + $0x34] sm:$0xf]
    %v5567 = vld [vmem:[#allocation2 + $0x38] sm:$0xf]
    %v5568 = vld [vmem:[#allocation2 + $0x3c] sm:$0xf]
    %v5569 = vld [vmem:[%s3] sm:$0xf]
    %v5570 = vld [vmem:[%s3 + $0x4] sm:$0xf]
    %v5571 = vld [vmem:[#allocation2 + $0x40] sm:$0x1]
    %v5572 = vld [vmem:[%s3 + $0x8] sm:$0xf]
    %v5573 = vld [vmem:[%s3 + $0xc] sm:$0xf]
    %v5591 = vunpack.c.l.b16 %v5553
    %v5592 = vunpack.c.l.b16 %v5554
    %v5593 = vunpack.c.l.b16 %v5555
    %v5594 = vunpack.c.l.b16 %v5556
    %v5595 = vunpack.c.l.b16 %v5557
    %v5596 = vunpack.c.l.b16 %v5558
    %v5597 = vunpack.c.l.b16 %v5559
    %v5598 = vunpack.c.l.b16 %v5560
    %v5599 = vunpack.c.l.b16 %v5561
    %v5600 = vunpack.c.l.b16 %v5562
    %v5601 = vunpack.c.l.b16 %v5563
    %v5602 = vunpack.c.l.b16 %v5564
    %v5603 = vunpack.c.l.b16 %v5565
    %v5604 = vunpack.c.l.b16 %v5566
    %v5605 = vunpack.c.l.b16 %v5567
    %v5606 = vunpack.c.l.b16 %v5568
    %v5607 = vunpack.c.l.b16 %v5571
    %v5608 = vpack.c.b16 %v5592, %v5591
    %v5609 = vpack.c.b16 %v5594, %v5593
    %v5610 = vpack.c.b16 %v5596, %v5595
    %v5611 = vpack.c.b16 %v5598, %v5597
    %v5612 = vpack.c.b16 %v5600, %v5599
    %v5613 = vpack.c.b16 %v5602, %v5601
    %v5614 = vpack.c.b16 %v5604, %v5603
    %v5615 = vpack.c.b16 %v5606, %v5605
    %v5616 = vpack.c.b16 %v5607, %v5607
    %v5618 = vshrl.u32 %v5608, 16
    %v5620 = vshll.u32 %v5608, 16
    %v5622 = vrot.slane %v5620, 1
    %v5623 = vor.u32 %v5618, %v5622
    %v5625 = vshll.u32 %v5609, 16
    %v5627 = vrot.slane %v5625, 1
    %v5628 = vsel %vm109, %v5623, %v5627
    %v5629 = vshrl.u32 %v5609, 16
    %v5631 = vor.u32 %v5629, %v5627
    %v5633 = vshll.u32 %v5610, 16
    %v5635 = vrot.slane %v5633, 1
    %v5636 = vsel %vm109, %v5631, %v5635
    %v5637 = vshrl.u32 %v5610, 16
    %v5639 = vor.u32 %v5637, %v5635
    %v5641 = vshll.u32 %v5611, 16
    %v5643 = vrot.slane %v5641, 1
    %v5644 = vsel %vm109, %v5639, %v5643
    %v5645 = vshrl.u32 %v5611, 16
    %v5647 = vor.u32 %v5645, %v5643
    %v5649 = vshll.u32 %v5612, 16
    %v5651 = vrot.slane %v5649, 1
    %v5652 = vsel %vm109, %v5647, %v5651
    %v5653 = vshrl.u32 %v5612, 16
    %v5655 = vor.u32 %v5653, %v5651
    %v5657 = vshll.u32 %v5613, 16
    %v5659 = vrot.slane %v5657, 1
    %v5660 = vsel %vm109, %v5655, %v5659
    %v5661 = vshrl.u32 %v5613, 16
    %v5663 = vor.u32 %v5661, %v5659
    %v5665 = vshll.u32 %v5614, 16
    %v5667 = vrot.slane %v5665, 1
    %v5668 = vsel %vm109, %v5663, %v5667
    %v5669 = vshrl.u32 %v5614, 16
    %v5671 = vor.u32 %v5669, %v5667
    %v5673 = vshll.u32 %v5615, 16
    %v5675 = vrot.slane %v5673, 1
    %v5676 = vsel %vm109, %v5671, %v5675
    %v5677 = vshrl.u32 %v5615, 16
    %v5679 = vor.u32 %v5677, %v5675
    %v5681 = vshll.u32 %v5616, 16
    %v5683 = vrot.slane %v5681, 1
    %v5684 = vsel %vm109, %v5679, %v5683
    %v5687 = vunpack.c.l.b16 %v5572
    %v5688 = vunpack.c.l.b16 %v5573
    %v5689 = vpack.c.b16 %v5688, %v5687
    %vm5691 = vcmask 130048
    %v5693 = vsel %vm5691, %v5628, 0
    %v5696 = vsel %vm5691, %v5636, 0
    %v5699 = vsel %vm5691, %v5644, 0
    %v5702 = vsel %vm5691, %v5652, 0
    %v5705 = vsel %vm5691, %v5660, 0
    %v5708 = vsel %vm5691, %v5668, 0
    %v5711 = vsel %vm5691, %v5676, 0
    %v5714 = vsel %vm5691, %v5684, 0
    %5716 = vmatpush.bf16.msra.mxu0 0
    %5717 = vmatpush.bf16.msra.mxu0 0
    %5718 = vmatpush.bf16.msra.mxu0 0
    %5719 = vmatpush.bf16.msra.mxu0 0
    %5720 = vmatpush.bf16.msra.mxu0 0
    %5721 = vmatpush.bf16.msra.mxu0 0
    %5722 = vmatpush.bf16.msra.mxu0 0
    %5723 = vmatpush.bf16.msra.mxu0 %v5689
    %5724 = vmatmul.bf16.gmra.mxu0 %v5693
    %v5725 = vpop.f32.mrf.mxu0
    %v5726 = vadd.f32 0.0, %v5725
    %v5727 = vpop.f32.mrf.mxu0
    %v5728 = vadd.f32 0.0, %v5727
    %5729 = vmatmul.bf16.gmra.mxu0 %v5696
    %v5730 = vpop.f32.mrf.mxu0
    %v5731 = vadd.f32 0.0, %v5730
    %v5732 = vpop.f32.mrf.mxu0
    %v5733 = vadd.f32 0.0, %v5732
    %5734 = vmatmul.bf16.gmra.mxu0 %v5699
    %v5735 = vpop.f32.mrf.mxu0
    %v5736 = vadd.f32 0.0, %v5735
    %v5737 = vpop.f32.mrf.mxu0
    %v5738 = vadd.f32 0.0, %v5737
    %5739 = vmatmul.bf16.gmra.mxu0 %v5702
    %v5740 = vpop.f32.mrf.mxu0
    %v5741 = vadd.f32 0.0, %v5740
    %v5742 = vpop.f32.mrf.mxu0
    %v5743 = vadd.f32 0.0, %v5742
    %5744 = vmatmul.bf16.gmra.mxu0 %v5705
    %v5745 = vpop.f32.mrf.mxu0
    %v5746 = vadd.f32 0.0, %v5745
    %v5747 = vpop.f32.mrf.mxu0
    %v5748 = vadd.f32 0.0, %v5747
    %5749 = vmatmul.bf16.gmra.mxu0 %v5708
    %v5750 = vpop.f32.mrf.mxu0
    %v5751 = vadd.f32 0.0, %v5750
    %v5752 = vpop.f32.mrf.mxu0
    %v5753 = vadd.f32 0.0, %v5752
    %5754 = vmatmul.bf16.gmra.mxu0 %v5711
    %v5755 = vpop.f32.mrf.mxu0
    %v5756 = vadd.f32 0.0, %v5755
    %v5757 = vpop.f32.mrf.mxu0
    %v5758 = vadd.f32 0.0, %v5757
    %5759 = vmatmul.bf16.gmra.mxu0 %v5714
    %v5760 = vpop.f32.mrf.mxu0
    %v5761 = vadd.f32 0.0, %v5760
    %v5762 = vpop.f32.mrf.mxu0
    %v5763 = vadd.f32 0.0, %v5762
    %5764 = vdwg.mxu0
    %v5767 = vunpack.c.l.b16 %v5569
    %v5768 = vunpack.c.l.b16 %v5570
    %v5769 = vpack.c.b16 %v5768, %v5767
    %v5771 = vsel %vm5691, %v5608, 0
    %v5773 = vsel %vm5691, %v5609, 0
    %v5775 = vsel %vm5691, %v5610, 0
    %v5777 = vsel %vm5691, %v5611, 0
    %v5779 = vsel %vm5691, %v5612, 0
    %v5781 = vsel %vm5691, %v5613, 0
    %v5783 = vsel %vm5691, %v5614, 0
    %v5785 = vsel %vm5691, %v5615, 0
    %5787 = vmatpush.bf16.msra.mxu0 0
    %5788 = vmatpush.bf16.msra.mxu0 0
    %5789 = vmatpush.bf16.msra.mxu0 0
    %5790 = vmatpush.bf16.msra.mxu0 0
    %5791 = vmatpush.bf16.msra.mxu0 0
    %5792 = vmatpush.bf16.msra.mxu0 0
    %5793 = vmatpush.bf16.msra.mxu0 0
    %5794 = vmatpush.bf16.msra.mxu0 %v5769
    %5795 = vmatmul.bf16.gmra.mxu0 %v5771
    %v5796 = vpop.f32.mrf.mxu0
    %v5797 = vadd.f32 %v5726, %v5796
    %v5798 = vpop.f32.mrf.mxu0
    %v5799 = vadd.f32 %v5728, %v5798
    %5800 = vmatmul.bf16.gmra.mxu0 %v5773
    %v5801 = vpop.f32.mrf.mxu0
    %v5802 = vadd.f32 %v5731, %v5801
    %v5803 = vpop.f32.mrf.mxu0
    %v5804 = vadd.f32 %v5733, %v5803
    %5805 = vmatmul.bf16.gmra.mxu0 %v5775
    %v5806 = vpop.f32.mrf.mxu0
    %v5807 = vadd.f32 %v5736, %v5806
    %v5808 = vpop.f32.mrf.mxu0
    %v5809 = vadd.f32 %v5738, %v5808
    %5810 = vmatmul.bf16.gmra.mxu0 %v5777
    %v5811 = vpop.f32.mrf.mxu0
    %v5812 = vadd.f32 %v5741, %v5811
    %v5813 = vpop.f32.mrf.mxu0
    %v5814 = vadd.f32 %v5743, %v5813
    %5815 = vmatmul.bf16.gmra.mxu0 %v5779
    %v5816 = vpop.f32.mrf.mxu0
    %v5817 = vadd.f32 %v5746, %v5816
    %v5818 = vpop.f32.mrf.mxu0
    %v5819 = vadd.f32 %v5748, %v5818
    %5820 = vmatmul.bf16.gmra.mxu0 %v5781
    %v5821 = vpop.f32.mrf.mxu0
    %v5822 = vadd.f32 %v5751, %v5821
    %v5823 = vpop.f32.mrf.mxu0
    %v5824 = vadd.f32 %v5753, %v5823
    %5825 = vmatmul.bf16.gmra.mxu0 %v5783
    %v5826 = vpop.f32.mrf.mxu0
    %v5827 = vadd.f32 %v5756, %v5826
    %v5828 = vpop.f32.mrf.mxu0
    %v5829 = vadd.f32 %v5758, %v5828
    %5830 = vmatmul.bf16.gmra.mxu0 %v5785
    %v5831 = vpop.f32.mrf.mxu0
    %v5832 = vadd.f32 %v5761, %v5831
    %v5833 = vpop.f32.mrf.mxu0
    %v5834 = vadd.f32 %v5763, %v5833
    %5835 = vdwg.mxu0
    %v5836 = vld [vmem:[#allocation2] sm:$0xe]
    %v5837 = vld [vmem:[%s3 + $0x10] sm:$0xf]
    %v5838 = vld [vmem:[%s3 + $0x14] sm:$0xf]
    %v5840 = vunpack.c.l.b16 %v5836
    %v5841 = vpack.c.b16 %v5592, %v5840
    %v5842 = vrot.slane %v5841, 1
    %v5843 = vrot.slane %v5609, 1
    %v5844 = vsel %vm344, %v5842, %v5843
    %v5845 = vrot.slane %v5610, 1
    %v5846 = vsel %vm344, %v5843, %v5845
    %v5847 = vrot.slane %v5611, 1
    %v5848 = vsel %vm344, %v5845, %v5847
    %v5849 = vrot.slane %v5612, 1
    %v5850 = vsel %vm344, %v5847, %v5849
    %v5851 = vrot.slane %v5613, 1
    %v5852 = vsel %vm344, %v5849, %v5851
    %v5853 = vrot.slane %v5614, 1
    %v5854 = vsel %vm344, %v5851, %v5853
    %v5855 = vrot.slane %v5615, 1
    %v5856 = vsel %vm344, %v5853, %v5855
    %v5857 = vrot.slane %v5616, 1
    %v5858 = vsel %vm344, %v5855, %v5857
    %v5861 = vunpack.c.l.b16 %v5837
    %v5862 = vunpack.c.l.b16 %v5838
    %v5863 = vpack.c.b16 %v5862, %v5861
    %v5866 = vsel %vm5691, %v5844, 0
    %v5869 = vsel %vm5691, %v5846, 0
    %v5872 = vsel %vm5691, %v5848, 0
    %v5875 = vsel %vm5691, %v5850, 0
    %v5878 = vsel %vm5691, %v5852, 0
    %v5881 = vsel %vm5691, %v5854, 0
    %v5884 = vsel %vm5691, %v5856, 0
    %v5887 = vsel %vm5691, %v5858, 0
    %5889 = vmatpush.bf16.msra.mxu0 0
    %5890 = vmatpush.bf16.msra.mxu0 0
    %5891 = vmatpush.bf16.msra.mxu0 0
    %5892 = vmatpush.bf16.msra.mxu0 0
    %5893 = vmatpush.bf16.msra.mxu0 0
    %5894 = vmatpush.bf16.msra.mxu0 0
    %5895 = vmatpush.bf16.msra.mxu0 0
    %5896 = vmatpush.bf16.msra.mxu0 %v5863
    %5897 = vmatmul.bf16.gmra.mxu0 %v5866
    %v5898 = vpop.f32.mrf.mxu0
    %v5899 = vadd.f32 0.0, %v5898
    %v5900 = vpop.f32.mrf.mxu0
    %v5901 = vadd.f32 0.0, %v5900
    %5902 = vmatmul.bf16.gmra.mxu0 %v5869
    %v5903 = vpop.f32.mrf.mxu0
    %v5904 = vadd.f32 0.0, %v5903
    %v5905 = vpop.f32.mrf.mxu0
    %v5906 = vadd.f32 0.0, %v5905
    %5907 = vmatmul.bf16.gmra.mxu0 %v5872
    %v5908 = vpop.f32.mrf.mxu0
    %v5909 = vadd.f32 0.0, %v5908
    %v5910 = vpop.f32.mrf.mxu0
    %v5911 = vadd.f32 0.0, %v5910
    %5912 = vmatmul.bf16.gmra.mxu0 %v5875
    %v5913 = vpop.f32.mrf.mxu0
    %v5914 = vadd.f32 0.0, %v5913
    %v5915 = vpop.f32.mrf.mxu0
    %v5916 = vadd.f32 0.0, %v5915
    %5917 = vmatmul.bf16.gmra.mxu0 %v5878
    %v5918 = vpop.f32.mrf.mxu0
    %v5919 = vadd.f32 0.0, %v5918
    %v5920 = vpop.f32.mrf.mxu0
    %v5921 = vadd.f32 0.0, %v5920
    %5922 = vmatmul.bf16.gmra.mxu0 %v5881
    %v5923 = vpop.f32.mrf.mxu0
    %v5924 = vadd.f32 0.0, %v5923
    %v5925 = vpop.f32.mrf.mxu0
    %v5926 = vadd.f32 0.0, %v5925
    %5927 = vmatmul.bf16.gmra.mxu0 %v5884
    %v5928 = vpop.f32.mrf.mxu0
    %v5929 = vadd.f32 0.0, %v5928
    %v5930 = vpop.f32.mrf.mxu0
    %v5931 = vadd.f32 0.0, %v5930
    %5932 = vmatmul.bf16.gmra.mxu0 %v5887
    %v5933 = vpop.f32.mrf.mxu0
    %v5934 = vadd.f32 0.0, %v5933
    %v5935 = vpop.f32.mrf.mxu0
    %v5936 = vadd.f32 0.0, %v5935
    %5937 = vdwg.mxu0
    %v5938 = vadd.f32 %v5797, %v5899
    %v5939 = vadd.f32 %v5799, %v5901
    %v5940 = vadd.f32 %v5802, %v5904
    %v5941 = vadd.f32 %v5804, %v5906
    %v5942 = vadd.f32 %v5807, %v5909
    %v5943 = vadd.f32 %v5809, %v5911
    %v5944 = vadd.f32 %v5812, %v5914
    %v5945 = vadd.f32 %v5814, %v5916
    %v5946 = vadd.f32 %v5817, %v5919
    %v5947 = vadd.f32 %v5819, %v5921
    %v5948 = vadd.f32 %v5822, %v5924
    %v5949 = vadd.f32 %v5824, %v5926
    %v5950 = vadd.f32 %v5827, %v5929
    %v5951 = vadd.f32 %v5829, %v5931
    %v5952 = vadd.f32 %v5832, %v5934
    %v5953 = vadd.f32 %v5834, %v5936
    %v5954 = vld [vmem:[#allocation2 + $0x8] sm:$0xf]
    %v5955 = vld [vmem:[#allocation2 + $0xc] sm:$0xf]
    %v5956 = vld [vmem:[#allocation2 + $0x10] sm:$0xf]
    %v5957 = vld [vmem:[#allocation2 + $0x14] sm:$0xf]
    %v5958 = vld [vmem:[#allocation2 + $0x18] sm:$0xf]
    %v5959 = vld [vmem:[#allocation2 + $0x1c] sm:$0xf]
    %v5960 = vld [vmem:[#allocation2 + $0x20] sm:$0xf]
    %v5961 = vld [vmem:[#allocation2 + $0x24] sm:$0xf]
    %v5962 = vld [vmem:[#allocation2 + $0x28] sm:$0xf]
    %v5963 = vld [vmem:[#allocation2 + $0x2c] sm:$0xf]
    %v5964 = vld [vmem:[#allocation2 + $0x30] sm:$0xf]
    %v5965 = vld [vmem:[#allocation2 + $0x34] sm:$0xf]
    %v5966 = vld [vmem:[#allocation2 + $0x38] sm:$0xf]
    %v5967 = vld [vmem:[#allocation2 + $0x3c] sm:$0xf]
    %v5968 = vld [vmem:[#allocation2 + $0x40] sm:$0xf]
    %v5969 = vld [vmem:[#allocation2 + $0x44] sm:$0xf]
    %v5970 = vld [vmem:[%s3 + $0x18] sm:$0xf]
    %v5971 = vld [vmem:[%s3 + $0x1c] sm:$0xf]
    %v5988 = vunpack.c.l.b16 %v5954
    %v5989 = vunpack.c.l.b16 %v5955
    %v5990 = vunpack.c.l.b16 %v5956
    %v5991 = vunpack.c.l.b16 %v5957
    %v5992 = vunpack.c.l.b16 %v5958
    %v5993 = vunpack.c.l.b16 %v5959
    %v5994 = vunpack.c.l.b16 %v5960
    %v5995 = vunpack.c.l.b16 %v5961
    %v5996 = vunpack.c.l.b16 %v5962
    %v5997 = vunpack.c.l.b16 %v5963
    %v5998 = vunpack.c.l.b16 %v5964
    %v5999 = vunpack.c.l.b16 %v5965
    %v6000 = vunpack.c.l.b16 %v5966
    %v6001 = vunpack.c.l.b16 %v5967
    %v6002 = vunpack.c.l.b16 %v5968
    %v6003 = vunpack.c.l.b16 %v5969
    %v6004 = vpack.c.b16 %v5989, %v5988
    %v6005 = vpack.c.b16 %v5991, %v5990
    %v6006 = vpack.c.b16 %v5993, %v5992
    %v6007 = vpack.c.b16 %v5995, %v5994
    %v6008 = vpack.c.b16 %v5997, %v5996
    %v6009 = vpack.c.b16 %v5999, %v5998
    %v6010 = vpack.c.b16 %v6001, %v6000
    %v6011 = vpack.c.b16 %v6003, %v6002
    %v6014 = vunpack.c.l.b16 %v5970
    %v6015 = vunpack.c.l.b16 %v5971
    %v6016 = vpack.c.b16 %v6015, %v6014
    %v6019 = vsel %vm5691, %v6004, 0
    %v6022 = vsel %vm5691, %v6005, 0
    %v6025 = vsel %vm5691, %v6006, 0
    %v6028 = vsel %vm5691, %v6007, 0
    %v6031 = vsel %vm5691, %v6008, 0
    %v6034 = vsel %vm5691, %v6009, 0
    %v6037 = vsel %vm5691, %v6010, 0
    %v6040 = vsel %vm5691, %v6011, 0
    %6042 = vmatpush.bf16.msra.mxu0 0
    %6043 = vmatpush.bf16.msra.mxu0 0
    %6044 = vmatpush.bf16.msra.mxu0 0
    %6045 = vmatpush.bf16.msra.mxu0 0
    %6046 = vmatpush.bf16.msra.mxu0 0
    %6047 = vmatpush.bf16.msra.mxu0 0
    %6048 = vmatpush.bf16.msra.mxu0 0
    %6049 = vmatpush.bf16.msra.mxu0 %v6016
    %6050 = vmatmul.bf16.gmra.mxu0 %v6019
    %v6051 = vpop.f32.mrf.mxu0
    %v6052 = vadd.f32 0.0, %v6051
    %v6053 = vpop.f32.mrf.mxu0
    %v6054 = vadd.f32 0.0, %v6053
    %6055 = vmatmul.bf16.gmra.mxu0 %v6022
    %v6056 = vpop.f32.mrf.mxu0
    %v6057 = vadd.f32 0.0, %v6056
    %v6058 = vpop.f32.mrf.mxu0
    %v6059 = vadd.f32 0.0, %v6058
    %6060 = vmatmul.bf16.gmra.mxu0 %v6025
    %v6061 = vpop.f32.mrf.mxu0
    %v6062 = vadd.f32 0.0, %v6061
    %v6063 = vpop.f32.mrf.mxu0
    %v6064 = vadd.f32 0.0, %v6063
    %6065 = vmatmul.bf16.gmra.mxu0 %v6028
    %v6066 = vpop.f32.mrf.mxu0
    %v6067 = vadd.f32 0.0, %v6066
    %v6068 = vpop.f32.mrf.mxu0
    %v6069 = vadd.f32 0.0, %v6068
    %6070 = vmatmul.bf16.gmra.mxu0 %v6031
    %v6071 = vpop.f32.mrf.mxu0
    %v6072 = vadd.f32 0.0, %v6071
    %v6073 = vpop.f32.mrf.mxu0
    %v6074 = vadd.f32 0.0, %v6073
    %6075 = vmatmul.bf16.gmra.mxu0 %v6034
    %v6076 = vpop.f32.mrf.mxu0
    %v6077 = vadd.f32 0.0, %v6076
    %v6078 = vpop.f32.mrf.mxu0
    %v6079 = vadd.f32 0.0, %v6078
    %6080 = vmatmul.bf16.gmra.mxu0 %v6037
    %v6081 = vpop.f32.mrf.mxu0
    %v6082 = vadd.f32 0.0, %v6081
    %v6083 = vpop.f32.mrf.mxu0
    %v6084 = vadd.f32 0.0, %v6083
    %6085 = vmatmul.bf16.gmra.mxu0 %v6040
    %v6086 = vpop.f32.mrf.mxu0
    %v6087 = vadd.f32 0.0, %v6086
    %v6088 = vpop.f32.mrf.mxu0
    %v6089 = vadd.f32 0.0, %v6088
    %6090 = vdwg.mxu0
    %v6091 = vadd.f32 %v5938, %v6052
    %v6092 = vadd.f32 %v5939, %v6054
    %v6093 = vadd.f32 %v5940, %v6057
    %v6094 = vadd.f32 %v5941, %v6059
    %v6095 = vadd.f32 %v5942, %v6062
    %v6096 = vadd.f32 %v5943, %v6064
    %v6097 = vadd.f32 %v5944, %v6067
    %v6098 = vadd.f32 %v5945, %v6069
    %v6099 = vadd.f32 %v5946, %v6072
    %v6100 = vadd.f32 %v5947, %v6074
    %v6101 = vadd.f32 %v5948, %v6077
    %v6102 = vadd.f32 %v5949, %v6079
    %v6103 = vadd.f32 %v5950, %v6082
    %v6104 = vadd.f32 %v5951, %v6084
    %v6105 = vadd.f32 %v5952, %v6087
    %v6106 = vadd.f32 %v5953, %v6089
    %v6107 = vld [vmem:[#allocation2 + $0x8] sm:$0xf]
    %v6108 = vld [vmem:[#allocation2 + $0xc] sm:$0xf]
    %v6109 = vld [vmem:[#allocation2 + $0x10] sm:$0xf]
    %v6110 = vld [vmem:[#allocation2 + $0x14] sm:$0xf]
    %v6111 = vld [vmem:[#allocation2 + $0x18] sm:$0xf]
    %v6112 = vld [vmem:[#allocation2 + $0x1c] sm:$0xf]
    %v6113 = vld [vmem:[#allocation2 + $0x20] sm:$0xf]
    %v6114 = vld [vmem:[#allocation2 + $0x24] sm:$0xf]
    %v6115 = vld [vmem:[#allocation2 + $0x28] sm:$0xf]
    %v6116 = vld [vmem:[#allocation2 + $0x2c] sm:$0xf]
    %v6117 = vld [vmem:[#allocation2 + $0x30] sm:$0xf]
    %v6118 = vld [vmem:[#allocation2 + $0x34] sm:$0xf]
    %v6119 = vld [vmem:[#allocation2 + $0x38] sm:$0xf]
    %v6120 = vld [vmem:[#allocation2 + $0x3c] sm:$0xf]
    %v6121 = vld [vmem:[#allocation2 + $0x40] sm:$0xf]
    %v6122 = vld [vmem:[#allocation2 + $0x44] sm:$0xf]
    %v6123 = vld [vmem:[#allocation2 + $0x48] sm:$0x1]
    %v6124 = vld [vmem:[%s3 + $0x20] sm:$0xf]
    %v6125 = vld [vmem:[%s3 + $0x24] sm:$0xf]
    %v6143 = vunpack.c.l.b16 %v6107
    %v6144 = vunpack.c.l.b16 %v6108
    %v6145 = vunpack.c.l.b16 %v6109
    %v6146 = vunpack.c.l.b16 %v6110
    %v6147 = vunpack.c.l.b16 %v6111
    %v6148 = vunpack.c.l.b16 %v6112
    %v6149 = vunpack.c.l.b16 %v6113
    %v6150 = vunpack.c.l.b16 %v6114
    %v6151 = vunpack.c.l.b16 %v6115
    %v6152 = vunpack.c.l.b16 %v6116
    %v6153 = vunpack.c.l.b16 %v6117
    %v6154 = vunpack.c.l.b16 %v6118
    %v6155 = vunpack.c.l.b16 %v6119
    %v6156 = vunpack.c.l.b16 %v6120
    %v6157 = vunpack.c.l.b16 %v6121
    %v6158 = vunpack.c.l.b16 %v6122
    %v6159 = vunpack.c.l.b16 %v6123
    %v6160 = vpack.c.b16 %v6144, %v6143
    %v6161 = vpack.c.b16 %v6146, %v6145
    %v6162 = vpack.c.b16 %v6148, %v6147
    %v6163 = vpack.c.b16 %v6150, %v6149
    %v6164 = vpack.c.b16 %v6152, %v6151
    %v6165 = vpack.c.b16 %v6154, %v6153
    %v6166 = vpack.c.b16 %v6156, %v6155
    %v6167 = vpack.c.b16 %v6158, %v6157
    %v6168 = vpack.c.b16 %v6159, %v6159
    %v6170 = vshrl.u32 %v6160, 16
    %v6172 = vshll.u32 %v6160, 16
    %v6174 = vrot.slane %v6172, 1
    %v6175 = vor.u32 %v6170, %v6174
    %v6177 = vshll.u32 %v6161, 16
    %v6179 = vrot.slane %v6177, 1
    %v6180 = vsel %vm109, %v6175, %v6179
    %v6181 = vshrl.u32 %v6161, 16
    %v6183 = vor.u32 %v6181, %v6179
    %v6185 = vshll.u32 %v6162, 16
    %v6187 = vrot.slane %v6185, 1
    %v6188 = vsel %vm109, %v6183, %v6187
    %v6189 = vshrl.u32 %v6162, 16
    %v6191 = vor.u32 %v6189, %v6187
    %v6193 = vshll.u32 %v6163, 16
    %v6195 = vrot.slane %v6193, 1
    %v6196 = vsel %vm109, %v6191, %v6195
    %v6197 = vshrl.u32 %v6163, 16
    %v6199 = vor.u32 %v6197, %v6195
    %v6201 = vshll.u32 %v6164, 16
    %v6203 = vrot.slane %v6201, 1
    %v6204 = vsel %vm109, %v6199, %v6203
    %v6205 = vshrl.u32 %v6164, 16
    %v6207 = vor.u32 %v6205, %v6203
    %v6209 = vshll.u32 %v6165, 16
    %v6211 = vrot.slane %v6209, 1
    %v6212 = vsel %vm109, %v6207, %v6211
    %v6213 = vshrl.u32 %v6165, 16
    %v6215 = vor.u32 %v6213, %v6211
    %v6217 = vshll.u32 %v6166, 16
    %v6219 = vrot.slane %v6217, 1
    %v6220 = vsel %vm109, %v6215, %v6219
    %v6221 = vshrl.u32 %v6166, 16
    %v6223 = vor.u32 %v6221, %v6219
    %v6225 = vshll.u32 %v6167, 16
    %v6227 = vrot.slane %v6225, 1
    %v6228 = vsel %vm109, %v6223, %v6227
    %v6229 = vshrl.u32 %v6167, 16
    %v6231 = vor.u32 %v6229, %v6227
    %v6233 = vshll.u32 %v6168, 16
    %v6235 = vrot.slane %v6233, 1
    %v6236 = vsel %vm109, %v6231, %v6235
    %v6239 = vunpack.c.l.b16 %v6124
    %v6240 = vunpack.c.l.b16 %v6125
    %v6241 = vpack.c.b16 %v6240, %v6239
    %v6244 = vsel %vm5691, %v6180, 0
    %v6247 = vsel %vm5691, %v6188, 0
    %v6250 = vsel %vm5691, %v6196, 0
    %v6253 = vsel %vm5691, %v6204, 0
    %v6256 = vsel %vm5691, %v6212, 0
    %v6259 = vsel %vm5691, %v6220, 0
    %v6262 = vsel %vm5691, %v6228, 0
    %v6265 = vsel %vm5691, %v6236, 0
    %6267 = vmatpush.bf16.msra.mxu0 0
    %6268 = vmatpush.bf16.msra.mxu0 0
    %6269 = vmatpush.bf16.msra.mxu0 0
    %6270 = vmatpush.bf16.msra.mxu0 0
    %6271 = vmatpush.bf16.msra.mxu0 0
    %6272 = vmatpush.bf16.msra.mxu0 0
    %6273 = vmatpush.bf16.msra.mxu0 0
    %6274 = vmatpush.bf16.msra.mxu0 %v6241
    %6275 = vmatmul.bf16.gmra.mxu0 %v6244
    %v6276 = vpop.f32.mrf.mxu0
    %v6277 = vadd.f32 0.0, %v6276
    %v6278 = vpop.f32.mrf.mxu0
    %v6279 = vadd.f32 0.0, %v6278
    %6280 = vmatmul.bf16.gmra.mxu0 %v6247
    %v6281 = vpop.f32.mrf.mxu0
    %v6282 = vadd.f32 0.0, %v6281
    %v6283 = vpop.f32.mrf.mxu0
    %v6284 = vadd.f32 0.0, %v6283
    %6285 = vmatmul.bf16.gmra.mxu0 %v6250
    %v6286 = vpop.f32.mrf.mxu0
    %v6287 = vadd.f32 0.0, %v6286
    %v6288 = vpop.f32.mrf.mxu0
    %v6289 = vadd.f32 0.0, %v6288
    %6290 = vmatmul.bf16.gmra.mxu0 %v6253
    %v6291 = vpop.f32.mrf.mxu0
    %v6292 = vadd.f32 0.0, %v6291
    %v6293 = vpop.f32.mrf.mxu0
    %v6294 = vadd.f32 0.0, %v6293
    %6295 = vmatmul.bf16.gmra.mxu0 %v6256
    %v6296 = vpop.f32.mrf.mxu0
    %v6297 = vadd.f32 0.0, %v6296
    %v6298 = vpop.f32.mrf.mxu0
    %v6299 = vadd.f32 0.0, %v6298
    %6300 = vmatmul.bf16.gmra.mxu0 %v6259
    %v6301 = vpop.f32.mrf.mxu0
    %v6302 = vadd.f32 0.0, %v6301
    %v6303 = vpop.f32.mrf.mxu0
    %v6304 = vadd.f32 0.0, %v6303
    %6305 = vmatmul.bf16.gmra.mxu0 %v6262
    %v6306 = vpop.f32.mrf.mxu0
    %v6307 = vadd.f32 0.0, %v6306
    %v6308 = vpop.f32.mrf.mxu0
    %v6309 = vadd.f32 0.0, %v6308
    %6310 = vmatmul.bf16.gmra.mxu0 %v6265
    %v6311 = vpop.f32.mrf.mxu0
    %v6312 = vadd.f32 0.0, %v6311
    %v6313 = vpop.f32.mrf.mxu0
    %v6314 = vadd.f32 0.0, %v6313
    %6315 = vdwg.mxu0
    %v6316 = vadd.f32 %v6091, %v6277
    %v6317 = vadd.f32 %v6092, %v6279
    %v6318 = vadd.f32 %v6093, %v6282
    %v6319 = vadd.f32 %v6094, %v6284
    %v6320 = vadd.f32 %v6095, %v6287
    %v6321 = vadd.f32 %v6096, %v6289
    %v6322 = vadd.f32 %v6097, %v6292
    %v6323 = vadd.f32 %v6098, %v6294
    %v6324 = vadd.f32 %v6099, %v6297
    %v6325 = vadd.f32 %v6100, %v6299
    %v6326 = vadd.f32 %v6101, %v6302
    %v6327 = vadd.f32 %v6102, %v6304
    %v6328 = vadd.f32 %v6103, %v6307
    %v6329 = vadd.f32 %v6104, %v6309
    %v6330 = vadd.f32 %v6105, %v6312
    %v6331 = vadd.f32 %v6106, %v6314
    %v6332 = vld [vmem:[#allocation2 + $0x8] sm:$0xe]
    %v6333 = vld [vmem:[%s3 + $0x28] sm:$0xf]
    %v6334 = vld [vmem:[%s3 + $0x2c] sm:$0xf]
    %v6336 = vunpack.c.l.b16 %v6332
    %v6337 = vpack.c.b16 %v6144, %v6336
    %v6338 = vrot.slane %v6337, 1
    %v6339 = vrot.slane %v6161, 1
    %v6340 = vsel %vm344, %v6338, %v6339
    %v6341 = vrot.slane %v6162, 1
    %v6342 = vsel %vm344, %v6339, %v6341
    %v6343 = vrot.slane %v6163, 1
    %v6344 = vsel %vm344, %v6341, %v6343
    %v6345 = vrot.slane %v6164, 1
    %v6346 = vsel %vm344, %v6343, %v6345
    %v6347 = vrot.slane %v6165, 1
    %v6348 = vsel %vm344, %v6345, %v6347
    %v6349 = vrot.slane %v6166, 1
    %v6350 = vsel %vm344, %v6347, %v6349
    %v6351 = vrot.slane %v6167, 1
    %v6352 = vsel %vm344, %v6349, %v6351
    %v6353 = vrot.slane %v6168, 1
    %v6354 = vsel %vm344, %v6351, %v6353
    %v6357 = vunpack.c.l.b16 %v6333
    %v6358 = vunpack.c.l.b16 %v6334
    %v6359 = vpack.c.b16 %v6358, %v6357
    %v6362 = vsel %vm5691, %v6340, 0
    %v6365 = vsel %vm5691, %v6342, 0
    %v6368 = vsel %vm5691, %v6344, 0
    %v6371 = vsel %vm5691, %v6346, 0
    %v6374 = vsel %vm5691, %v6348, 0
    %v6377 = vsel %vm5691, %v6350, 0
    %v6380 = vsel %vm5691, %v6352, 0
    %v6383 = vsel %vm5691, %v6354, 0
    %6385 = vmatpush.bf16.msra.mxu0 0
    %6386 = vmatpush.bf16.msra.mxu0 0
    %6387 = vmatpush.bf16.msra.mxu0 0
    %6388 = vmatpush.bf16.msra.mxu0 0
    %6389 = vmatpush.bf16.msra.mxu0 0
    %6390 = vmatpush.bf16.msra.mxu0 0
    %6391 = vmatpush.bf16.msra.mxu0 0
    %6392 = vmatpush.bf16.msra.mxu0 %v6359
    %6393 = vmatmul.bf16.gmra.mxu0 %v6362
    %v6394 = vpop.f32.mrf.mxu0
    %v6395 = vadd.f32 0.0, %v6394
    %v6396 = vpop.f32.mrf.mxu0
    %v6397 = vadd.f32 0.0, %v6396
    %6398 = vmatmul.bf16.gmra.mxu0 %v6365
    %v6399 = vpop.f32.mrf.mxu0
    %v6400 = vadd.f32 0.0, %v6399
    %v6401 = vpop.f32.mrf.mxu0
    %v6402 = vadd.f32 0.0, %v6401
    %6403 = vmatmul.bf16.gmra.mxu0 %v6368
    %v6404 = vpop.f32.mrf.mxu0
    %v6405 = vadd.f32 0.0, %v6404
    %v6406 = vpop.f32.mrf.mxu0
    %v6407 = vadd.f32 0.0, %v6406
    %6408 = vmatmul.bf16.gmra.mxu0 %v6371
    %v6409 = vpop.f32.mrf.mxu0
    %v6410 = vadd.f32 0.0, %v6409
    %v6411 = vpop.f32.mrf.mxu0
    %v6412 = vadd.f32 0.0, %v6411
    %6413 = vmatmul.bf16.gmra.mxu0 %v6374
    %v6414 = vpop.f32.mrf.mxu0
    %v6415 = vadd.f32 0.0, %v6414
    %v6416 = vpop.f32.mrf.mxu0
    %v6417 = vadd.f32 0.0, %v6416
    %6418 = vmatmul.bf16.gmra.mxu0 %v6377
    %v6419 = vpop.f32.mrf.mxu0
    %v6420 = vadd.f32 0.0, %v6419
    %v6421 = vpop.f32.mrf.mxu0
    %v6422 = vadd.f32 0.0, %v6421
    %6423 = vmatmul.bf16.gmra.mxu0 %v6380
    %v6424 = vpop.f32.mrf.mxu0
    %v6425 = vadd.f32 0.0, %v6424
    %v6426 = vpop.f32.mrf.mxu0
    %v6427 = vadd.f32 0.0, %v6426
    %6428 = vmatmul.bf16.gmra.mxu0 %v6383
    %v6429 = vpop.f32.mrf.mxu0
    %v6430 = vadd.f32 0.0, %v6429
    %v6431 = vpop.f32.mrf.mxu0
    %v6432 = vadd.f32 0.0, %v6431
    %6433 = vdwg.mxu0
    %v6434 = vadd.f32 %v6316, %v6395
    %v6435 = vadd.f32 %v6317, %v6397
    %v6436 = vadd.f32 %v6318, %v6400
    %v6437 = vadd.f32 %v6319, %v6402
    %v6438 = vadd.f32 %v6320, %v6405
    %v6439 = vadd.f32 %v6321, %v6407
    %v6440 = vadd.f32 %v6322, %v6410
    %v6441 = vadd.f32 %v6323, %v6412
    %v6442 = vadd.f32 %v6324, %v6415
    %v6443 = vadd.f32 %v6325, %v6417
    %v6444 = vadd.f32 %v6326, %v6420
    %v6445 = vadd.f32 %v6327, %v6422
    %v6446 = vadd.f32 %v6328, %v6425
    %v6447 = vadd.f32 %v6329, %v6427
    %v6448 = vadd.f32 %v6330, %v6430
    %v6449 = vadd.f32 %v6331, %v6432
    %v6450 = vld [vmem:[#allocation2 + $0x10] sm:$0xf]
    %v6451 = vld [vmem:[#allocation2 + $0x14] sm:$0xf]
    %v6452 = vld [vmem:[#allocation2 + $0x18] sm:$0xf]
    %v6453 = vld [vmem:[#allocation2 + $0x1c] sm:$0xf]
    %v6454 = vld [vmem:[#allocation2 + $0x20] sm:$0xf]
    %v6455 = vld [vmem:[#allocation2 + $0x24] sm:$0xf]
    %v6456 = vld [vmem:[#allocation2 + $0x28] sm:$0xf]
    %v6457 = vld [vmem:[#allocation2 + $0x2c] sm:$0xf]
    %v6458 = vld [vmem:[#allocation2 + $0x30] sm:$0xf]
    %v6459 = vld [vmem:[#allocation2 + $0x34] sm:$0xf]
    %v6460 = vld [vmem:[#allocation2 + $0x38] sm:$0xf]
    %v6461 = vld [vmem:[#allocation2 + $0x3c] sm:$0xf]
    %v6462 = vld [vmem:[#allocation2 + $0x40] sm:$0xf]
    %v6463 = vld [vmem:[#allocation2 + $0x44] sm:$0xf]
    %v6464 = vld [vmem:[#allocation2 + $0x48] sm:$0xf]
    %v6465 = vld [vmem:[#allocation2 + $0x4c] sm:$0xf]
    %v6466 = vld [vmem:[%s3 + $0x30] sm:$0xf]
    %v6467 = vld [vmem:[%s3 + $0x34] sm:$0xf]
    %v6484 = vunpack.c.l.b16 %v6450
    %v6485 = vunpack.c.l.b16 %v6451
    %v6486 = vunpack.c.l.b16 %v6452
    %v6487 = vunpack.c.l.b16 %v6453
    %v6488 = vunpack.c.l.b16 %v6454
    %v6489 = vunpack.c.l.b16 %v6455
    %v6490 = vunpack.c.l.b16 %v6456
    %v6491 = vunpack.c.l.b16 %v6457
    %v6492 = vunpack.c.l.b16 %v6458
    %v6493 = vunpack.c.l.b16 %v6459
    %v6494 = vunpack.c.l.b16 %v6460
    %v6495 = vunpack.c.l.b16 %v6461
    %v6496 = vunpack.c.l.b16 %v6462
    %v6497 = vunpack.c.l.b16 %v6463
    %v6498 = vunpack.c.l.b16 %v6464
    %v6499 = vunpack.c.l.b16 %v6465
    %v6500 = vpack.c.b16 %v6485, %v6484
    %v6501 = vpack.c.b16 %v6487, %v6486
    %v6502 = vpack.c.b16 %v6489, %v6488
    %v6503 = vpack.c.b16 %v6491, %v6490
    %v6504 = vpack.c.b16 %v6493, %v6492
    %v6505 = vpack.c.b16 %v6495, %v6494
    %v6506 = vpack.c.b16 %v6497, %v6496
    %v6507 = vpack.c.b16 %v6499, %v6498
    %v6510 = vunpack.c.l.b16 %v6466
    %v6511 = vunpack.c.l.b16 %v6467
    %v6512 = vpack.c.b16 %v6511, %v6510
    %v6515 = vsel %vm5691, %v6500, 0
    %v6518 = vsel %vm5691, %v6501, 0
    %v6521 = vsel %vm5691, %v6502, 0
    %v6524 = vsel %vm5691, %v6503, 0
    %v6527 = vsel %vm5691, %v6504, 0
    %v6530 = vsel %vm5691, %v6505, 0
    %v6533 = vsel %vm5691, %v6506, 0
    %v6536 = vsel %vm5691, %v6507, 0
    %6538 = vmatpush.bf16.msra.mxu0 0
    %6539 = vmatpush.bf16.msra.mxu0 0
    %6540 = vmatpush.bf16.msra.mxu0 0
    %6541 = vmatpush.bf16.msra.mxu0 0
    %6542 = vmatpush.bf16.msra.mxu0 0
    %6543 = vmatpush.bf16.msra.mxu0 0
    %6544 = vmatpush.bf16.msra.mxu0 0
    %6545 = vmatpush.bf16.msra.mxu0 %v6512
    %6546 = vmatmul.bf16.gmra.mxu0 %v6515
    %v6547 = vpop.f32.mrf.mxu0
    %v6548 = vadd.f32 0.0, %v6547
    %v6549 = vpop.f32.mrf.mxu0
    %v6550 = vadd.f32 0.0, %v6549
    %6551 = vmatmul.bf16.gmra.mxu0 %v6518
    %v6552 = vpop.f32.mrf.mxu0
    %v6553 = vadd.f32 0.0, %v6552
    %v6554 = vpop.f32.mrf.mxu0
    %v6555 = vadd.f32 0.0, %v6554
    %6556 = vmatmul.bf16.gmra.mxu0 %v6521
    %v6557 = vpop.f32.mrf.mxu0
    %v6558 = vadd.f32 0.0, %v6557
    %v6559 = vpop.f32.mrf.mxu0
    %v6560 = vadd.f32 0.0, %v6559
    %6561 = vmatmul.bf16.gmra.mxu0 %v6524
    %v6562 = vpop.f32.mrf.mxu0
    %v6563 = vadd.f32 0.0, %v6562
    %v6564 = vpop.f32.mrf.mxu0
    %v6565 = vadd.f32 0.0, %v6564
    %6566 = vmatmul.bf16.gmra.mxu0 %v6527
    %v6567 = vpop.f32.mrf.mxu0
    %v6568 = vadd.f32 0.0, %v6567
    %v6569 = vpop.f32.mrf.mxu0
    %v6570 = vadd.f32 0.0, %v6569
    %6571 = vmatmul.bf16.gmra.mxu0 %v6530
    %v6572 = vpop.f32.mrf.mxu0
    %v6573 = vadd.f32 0.0, %v6572
    %v6574 = vpop.f32.mrf.mxu0
    %v6575 = vadd.f32 0.0, %v6574
    %6576 = vmatmul.bf16.gmra.mxu0 %v6533
    %v6577 = vpop.f32.mrf.mxu0
    %v6578 = vadd.f32 0.0, %v6577
    %v6579 = vpop.f32.mrf.mxu0
    %v6580 = vadd.f32 0.0, %v6579
    %6581 = vmatmul.bf16.gmra.mxu0 %v6536
    %v6582 = vpop.f32.mrf.mxu0
    %v6583 = vadd.f32 0.0, %v6582
    %v6584 = vpop.f32.mrf.mxu0
    %v6585 = vadd.f32 0.0, %v6584
    %6586 = vdwg.mxu0
    %v6587 = vadd.f32 %v6434, %v6548
    %v6588 = vadd.f32 %v6435, %v6550
    %v6589 = vadd.f32 %v6436, %v6553
    %v6590 = vadd.f32 %v6437, %v6555
    %v6591 = vadd.f32 %v6438, %v6558
    %v6592 = vadd.f32 %v6439, %v6560
    %v6593 = vadd.f32 %v6440, %v6563
    %v6594 = vadd.f32 %v6441, %v6565
    %v6595 = vadd.f32 %v6442, %v6568
    %v6596 = vadd.f32 %v6443, %v6570
    %v6597 = vadd.f32 %v6444, %v6573
    %v6598 = vadd.f32 %v6445, %v6575
    %v6599 = vadd.f32 %v6446, %v6578
    %v6600 = vadd.f32 %v6447, %v6580
    %v6601 = vadd.f32 %v6448, %v6583
    %v6602 = vadd.f32 %v6449, %v6585
    %v6603 = vld [vmem:[#allocation2 + $0x10] sm:$0xf]
    %v6604 = vld [vmem:[#allocation2 + $0x14] sm:$0xf]
    %v6605 = vld [vmem:[#allocation2 + $0x18] sm:$0xf]
    %v6606 = vld [vmem:[#allocation2 + $0x1c] sm:$0xf]
    %v6607 = vld [vmem:[#allocation2 + $0x20] sm:$0xf]
    %v6608 = vld [vmem:[#allocation2 + $0x24] sm:$0xf]
    %v6609 = vld [vmem:[#allocation2 + $0x28] sm:$0xf]
    %v6610 = vld [vmem:[#allocation2 + $0x2c] sm:$0xf]
    %v6611 = vld [vmem:[#allocation2 + $0x30] sm:$0xf]
    %v6612 = vld [vmem:[#allocation2 + $0x34] sm:$0xf]
    %v6613 = vld [vmem:[#allocation2 + $0x38] sm:$0xf]
    %v6614 = vld [vmem:[#allocation2 + $0x3c] sm:$0xf]
    %v6615 = vld [vmem:[#allocation2 + $0x40] sm:$0xf]
    %v6616 = vld [vmem:[#allocation2 + $0x44] sm:$0xf]
    %v6617 = vld [vmem:[#allocation2 + $0x48] sm:$0xf]
    %v6618 = vld [vmem:[#allocation2 + $0x4c] sm:$0xf]
    %v6619 = vld [vmem:[#allocation2 + $0x50] sm:$0x1]
    %v6620 = vld [vmem:[%s3 + $0x38] sm:$0xf]
    %v6621 = vld [vmem:[%s3 + $0x3c] sm:$0xf]
    %v6639 = vunpack.c.l.b16 %v6603
    %v6640 = vunpack.c.l.b16 %v6604
    %v6641 = vunpack.c.l.b16 %v6605
    %v6642 = vunpack.c.l.b16 %v6606
    %v6643 = vunpack.c.l.b16 %v6607
    %v6644 = vunpack.c.l.b16 %v6608
    %v6645 = vunpack.c.l.b16 %v6609
    %v6646 = vunpack.c.l.b16 %v6610
    %v6647 = vunpack.c.l.b16 %v6611
    %v6648 = vunpack.c.l.b16 %v6612
    %v6649 = vunpack.c.l.b16 %v6613
    %v6650 = vunpack.c.l.b16 %v6614
    %v6651 = vunpack.c.l.b16 %v6615
    %v6652 = vunpack.c.l.b16 %v6616
    %v6653 = vunpack.c.l.b16 %v6617
    %v6654 = vunpack.c.l.b16 %v6618
    %v6655 = vunpack.c.l.b16 %v6619
    %v6656 = vpack.c.b16 %v6640, %v6639
    %v6657 = vpack.c.b16 %v6642, %v6641
    %v6658 = vpack.c.b16 %v6644, %v6643
    %v6659 = vpack.c.b16 %v6646, %v6645
    %v6660 = vpack.c.b16 %v6648, %v6647
    %v6661 = vpack.c.b16 %v6650, %v6649
    %v6662 = vpack.c.b16 %v6652, %v6651
    %v6663 = vpack.c.b16 %v6654, %v6653
    %v6664 = vpack.c.b16 %v6655, %v6655
    %v6666 = vshrl.u32 %v6656, 16
    %v6668 = vshll.u32 %v6656, 16
    %v6670 = vrot.slane %v6668, 1
    %v6671 = vor.u32 %v6666, %v6670
    %v6673 = vshll.u32 %v6657, 16
    %v6675 = vrot.slane %v6673, 1
    %v6676 = vsel %vm109, %v6671, %v6675
    %v6677 = vshrl.u32 %v6657, 16
    %v6679 = vor.u32 %v6677, %v6675
    %v6681 = vshll.u32 %v6658, 16
    %v6683 = vrot.slane %v6681, 1
    %v6684 = vsel %vm109, %v6679, %v6683
    %v6685 = vshrl.u32 %v6658, 16
    %v6687 = vor.u32 %v6685, %v6683
    %v6689 = vshll.u32 %v6659, 16
    %v6691 = vrot.slane %v6689, 1
    %v6692 = vsel %vm109, %v6687, %v6691
    %v6693 = vshrl.u32 %v6659, 16
    %v6695 = vor.u32 %v6693, %v6691
    %v6697 = vshll.u32 %v6660, 16
    %v6699 = vrot.slane %v6697, 1
    %v6700 = vsel %vm109, %v6695, %v6699
    %v6701 = vshrl.u32 %v6660, 16
    %v6703 = vor.u32 %v6701, %v6699
    %v6705 = vshll.u32 %v6661, 16
    %v6707 = vrot.slane %v6705, 1
    %v6708 = vsel %vm109, %v6703, %v6707
    %v6709 = vshrl.u32 %v6661, 16
    %v6711 = vor.u32 %v6709, %v6707
    %v6713 = vshll.u32 %v6662, 16
    %v6715 = vrot.slane %v6713, 1
    %v6716 = vsel %vm109, %v6711, %v6715
    %v6717 = vshrl.u32 %v6662, 16
    %v6719 = vor.u32 %v6717, %v6715
    %v6721 = vshll.u32 %v6663, 16
    %v6723 = vrot.slane %v6721, 1
    %v6724 = vsel %vm109, %v6719, %v6723
    %v6725 = vshrl.u32 %v6663, 16
    %v6727 = vor.u32 %v6725, %v6723
    %v6729 = vshll.u32 %v6664, 16
    %v6731 = vrot.slane %v6729, 1
    %v6732 = vsel %vm109, %v6727, %v6731
    %v6735 = vunpack.c.l.b16 %v6620
    %v6736 = vunpack.c.l.b16 %v6621
    %v6737 = vpack.c.b16 %v6736, %v6735
    %v6740 = vsel %vm5691, %v6676, 0
    %v6743 = vsel %vm5691, %v6684, 0
    %v6746 = vsel %vm5691, %v6692, 0
    %v6749 = vsel %vm5691, %v6700, 0
    %v6752 = vsel %vm5691, %v6708, 0
    %v6755 = vsel %vm5691, %v6716, 0
    %v6758 = vsel %vm5691, %v6724, 0
    %v6761 = vsel %vm5691, %v6732, 0
    %6763 = vmatpush.bf16.msra.mxu0 0
    %6764 = vmatpush.bf16.msra.mxu0 0
    %6765 = vmatpush.bf16.msra.mxu0 0
    %6766 = vmatpush.bf16.msra.mxu0 0
    %6767 = vmatpush.bf16.msra.mxu0 0
    %6768 = vmatpush.bf16.msra.mxu0 0
    %6769 = vmatpush.bf16.msra.mxu0 0
    %6770 = vmatpush.bf16.msra.mxu0 %v6737
    %6771 = vmatmul.bf16.gmra.mxu0 %v6740
    %v6772 = vpop.f32.mrf.mxu0
    %v6773 = vadd.f32 0.0, %v6772
    %v6774 = vpop.f32.mrf.mxu0
    %v6775 = vadd.f32 0.0, %v6774
    %6776 = vmatmul.bf16.gmra.mxu0 %v6743
    %v6777 = vpop.f32.mrf.mxu0
    %v6778 = vadd.f32 0.0, %v6777
    %v6779 = vpop.f32.mrf.mxu0
    %v6780 = vadd.f32 0.0, %v6779
    %6781 = vmatmul.bf16.gmra.mxu0 %v6746
    %v6782 = vpop.f32.mrf.mxu0
    %v6783 = vadd.f32 0.0, %v6782
    %v6784 = vpop.f32.mrf.mxu0
    %v6785 = vadd.f32 0.0, %v6784
    %6786 = vmatmul.bf16.gmra.mxu0 %v6749
    %v6787 = vpop.f32.mrf.mxu0
    %v6788 = vadd.f32 0.0, %v6787
    %v6789 = vpop.f32.mrf.mxu0
    %v6790 = vadd.f32 0.0, %v6789
    %6791 = vmatmul.bf16.gmra.mxu0 %v6752
    %v6792 = vpop.f32.mrf.mxu0
    %v6793 = vadd.f32 0.0, %v6792
    %v6794 = vpop.f32.mrf.mxu0
    %v6795 = vadd.f32 0.0, %v6794
    %6796 = vmatmul.bf16.gmra.mxu0 %v6755
    %v6797 = vpop.f32.mrf.mxu0
    %v6798 = vadd.f32 0.0, %v6797
    %v6799 = vpop.f32.mrf.mxu0
    %v6800 = vadd.f32 0.0, %v6799
    %6801 = vmatmul.bf16.gmra.mxu0 %v6758
    %v6802 = vpop.f32.mrf.mxu0
    %v6803 = vadd.f32 0.0, %v6802
    %v6804 = vpop.f32.mrf.mxu0
    %v6805 = vadd.f32 0.0, %v6804
    %6806 = vmatmul.bf16.gmra.mxu0 %v6761
    %v6807 = vpop.f32.mrf.mxu0
    %v6808 = vadd.f32 0.0, %v6807
    %v6809 = vpop.f32.mrf.mxu0
    %v6810 = vadd.f32 0.0, %v6809
    %6811 = vdwg.mxu0
    %v6812 = vadd.f32 %v6587, %v6773
    %v6813 = vadd.f32 %v6588, %v6775
    %v6814 = vadd.f32 %v6589, %v6778
    %v6815 = vadd.f32 %v6590, %v6780
    %v6816 = vadd.f32 %v6591, %v6783
    %v6817 = vadd.f32 %v6592, %v6785
    %v6818 = vadd.f32 %v6593, %v6788
    %v6819 = vadd.f32 %v6594, %v6790
    %v6820 = vadd.f32 %v6595, %v6793
    %v6821 = vadd.f32 %v6596, %v6795
    %v6822 = vadd.f32 %v6597, %v6798
    %v6823 = vadd.f32 %v6598, %v6800
    %v6824 = vadd.f32 %v6599, %v6803
    %v6825 = vadd.f32 %v6600, %v6805
    %v6826 = vadd.f32 %v6601, %v6808
    %v6827 = vadd.f32 %v6602, %v6810
    %v6828 = vld [vmem:[#allocation2 + $0x10] sm:$0xe]
    %v6829 = vld [vmem:[%s3 + $0x40] sm:$0xf]
    %v6830 = vld [vmem:[%s3 + $0x44] sm:$0xf]
    %v6832 = vunpack.c.l.b16 %v6828
    %v6833 = vpack.c.b16 %v6640, %v6832
    %v6834 = vrot.slane %v6833, 1
    %v6835 = vrot.slane %v6657, 1
    %v6836 = vsel %vm344, %v6834, %v6835
    %v6837 = vrot.slane %v6658, 1
    %v6838 = vsel %vm344, %v6835, %v6837
    %v6839 = vrot.slane %v6659, 1
    %v6840 = vsel %vm344, %v6837, %v6839
    %v6841 = vrot.slane %v6660, 1
    %v6842 = vsel %vm344, %v6839, %v6841
    %v6843 = vrot.slane %v6661, 1
    %v6844 = vsel %vm344, %v6841, %v6843
    %v6845 = vrot.slane %v6662, 1
    %v6846 = vsel %vm344, %v6843, %v6845
    %v6847 = vrot.slane %v6663, 1
    %v6848 = vsel %vm344, %v6845, %v6847
    %v6849 = vrot.slane %v6664, 1
    %v6850 = vsel %vm344, %v6847, %v6849
    %v6853 = vunpack.c.l.b16 %v6829
    %v6854 = vunpack.c.l.b16 %v6830
    %v6855 = vpack.c.b16 %v6854, %v6853
    %v6858 = vsel %vm5691, %v6836, 0
    %v6861 = vsel %vm5691, %v6838, 0
    %v6864 = vsel %vm5691, %v6840, 0
    %v6867 = vsel %vm5691, %v6842, 0
    %v6870 = vsel %vm5691, %v6844, 0
    %v6873 = vsel %vm5691, %v6846, 0
    %v6876 = vsel %vm5691, %v6848, 0
    %v6879 = vsel %vm5691, %v6850, 0
    %6881 = vmatpush.bf16.msra.mxu0 0
    %6882 = vmatpush.bf16.msra.mxu0 0
    %6883 = vmatpush.bf16.msra.mxu0 0
    %6884 = vmatpush.bf16.msra.mxu0 0
    %6885 = vmatpush.bf16.msra.mxu0 0
    %6886 = vmatpush.bf16.msra.mxu0 0
    %6887 = vmatpush.bf16.msra.mxu0 0
    %6888 = vmatpush.bf16.msra.mxu0 %v6855
    %6889 = vmatmul.bf16.gmra.mxu0 %v6858
    %v6890 = vpop.f32.mrf.mxu0
    %v6891 = vadd.f32 0.0, %v6890
    %v6892 = vpop.f32.mrf.mxu0
    %v6893 = vadd.f32 0.0, %v6892
    %6894 = vmatmul.bf16.gmra.mxu0 %v6861
    %v6895 = vpop.f32.mrf.mxu0
    %v6896 = vadd.f32 0.0, %v6895
    %v6897 = vpop.f32.mrf.mxu0
    %v6898 = vadd.f32 0.0, %v6897
    %6899 = vmatmul.bf16.gmra.mxu0 %v6864
    %v6900 = vpop.f32.mrf.mxu0
    %v6901 = vadd.f32 0.0, %v6900
    %v6902 = vpop.f32.mrf.mxu0
    %v6903 = vadd.f32 0.0, %v6902
    %6904 = vmatmul.bf16.gmra.mxu0 %v6867
    %v6905 = vpop.f32.mrf.mxu0
    %v6906 = vadd.f32 0.0, %v6905
    %v6907 = vpop.f32.mrf.mxu0
    %v6908 = vadd.f32 0.0, %v6907
    %6909 = vmatmul.bf16.gmra.mxu0 %v6870
    %v6910 = vpop.f32.mrf.mxu0
    %v6911 = vadd.f32 0.0, %v6910
    %v6912 = vpop.f32.mrf.mxu0
    %v6913 = vadd.f32 0.0, %v6912
    %6914 = vmatmul.bf16.gmra.mxu0 %v6873
    %v6915 = vpop.f32.mrf.mxu0
    %v6916 = vadd.f32 0.0, %v6915
    %v6917 = vpop.f32.mrf.mxu0
    %v6918 = vadd.f32 0.0, %v6917
    %6919 = vmatmul.bf16.gmra.mxu0 %v6876
    %v6920 = vpop.f32.mrf.mxu0
    %v6921 = vadd.f32 0.0, %v6920
    %v6922 = vpop.f32.mrf.mxu0
    %v6923 = vadd.f32 0.0, %v6922
    %6924 = vmatmul.bf16.gmra.mxu0 %v6879
    %v6925 = vpop.f32.mrf.mxu0
    %v6926 = vadd.f32 0.0, %v6925
    %v6927 = vpop.f32.mrf.mxu0
    %v6928 = vadd.f32 0.0, %v6927
    %6929 = vdwg.mxu0
    %v6930 = vadd.f32 %v6812, %v6891
    %v6931 = vadd.f32 %v6813, %v6893
    %v6932 = vadd.f32 %v6814, %v6896
    %v6933 = vadd.f32 %v6815, %v6898
    %v6934 = vadd.f32 %v6816, %v6901
    %v6935 = vadd.f32 %v6817, %v6903
    %v6936 = vadd.f32 %v6818, %v6906
    %v6937 = vadd.f32 %v6819, %v6908
    %v6938 = vadd.f32 %v6820, %v6911
    %v6939 = vadd.f32 %v6821, %v6913
    %v6940 = vadd.f32 %v6822, %v6916
    %v6941 = vadd.f32 %v6823, %v6918
    %v6942 = vadd.f32 %v6824, %v6921
    %v6943 = vadd.f32 %v6825, %v6923
    %v6944 = vadd.f32 %v6826, %v6926
    %v6945 = vadd.f32 %v6827, %v6928
    %v6947 = vperm.slane %v46, 0
    %v6949 = vadd.f32 %v6930, %v6947
    %v6950 = vadd.f32 %v6931, %v6947
    %v6951 = vadd.f32 %v6932, %v6947
    %v6952 = vadd.f32 %v6933, %v6947
    %v6953 = vadd.f32 %v6934, %v6947
    %v6954 = vadd.f32 %v6935, %v6947
    %v6955 = vadd.f32 %v6936, %v6947
    %v6956 = vadd.f32 %v6937, %v6947
    %v6957 = vadd.f32 %v6938, %v6947
    %v6958 = vadd.f32 %v6939, %v6947
    %v6959 = vadd.f32 %v6940, %v6947
    %v6960 = vadd.f32 %v6941, %v6947
    %v6961 = vadd.f32 %v6942, %v6947
    %v6962 = vadd.f32 %v6943, %v6947
    %v6963 = vadd.f32 %v6944, %v6947
    %v6964 = vadd.f32 %v6945, %v6947
    %v6965 = vmax.f32 %v6949, 0.0
    %v6966 = vmax.f32 %v6950, 0.0
    %v6967 = vmax.f32 %v6951, 0.0
    %v6968 = vmax.f32 %v6952, 0.0
    %v6969 = vmax.f32 %v6953, 0.0
    %v6970 = vmax.f32 %v6954, 0.0
    %v6971 = vmax.f32 %v6955, 0.0
    %v6972 = vmax.f32 %v6956, 0.0
    %v6973 = vmax.f32 %v6957, 0.0
    %v6974 = vmax.f32 %v6958, 0.0
    %v6975 = vmax.f32 %v6959, 0.0
    %v6976 = vmax.f32 %v6960, 0.0
    %v6977 = vmax.f32 %v6961, 0.0
    %v6978 = vmax.f32 %v6962, 0.0
    %v6979 = vmax.f32 %v6963, 0.0
    %v6980 = vmax.f32 %v6964, 0.0
    %vm6981 = vcmask 261120
    %6982 = vst.msk [vmem:[#allocation3] sm:$0xff] %vm6981, %v6965
    %6983 = vst.msk [vmem:[#allocation3 + $0x8] sm:$0xff] %vm6981, %v6966
    %6984 = vst.msk [vmem:[#allocation3 + $0x10] sm:$0xff] %vm6981, %v6967
    %6985 = vst.msk [vmem:[#allocation3 + $0x18] sm:$0xff] %vm6981, %v6968
    %6986 = vst.msk [vmem:[#allocation3 + $0x20] sm:$0xff] %vm6981, %v6969
    %6987 = vst.msk [vmem:[#allocation3 + $0x28] sm:$0xff] %vm6981, %v6970
    %6988 = vst.msk [vmem:[#allocation3 + $0x30] sm:$0xff] %vm6981, %v6971
    %6989 = vst.msk [vmem:[#allocation3 + $0x38] sm:$0xff] %vm6981, %v6972
    %6990 = vst.msk [vmem:[#allocation3 + $0x40] sm:$0xff] %vm6981, %v6973
    %6991 = vst.msk [vmem:[#allocation3 + $0x48] sm:$0xff] %vm6981, %v6974
    %6992 = vst.msk [vmem:[#allocation3 + $0x50] sm:$0xff] %vm6981, %v6975
    %6993 = vst.msk [vmem:[#allocation3 + $0x58] sm:$0xff] %vm6981, %v6976
    %6994 = vst.msk [vmem:[#allocation3 + $0x60] sm:$0xff] %vm6981, %v6977
    %6995 = vst.msk [vmem:[#allocation3 + $0x68] sm:$0xff] %vm6981, %v6978
    %6996 = vst.msk [vmem:[#allocation3 + $0x70] sm:$0xff] %vm6981, %v6979
    %6997 = vst.msk [vmem:[#allocation3 + $0x78] sm:$0xff] %vm6981, %v6980
    %v6998 = vld [vmem:[#allocation2 + $0x40] sm:$0xf]
    %v6999 = vld [vmem:[#allocation2 + $0x44] sm:$0xf]
    %v7000 = vld [vmem:[#allocation2 + $0x48] sm:$0xf]
    %v7001 = vld [vmem:[#allocation2 + $0x4c] sm:$0xf]
    %v7002 = vld [vmem:[#allocation2 + $0x50] sm:$0xf]
    %v7003 = vld [vmem:[#allocation2 + $0x54] sm:$0xf]
    %v7004 = vld [vmem:[#allocation2 + $0x58] sm:$0xf]
    %v7005 = vld [vmem:[#allocation2 + $0x5c] sm:$0xf]
    %v7006 = vld [vmem:[#allocation2 + $0x60] sm:$0xf]
    %v7007 = vld [vmem:[#allocation2 + $0x64] sm:$0xf]
    %v7008 = vld [vmem:[#allocation2 + $0x68] sm:$0xf]
    %v7009 = vld [vmem:[#allocation2 + $0x6c] sm:$0xf]
    %v7010 = vld [vmem:[#allocation2 + $0x70] sm:$0xf]
    %v7011 = vld [vmem:[#allocation2 + $0x74] sm:$0xf]
    %v7012 = vld [vmem:[#allocation2 + $0x78] sm:$0xf]
    %v7013 = vld [vmem:[#allocation2 + $0x7c] sm:$0xf]
    %v7014 = vld [vmem:[%s3] sm:$0xf]
    %v7015 = vld [vmem:[%s3 + $0x4] sm:$0xf]
    %v7016 = vld [vmem:[#allocation2 + $0x80] sm:$0x1]
    %v7017 = vld [vmem:[%s3 + $0x8] sm:$0xf]
    %v7018 = vld [vmem:[%s3 + $0xc] sm:$0xf]
    %v7036 = vunpack.c.l.b16 %v6998
    %v7037 = vunpack.c.l.b16 %v6999
    %v7038 = vunpack.c.l.b16 %v7000
    %v7039 = vunpack.c.l.b16 %v7001
    %v7040 = vunpack.c.l.b16 %v7002
    %v7041 = vunpack.c.l.b16 %v7003
    %v7042 = vunpack.c.l.b16 %v7004
    %v7043 = vunpack.c.l.b16 %v7005
    %v7044 = vunpack.c.l.b16 %v7006
    %v7045 = vunpack.c.l.b16 %v7007
    %v7046 = vunpack.c.l.b16 %v7008
    %v7047 = vunpack.c.l.b16 %v7009
    %v7048 = vunpack.c.l.b16 %v7010
    %v7049 = vunpack.c.l.b16 %v7011
    %v7050 = vunpack.c.l.b16 %v7012
    %v7051 = vunpack.c.l.b16 %v7013
    %v7052 = vunpack.c.l.b16 %v7016
    %v7053 = vpack.c.b16 %v7037, %v7036
    %v7054 = vpack.c.b16 %v7039, %v7038
    %v7055 = vpack.c.b16 %v7041, %v7040
    %v7056 = vpack.c.b16 %v7043, %v7042
    %v7057 = vpack.c.b16 %v7045, %v7044
    %v7058 = vpack.c.b16 %v7047, %v7046
    %v7059 = vpack.c.b16 %v7049, %v7048
    %v7060 = vpack.c.b16 %v7051, %v7050
    %v7061 = vpack.c.b16 %v7052, %v7052
    %v7063 = vshrl.u32 %v7053, 16
    %v7065 = vshll.u32 %v7053, 16
    %v7067 = vrot.slane %v7065, 1
    %v7068 = vor.u32 %v7063, %v7067
    %v7070 = vshll.u32 %v7054, 16
    %v7072 = vrot.slane %v7070, 1
    %v7073 = vsel %vm109, %v7068, %v7072
    %v7074 = vshrl.u32 %v7054, 16
    %v7076 = vor.u32 %v7074, %v7072
    %v7078 = vshll.u32 %v7055, 16
    %v7080 = vrot.slane %v7078, 1
    %v7081 = vsel %vm109, %v7076, %v7080
    %v7082 = vshrl.u32 %v7055, 16
    %v7084 = vor.u32 %v7082, %v7080
    %v7086 = vshll.u32 %v7056, 16
    %v7088 = vrot.slane %v7086, 1
    %v7089 = vsel %vm109, %v7084, %v7088
    %v7090 = vshrl.u32 %v7056, 16
    %v7092 = vor.u32 %v7090, %v7088
    %v7094 = vshll.u32 %v7057, 16
    %v7096 = vrot.slane %v7094, 1
    %v7097 = vsel %vm109, %v7092, %v7096
    %v7098 = vshrl.u32 %v7057, 16
    %v7100 = vor.u32 %v7098, %v7096
    %v7102 = vshll.u32 %v7058, 16
    %v7104 = vrot.slane %v7102, 1
    %v7105 = vsel %vm109, %v7100, %v7104
    %v7106 = vshrl.u32 %v7058, 16
    %v7108 = vor.u32 %v7106, %v7104
    %v7110 = vshll.u32 %v7059, 16
    %v7112 = vrot.slane %v7110, 1
    %v7113 = vsel %vm109, %v7108, %v7112
    %v7114 = vshrl.u32 %v7059, 16
    %v7116 = vor.u32 %v7114, %v7112
    %v7118 = vshll.u32 %v7060, 16
    %v7120 = vrot.slane %v7118, 1
    %v7121 = vsel %vm109, %v7116, %v7120
    %v7122 = vshrl.u32 %v7060, 16
    %v7124 = vor.u32 %v7122, %v7120
    %v7126 = vshll.u32 %v7061, 16
    %v7128 = vrot.slane %v7126, 1
    %v7129 = vsel %vm109, %v7124, %v7128
    %v7132 = vunpack.c.l.b16 %v7017
    %v7133 = vunpack.c.l.b16 %v7018
    %v7134 = vpack.c.b16 %v7133, %v7132
    %v7137 = vsel %vm5691, %v7073, 0
    %v7140 = vsel %vm5691, %v7081, 0
    %v7143 = vsel %vm5691, %v7089, 0
    %v7146 = vsel %vm5691, %v7097, 0
    %v7149 = vsel %vm5691, %v7105, 0
    %v7152 = vsel %vm5691, %v7113, 0
    %v7155 = vsel %vm5691, %v7121, 0
    %v7158 = vsel %vm5691, %v7129, 0
    %7160 = vmatpush.bf16.msra.mxu0 0
    %7161 = vmatpush.bf16.msra.mxu0 0
    %7162 = vmatpush.bf16.msra.mxu0 0
    %7163 = vmatpush.bf16.msra.mxu0 0
    %7164 = vmatpush.bf16.msra.mxu0 0
    %7165 = vmatpush.bf16.msra.mxu0 0
    %7166 = vmatpush.bf16.msra.mxu0 0
    %7167 = vmatpush.bf16.msra.mxu0 %v7134
    %7168 = vmatmul.bf16.gmra.mxu0 %v7137
    %v7169 = vpop.f32.mrf.mxu0
    %v7170 = vadd.f32 0.0, %v7169
    %v7171 = vpop.f32.mrf.mxu0
    %v7172 = vadd.f32 0.0, %v7171
    %7173 = vmatmul.bf16.gmra.mxu0 %v7140
    %v7174 = vpop.f32.mrf.mxu0
    %v7175 = vadd.f32 0.0, %v7174
    %v7176 = vpop.f32.mrf.mxu0
    %v7177 = vadd.f32 0.0, %v7176
    %7178 = vmatmul.bf16.gmra.mxu0 %v7143
    %v7179 = vpop.f32.mrf.mxu0
    %v7180 = vadd.f32 0.0, %v7179
    %v7181 = vpop.f32.mrf.mxu0
    %v7182 = vadd.f32 0.0, %v7181
    %7183 = vmatmul.bf16.gmra.mxu0 %v7146
    %v7184 = vpop.f32.mrf.mxu0
    %v7185 = vadd.f32 0.0, %v7184
    %v7186 = vpop.f32.mrf.mxu0
    %v7187 = vadd.f32 0.0, %v7186
    %7188 = vmatmul.bf16.gmra.mxu0 %v7149
    %v7189 = vpop.f32.mrf.mxu0
    %v7190 = vadd.f32 0.0, %v7189
    %v7191 = vpop.f32.mrf.mxu0
    %v7192 = vadd.f32 0.0, %v7191
    %7193 = vmatmul.bf16.gmra.mxu0 %v7152
    %v7194 = vpop.f32.mrf.mxu0
    %v7195 = vadd.f32 0.0, %v7194
    %v7196 = vpop.f32.mrf.mxu0
    %v7197 = vadd.f32 0.0, %v7196
    %7198 = vmatmul.bf16.gmra.mxu0 %v7155
    %v7199 = vpop.f32.mrf.mxu0
    %v7200 = vadd.f32 0.0, %v7199
    %v7201 = vpop.f32.mrf.mxu0
    %v7202 = vadd.f32 0.0, %v7201
    %7203 = vmatmul.bf16.gmra.mxu0 %v7158
    %v7204 = vpop.f32.mrf.mxu0
    %v7205 = vadd.f32 0.0, %v7204
    %v7206 = vpop.f32.mrf.mxu0
    %v7207 = vadd.f32 0.0, %v7206
    %7208 = vdwg.mxu0
    %v7211 = vunpack.c.l.b16 %v7014
    %v7212 = vunpack.c.l.b16 %v7015
    %v7213 = vpack.c.b16 %v7212, %v7211
    %v7215 = vsel %vm5691, %v7053, 0
    %v7217 = vsel %vm5691, %v7054, 0
    %v7219 = vsel %vm5691, %v7055, 0
    %v7221 = vsel %vm5691, %v7056, 0
    %v7223 = vsel %vm5691, %v7057, 0
    %v7225 = vsel %vm5691, %v7058, 0
    %v7227 = vsel %vm5691, %v7059, 0
    %v7229 = vsel %vm5691, %v7060, 0
    %7231 = vmatpush.bf16.msra.mxu0 0
    %7232 = vmatpush.bf16.msra.mxu0 0
    %7233 = vmatpush.bf16.msra.mxu0 0
    %7234 = vmatpush.bf16.msra.mxu0 0
    %7235 = vmatpush.bf16.msra.mxu0 0
    %7236 = vmatpush.bf16.msra.mxu0 0
    %7237 = vmatpush.bf16.msra.mxu0 0
    %7238 = vmatpush.bf16.msra.mxu0 %v7213
    %7239 = vmatmul.bf16.gmra.mxu0 %v7215
    %v7240 = vpop.f32.mrf.mxu0
    %v7241 = vadd.f32 %v7170, %v7240
    %v7242 = vpop.f32.mrf.mxu0
    %v7243 = vadd.f32 %v7172, %v7242
    %7244 = vmatmul.bf16.gmra.mxu0 %v7217
    %v7245 = vpop.f32.mrf.mxu0
    %v7246 = vadd.f32 %v7175, %v7245
    %v7247 = vpop.f32.mrf.mxu0
    %v7248 = vadd.f32 %v7177, %v7247
    %7249 = vmatmul.bf16.gmra.mxu0 %v7219
    %v7250 = vpop.f32.mrf.mxu0
    %v7251 = vadd.f32 %v7180, %v7250
    %v7252 = vpop.f32.mrf.mxu0
    %v7253 = vadd.f32 %v7182, %v7252
    %7254 = vmatmul.bf16.gmra.mxu0 %v7221
    %v7255 = vpop.f32.mrf.mxu0
    %v7256 = vadd.f32 %v7185, %v7255
    %v7257 = vpop.f32.mrf.mxu0
    %v7258 = vadd.f32 %v7187, %v7257
    %7259 = vmatmul.bf16.gmra.mxu0 %v7223
    %v7260 = vpop.f32.mrf.mxu0
    %v7261 = vadd.f32 %v7190, %v7260
    %v7262 = vpop.f32.mrf.mxu0
    %v7263 = vadd.f32 %v7192, %v7262
    %7264 = vmatmul.bf16.gmra.mxu0 %v7225
    %v7265 = vpop.f32.mrf.mxu0
    %v7266 = vadd.f32 %v7195, %v7265
    %v7267 = vpop.f32.mrf.mxu0
    %v7268 = vadd.f32 %v7197, %v7267
    %7269 = vmatmul.bf16.gmra.mxu0 %v7227
    %v7270 = vpop.f32.mrf.mxu0
    %v7271 = vadd.f32 %v7200, %v7270
    %v7272 = vpop.f32.mrf.mxu0
    %v7273 = vadd.f32 %v7202, %v7272
    %7274 = vmatmul.bf16.gmra.mxu0 %v7229
    %v7275 = vpop.f32.mrf.mxu0
    %v7276 = vadd.f32 %v7205, %v7275
    %v7277 = vpop.f32.mrf.mxu0
    %v7278 = vadd.f32 %v7207, %v7277
    %7279 = vdwg.mxu0
    %v7280 = vld [vmem:[#allocation2 + $0x40] sm:$0xe]
    %v7281 = vld [vmem:[%s3 + $0x10] sm:$0xf]
    %v7282 = vld [vmem:[%s3 + $0x14] sm:$0xf]
    %v7284 = vunpack.c.l.b16 %v7280
    %v7285 = vpack.c.b16 %v7037, %v7284
    %v7286 = vrot.slane %v7285, 1
    %v7287 = vrot.slane %v7054, 1
    %v7288 = vsel %vm344, %v7286, %v7287
    %v7289 = vrot.slane %v7055, 1
    %v7290 = vsel %vm344, %v7287, %v7289
    %v7291 = vrot.slane %v7056, 1
    %v7292 = vsel %vm344, %v7289, %v7291
    %v7293 = vrot.slane %v7057, 1
    %v7294 = vsel %vm344, %v7291, %v7293
    %v7295 = vrot.slane %v7058, 1
    %v7296 = vsel %vm344, %v7293, %v7295
    %v7297 = vrot.slane %v7059, 1
    %v7298 = vsel %vm344, %v7295, %v7297
    %v7299 = vrot.slane %v7060, 1
    %v7300 = vsel %vm344, %v7297, %v7299
    %v7301 = vrot.slane %v7061, 1
    %v7302 = vsel %vm344, %v7299, %v7301
    %v7305 = vunpack.c.l.b16 %v7281
    %v7306 = vunpack.c.l.b16 %v7282
    %v7307 = vpack.c.b16 %v7306, %v7305
    %v7310 = vsel %vm5691, %v7288, 0
    %v7313 = vsel %vm5691, %v7290, 0
    %v7316 = vsel %vm5691, %v7292, 0
    %v7319 = vsel %vm5691, %v7294, 0
    %v7322 = vsel %vm5691, %v7296, 0
    %v7325 = vsel %vm5691, %v7298, 0
    %v7328 = vsel %vm5691, %v7300, 0
    %v7331 = vsel %vm5691, %v7302, 0
    %7333 = vmatpush.bf16.msra.mxu0 0
    %7334 = vmatpush.bf16.msra.mxu0 0
    %7335 = vmatpush.bf16.msra.mxu0 0
    %7336 = vmatpush.bf16.msra.mxu0 0
    %7337 = vmatpush.bf16.msra.mxu0 0
    %7338 = vmatpush.bf16.msra.mxu0 0
    %7339 = vmatpush.bf16.msra.mxu0 0
    %7340 = vmatpush.bf16.msra.mxu0 %v7307
    %7341 = vmatmul.bf16.gmra.mxu0 %v7310
    %v7342 = vpop.f32.mrf.mxu0
    %v7343 = vadd.f32 0.0, %v7342
    %v7344 = vpop.f32.mrf.mxu0
    %v7345 = vadd.f32 0.0, %v7344
    %7346 = vmatmul.bf16.gmra.mxu0 %v7313
    %v7347 = vpop.f32.mrf.mxu0
    %v7348 = vadd.f32 0.0, %v7347
    %v7349 = vpop.f32.mrf.mxu0
    %v7350 = vadd.f32 0.0, %v7349
    %7351 = vmatmul.bf16.gmra.mxu0 %v7316
    %v7352 = vpop.f32.mrf.mxu0
    %v7353 = vadd.f32 0.0, %v7352
    %v7354 = vpop.f32.mrf.mxu0
    %v7355 = vadd.f32 0.0, %v7354
    %7356 = vmatmul.bf16.gmra.mxu0 %v7319
    %v7357 = vpop.f32.mrf.mxu0
    %v7358 = vadd.f32 0.0, %v7357
    %v7359 = vpop.f32.mrf.mxu0
    %v7360 = vadd.f32 0.0, %v7359
    %7361 = vmatmul.bf16.gmra.mxu0 %v7322
    %v7362 = vpop.f32.mrf.mxu0
    %v7363 = vadd.f32 0.0, %v7362
    %v7364 = vpop.f32.mrf.mxu0
    %v7365 = vadd.f32 0.0, %v7364
    %7366 = vmatmul.bf16.gmra.mxu0 %v7325
    %v7367 = vpop.f32.mrf.mxu0
    %v7368 = vadd.f32 0.0, %v7367
    %v7369 = vpop.f32.mrf.mxu0
    %v7370 = vadd.f32 0.0, %v7369
    %7371 = vmatmul.bf16.gmra.mxu0 %v7328
    %v7372 = vpop.f32.mrf.mxu0
    %v7373 = vadd.f32 0.0, %v7372
    %v7374 = vpop.f32.mrf.mxu0
    %v7375 = vadd.f32 0.0, %v7374
    %7376 = vmatmul.bf16.gmra.mxu0 %v7331
    %v7377 = vpop.f32.mrf.mxu0
    %v7378 = vadd.f32 0.0, %v7377
    %v7379 = vpop.f32.mrf.mxu0
    %v7380 = vadd.f32 0.0, %v7379
    %7381 = vdwg.mxu0
    %v7382 = vadd.f32 %v7241, %v7343
    %v7383 = vadd.f32 %v7243, %v7345
    %v7384 = vadd.f32 %v7246, %v7348
    %v7385 = vadd.f32 %v7248, %v7350
    %v7386 = vadd.f32 %v7251, %v7353
    %v7387 = vadd.f32 %v7253, %v7355
    %v7388 = vadd.f32 %v7256, %v7358
    %v7389 = vadd.f32 %v7258, %v7360
    %v7390 = vadd.f32 %v7261, %v7363
    %v7391 = vadd.f32 %v7263, %v7365
    %v7392 = vadd.f32 %v7266, %v7368
    %v7393 = vadd.f32 %v7268, %v7370
    %v7394 = vadd.f32 %v7271, %v7373
    %v7395 = vadd.f32 %v7273, %v7375
    %v7396 = vadd.f32 %v7276, %v7378
    %v7397 = vadd.f32 %v7278, %v7380
    %v7398 = vld [vmem:[#allocation2 + $0x48] sm:$0xf]
    %v7399 = vld [vmem:[#allocation2 + $0x4c] sm:$0xf]
    %v7400 = vld [vmem:[#allocation2 + $0x50] sm:$0xf]
    %v7401 = vld [vmem:[#allocation2 + $0x54] sm:$0xf]
    %v7402 = vld [vmem:[#allocation2 + $0x58] sm:$0xf]
    %v7403 = vld [vmem:[#allocation2 + $0x5c] sm:$0xf]
    %v7404 = vld [vmem:[#allocation2 + $0x60] sm:$0xf]
    %v7405 = vld [vmem:[#allocation2 + $0x64] sm:$0xf]
    %v7406 = vld [vmem:[#allocation2 + $0x68] sm:$0xf]
    %v7407 = vld [vmem:[#allocation2 + $0x6c] sm:$0xf]
    %v7408 = vld [vmem:[#allocation2 + $0x70] sm:$0xf]
    %v7409 = vld [vmem:[#allocation2 + $0x74] sm:$0xf]
    %v7410 = vld [vmem:[#allocation2 + $0x78] sm:$0xf]
    %v7411 = vld [vmem:[#allocation2 + $0x7c] sm:$0xf]
    %v7412 = vld [vmem:[#allocation2 + $0x80] sm:$0xf]
    %v7413 = vld [vmem:[#allocation2 + $0x84] sm:$0xf]
    %v7414 = vld [vmem:[%s3 + $0x18] sm:$0xf]
    %v7415 = vld [vmem:[%s3 + $0x1c] sm:$0xf]
    %v7432 = vunpack.c.l.b16 %v7398
    %v7433 = vunpack.c.l.b16 %v7399
    %v7434 = vunpack.c.l.b16 %v7400
    %v7435 = vunpack.c.l.b16 %v7401
    %v7436 = vunpack.c.l.b16 %v7402
    %v7437 = vunpack.c.l.b16 %v7403
    %v7438 = vunpack.c.l.b16 %v7404
    %v7439 = vunpack.c.l.b16 %v7405
    %v7440 = vunpack.c.l.b16 %v7406
    %v7441 = vunpack.c.l.b16 %v7407
    %v7442 = vunpack.c.l.b16 %v7408
    %v7443 = vunpack.c.l.b16 %v7409
    %v7444 = vunpack.c.l.b16 %v7410
    %v7445 = vunpack.c.l.b16 %v7411
    %v7446 = vunpack.c.l.b16 %v7412
    %v7447 = vunpack.c.l.b16 %v7413
    %v7448 = vpack.c.b16 %v7433, %v7432
    %v7449 = vpack.c.b16 %v7435, %v7434
    %v7450 = vpack.c.b16 %v7437, %v7436
    %v7451 = vpack.c.b16 %v7439, %v7438
    %v7452 = vpack.c.b16 %v7441, %v7440
    %v7453 = vpack.c.b16 %v7443, %v7442
    %v7454 = vpack.c.b16 %v7445, %v7444
    %v7455 = vpack.c.b16 %v7447, %v7446
    %v7458 = vunpack.c.l.b16 %v7414
    %v7459 = vunpack.c.l.b16 %v7415
    %v7460 = vpack.c.b16 %v7459, %v7458
    %v7463 = vsel %vm5691, %v7448, 0
    %v7466 = vsel %vm5691, %v7449, 0
    %v7469 = vsel %vm5691, %v7450, 0
    %v7472 = vsel %vm5691, %v7451, 0
    %v7475 = vsel %vm5691, %v7452, 0
    %v7478 = vsel %vm5691, %v7453, 0
    %v7481 = vsel %vm5691, %v7454, 0
    %v7484 = vsel %vm5691, %v7455, 0
    %7486 = vmatpush.bf16.msra.mxu0 0
    %7487 = vmatpush.bf16.msra.mxu0 0
    %7488 = vmatpush.bf16.msra.mxu0 0
    %7489 = vmatpush.bf16.msra.mxu0 0
    %7490 = vmatpush.bf16.msra.mxu0 0
    %7491 = vmatpush.bf16.msra.mxu0 0
    %7492 = vmatpush.bf16.msra.mxu0 0
    %7493 = vmatpush.bf16.msra.mxu0 %v7460
    %7494 = vmatmul.bf16.gmra.mxu0 %v7463
    %v7495 = vpop.f32.mrf.mxu0
    %v7496 = vadd.f32 0.0, %v7495
    %v7497 = vpop.f32.mrf.mxu0
    %v7498 = vadd.f32 0.0, %v7497
    %7499 = vmatmul.bf16.gmra.mxu0 %v7466
    %v7500 = vpop.f32.mrf.mxu0
    %v7501 = vadd.f32 0.0, %v7500
    %v7502 = vpop.f32.mrf.mxu0
    %v7503 = vadd.f32 0.0, %v7502
    %7504 = vmatmul.bf16.gmra.mxu0 %v7469
    %v7505 = vpop.f32.mrf.mxu0
    %v7506 = vadd.f32 0.0, %v7505
    %v7507 = vpop.f32.mrf.mxu0
    %v7508 = vadd.f32 0.0, %v7507
    %7509 = vmatmul.bf16.gmra.mxu0 %v7472
    %v7510 = vpop.f32.mrf.mxu0
    %v7511 = vadd.f32 0.0, %v7510
    %v7512 = vpop.f32.mrf.mxu0
    %v7513 = vadd.f32 0.0, %v7512
    %7514 = vmatmul.bf16.gmra.mxu0 %v7475
    %v7515 = vpop.f32.mrf.mxu0
    %v7516 = vadd.f32 0.0, %v7515
    %v7517 = vpop.f32.mrf.mxu0
    %v7518 = vadd.f32 0.0, %v7517
    %7519 = vmatmul.bf16.gmra.mxu0 %v7478
    %v7520 = vpop.f32.mrf.mxu0
    %v7521 = vadd.f32 0.0, %v7520
    %v7522 = vpop.f32.mrf.mxu0
    %v7523 = vadd.f32 0.0, %v7522
    %7524 = vmatmul.bf16.gmra.mxu0 %v7481
    %v7525 = vpop.f32.mrf.mxu0
    %v7526 = vadd.f32 0.0, %v7525
    %v7527 = vpop.f32.mrf.mxu0
    %v7528 = vadd.f32 0.0, %v7527
    %7529 = vmatmul.bf16.gmra.mxu0 %v7484
    %v7530 = vpop.f32.mrf.mxu0
    %v7531 = vadd.f32 0.0, %v7530
    %v7532 = vpop.f32.mrf.mxu0
    %v7533 = vadd.f32 0.0, %v7532
    %7534 = vdwg.mxu0
    %v7535 = vadd.f32 %v7382, %v7496
    %v7536 = vadd.f32 %v7383, %v7498
    %v7537 = vadd.f32 %v7384, %v7501
    %v7538 = vadd.f32 %v7385, %v7503
    %v7539 = vadd.f32 %v7386, %v7506
    %v7540 = vadd.f32 %v7387, %v7508
    %v7541 = vadd.f32 %v7388, %v7511
    %v7542 = vadd.f32 %v7389, %v7513
    %v7543 = vadd.f32 %v7390, %v7516
    %v7544 = vadd.f32 %v7391, %v7518
    %v7545 = vadd.f32 %v7392, %v7521
    %v7546 = vadd.f32 %v7393, %v7523
    %v7547 = vadd.f32 %v7394, %v7526
    %v7548 = vadd.f32 %v7395, %v7528
    %v7549 = vadd.f32 %v7396, %v7531
    %v7550 = vadd.f32 %v7397, %v7533
    %v7551 = vld [vmem:[#allocation2 + $0x48] sm:$0xf]
    %v7552 = vld [vmem:[#allocation2 + $0x4c] sm:$0xf]
    %v7553 = vld [vmem:[#allocation2 + $0x50] sm:$0xf]
    %v7554 = vld [vmem:[#allocation2 + $0x54] sm:$0xf]
    %v7555 = vld [vmem:[#allocation2 + $0x58] sm:$0xf]
    %v7556 = vld [vmem:[#allocation2 + $0x5c] sm:$0xf]
    %v7557 = vld [vmem:[#allocation2 + $0x60] sm:$0xf]
    %v7558 = vld [vmem:[#allocation2 + $0x64] sm:$0xf]
    %v7559 = vld [vmem:[#allocation2 + $0x68] sm:$0xf]
    %v7560 = vld [vmem:[#allocation2 + $0x6c] sm:$0xf]
    %v7561 = vld [vmem:[#allocation2 + $0x70] sm:$0xf]
    %v7562 = vld [vmem:[#allocation2 + $0x74] sm:$0xf]
    %v7563 = vld [vmem:[#allocation2 + $0x78] sm:$0xf]
    %v7564 = vld [vmem:[#allocation2 + $0x7c] sm:$0xf]
    %v7565 = vld [vmem:[#allocation2 + $0x80] sm:$0xf]
    %v7566 = vld [vmem:[#allocation2 + $0x84] sm:$0xf]
    %v7567 = vld [vmem:[#allocation2 + $0x88] sm:$0x1]
    %v7568 = vld [vmem:[%s3 + $0x20] sm:$0xf]
    %v7569 = vld [vmem:[%s3 + $0x24] sm:$0xf]
    %v7587 = vunpack.c.l.b16 %v7551
    %v7588 = vunpack.c.l.b16 %v7552
    %v7589 = vunpack.c.l.b16 %v7553
    %v7590 = vunpack.c.l.b16 %v7554
    %v7591 = vunpack.c.l.b16 %v7555
    %v7592 = vunpack.c.l.b16 %v7556
    %v7593 = vunpack.c.l.b16 %v7557
    %v7594 = vunpack.c.l.b16 %v7558
    %v7595 = vunpack.c.l.b16 %v7559
    %v7596 = vunpack.c.l.b16 %v7560
    %v7597 = vunpack.c.l.b16 %v7561
    %v7598 = vunpack.c.l.b16 %v7562
    %v7599 = vunpack.c.l.b16 %v7563
    %v7600 = vunpack.c.l.b16 %v7564
    %v7601 = vunpack.c.l.b16 %v7565
    %v7602 = vunpack.c.l.b16 %v7566
    %v7603 = vunpack.c.l.b16 %v7567
    %v7604 = vpack.c.b16 %v7588, %v7587
    %v7605 = vpack.c.b16 %v7590, %v7589
    %v7606 = vpack.c.b16 %v7592, %v7591
    %v7607 = vpack.c.b16 %v7594, %v7593
    %v7608 = vpack.c.b16 %v7596, %v7595
    %v7609 = vpack.c.b16 %v7598, %v7597
    %v7610 = vpack.c.b16 %v7600, %v7599
    %v7611 = vpack.c.b16 %v7602, %v7601
    %v7612 = vpack.c.b16 %v7603, %v7603
    %v7614 = vshrl.u32 %v7604, 16
    %v7616 = vshll.u32 %v7604, 16
    %v7618 = vrot.slane %v7616, 1
    %v7619 = vor.u32 %v7614, %v7618
    %v7621 = vshll.u32 %v7605, 16
    %v7623 = vrot.slane %v7621, 1
    %v7624 = vsel %vm109, %v7619, %v7623
    %v7625 = vshrl.u32 %v7605, 16
    %v7627 = vor.u32 %v7625, %v7623
    %v7629 = vshll.u32 %v7606, 16
    %v7631 = vrot.slane %v7629, 1
    %v7632 = vsel %vm109, %v7627, %v7631
    %v7633 = vshrl.u32 %v7606, 16
    %v7635 = vor.u32 %v7633, %v7631
    %v7637 = vshll.u32 %v7607, 16
    %v7639 = vrot.slane %v7637, 1
    %v7640 = vsel %vm109, %v7635, %v7639
    %v7641 = vshrl.u32 %v7607, 16
    %v7643 = vor.u32 %v7641, %v7639
    %v7645 = vshll.u32 %v7608, 16
    %v7647 = vrot.slane %v7645, 1
    %v7648 = vsel %vm109, %v7643, %v7647
    %v7649 = vshrl.u32 %v7608, 16
    %v7651 = vor.u32 %v7649, %v7647
    %v7653 = vshll.u32 %v7609, 16
    %v7655 = vrot.slane %v7653, 1
    %v7656 = vsel %vm109, %v7651, %v7655
    %v7657 = vshrl.u32 %v7609, 16
    %v7659 = vor.u32 %v7657, %v7655
    %v7661 = vshll.u32 %v7610, 16
    %v7663 = vrot.slane %v7661, 1
    %v7664 = vsel %vm109, %v7659, %v7663
    %v7665 = vshrl.u32 %v7610, 16
    %v7667 = vor.u32 %v7665, %v7663
    %v7669 = vshll.u32 %v7611, 16
    %v7671 = vrot.slane %v7669, 1
    %v7672 = vsel %vm109, %v7667, %v7671
    %v7673 = vshrl.u32 %v7611, 16
    %v7675 = vor.u32 %v7673, %v7671
    %v7677 = vshll.u32 %v7612, 16
    %v7679 = vrot.slane %v7677, 1
    %v7680 = vsel %vm109, %v7675, %v7679
    %v7683 = vunpack.c.l.b16 %v7568
    %v7684 = vunpack.c.l.b16 %v7569
    %v7685 = vpack.c.b16 %v7684, %v7683
    %v7688 = vsel %vm5691, %v7624, 0
    %v7691 = vsel %vm5691, %v7632, 0
    %v7694 = vsel %vm5691, %v7640, 0
    %v7697 = vsel %vm5691, %v7648, 0
    %v7700 = vsel %vm5691, %v7656, 0
    %v7703 = vsel %vm5691, %v7664, 0
    %v7706 = vsel %vm5691, %v7672, 0
    %v7709 = vsel %vm5691, %v7680, 0
    %7711 = vmatpush.bf16.msra.mxu0 0
    %7712 = vmatpush.bf16.msra.mxu0 0
    %7713 = vmatpush.bf16.msra.mxu0 0
    %7714 = vmatpush.bf16.msra.mxu0 0
    %7715 = vmatpush.bf16.msra.mxu0 0
    %7716 = vmatpush.bf16.msra.mxu0 0
    %7717 = vmatpush.bf16.msra.mxu0 0
    %7718 = vmatpush.bf16.msra.mxu0 %v7685
    %7719 = vmatmul.bf16.gmra.mxu0 %v7688
    %v7720 = vpop.f32.mrf.mxu0
    %v7721 = vadd.f32 0.0, %v7720
    %v7722 = vpop.f32.mrf.mxu0
    %v7723 = vadd.f32 0.0, %v7722
    %7724 = vmatmul.bf16.gmra.mxu0 %v7691
    %v7725 = vpop.f32.mrf.mxu0
    %v7726 = vadd.f32 0.0, %v7725
    %v7727 = vpop.f32.mrf.mxu0
    %v7728 = vadd.f32 0.0, %v7727
    %7729 = vmatmul.bf16.gmra.mxu0 %v7694
    %v7730 = vpop.f32.mrf.mxu0
    %v7731 = vadd.f32 0.0, %v7730
    %v7732 = vpop.f32.mrf.mxu0
    %v7733 = vadd.f32 0.0, %v7732
    %7734 = vmatmul.bf16.gmra.mxu0 %v7697
    %v7735 = vpop.f32.mrf.mxu0
    %v7736 = vadd.f32 0.0, %v7735
    %v7737 = vpop.f32.mrf.mxu0
    %v7738 = vadd.f32 0.0, %v7737
    %7739 = vmatmul.bf16.gmra.mxu0 %v7700
    %v7740 = vpop.f32.mrf.mxu0
    %v7741 = vadd.f32 0.0, %v7740
    %v7742 = vpop.f32.mrf.mxu0
    %v7743 = vadd.f32 0.0, %v7742
    %7744 = vmatmul.bf16.gmra.mxu0 %v7703
    %v7745 = vpop.f32.mrf.mxu0
    %v7746 = vadd.f32 0.0, %v7745
    %v7747 = vpop.f32.mrf.mxu0
    %v7748 = vadd.f32 0.0, %v7747
    %7749 = vmatmul.bf16.gmra.mxu0 %v7706
    %v7750 = vpop.f32.mrf.mxu0
    %v7751 = vadd.f32 0.0, %v7750
    %v7752 = vpop.f32.mrf.mxu0
    %v7753 = vadd.f32 0.0, %v7752
    %7754 = vmatmul.bf16.gmra.mxu0 %v7709
    %v7755 = vpop.f32.mrf.mxu0
    %v7756 = vadd.f32 0.0, %v7755
    %v7757 = vpop.f32.mrf.mxu0
    %v7758 = vadd.f32 0.0, %v7757
    %7759 = vdwg.mxu0
    %v7760 = vadd.f32 %v7535, %v7721
    %v7761 = vadd.f32 %v7536, %v7723
    %v7762 = vadd.f32 %v7537, %v7726
    %v7763 = vadd.f32 %v7538, %v7728
    %v7764 = vadd.f32 %v7539, %v7731
    %v7765 = vadd.f32 %v7540, %v7733
    %v7766 = vadd.f32 %v7541, %v7736
    %v7767 = vadd.f32 %v7542, %v7738
    %v7768 = vadd.f32 %v7543, %v7741
    %v7769 = vadd.f32 %v7544, %v7743
    %v7770 = vadd.f32 %v7545, %v7746
    %v7771 = vadd.f32 %v7546, %v7748
    %v7772 = vadd.f32 %v7547, %v7751
    %v7773 = vadd.f32 %v7548, %v7753
    %v7774 = vadd.f32 %v7549, %v7756
    %v7775 = vadd.f32 %v7550, %v7758
    %v7776 = vld [vmem:[#allocation2 + $0x48] sm:$0xe]
    %v7777 = vld [vmem:[%s3 + $0x28] sm:$0xf]
    %v7778 = vld [vmem:[%s3 + $0x2c] sm:$0xf]
    %v7780 = vunpack.c.l.b16 %v7776
    %v7781 = vpack.c.b16 %v7588, %v7780
    %v7782 = vrot.slane %v7781, 1
    %v7783 = vrot.slane %v7605, 1
    %v7784 = vsel %vm344, %v7782, %v7783
    %v7785 = vrot.slane %v7606, 1
    %v7786 = vsel %vm344, %v7783, %v7785
    %v7787 = vrot.slane %v7607, 1
    %v7788 = vsel %vm344, %v7785, %v7787
    %v7789 = vrot.slane %v7608, 1
    %v7790 = vsel %vm344, %v7787, %v7789
    %v7791 = vrot.slane %v7609, 1
    %v7792 = vsel %vm344, %v7789, %v7791
    %v7793 = vrot.slane %v7610, 1
    %v7794 = vsel %vm344, %v7791, %v7793
    %v7795 = vrot.slane %v7611, 1
    %v7796 = vsel %vm344, %v7793, %v7795
    %v7797 = vrot.slane %v7612, 1
    %v7798 = vsel %vm344, %v7795, %v7797
    %v7801 = vunpack.c.l.b16 %v7777
    %v7802 = vunpack.c.l.b16 %v7778
    %v7803 = vpack.c.b16 %v7802, %v7801
    %v7806 = vsel %vm5691, %v7784, 0
    %v7809 = vsel %vm5691, %v7786, 0
    %v7812 = vsel %vm5691, %v7788, 0
    %v7815 = vsel %vm5691, %v7790, 0
    %v7818 = vsel %vm5691, %v7792, 0
    %v7821 = vsel %vm5691, %v7794, 0
    %v7824 = vsel %vm5691, %v7796, 0
    %v7827 = vsel %vm5691, %v7798, 0
    %7829 = vmatpush.bf16.msra.mxu0 0
    %7830 = vmatpush.bf16.msra.mxu0 0
    %7831 = vmatpush.bf16.msra.mxu0 0
    %7832 = vmatpush.bf16.msra.mxu0 0
    %7833 = vmatpush.bf16.msra.mxu0 0
    %7834 = vmatpush.bf16.msra.mxu0 0
    %7835 = vmatpush.bf16.msra.mxu0 0
    %7836 = vmatpush.bf16.msra.mxu0 %v7803
    %7837 = vmatmul.bf16.gmra.mxu0 %v7806
    %v7838 = vpop.f32.mrf.mxu0
    %v7839 = vadd.f32 0.0, %v7838
    %v7840 = vpop.f32.mrf.mxu0
    %v7841 = vadd.f32 0.0, %v7840
    %7842 = vmatmul.bf16.gmra.mxu0 %v7809
    %v7843 = vpop.f32.mrf.mxu0
    %v7844 = vadd.f32 0.0, %v7843
    %v7845 = vpop.f32.mrf.mxu0
    %v7846 = vadd.f32 0.0, %v7845
    %7847 = vmatmul.bf16.gmra.mxu0 %v7812
    %v7848 = vpop.f32.mrf.mxu0
    %v7849 = vadd.f32 0.0, %v7848
    %v7850 = vpop.f32.mrf.mxu0
    %v7851 = vadd.f32 0.0, %v7850
    %7852 = vmatmul.bf16.gmra.mxu0 %v7815
    %v7853 = vpop.f32.mrf.mxu0
    %v7854 = vadd.f32 0.0, %v7853
    %v7855 = vpop.f32.mrf.mxu0
    %v7856 = vadd.f32 0.0, %v7855
    %7857 = vmatmul.bf16.gmra.mxu0 %v7818
    %v7858 = vpop.f32.mrf.mxu0
    %v7859 = vadd.f32 0.0, %v7858
    %v7860 = vpop.f32.mrf.mxu0
    %v7861 = vadd.f32 0.0, %v7860
    %7862 = vmatmul.bf16.gmra.mxu0 %v7821
    %v7863 = vpop.f32.mrf.mxu0
    %v7864 = vadd.f32 0.0, %v7863
    %v7865 = vpop.f32.mrf.mxu0
    %v7866 = vadd.f32 0.0, %v7865
    %7867 = vmatmul.bf16.gmra.mxu0 %v7824
    %v7868 = vpop.f32.mrf.mxu0
    %v7869 = vadd.f32 0.0, %v7868
    %v7870 = vpop.f32.mrf.mxu0
    %v7871 = vadd.f32 0.0, %v7870
    %7872 = vmatmul.bf16.gmra.mxu0 %v7827
    %v7873 = vpop.f32.mrf.mxu0
    %v7874 = vadd.f32 0.0, %v7873
    %v7875 = vpop.f32.mrf.mxu0
    %v7876 = vadd.f32 0.0, %v7875
    %7877 = vdwg.mxu0
    %v7878 = vadd.f32 %v7760, %v7839
    %v7879 = vadd.f32 %v7761, %v7841
    %v7880 = vadd.f32 %v7762, %v7844
    %v7881 = vadd.f32 %v7763, %v7846
    %v7882 = vadd.f32 %v7764, %v7849
    %v7883 = vadd.f32 %v7765, %v7851
    %v7884 = vadd.f32 %v7766, %v7854
    %v7885 = vadd.f32 %v7767, %v7856
    %v7886 = vadd.f32 %v7768, %v7859
    %v7887 = vadd.f32 %v7769, %v7861
    %v7888 = vadd.f32 %v7770, %v7864
    %v7889 = vadd.f32 %v7771, %v7866
    %v7890 = vadd.f32 %v7772, %v7869
    %v7891 = vadd.f32 %v7773, %v7871
    %v7892 = vadd.f32 %v7774, %v7874
    %v7893 = vadd.f32 %v7775, %v7876
    %v7894 = vld [vmem:[#allocation2 + $0x50] sm:$0xf]
    %v7895 = vld [vmem:[#allocation2 + $0x54] sm:$0xf]
    %v7896 = vld [vmem:[#allocation2 + $0x58] sm:$0xf]
    %v7897 = vld [vmem:[#allocation2 + $0x5c] sm:$0xf]
    %v7898 = vld [vmem:[#allocation2 + $0x60] sm:$0xf]
    %v7899 = vld [vmem:[#allocation2 + $0x64] sm:$0xf]
    %v7900 = vld [vmem:[#allocation2 + $0x68] sm:$0xf]
    %v7901 = vld [vmem:[#allocation2 + $0x6c] sm:$0xf]
    %v7902 = vld [vmem:[#allocation2 + $0x70] sm:$0xf]
    %v7903 = vld [vmem:[#allocation2 + $0x74] sm:$0xf]
    %v7904 = vld [vmem:[#allocation2 + $0x78] sm:$0xf]
    %v7905 = vld [vmem:[#allocation2 + $0x7c] sm:$0xf]
    %v7906 = vld [vmem:[#allocation2 + $0x80] sm:$0xf]
    %v7907 = vld [vmem:[#allocation2 + $0x84] sm:$0xf]
    %v7908 = vld [vmem:[#allocation2 + $0x88] sm:$0xf]
    %v7909 = vld [vmem:[#allocation2 + $0x8c] sm:$0xf]
    %v7910 = vld [vmem:[%s3 + $0x30] sm:$0xf]
    %v7911 = vld [vmem:[%s3 + $0x34] sm:$0xf]
    %v7928 = vunpack.c.l.b16 %v7894
    %v7929 = vunpack.c.l.b16 %v7895
    %v7930 = vunpack.c.l.b16 %v7896
    %v7931 = vunpack.c.l.b16 %v7897
    %v7932 = vunpack.c.l.b16 %v7898
    %v7933 = vunpack.c.l.b16 %v7899
    %v7934 = vunpack.c.l.b16 %v7900
    %v7935 = vunpack.c.l.b16 %v7901
    %v7936 = vunpack.c.l.b16 %v7902
    %v7937 = vunpack.c.l.b16 %v7903
    %v7938 = vunpack.c.l.b16 %v7904
    %v7939 = vunpack.c.l.b16 %v7905
    %v7940 = vunpack.c.l.b16 %v7906
    %v7941 = vunpack.c.l.b16 %v7907
    %v7942 = vunpack.c.l.b16 %v7908
    %v7943 = vunpack.c.l.b16 %v7909
    %v7944 = vpack.c.b16 %v7929, %v7928
    %v7945 = vpack.c.b16 %v7931, %v7930
    %v7946 = vpack.c.b16 %v7933, %v7932
    %v7947 = vpack.c.b16 %v7935, %v7934
    %v7948 = vpack.c.b16 %v7937, %v7936
    %v7949 = vpack.c.b16 %v7939, %v7938
    %v7950 = vpack.c.b16 %v7941, %v7940
    %v7951 = vpack.c.b16 %v7943, %v7942
    %v7954 = vunpack.c.l.b16 %v7910
    %v7955 = vunpack.c.l.b16 %v7911
    %v7956 = vpack.c.b16 %v7955, %v7954
    %v7959 = vsel %vm5691, %v7944, 0
    %v7962 = vsel %vm5691, %v7945, 0
    %v7965 = vsel %vm5691, %v7946, 0
    %v7968 = vsel %vm5691, %v7947, 0
    %v7971 = vsel %vm5691, %v7948, 0
    %v7974 = vsel %vm5691, %v7949, 0
    %v7977 = vsel %vm5691, %v7950, 0
    %v7980 = vsel %vm5691, %v7951, 0
    %7982 = vmatpush.bf16.msra.mxu0 0
    %7983 = vmatpush.bf16.msra.mxu0 0
    %7984 = vmatpush.bf16.msra.mxu0 0
    %7985 = vmatpush.bf16.msra.mxu0 0
    %7986 = vmatpush.bf16.msra.mxu0 0
    %7987 = vmatpush.bf16.msra.mxu0 0
    %7988 = vmatpush.bf16.msra.mxu0 0
    %7989 = vmatpush.bf16.msra.mxu0 %v7956
    %7990 = vmatmul.bf16.gmra.mxu0 %v7959
    %v7991 = vpop.f32.mrf.mxu0
    %v7992 = vadd.f32 0.0, %v7991
    %v7993 = vpop.f32.mrf.mxu0
    %v7994 = vadd.f32 0.0, %v7993
    %7995 = vmatmul.bf16.gmra.mxu0 %v7962
    %v7996 = vpop.f32.mrf.mxu0
    %v7997 = vadd.f32 0.0, %v7996
    %v7998 = vpop.f32.mrf.mxu0
    %v7999 = vadd.f32 0.0, %v7998
    %8000 = vmatmul.bf16.gmra.mxu0 %v7965
    %v8001 = vpop.f32.mrf.mxu0
    %v8002 = vadd.f32 0.0, %v8001
    %v8003 = vpop.f32.mrf.mxu0
    %v8004 = vadd.f32 0.0, %v8003
    %8005 = vmatmul.bf16.gmra.mxu0 %v7968
    %v8006 = vpop.f32.mrf.mxu0
    %v8007 = vadd.f32 0.0, %v8006
    %v8008 = vpop.f32.mrf.mxu0
    %v8009 = vadd.f32 0.0, %v8008
    %8010 = vmatmul.bf16.gmra.mxu0 %v7971
    %v8011 = vpop.f32.mrf.mxu0
    %v8012 = vadd.f32 0.0, %v8011
    %v8013 = vpop.f32.mrf.mxu0
    %v8014 = vadd.f32 0.0, %v8013
    %8015 = vmatmul.bf16.gmra.mxu0 %v7974
    %v8016 = vpop.f32.mrf.mxu0
    %v8017 = vadd.f32 0.0, %v8016
    %v8018 = vpop.f32.mrf.mxu0
    %v8019 = vadd.f32 0.0, %v8018
    %8020 = vmatmul.bf16.gmra.mxu0 %v7977
    %v8021 = vpop.f32.mrf.mxu0
    %v8022 = vadd.f32 0.0, %v8021
    %v8023 = vpop.f32.mrf.mxu0
    %v8024 = vadd.f32 0.0, %v8023
    %8025 = vmatmul.bf16.gmra.mxu0 %v7980
    %v8026 = vpop.f32.mrf.mxu0
    %v8027 = vadd.f32 0.0, %v8026
    %v8028 = vpop.f32.mrf.mxu0
    %v8029 = vadd.f32 0.0, %v8028
    %8030 = vdwg.mxu0
    %v8031 = vadd.f32 %v7878, %v7992
    %v8032 = vadd.f32 %v7879, %v7994
    %v8033 = vadd.f32 %v7880, %v7997
    %v8034 = vadd.f32 %v7881, %v7999
    %v8035 = vadd.f32 %v7882, %v8002
    %v8036 = vadd.f32 %v7883, %v8004
    %v8037 = vadd.f32 %v7884, %v8007
    %v8038 = vadd.f32 %v7885, %v8009
    %v8039 = vadd.f32 %v7886, %v8012
    %v8040 = vadd.f32 %v7887, %v8014
    %v8041 = vadd.f32 %v7888, %v8017
    %v8042 = vadd.f32 %v7889, %v8019
    %v8043 = vadd.f32 %v7890, %v8022
    %v8044 = vadd.f32 %v7891, %v8024
    %v8045 = vadd.f32 %v7892, %v8027
    %v8046 = vadd.f32 %v7893, %v8029
    %v8047 = vld [vmem:[#allocation2 + $0x50] sm:$0xf]
    %v8048 = vld [vmem:[#allocation2 + $0x54] sm:$0xf]
    %v8049 = vld [vmem:[#allocation2 + $0x58] sm:$0xf]
    %v8050 = vld [vmem:[#allocation2 + $0x5c] sm:$0xf]
    %v8051 = vld [vmem:[#allocation2 + $0x60] sm:$0xf]
    %v8052 = vld [vmem:[#allocation2 + $0x64] sm:$0xf]
    %v8053 = vld [vmem:[#allocation2 + $0x68] sm:$0xf]
    %v8054 = vld [vmem:[#allocation2 + $0x6c] sm:$0xf]
    %v8055 = vld [vmem:[#allocation2 + $0x70] sm:$0xf]
    %v8056 = vld [vmem:[#allocation2 + $0x74] sm:$0xf]
    %v8057 = vld [vmem:[#allocation2 + $0x78] sm:$0xf]
    %v8058 = vld [vmem:[#allocation2 + $0x7c] sm:$0xf]
    %v8059 = vld [vmem:[#allocation2 + $0x80] sm:$0xf]
    %v8060 = vld [vmem:[#allocation2 + $0x84] sm:$0xf]
    %v8061 = vld [vmem:[#allocation2 + $0x88] sm:$0xf]
    %v8062 = vld [vmem:[#allocation2 + $0x8c] sm:$0xf]
    %v8063 = vld [vmem:[#allocation2 + $0x90] sm:$0x1]
    %v8064 = vld [vmem:[%s3 + $0x38] sm:$0xf]
    %v8065 = vld [vmem:[%s3 + $0x3c] sm:$0xf]
    %v8083 = vunpack.c.l.b16 %v8047
    %v8084 = vunpack.c.l.b16 %v8048
    %v8085 = vunpack.c.l.b16 %v8049
    %v8086 = vunpack.c.l.b16 %v8050
    %v8087 = vunpack.c.l.b16 %v8051
    %v8088 = vunpack.c.l.b16 %v8052
    %v8089 = vunpack.c.l.b16 %v8053
    %v8090 = vunpack.c.l.b16 %v8054
    %v8091 = vunpack.c.l.b16 %v8055
    %v8092 = vunpack.c.l.b16 %v8056
    %v8093 = vunpack.c.l.b16 %v8057
    %v8094 = vunpack.c.l.b16 %v8058
    %v8095 = vunpack.c.l.b16 %v8059
    %v8096 = vunpack.c.l.b16 %v8060
    %v8097 = vunpack.c.l.b16 %v8061
    %v8098 = vunpack.c.l.b16 %v8062
    %v8099 = vunpack.c.l.b16 %v8063
    %v8100 = vpack.c.b16 %v8084, %v8083
    %v8101 = vpack.c.b16 %v8086, %v8085
    %v8102 = vpack.c.b16 %v8088, %v8087
    %v8103 = vpack.c.b16 %v8090, %v8089
    %v8104 = vpack.c.b16 %v8092, %v8091
    %v8105 = vpack.c.b16 %v8094, %v8093
    %v8106 = vpack.c.b16 %v8096, %v8095
    %v8107 = vpack.c.b16 %v8098, %v8097
    %v8108 = vpack.c.b16 %v8099, %v8099
    %v8110 = vshrl.u32 %v8100, 16
    %v8112 = vshll.u32 %v8100, 16
    %v8114 = vrot.slane %v8112, 1
    %v8115 = vor.u32 %v8110, %v8114
    %v8117 = vshll.u32 %v8101, 16
    %v8119 = vrot.slane %v8117, 1
    %v8120 = vsel %vm109, %v8115, %v8119
    %v8121 = vshrl.u32 %v8101, 16
    %v8123 = vor.u32 %v8121, %v8119
    %v8125 = vshll.u32 %v8102, 16
    %v8127 = vrot.slane %v8125, 1
    %v8128 = vsel %vm109, %v8123, %v8127
    %v8129 = vshrl.u32 %v8102, 16
    %v8131 = vor.u32 %v8129, %v8127
    %v8133 = vshll.u32 %v8103, 16
    %v8135 = vrot.slane %v8133, 1
    %v8136 = vsel %vm109, %v8131, %v8135
    %v8137 = vshrl.u32 %v8103, 16
    %v8139 = vor.u32 %v8137, %v8135
    %v8141 = vshll.u32 %v8104, 16
    %v8143 = vrot.slane %v8141, 1
    %v8144 = vsel %vm109, %v8139, %v8143
    %v8145 = vshrl.u32 %v8104, 16
    %v8147 = vor.u32 %v8145, %v8143
    %v8149 = vshll.u32 %v8105, 16
    %v8151 = vrot.slane %v8149, 1
    %v8152 = vsel %vm109, %v8147, %v8151
    %v8153 = vshrl.u32 %v8105, 16
    %v8155 = vor.u32 %v8153, %v8151
    %v8157 = vshll.u32 %v8106, 16
    %v8159 = vrot.slane %v8157, 1
    %v8160 = vsel %vm109, %v8155, %v8159
    %v8161 = vshrl.u32 %v8106, 16
    %v8163 = vor.u32 %v8161, %v8159
    %v8165 = vshll.u32 %v8107, 16
    %v8167 = vrot.slane %v8165, 1
    %v8168 = vsel %vm109, %v8163, %v8167
    %v8169 = vshrl.u32 %v8107, 16
    %v8171 = vor.u32 %v8169, %v8167
    %v8173 = vshll.u32 %v8108, 16
    %v8175 = vrot.slane %v8173, 1
    %v8176 = vsel %vm109, %v8171, %v8175
    %v8179 = vunpack.c.l.b16 %v8064
    %v8180 = vunpack.c.l.b16 %v8065
    %v8181 = vpack.c.b16 %v8180, %v8179
    %v8184 = vsel %vm5691, %v8120, 0
    %v8187 = vsel %vm5691, %v8128, 0
    %v8190 = vsel %vm5691, %v8136, 0
    %v8193 = vsel %vm5691, %v8144, 0
    %v8196 = vsel %vm5691, %v8152, 0
    %v8199 = vsel %vm5691, %v8160, 0
    %v8202 = vsel %vm5691, %v8168, 0
    %v8205 = vsel %vm5691, %v8176, 0
    %8207 = vmatpush.bf16.msra.mxu0 0
    %8208 = vmatpush.bf16.msra.mxu0 0
    %8209 = vmatpush.bf16.msra.mxu0 0
    %8210 = vmatpush.bf16.msra.mxu0 0
    %8211 = vmatpush.bf16.msra.mxu0 0
    %8212 = vmatpush.bf16.msra.mxu0 0
    %8213 = vmatpush.bf16.msra.mxu0 0
    %8214 = vmatpush.bf16.msra.mxu0 %v8181
    %8215 = vmatmul.bf16.gmra.mxu0 %v8184
    %v8216 = vpop.f32.mrf.mxu0
    %v8217 = vadd.f32 0.0, %v8216
    %v8218 = vpop.f32.mrf.mxu0
    %v8219 = vadd.f32 0.0, %v8218
    %8220 = vmatmul.bf16.gmra.mxu0 %v8187
    %v8221 = vpop.f32.mrf.mxu0
    %v8222 = vadd.f32 0.0, %v8221
    %v8223 = vpop.f32.mrf.mxu0
    %v8224 = vadd.f32 0.0, %v8223
    %8225 = vmatmul.bf16.gmra.mxu0 %v8190
    %v8226 = vpop.f32.mrf.mxu0
    %v8227 = vadd.f32 0.0, %v8226
    %v8228 = vpop.f32.mrf.mxu0
    %v8229 = vadd.f32 0.0, %v8228
    %8230 = vmatmul.bf16.gmra.mxu0 %v8193
    %v8231 = vpop.f32.mrf.mxu0
    %v8232 = vadd.f32 0.0, %v8231
    %v8233 = vpop.f32.mrf.mxu0
    %v8234 = vadd.f32 0.0, %v8233
    %8235 = vmatmul.bf16.gmra.mxu0 %v8196
    %v8236 = vpop.f32.mrf.mxu0
    %v8237 = vadd.f32 0.0, %v8236
    %v8238 = vpop.f32.mrf.mxu0
    %v8239 = vadd.f32 0.0, %v8238
    %8240 = vmatmul.bf16.gmra.mxu0 %v8199
    %v8241 = vpop.f32.mrf.mxu0
    %v8242 = vadd.f32 0.0, %v8241
    %v8243 = vpop.f32.mrf.mxu0
    %v8244 = vadd.f32 0.0, %v8243
    %8245 = vmatmul.bf16.gmra.mxu0 %v8202
    %v8246 = vpop.f32.mrf.mxu0
    %v8247 = vadd.f32 0.0, %v8246
    %v8248 = vpop.f32.mrf.mxu0
    %v8249 = vadd.f32 0.0, %v8248
    %8250 = vmatmul.bf16.gmra.mxu0 %v8205
    %v8251 = vpop.f32.mrf.mxu0
    %v8252 = vadd.f32 0.0, %v8251
    %v8253 = vpop.f32.mrf.mxu0
    %v8254 = vadd.f32 0.0, %v8253
    %8255 = vdwg.mxu0
    %v8256 = vadd.f32 %v8031, %v8217
    %v8257 = vadd.f32 %v8032, %v8219
    %v8258 = vadd.f32 %v8033, %v8222
    %v8259 = vadd.f32 %v8034, %v8224
    %v8260 = vadd.f32 %v8035, %v8227
    %v8261 = vadd.f32 %v8036, %v8229
    %v8262 = vadd.f32 %v8037, %v8232
    %v8263 = vadd.f32 %v8038, %v8234
    %v8264 = vadd.f32 %v8039, %v8237
    %v8265 = vadd.f32 %v8040, %v8239
    %v8266 = vadd.f32 %v8041, %v8242
    %v8267 = vadd.f32 %v8042, %v8244
    %v8268 = vadd.f32 %v8043, %v8247
    %v8269 = vadd.f32 %v8044, %v8249
    %v8270 = vadd.f32 %v8045, %v8252
    %v8271 = vadd.f32 %v8046, %v8254
    %v8272 = vld [vmem:[#allocation2 + $0x50] sm:$0xe]
    %v8273 = vld [vmem:[%s3 + $0x40] sm:$0xf]
    %v8274 = vld [vmem:[%s3 + $0x44] sm:$0xf]
    %v8276 = vunpack.c.l.b16 %v8272
    %v8277 = vpack.c.b16 %v8084, %v8276
    %v8278 = vrot.slane %v8277, 1
    %v8279 = vrot.slane %v8101, 1
    %v8280 = vsel %vm344, %v8278, %v8279
    %v8281 = vrot.slane %v8102, 1
    %v8282 = vsel %vm344, %v8279, %v8281
    %v8283 = vrot.slane %v8103, 1
    %v8284 = vsel %vm344, %v8281, %v8283
    %v8285 = vrot.slane %v8104, 1
    %v8286 = vsel %vm344, %v8283, %v8285
    %v8287 = vrot.slane %v8105, 1
    %v8288 = vsel %vm344, %v8285, %v8287
    %v8289 = vrot.slane %v8106, 1
    %v8290 = vsel %vm344, %v8287, %v8289
    %v8291 = vrot.slane %v8107, 1
    %v8292 = vsel %vm344, %v8289, %v8291
    %v8293 = vrot.slane %v8108, 1
    %v8294 = vsel %vm344, %v8291, %v8293
    %v8297 = vunpack.c.l.b16 %v8273
    %v8298 = vunpack.c.l.b16 %v8274
    %v8299 = vpack.c.b16 %v8298, %v8297
    %v8302 = vsel %vm5691, %v8280, 0
    %v8305 = vsel %vm5691, %v8282, 0
    %v8308 = vsel %vm5691, %v8284, 0
    %v8311 = vsel %vm5691, %v8286, 0
    %v8314 = vsel %vm5691, %v8288, 0
    %v8317 = vsel %vm5691, %v8290, 0
    %v8320 = vsel %vm5691, %v8292, 0
    %v8323 = vsel %vm5691, %v8294, 0
    %8325 = vmatpush.bf16.msra.mxu0 0
    %8326 = vmatpush.bf16.msra.mxu0 0
    %8327 = vmatpush.bf16.msra.mxu0 0
    %8328 = vmatpush.bf16.msra.mxu0 0
    %8329 = vmatpush.bf16.msra.mxu0 0
    %8330 = vmatpush.bf16.msra.mxu0 0
    %8331 = vmatpush.bf16.msra.mxu0 0
    %8332 = vmatpush.bf16.msra.mxu0 %v8299
    %8333 = vmatmul.bf16.gmra.mxu0 %v8302
    %v8334 = vpop.f32.mrf.mxu0
    %v8335 = vadd.f32 0.0, %v8334
    %v8336 = vpop.f32.mrf.mxu0
    %v8337 = vadd.f32 0.0, %v8336
    %8338 = vmatmul.bf16.gmra.mxu0 %v8305
    %v8339 = vpop.f32.mrf.mxu0
    %v8340 = vadd.f32 0.0, %v8339
    %v8341 = vpop.f32.mrf.mxu0
    %v8342 = vadd.f32 0.0, %v8341
    %8343 = vmatmul.bf16.gmra.mxu0 %v8308
    %v8344 = vpop.f32.mrf.mxu0
    %v8345 = vadd.f32 0.0, %v8344
    %v8346 = vpop.f32.mrf.mxu0
    %v8347 = vadd.f32 0.0, %v8346
    %8348 = vmatmul.bf16.gmra.mxu0 %v8311
    %v8349 = vpop.f32.mrf.mxu0
    %v8350 = vadd.f32 0.0, %v8349
    %v8351 = vpop.f32.mrf.mxu0
    %v8352 = vadd.f32 0.0, %v8351
    %8353 = vmatmul.bf16.gmra.mxu0 %v8314
    %v8354 = vpop.f32.mrf.mxu0
    %v8355 = vadd.f32 0.0, %v8354
    %v8356 = vpop.f32.mrf.mxu0
    %v8357 = vadd.f32 0.0, %v8356
    %8358 = vmatmul.bf16.gmra.mxu0 %v8317
    %v8359 = vpop.f32.mrf.mxu0
    %v8360 = vadd.f32 0.0, %v8359
    %v8361 = vpop.f32.mrf.mxu0
    %v8362 = vadd.f32 0.0, %v8361
    %8363 = vmatmul.bf16.gmra.mxu0 %v8320
    %v8364 = vpop.f32.mrf.mxu0
    %v8365 = vadd.f32 0.0, %v8364
    %v8366 = vpop.f32.mrf.mxu0
    %v8367 = vadd.f32 0.0, %v8366
    %8368 = vmatmul.bf16.gmra.mxu0 %v8323
    %v8369 = vpop.f32.mrf.mxu0
    %v8370 = vadd.f32 0.0, %v8369
    %v8371 = vpop.f32.mrf.mxu0
    %v8372 = vadd.f32 0.0, %v8371
    %8373 = vdwg.mxu0
    %v8374 = vadd.f32 %v8256, %v8335
    %v8375 = vadd.f32 %v8257, %v8337
    %v8376 = vadd.f32 %v8258, %v8340
    %v8377 = vadd.f32 %v8259, %v8342
    %v8378 = vadd.f32 %v8260, %v8345
    %v8379 = vadd.f32 %v8261, %v8347
    %v8380 = vadd.f32 %v8262, %v8350
    %v8381 = vadd.f32 %v8263, %v8352
    %v8382 = vadd.f32 %v8264, %v8355
    %v8383 = vadd.f32 %v8265, %v8357
    %v8384 = vadd.f32 %v8266, %v8360
    %v8385 = vadd.f32 %v8267, %v8362
    %v8386 = vadd.f32 %v8268, %v8365
    %v8387 = vadd.f32 %v8269, %v8367
    %v8388 = vadd.f32 %v8270, %v8370
    %v8389 = vadd.f32 %v8271, %v8372
    %v8390 = vadd.f32 %v8374, %v6947
    %v8391 = vadd.f32 %v8375, %v6947
    %v8392 = vadd.f32 %v8376, %v6947
    %v8393 = vadd.f32 %v8377, %v6947
    %v8394 = vadd.f32 %v8378, %v6947
    %v8395 = vadd.f32 %v8379, %v6947
    %v8396 = vadd.f32 %v8380, %v6947
    %v8397 = vadd.f32 %v8381, %v6947
    %v8398 = vadd.f32 %v8382, %v6947
    %v8399 = vadd.f32 %v8383, %v6947
    %v8400 = vadd.f32 %v8384, %v6947
    %v8401 = vadd.f32 %v8385, %v6947
    %v8402 = vadd.f32 %v8386, %v6947
    %v8403 = vadd.f32 %v8387, %v6947
    %v8404 = vadd.f32 %v8388, %v6947
    %v8405 = vadd.f32 %v8389, %v6947
    %v8406 = vmax.f32 %v8390, 0.0
    %v8407 = vmax.f32 %v8391, 0.0
    %v8408 = vmax.f32 %v8392, 0.0
    %v8409 = vmax.f32 %v8393, 0.0
    %v8410 = vmax.f32 %v8394, 0.0
    %v8411 = vmax.f32 %v8395, 0.0
    %v8412 = vmax.f32 %v8396, 0.0
    %v8413 = vmax.f32 %v8397, 0.0
    %v8414 = vmax.f32 %v8398, 0.0
    %v8415 = vmax.f32 %v8399, 0.0
    %v8416 = vmax.f32 %v8400, 0.0
    %v8417 = vmax.f32 %v8401, 0.0
    %v8418 = vmax.f32 %v8402, 0.0
    %v8419 = vmax.f32 %v8403, 0.0
    %v8420 = vmax.f32 %v8404, 0.0
    %v8421 = vmax.f32 %v8405, 0.0
    %8422 = vst.msk [vmem:[#allocation3 + $0x80] sm:$0xff] %vm6981, %v8406
    %8423 = vst.msk [vmem:[#allocation3 + $0x88] sm:$0xff] %vm6981, %v8407
    %8424 = vst.msk [vmem:[#allocation3 + $0x90] sm:$0xff] %vm6981, %v8408
    %8425 = vst.msk [vmem:[#allocation3 + $0x98] sm:$0xff] %vm6981, %v8409
    %8426 = vst.msk [vmem:[#allocation3 + $0xa0] sm:$0xff] %vm6981, %v8410
    %8427 = vst.msk [vmem:[#allocation3 + $0xa8] sm:$0xff] %vm6981, %v8411
    %8428 = vst.msk [vmem:[#allocation3 + $0xb0] sm:$0xff] %vm6981, %v8412
    %8429 = vst.msk [vmem:[#allocation3 + $0xb8] sm:$0xff] %vm6981, %v8413
    %8430 = vst.msk [vmem:[#allocation3 + $0xc0] sm:$0xff] %vm6981, %v8414
    %8431 = vst.msk [vmem:[#allocation3 + $0xc8] sm:$0xff] %vm6981, %v8415
    %8432 = vst.msk [vmem:[#allocation3 + $0xd0] sm:$0xff] %vm6981, %v8416
    %8433 = vst.msk [vmem:[#allocation3 + $0xd8] sm:$0xff] %vm6981, %v8417
    %8434 = vst.msk [vmem:[#allocation3 + $0xe0] sm:$0xff] %vm6981, %v8418
    %8435 = vst.msk [vmem:[#allocation3 + $0xe8] sm:$0xff] %vm6981, %v8419
    %8436 = vst.msk [vmem:[#allocation3 + $0xf0] sm:$0xff] %vm6981, %v8420
    %8437 = vst.msk [vmem:[#allocation3 + $0xf8] sm:$0xff] %vm6981, %v8421
    %v8438 = vld [vmem:[#allocation2 + $0x80] sm:$0xf]
    %v8439 = vld [vmem:[#allocation2 + $0x84] sm:$0xf]
    %v8440 = vld [vmem:[#allocation2 + $0x88] sm:$0xf]
    %v8441 = vld [vmem:[#allocation2 + $0x8c] sm:$0xf]
    %v8442 = vld [vmem:[#allocation2 + $0x90] sm:$0xf]
    %v8443 = vld [vmem:[#allocation2 + $0x94] sm:$0xf]
    %v8444 = vld [vmem:[#allocation2 + $0x98] sm:$0xf]
    %v8445 = vld [vmem:[#allocation2 + $0x9c] sm:$0xf]
    %v8446 = vld [vmem:[#allocation2 + $0xa0] sm:$0xf]
    %v8447 = vld [vmem:[#allocation2 + $0xa4] sm:$0xf]
    %v8448 = vld [vmem:[#allocation2 + $0xa8] sm:$0xf]
    %v8449 = vld [vmem:[#allocation2 + $0xac] sm:$0xf]
    %v8450 = vld [vmem:[#allocation2 + $0xb0] sm:$0xf]
    %v8451 = vld [vmem:[#allocation2 + $0xb4] sm:$0xf]
    %v8452 = vld [vmem:[#allocation2 + $0xb8] sm:$0xf]
    %v8453 = vld [vmem:[#allocation2 + $0xbc] sm:$0xf]
    %v8454 = vld [vmem:[%s3] sm:$0xf]
    %v8455 = vld [vmem:[%s3 + $0x4] sm:$0xf]
    %v8456 = vld [vmem:[#allocation2 + $0xc0] sm:$0x1]
    %v8457 = vld [vmem:[%s3 + $0x8] sm:$0xf]
    %v8458 = vld [vmem:[%s3 + $0xc] sm:$0xf]
    %v8476 = vunpack.c.l.b16 %v8438
    %v8477 = vunpack.c.l.b16 %v8439
    %v8478 = vunpack.c.l.b16 %v8440
    %v8479 = vunpack.c.l.b16 %v8441
    %v8480 = vunpack.c.l.b16 %v8442
    %v8481 = vunpack.c.l.b16 %v8443
    %v8482 = vunpack.c.l.b16 %v8444
    %v8483 = vunpack.c.l.b16 %v8445
    %v8484 = vunpack.c.l.b16 %v8446
    %v8485 = vunpack.c.l.b16 %v8447
    %v8486 = vunpack.c.l.b16 %v8448
    %v8487 = vunpack.c.l.b16 %v8449
    %v8488 = vunpack.c.l.b16 %v8450
    %v8489 = vunpack.c.l.b16 %v8451
    %v8490 = vunpack.c.l.b16 %v8452
    %v8491 = vunpack.c.l.b16 %v8453
    %v8492 = vunpack.c.l.b16 %v8456
    %v8493 = vpack.c.b16 %v8477, %v8476
    %v8494 = vpack.c.b16 %v8479, %v8478
    %v8495 = vpack.c.b16 %v8481, %v8480
    %v8496 = vpack.c.b16 %v8483, %v8482
    %v8497 = vpack.c.b16 %v8485, %v8484
    %v8498 = vpack.c.b16 %v8487, %v8486
    %v8499 = vpack.c.b16 %v8489, %v8488
    %v8500 = vpack.c.b16 %v8491, %v8490
    %v8501 = vpack.c.b16 %v8492, %v8492
    %v8503 = vshrl.u32 %v8493, 16
    %v8505 = vshll.u32 %v8493, 16
    %v8507 = vrot.slane %v8505, 1
    %v8508 = vor.u32 %v8503, %v8507
    %v8510 = vshll.u32 %v8494, 16
    %v8512 = vrot.slane %v8510, 1
    %v8513 = vsel %vm109, %v8508, %v8512
    %v8514 = vshrl.u32 %v8494, 16
    %v8516 = vor.u32 %v8514, %v8512
    %v8518 = vshll.u32 %v8495, 16
    %v8520 = vrot.slane %v8518, 1
    %v8521 = vsel %vm109, %v8516, %v8520
    %v8522 = vshrl.u32 %v8495, 16
    %v8524 = vor.u32 %v8522, %v8520
    %v8526 = vshll.u32 %v8496, 16
    %v8528 = vrot.slane %v8526, 1
    %v8529 = vsel %vm109, %v8524, %v8528
    %v8530 = vshrl.u32 %v8496, 16
    %v8532 = vor.u32 %v8530, %v8528
    %v8534 = vshll.u32 %v8497, 16
    %v8536 = vrot.slane %v8534, 1
    %v8537 = vsel %vm109, %v8532, %v8536
    %v8538 = vshrl.u32 %v8497, 16
    %v8540 = vor.u32 %v8538, %v8536
    %v8542 = vshll.u32 %v8498, 16
    %v8544 = vrot.slane %v8542, 1
    %v8545 = vsel %vm109, %v8540, %v8544
    %v8546 = vshrl.u32 %v8498, 16
    %v8548 = vor.u32 %v8546, %v8544
    %v8550 = vshll.u32 %v8499, 16
    %v8552 = vrot.slane %v8550, 1
    %v8553 = vsel %vm109, %v8548, %v8552
    %v8554 = vshrl.u32 %v8499, 16
    %v8556 = vor.u32 %v8554, %v8552
    %v8558 = vshll.u32 %v8500, 16
    %v8560 = vrot.slane %v8558, 1
    %v8561 = vsel %vm109, %v8556, %v8560
    %v8562 = vshrl.u32 %v8500, 16
    %v8564 = vor.u32 %v8562, %v8560
    %v8566 = vshll.u32 %v8501, 16
    %v8568 = vrot.slane %v8566, 1
    %v8569 = vsel %vm109, %v8564, %v8568
    %v8572 = vunpack.c.l.b16 %v8457
    %v8573 = vunpack.c.l.b16 %v8458
    %v8574 = vpack.c.b16 %v8573, %v8572
    %v8577 = vsel %vm5691, %v8513, 0
    %v8580 = vsel %vm5691, %v8521, 0
    %v8583 = vsel %vm5691, %v8529, 0
    %v8586 = vsel %vm5691, %v8537, 0
    %v8589 = vsel %vm5691, %v8545, 0
    %v8592 = vsel %vm5691, %v8553, 0
    %v8595 = vsel %vm5691, %v8561, 0
    %v8598 = vsel %vm5691, %v8569, 0
    %8600 = vmatpush.bf16.msra.mxu0 0
    %8601 = vmatpush.bf16.msra.mxu0 0
    %8602 = vmatpush.bf16.msra.mxu0 0
    %8603 = vmatpush.bf16.msra.mxu0 0
    %8604 = vmatpush.bf16.msra.mxu0 0
    %8605 = vmatpush.bf16.msra.mxu0 0
    %8606 = vmatpush.bf16.msra.mxu0 0
    %8607 = vmatpush.bf16.msra.mxu0 %v8574
    %8608 = vmatmul.bf16.gmra.mxu0 %v8577
    %v8609 = vpop.f32.mrf.mxu0
    %v8610 = vadd.f32 0.0, %v8609
    %v8611 = vpop.f32.mrf.mxu0
    %v8612 = vadd.f32 0.0, %v8611
    %8613 = vmatmul.bf16.gmra.mxu0 %v8580
    %v8614 = vpop.f32.mrf.mxu0
    %v8615 = vadd.f32 0.0, %v8614
    %v8616 = vpop.f32.mrf.mxu0
    %v8617 = vadd.f32 0.0, %v8616
    %8618 = vmatmul.bf16.gmra.mxu0 %v8583
    %v8619 = vpop.f32.mrf.mxu0
    %v8620 = vadd.f32 0.0, %v8619
    %v8621 = vpop.f32.mrf.mxu0
    %v8622 = vadd.f32 0.0, %v8621
    %8623 = vmatmul.bf16.gmra.mxu0 %v8586
    %v8624 = vpop.f32.mrf.mxu0
    %v8625 = vadd.f32 0.0, %v8624
    %v8626 = vpop.f32.mrf.mxu0
    %v8627 = vadd.f32 0.0, %v8626
    %8628 = vmatmul.bf16.gmra.mxu0 %v8589
    %v8629 = vpop.f32.mrf.mxu0
    %v8630 = vadd.f32 0.0, %v8629
    %v8631 = vpop.f32.mrf.mxu0
    %v8632 = vadd.f32 0.0, %v8631
    %8633 = vmatmul.bf16.gmra.mxu0 %v8592
    %v8634 = vpop.f32.mrf.mxu0
    %v8635 = vadd.f32 0.0, %v8634
    %v8636 = vpop.f32.mrf.mxu0
    %v8637 = vadd.f32 0.0, %v8636
    %8638 = vmatmul.bf16.gmra.mxu0 %v8595
    %v8639 = vpop.f32.mrf.mxu0
    %v8640 = vadd.f32 0.0, %v8639
    %v8641 = vpop.f32.mrf.mxu0
    %v8642 = vadd.f32 0.0, %v8641
    %8643 = vmatmul.bf16.gmra.mxu0 %v8598
    %v8644 = vpop.f32.mrf.mxu0
    %v8645 = vadd.f32 0.0, %v8644
    %v8646 = vpop.f32.mrf.mxu0
    %v8647 = vadd.f32 0.0, %v8646
    %8648 = vdwg.mxu0
    %v8651 = vunpack.c.l.b16 %v8454
    %v8652 = vunpack.c.l.b16 %v8455
    %v8653 = vpack.c.b16 %v8652, %v8651
    %v8655 = vsel %vm5691, %v8493, 0
    %v8657 = vsel %vm5691, %v8494, 0
    %v8659 = vsel %vm5691, %v8495, 0
    %v8661 = vsel %vm5691, %v8496, 0
    %v8663 = vsel %vm5691, %v8497, 0
    %v8665 = vsel %vm5691, %v8498, 0
    %v8667 = vsel %vm5691, %v8499, 0
    %v8669 = vsel %vm5691, %v8500, 0
    %8671 = vmatpush.bf16.msra.mxu0 0
    %8672 = vmatpush.bf16.msra.mxu0 0
    %8673 = vmatpush.bf16.msra.mxu0 0
    %8674 = vmatpush.bf16.msra.mxu0 0
    %8675 = vmatpush.bf16.msra.mxu0 0
    %8676 = vmatpush.bf16.msra.mxu0 0
    %8677 = vmatpush.bf16.msra.mxu0 0
    %8678 = vmatpush.bf16.msra.mxu0 %v8653
    %8679 = vmatmul.bf16.gmra.mxu0 %v8655
    %v8680 = vpop.f32.mrf.mxu0
    %v8681 = vadd.f32 %v8610, %v8680
    %v8682 = vpop.f32.mrf.mxu0
    %v8683 = vadd.f32 %v8612, %v8682
    %8684 = vmatmul.bf16.gmra.mxu0 %v8657
    %v8685 = vpop.f32.mrf.mxu0
    %v8686 = vadd.f32 %v8615, %v8685
    %v8687 = vpop.f32.mrf.mxu0
    %v8688 = vadd.f32 %v8617, %v8687
    %8689 = vmatmul.bf16.gmra.mxu0 %v8659
    %v8690 = vpop.f32.mrf.mxu0
    %v8691 = vadd.f32 %v8620, %v8690
    %v8692 = vpop.f32.mrf.mxu0
    %v8693 = vadd.f32 %v8622, %v8692
    %8694 = vmatmul.bf16.gmra.mxu0 %v8661
    %v8695 = vpop.f32.mrf.mxu0
    %v8696 = vadd.f32 %v8625, %v8695
    %v8697 = vpop.f32.mrf.mxu0
    %v8698 = vadd.f32 %v8627, %v8697
    %8699 = vmatmul.bf16.gmra.mxu0 %v8663
    %v8700 = vpop.f32.mrf.mxu0
    %v8701 = vadd.f32 %v8630, %v8700
    %v8702 = vpop.f32.mrf.mxu0
    %v8703 = vadd.f32 %v8632, %v8702
    %8704 = vmatmul.bf16.gmra.mxu0 %v8665
    %v8705 = vpop.f32.mrf.mxu0
    %v8706 = vadd.f32 %v8635, %v8705
    %v8707 = vpop.f32.mrf.mxu0
    %v8708 = vadd.f32 %v8637, %v8707
    %8709 = vmatmul.bf16.gmra.mxu0 %v8667
    %v8710 = vpop.f32.mrf.mxu0
    %v8711 = vadd.f32 %v8640, %v8710
    %v8712 = vpop.f32.mrf.mxu0
    %v8713 = vadd.f32 %v8642, %v8712
    %8714 = vmatmul.bf16.gmra.mxu0 %v8669
    %v8715 = vpop.f32.mrf.mxu0
    %v8716 = vadd.f32 %v8645, %v8715
    %v8717 = vpop.f32.mrf.mxu0
    %v8718 = vadd.f32 %v8647, %v8717
    %8719 = vdwg.mxu0
    %v8720 = vld [vmem:[#allocation2 + $0x80] sm:$0xe]
    %v8721 = vld [vmem:[%s3 + $0x10] sm:$0xf]
    %v8722 = vld [vmem:[%s3 + $0x14] sm:$0xf]
    %v8724 = vunpack.c.l.b16 %v8720
    %v8725 = vpack.c.b16 %v8477, %v8724
    %v8726 = vrot.slane %v8725, 1
    %v8727 = vrot.slane %v8494, 1
    %v8728 = vsel %vm344, %v8726, %v8727
    %v8729 = vrot.slane %v8495, 1
    %v8730 = vsel %vm344, %v8727, %v8729
    %v8731 = vrot.slane %v8496, 1
    %v8732 = vsel %vm344, %v8729, %v8731
    %v8733 = vrot.slane %v8497, 1
    %v8734 = vsel %vm344, %v8731, %v8733
    %v8735 = vrot.slane %v8498, 1
    %v8736 = vsel %vm344, %v8733, %v8735
    %v8737 = vrot.slane %v8499, 1
    %v8738 = vsel %vm344, %v8735, %v8737
    %v8739 = vrot.slane %v8500, 1
    %v8740 = vsel %vm344, %v8737, %v8739
    %v8741 = vrot.slane %v8501, 1
    %v8742 = vsel %vm344, %v8739, %v8741
    %v8745 = vunpack.c.l.b16 %v8721
    %v8746 = vunpack.c.l.b16 %v8722
    %v8747 = vpack.c.b16 %v8746, %v8745
    %v8750 = vsel %vm5691, %v8728, 0
    %v8753 = vsel %vm5691, %v8730, 0
    %v8756 = vsel %vm5691, %v8732, 0
    %v8759 = vsel %vm5691, %v8734, 0
    %v8762 = vsel %vm5691, %v8736, 0
    %v8765 = vsel %vm5691, %v8738, 0
    %v8768 = vsel %vm5691, %v8740, 0
    %v8771 = vsel %vm5691, %v8742, 0
    %8773 = vmatpush.bf16.msra.mxu0 0
    %8774 = vmatpush.bf16.msra.mxu0 0
    %8775 = vmatpush.bf16.msra.mxu0 0
    %8776 = vmatpush.bf16.msra.mxu0 0
    %8777 = vmatpush.bf16.msra.mxu0 0
    %8778 = vmatpush.bf16.msra.mxu0 0
    %8779 = vmatpush.bf16.msra.mxu0 0
    %8780 = vmatpush.bf16.msra.mxu0 %v8747
    %8781 = vmatmul.bf16.gmra.mxu0 %v8750
    %v8782 = vpop.f32.mrf.mxu0
    %v8783 = vadd.f32 0.0, %v8782
    %v8784 = vpop.f32.mrf.mxu0
    %v8785 = vadd.f32 0.0, %v8784
    %8786 = vmatmul.bf16.gmra.mxu0 %v8753
    %v8787 = vpop.f32.mrf.mxu0
    %v8788 = vadd.f32 0.0, %v8787
    %v8789 = vpop.f32.mrf.mxu0
    %v8790 = vadd.f32 0.0, %v8789
    %8791 = vmatmul.bf16.gmra.mxu0 %v8756
    %v8792 = vpop.f32.mrf.mxu0
    %v8793 = vadd.f32 0.0, %v8792
    %v8794 = vpop.f32.mrf.mxu0
    %v8795 = vadd.f32 0.0, %v8794
    %8796 = vmatmul.bf16.gmra.mxu0 %v8759
    %v8797 = vpop.f32.mrf.mxu0
    %v8798 = vadd.f32 0.0, %v8797
    %v8799 = vpop.f32.mrf.mxu0
    %v8800 = vadd.f32 0.0, %v8799
    %8801 = vmatmul.bf16.gmra.mxu0 %v8762
    %v8802 = vpop.f32.mrf.mxu0
    %v8803 = vadd.f32 0.0, %v8802
    %v8804 = vpop.f32.mrf.mxu0
    %v8805 = vadd.f32 0.0, %v8804
    %8806 = vmatmul.bf16.gmra.mxu0 %v8765
    %v8807 = vpop.f32.mrf.mxu0
    %v8808 = vadd.f32 0.0, %v8807
    %v8809 = vpop.f32.mrf.mxu0
    %v8810 = vadd.f32 0.0, %v8809
    %8811 = vmatmul.bf16.gmra.mxu0 %v8768
    %v8812 = vpop.f32.mrf.mxu0
    %v8813 = vadd.f32 0.0, %v8812
    %v8814 = vpop.f32.mrf.mxu0
    %v8815 = vadd.f32 0.0, %v8814
    %8816 = vmatmul.bf16.gmra.mxu0 %v8771
    %v8817 = vpop.f32.mrf.mxu0
    %v8818 = vadd.f32 0.0, %v8817
    %v8819 = vpop.f32.mrf.mxu0
    %v8820 = vadd.f32 0.0, %v8819
    %8821 = vdwg.mxu0
    %v8822 = vadd.f32 %v8681, %v8783
    %v8823 = vadd.f32 %v8683, %v8785
    %v8824 = vadd.f32 %v8686, %v8788
    %v8825 = vadd.f32 %v8688, %v8790
    %v8826 = vadd.f32 %v8691, %v8793
    %v8827 = vadd.f32 %v8693, %v8795
    %v8828 = vadd.f32 %v8696, %v8798
    %v8829 = vadd.f32 %v8698, %v8800
    %v8830 = vadd.f32 %v8701, %v8803
    %v8831 = vadd.f32 %v8703, %v8805
    %v8832 = vadd.f32 %v8706, %v8808
    %v8833 = vadd.f32 %v8708, %v8810
    %v8834 = vadd.f32 %v8711, %v8813
    %v8835 = vadd.f32 %v8713, %v8815
    %v8836 = vadd.f32 %v8716, %v8818
    %v8837 = vadd.f32 %v8718, %v8820
    %v8838 = vld [vmem:[#allocation2 + $0x88] sm:$0xf]
    %v8839 = vld [vmem:[#allocation2 + $0x8c] sm:$0xf]
    %v8840 = vld [vmem:[#allocation2 + $0x90] sm:$0xf]
    %v8841 = vld [vmem:[#allocation2 + $0x94] sm:$0xf]
    %v8842 = vld [vmem:[#allocation2 + $0x98] sm:$0xf]
    %v8843 = vld [vmem:[#allocation2 + $0x9c] sm:$0xf]
    %v8844 = vld [vmem:[#allocation2 + $0xa0] sm:$0xf]
    %v8845 = vld [vmem:[#allocation2 + $0xa4] sm:$0xf]
    %v8846 = vld [vmem:[#allocation2 + $0xa8] sm:$0xf]
    %v8847 = vld [vmem:[#allocation2 + $0xac] sm:$0xf]
    %v8848 = vld [vmem:[#allocation2 + $0xb0] sm:$0xf]
    %v8849 = vld [vmem:[#allocation2 + $0xb4] sm:$0xf]
    %v8850 = vld [vmem:[#allocation2 + $0xb8] sm:$0xf]
    %v8851 = vld [vmem:[#allocation2 + $0xbc] sm:$0xf]
    %v8852 = vld [vmem:[#allocation2 + $0xc0] sm:$0xf]
    %v8853 = vld [vmem:[#allocation2 + $0xc4] sm:$0xf]
    %v8854 = vld [vmem:[%s3 + $0x18] sm:$0xf]
    %v8855 = vld [vmem:[%s3 + $0x1c] sm:$0xf]
    %v8872 = vunpack.c.l.b16 %v8838
    %v8873 = vunpack.c.l.b16 %v8839
    %v8874 = vunpack.c.l.b16 %v8840
    %v8875 = vunpack.c.l.b16 %v8841
    %v8876 = vunpack.c.l.b16 %v8842
    %v8877 = vunpack.c.l.b16 %v8843
    %v8878 = vunpack.c.l.b16 %v8844
    %v8879 = vunpack.c.l.b16 %v8845
    %v8880 = vunpack.c.l.b16 %v8846
    %v8881 = vunpack.c.l.b16 %v8847
    %v8882 = vunpack.c.l.b16 %v8848
    %v8883 = vunpack.c.l.b16 %v8849
    %v8884 = vunpack.c.l.b16 %v8850
    %v8885 = vunpack.c.l.b16 %v8851
    %v8886 = vunpack.c.l.b16 %v8852
    %v8887 = vunpack.c.l.b16 %v8853
    %v8888 = vpack.c.b16 %v8873, %v8872
    %v8889 = vpack.c.b16 %v8875, %v8874
    %v8890 = vpack.c.b16 %v8877, %v8876
    %v8891 = vpack.c.b16 %v8879, %v8878
    %v8892 = vpack.c.b16 %v8881, %v8880
    %v8893 = vpack.c.b16 %v8883, %v8882
    %v8894 = vpack.c.b16 %v8885, %v8884
    %v8895 = vpack.c.b16 %v8887, %v8886
    %v8898 = vunpack.c.l.b16 %v8854
    %v8899 = vunpack.c.l.b16 %v8855
    %v8900 = vpack.c.b16 %v8899, %v8898
    %v8903 = vsel %vm5691, %v8888, 0
    %v8906 = vsel %vm5691, %v8889, 0
    %v8909 = vsel %vm5691, %v8890, 0
    %v8912 = vsel %vm5691, %v8891, 0
    %v8915 = vsel %vm5691, %v8892, 0
    %v8918 = vsel %vm5691, %v8893, 0
    %v8921 = vsel %vm5691, %v8894, 0
    %v8924 = vsel %vm5691, %v8895, 0
    %8926 = vmatpush.bf16.msra.mxu0 0
    %8927 = vmatpush.bf16.msra.mxu0 0
    %8928 = vmatpush.bf16.msra.mxu0 0
    %8929 = vmatpush.bf16.msra.mxu0 0
    %8930 = vmatpush.bf16.msra.mxu0 0
    %8931 = vmatpush.bf16.msra.mxu0 0
    %8932 = vmatpush.bf16.msra.mxu0 0
    %8933 = vmatpush.bf16.msra.mxu0 %v8900
    %8934 = vmatmul.bf16.gmra.mxu0 %v8903
    %v8935 = vpop.f32.mrf.mxu0
    %v8936 = vadd.f32 0.0, %v8935
    %v8937 = vpop.f32.mrf.mxu0
    %v8938 = vadd.f32 0.0, %v8937
    %8939 = vmatmul.bf16.gmra.mxu0 %v8906
    %v8940 = vpop.f32.mrf.mxu0
    %v8941 = vadd.f32 0.0, %v8940
    %v8942 = vpop.f32.mrf.mxu0
    %v8943 = vadd.f32 0.0, %v8942
    %8944 = vmatmul.bf16.gmra.mxu0 %v8909
    %v8945 = vpop.f32.mrf.mxu0
    %v8946 = vadd.f32 0.0, %v8945
    %v8947 = vpop.f32.mrf.mxu0
    %v8948 = vadd.f32 0.0, %v8947
    %8949 = vmatmul.bf16.gmra.mxu0 %v8912
    %v8950 = vpop.f32.mrf.mxu0
    %v8951 = vadd.f32 0.0, %v8950
    %v8952 = vpop.f32.mrf.mxu0
    %v8953 = vadd.f32 0.0, %v8952
    %8954 = vmatmul.bf16.gmra.mxu0 %v8915
    %v8955 = vpop.f32.mrf.mxu0
    %v8956 = vadd.f32 0.0, %v8955
    %v8957 = vpop.f32.mrf.mxu0
    %v8958 = vadd.f32 0.0, %v8957
    %8959 = vmatmul.bf16.gmra.mxu0 %v8918
    %v8960 = vpop.f32.mrf.mxu0
    %v8961 = vadd.f32 0.0, %v8960
    %v8962 = vpop.f32.mrf.mxu0
    %v8963 = vadd.f32 0.0, %v8962
    %8964 = vmatmul.bf16.gmra.mxu0 %v8921
    %v8965 = vpop.f32.mrf.mxu0
    %v8966 = vadd.f32 0.0, %v8965
    %v8967 = vpop.f32.mrf.mxu0
    %v8968 = vadd.f32 0.0, %v8967
    %8969 = vmatmul.bf16.gmra.mxu0 %v8924
    %v8970 = vpop.f32.mrf.mxu0
    %v8971 = vadd.f32 0.0, %v8970
    %v8972 = vpop.f32.mrf.mxu0
    %v8973 = vadd.f32 0.0, %v8972
    %8974 = vdwg.mxu0
    %v8975 = vadd.f32 %v8822, %v8936
    %v8976 = vadd.f32 %v8823, %v8938
    %v8977 = vadd.f32 %v8824, %v8941
    %v8978 = vadd.f32 %v8825, %v8943
    %v8979 = vadd.f32 %v8826, %v8946
    %v8980 = vadd.f32 %v8827, %v8948
    %v8981 = vadd.f32 %v8828, %v8951
    %v8982 = vadd.f32 %v8829, %v8953
    %v8983 = vadd.f32 %v8830, %v8956
    %v8984 = vadd.f32 %v8831, %v8958
    %v8985 = vadd.f32 %v8832, %v8961
    %v8986 = vadd.f32 %v8833, %v8963
    %v8987 = vadd.f32 %v8834, %v8966
    %v8988 = vadd.f32 %v8835, %v8968
    %v8989 = vadd.f32 %v8836, %v8971
    %v8990 = vadd.f32 %v8837, %v8973
    %v8991 = vld [vmem:[#allocation2 + $0x88] sm:$0xf]
    %v8992 = vld [vmem:[#allocation2 + $0x8c] sm:$0xf]
    %v8993 = vld [vmem:[#allocation2 + $0x90] sm:$0xf]
    %v8994 = vld [vmem:[#allocation2 + $0x94] sm:$0xf]
    %v8995 = vld [vmem:[#allocation2 + $0x98] sm:$0xf]
    %v8996 = vld [vmem:[#allocation2 + $0x9c] sm:$0xf]
    %v8997 = vld [vmem:[#allocation2 + $0xa0] sm:$0xf]
    %v8998 = vld [vmem:[#allocation2 + $0xa4] sm:$0xf]
    %v8999 = vld [vmem:[#allocation2 + $0xa8] sm:$0xf]
    %v9000 = vld [vmem:[#allocation2 + $0xac] sm:$0xf]
    %v9001 = vld [vmem:[#allocation2 + $0xb0] sm:$0xf]
    %v9002 = vld [vmem:[#allocation2 + $0xb4] sm:$0xf]
    %v9003 = vld [vmem:[#allocation2 + $0xb8] sm:$0xf]
    %v9004 = vld [vmem:[#allocation2 + $0xbc] sm:$0xf]
    %v9005 = vld [vmem:[#allocation2 + $0xc0] sm:$0xf]
    %v9006 = vld [vmem:[#allocation2 + $0xc4] sm:$0xf]
    %v9007 = vld [vmem:[#allocation2 + $0xc8] sm:$0x1]
    %v9008 = vld [vmem:[%s3 + $0x20] sm:$0xf]
    %v9009 = vld [vmem:[%s3 + $0x24] sm:$0xf]
    %v9027 = vunpack.c.l.b16 %v8991
    %v9028 = vunpack.c.l.b16 %v8992
    %v9029 = vunpack.c.l.b16 %v8993
    %v9030 = vunpack.c.l.b16 %v8994
    %v9031 = vunpack.c.l.b16 %v8995
    %v9032 = vunpack.c.l.b16 %v8996
    %v9033 = vunpack.c.l.b16 %v8997
    %v9034 = vunpack.c.l.b16 %v8998
    %v9035 = vunpack.c.l.b16 %v8999
    %v9036 = vunpack.c.l.b16 %v9000
    %v9037 = vunpack.c.l.b16 %v9001
    %v9038 = vunpack.c.l.b16 %v9002
    %v9039 = vunpack.c.l.b16 %v9003
    %v9040 = vunpack.c.l.b16 %v9004
    %v9041 = vunpack.c.l.b16 %v9005
    %v9042 = vunpack.c.l.b16 %v9006
    %v9043 = vunpack.c.l.b16 %v9007
    %v9044 = vpack.c.b16 %v9028, %v9027
    %v9045 = vpack.c.b16 %v9030, %v9029
    %v9046 = vpack.c.b16 %v9032, %v9031
    %v9047 = vpack.c.b16 %v9034, %v9033
    %v9048 = vpack.c.b16 %v9036, %v9035
    %v9049 = vpack.c.b16 %v9038, %v9037
    %v9050 = vpack.c.b16 %v9040, %v9039
    %v9051 = vpack.c.b16 %v9042, %v9041
    %v9052 = vpack.c.b16 %v9043, %v9043
    %v9054 = vshrl.u32 %v9044, 16
    %v9056 = vshll.u32 %v9044, 16
    %v9058 = vrot.slane %v9056, 1
    %v9059 = vor.u32 %v9054, %v9058
    %v9061 = vshll.u32 %v9045, 16
    %v9063 = vrot.slane %v9061, 1
    %v9064 = vsel %vm109, %v9059, %v9063
    %v9065 = vshrl.u32 %v9045, 16
    %v9067 = vor.u32 %v9065, %v9063
    %v9069 = vshll.u32 %v9046, 16
    %v9071 = vrot.slane %v9069, 1
    %v9072 = vsel %vm109, %v9067, %v9071
    %v9073 = vshrl.u32 %v9046, 16
    %v9075 = vor.u32 %v9073, %v9071
    %v9077 = vshll.u32 %v9047, 16
    %v9079 = vrot.slane %v9077, 1
    %v9080 = vsel %vm109, %v9075, %v9079
    %v9081 = vshrl.u32 %v9047, 16
    %v9083 = vor.u32 %v9081, %v9079
    %v9085 = vshll.u32 %v9048, 16
    %v9087 = vrot.slane %v9085, 1
    %v9088 = vsel %vm109, %v9083, %v9087
    %v9089 = vshrl.u32 %v9048, 16
    %v9091 = vor.u32 %v9089, %v9087
    %v9093 = vshll.u32 %v9049, 16
    %v9095 = vrot.slane %v9093, 1
    %v9096 = vsel %vm109, %v9091, %v9095
    %v9097 = vshrl.u32 %v9049, 16
    %v9099 = vor.u32 %v9097, %v9095
    %v9101 = vshll.u32 %v9050, 16
    %v9103 = vrot.slane %v9101, 1
    %v9104 = vsel %vm109, %v9099, %v9103
    %v9105 = vshrl.u32 %v9050, 16
    %v9107 = vor.u32 %v9105, %v9103
    %v9109 = vshll.u32 %v9051, 16
    %v9111 = vrot.slane %v9109, 1
    %v9112 = vsel %vm109, %v9107, %v9111
    %v9113 = vshrl.u32 %v9051, 16
    %v9115 = vor.u32 %v9113, %v9111
    %v9117 = vshll.u32 %v9052, 16
    %v9119 = vrot.slane %v9117, 1
    %v9120 = vsel %vm109, %v9115, %v9119
    %v9123 = vunpack.c.l.b16 %v9008
    %v9124 = vunpack.c.l.b16 %v9009
    %v9125 = vpack.c.b16 %v9124, %v9123
    %v9128 = vsel %vm5691, %v9064, 0
    %v9131 = vsel %vm5691, %v9072, 0
    %v9134 = vsel %vm5691, %v9080, 0
    %v9137 = vsel %vm5691, %v9088, 0
    %v9140 = vsel %vm5691, %v9096, 0
    %v9143 = vsel %vm5691, %v9104, 0
    %v9146 = vsel %vm5691, %v9112, 0
    %v9149 = vsel %vm5691, %v9120, 0
    %9151 = vmatpush.bf16.msra.mxu0 0
    %9152 = vmatpush.bf16.msra.mxu0 0
    %9153 = vmatpush.bf16.msra.mxu0 0
    %9154 = vmatpush.bf16.msra.mxu0 0
    %9155 = vmatpush.bf16.msra.mxu0 0
    %9156 = vmatpush.bf16.msra.mxu0 0
    %9157 = vmatpush.bf16.msra.mxu0 0
    %9158 = vmatpush.bf16.msra.mxu0 %v9125
    %9159 = vmatmul.bf16.gmra.mxu0 %v9128
    %v9160 = vpop.f32.mrf.mxu0
    %v9161 = vadd.f32 0.0, %v9160
    %v9162 = vpop.f32.mrf.mxu0
    %v9163 = vadd.f32 0.0, %v9162
    %9164 = vmatmul.bf16.gmra.mxu0 %v9131
    %v9165 = vpop.f32.mrf.mxu0
    %v9166 = vadd.f32 0.0, %v9165
    %v9167 = vpop.f32.mrf.mxu0
    %v9168 = vadd.f32 0.0, %v9167
    %9169 = vmatmul.bf16.gmra.mxu0 %v9134
    %v9170 = vpop.f32.mrf.mxu0
    %v9171 = vadd.f32 0.0, %v9170
    %v9172 = vpop.f32.mrf.mxu0
    %v9173 = vadd.f32 0.0, %v9172
    %9174 = vmatmul.bf16.gmra.mxu0 %v9137
    %v9175 = vpop.f32.mrf.mxu0
    %v9176 = vadd.f32 0.0, %v9175
    %v9177 = vpop.f32.mrf.mxu0
    %v9178 = vadd.f32 0.0, %v9177
    %9179 = vmatmul.bf16.gmra.mxu0 %v9140
    %v9180 = vpop.f32.mrf.mxu0
    %v9181 = vadd.f32 0.0, %v9180
    %v9182 = vpop.f32.mrf.mxu0
    %v9183 = vadd.f32 0.0, %v9182
    %9184 = vmatmul.bf16.gmra.mxu0 %v9143
    %v9185 = vpop.f32.mrf.mxu0
    %v9186 = vadd.f32 0.0, %v9185
    %v9187 = vpop.f32.mrf.mxu0
    %v9188 = vadd.f32 0.0, %v9187
    %9189 = vmatmul.bf16.gmra.mxu0 %v9146
    %v9190 = vpop.f32.mrf.mxu0
    %v9191 = vadd.f32 0.0, %v9190
    %v9192 = vpop.f32.mrf.mxu0
    %v9193 = vadd.f32 0.0, %v9192
    %9194 = vmatmul.bf16.gmra.mxu0 %v9149
    %v9195 = vpop.f32.mrf.mxu0
    %v9196 = vadd.f32 0.0, %v9195
    %v9197 = vpop.f32.mrf.mxu0
    %v9198 = vadd.f32 0.0, %v9197
    %9199 = vdwg.mxu0
    %v9200 = vadd.f32 %v8975, %v9161
    %v9201 = vadd.f32 %v8976, %v9163
    %v9202 = vadd.f32 %v8977, %v9166
    %v9203 = vadd.f32 %v8978, %v9168
    %v9204 = vadd.f32 %v8979, %v9171
    %v9205 = vadd.f32 %v8980, %v9173
    %v9206 = vadd.f32 %v8981, %v9176
    %v9207 = vadd.f32 %v8982, %v9178
    %v9208 = vadd.f32 %v8983, %v9181
    %v9209 = vadd.f32 %v8984, %v9183
    %v9210 = vadd.f32 %v8985, %v9186
    %v9211 = vadd.f32 %v8986, %v9188
    %v9212 = vadd.f32 %v8987, %v9191
    %v9213 = vadd.f32 %v8988, %v9193
    %v9214 = vadd.f32 %v8989, %v9196
    %v9215 = vadd.f32 %v8990, %v9198
    %v9216 = vld [vmem:[#allocation2 + $0x88] sm:$0xe]
    %v9217 = vld [vmem:[%s3 + $0x28] sm:$0xf]
    %v9218 = vld [vmem:[%s3 + $0x2c] sm:$0xf]
    %v9220 = vunpack.c.l.b16 %v9216
    %v9221 = vpack.c.b16 %v9028, %v9220
    %v9222 = vrot.slane %v9221, 1
    %v9223 = vrot.slane %v9045, 1
    %v9224 = vsel %vm344, %v9222, %v9223
    %v9225 = vrot.slane %v9046, 1
    %v9226 = vsel %vm344, %v9223, %v9225
    %v9227 = vrot.slane %v9047, 1
    %v9228 = vsel %vm344, %v9225, %v9227
    %v9229 = vrot.slane %v9048, 1
    %v9230 = vsel %vm344, %v9227, %v9229
    %v9231 = vrot.slane %v9049, 1
    %v9232 = vsel %vm344, %v9229, %v9231
    %v9233 = vrot.slane %v9050, 1
    %v9234 = vsel %vm344, %v9231, %v9233
    %v9235 = vrot.slane %v9051, 1
    %v9236 = vsel %vm344, %v9233, %v9235
    %v9237 = vrot.slane %v9052, 1
    %v9238 = vsel %vm344, %v9235, %v9237
    %v9241 = vunpack.c.l.b16 %v9217
    %v9242 = vunpack.c.l.b16 %v9218
    %v9243 = vpack.c.b16 %v9242, %v9241
    %v9246 = vsel %vm5691, %v9224, 0
    %v9249 = vsel %vm5691, %v9226, 0
    %v9252 = vsel %vm5691, %v9228, 0
    %v9255 = vsel %vm5691, %v9230, 0
    %v9258 = vsel %vm5691, %v9232, 0
    %v9261 = vsel %vm5691, %v9234, 0
    %v9264 = vsel %vm5691, %v9236, 0
    %v9267 = vsel %vm5691, %v9238, 0
    %9269 = vmatpush.bf16.msra.mxu0 0
    %9270 = vmatpush.bf16.msra.mxu0 0
    %9271 = vmatpush.bf16.msra.mxu0 0
    %9272 = vmatpush.bf16.msra.mxu0 0
    %9273 = vmatpush.bf16.msra.mxu0 0
    %9274 = vmatpush.bf16.msra.mxu0 0
    %9275 = vmatpush.bf16.msra.mxu0 0
    %9276 = vmatpush.bf16.msra.mxu0 %v9243
    %9277 = vmatmul.bf16.gmra.mxu0 %v9246
    %v9278 = vpop.f32.mrf.mxu0
    %v9279 = vadd.f32 0.0, %v9278
    %v9280 = vpop.f32.mrf.mxu0
    %v9281 = vadd.f32 0.0, %v9280
    %9282 = vmatmul.bf16.gmra.mxu0 %v9249
    %v9283 = vpop.f32.mrf.mxu0
    %v9284 = vadd.f32 0.0, %v9283
    %v9285 = vpop.f32.mrf.mxu0
    %v9286 = vadd.f32 0.0, %v9285
    %9287 = vmatmul.bf16.gmra.mxu0 %v9252
    %v9288 = vpop.f32.mrf.mxu0
    %v9289 = vadd.f32 0.0, %v9288
    %v9290 = vpop.f32.mrf.mxu0
    %v9291 = vadd.f32 0.0, %v9290
    %9292 = vmatmul.bf16.gmra.mxu0 %v9255
    %v9293 = vpop.f32.mrf.mxu0
    %v9294 = vadd.f32 0.0, %v9293
    %v9295 = vpop.f32.mrf.mxu0
    %v9296 = vadd.f32 0.0, %v9295
    %9297 = vmatmul.bf16.gmra.mxu0 %v9258
    %v9298 = vpop.f32.mrf.mxu0
    %v9299 = vadd.f32 0.0, %v9298
    %v9300 = vpop.f32.mrf.mxu0
    %v9301 = vadd.f32 0.0, %v9300
    %9302 = vmatmul.bf16.gmra.mxu0 %v9261
    %v9303 = vpop.f32.mrf.mxu0
    %v9304 = vadd.f32 0.0, %v9303
    %v9305 = vpop.f32.mrf.mxu0
    %v9306 = vadd.f32 0.0, %v9305
    %9307 = vmatmul.bf16.gmra.mxu0 %v9264
    %v9308 = vpop.f32.mrf.mxu0
    %v9309 = vadd.f32 0.0, %v9308
    %v9310 = vpop.f32.mrf.mxu0
    %v9311 = vadd.f32 0.0, %v9310
    %9312 = vmatmul.bf16.gmra.mxu0 %v9267
    %v9313 = vpop.f32.mrf.mxu0
    %v9314 = vadd.f32 0.0, %v9313
    %v9315 = vpop.f32.mrf.mxu0
    %v9316 = vadd.f32 0.0, %v9315
    %9317 = vdwg.mxu0
    %v9318 = vadd.f32 %v9200, %v9279
    %v9319 = vadd.f32 %v9201, %v9281
    %v9320 = vadd.f32 %v9202, %v9284
    %v9321 = vadd.f32 %v9203, %v9286
    %v9322 = vadd.f32 %v9204, %v9289
    %v9323 = vadd.f32 %v9205, %v9291
    %v9324 = vadd.f32 %v9206, %v9294
    %v9325 = vadd.f32 %v9207, %v9296
    %v9326 = vadd.f32 %v9208, %v9299
    %v9327 = vadd.f32 %v9209, %v9301
    %v9328 = vadd.f32 %v9210, %v9304
    %v9329 = vadd.f32 %v9211, %v9306
    %v9330 = vadd.f32 %v9212, %v9309
    %v9331 = vadd.f32 %v9213, %v9311
    %v9332 = vadd.f32 %v9214, %v9314
    %v9333 = vadd.f32 %v9215, %v9316
    %v9334 = vld [vmem:[#allocation2 + $0x90] sm:$0xf]
    %v9335 = vld [vmem:[#allocation2 + $0x94] sm:$0xf]
    %v9336 = vld [vmem:[#allocation2 + $0x98] sm:$0xf]
    %v9337 = vld [vmem:[#allocation2 + $0x9c] sm:$0xf]
    %v9338 = vld [vmem:[#allocation2 + $0xa0] sm:$0xf]
    %v9339 = vld [vmem:[#allocation2 + $0xa4] sm:$0xf]
    %v9340 = vld [vmem:[#allocation2 + $0xa8] sm:$0xf]
    %v9341 = vld [vmem:[#allocation2 + $0xac] sm:$0xf]
    %v9342 = vld [vmem:[#allocation2 + $0xb0] sm:$0xf]
    %v9343 = vld [vmem:[#allocation2 + $0xb4] sm:$0xf]
    %v9344 = vld [vmem:[#allocation2 + $0xb8] sm:$0xf]
    %v9345 = vld [vmem:[#allocation2 + $0xbc] sm:$0xf]
    %v9346 = vld [vmem:[#allocation2 + $0xc0] sm:$0xf]
    %v9347 = vld [vmem:[#allocation2 + $0xc4] sm:$0xf]
    %v9348 = vld [vmem:[#allocation2 + $0xc8] sm:$0xf]
    %v9349 = vld [vmem:[#allocation2 + $0xcc] sm:$0xf]
    %v9350 = vld [vmem:[%s3 + $0x30] sm:$0xf]
    %v9351 = vld [vmem:[%s3 + $0x34] sm:$0xf]
    %v9368 = vunpack.c.l.b16 %v9334
    %v9369 = vunpack.c.l.b16 %v9335
    %v9370 = vunpack.c.l.b16 %v9336
    %v9371 = vunpack.c.l.b16 %v9337
    %v9372 = vunpack.c.l.b16 %v9338
    %v9373 = vunpack.c.l.b16 %v9339
    %v9374 = vunpack.c.l.b16 %v9340
    %v9375 = vunpack.c.l.b16 %v9341
    %v9376 = vunpack.c.l.b16 %v9342
    %v9377 = vunpack.c.l.b16 %v9343
    %v9378 = vunpack.c.l.b16 %v9344
    %v9379 = vunpack.c.l.b16 %v9345
    %v9380 = vunpack.c.l.b16 %v9346
    %v9381 = vunpack.c.l.b16 %v9347
    %v9382 = vunpack.c.l.b16 %v9348
    %v9383 = vunpack.c.l.b16 %v9349
    %v9384 = vpack.c.b16 %v9369, %v9368
    %v9385 = vpack.c.b16 %v9371, %v9370
    %v9386 = vpack.c.b16 %v9373, %v9372
    %v9387 = vpack.c.b16 %v9375, %v9374
    %v9388 = vpack.c.b16 %v9377, %v9376
    %v9389 = vpack.c.b16 %v9379, %v9378
    %v9390 = vpack.c.b16 %v9381, %v9380
    %v9391 = vpack.c.b16 %v9383, %v9382
    %v9394 = vunpack.c.l.b16 %v9350
    %v9395 = vunpack.c.l.b16 %v9351
    %v9396 = vpack.c.b16 %v9395, %v9394
    %v9399 = vsel %vm5691, %v9384, 0
    %v9402 = vsel %vm5691, %v9385, 0
    %v9405 = vsel %vm5691, %v9386, 0
    %v9408 = vsel %vm5691, %v9387, 0
    %v9411 = vsel %vm5691, %v9388, 0
    %v9414 = vsel %vm5691, %v9389, 0
    %v9417 = vsel %vm5691, %v9390, 0
    %v9420 = vsel %vm5691, %v9391, 0
    %9422 = vmatpush.bf16.msra.mxu0 0
    %9423 = vmatpush.bf16.msra.mxu0 0
    %9424 = vmatpush.bf16.msra.mxu0 0
    %9425 = vmatpush.bf16.msra.mxu0 0
    %9426 = vmatpush.bf16.msra.mxu0 0
    %9427 = vmatpush.bf16.msra.mxu0 0
    %9428 = vmatpush.bf16.msra.mxu0 0
    %9429 = vmatpush.bf16.msra.mxu0 %v9396
    %9430 = vmatmul.bf16.gmra.mxu0 %v9399
    %v9431 = vpop.f32.mrf.mxu0
    %v9432 = vadd.f32 0.0, %v9431
    %v9433 = vpop.f32.mrf.mxu0
    %v9434 = vadd.f32 0.0, %v9433
    %9435 = vmatmul.bf16.gmra.mxu0 %v9402
    %v9436 = vpop.f32.mrf.mxu0
    %v9437 = vadd.f32 0.0, %v9436
    %v9438 = vpop.f32.mrf.mxu0
    %v9439 = vadd.f32 0.0, %v9438
    %9440 = vmatmul.bf16.gmra.mxu0 %v9405
    %v9441 = vpop.f32.mrf.mxu0
    %v9442 = vadd.f32 0.0, %v9441
    %v9443 = vpop.f32.mrf.mxu0
    %v9444 = vadd.f32 0.0, %v9443
    %9445 = vmatmul.bf16.gmra.mxu0 %v9408
    %v9446 = vpop.f32.mrf.mxu0
    %v9447 = vadd.f32 0.0, %v9446
    %v9448 = vpop.f32.mrf.mxu0
    %v9449 = vadd.f32 0.0, %v9448
    %9450 = vmatmul.bf16.gmra.mxu0 %v9411
    %v9451 = vpop.f32.mrf.mxu0
    %v9452 = vadd.f32 0.0, %v9451
    %v9453 = vpop.f32.mrf.mxu0
    %v9454 = vadd.f32 0.0, %v9453
    %9455 = vmatmul.bf16.gmra.mxu0 %v9414
    %v9456 = vpop.f32.mrf.mxu0
    %v9457 = vadd.f32 0.0, %v9456
    %v9458 = vpop.f32.mrf.mxu0
    %v9459 = vadd.f32 0.0, %v9458
    %9460 = vmatmul.bf16.gmra.mxu0 %v9417
    %v9461 = vpop.f32.mrf.mxu0
    %v9462 = vadd.f32 0.0, %v9461
    %v9463 = vpop.f32.mrf.mxu0
    %v9464 = vadd.f32 0.0, %v9463
    %9465 = vmatmul.bf16.gmra.mxu0 %v9420
    %v9466 = vpop.f32.mrf.mxu0
    %v9467 = vadd.f32 0.0, %v9466
    %v9468 = vpop.f32.mrf.mxu0
    %v9469 = vadd.f32 0.0, %v9468
    %9470 = vdwg.mxu0
    %v9471 = vadd.f32 %v9318, %v9432
    %v9472 = vadd.f32 %v9319, %v9434
    %v9473 = vadd.f32 %v9320, %v9437
    %v9474 = vadd.f32 %v9321, %v9439
    %v9475 = vadd.f32 %v9322, %v9442
    %v9476 = vadd.f32 %v9323, %v9444
    %v9477 = vadd.f32 %v9324, %v9447
    %v9478 = vadd.f32 %v9325, %v9449
    %v9479 = vadd.f32 %v9326, %v9452
    %v9480 = vadd.f32 %v9327, %v9454
    %v9481 = vadd.f32 %v9328, %v9457
    %v9482 = vadd.f32 %v9329, %v9459
    %v9483 = vadd.f32 %v9330, %v9462
    %v9484 = vadd.f32 %v9331, %v9464
    %v9485 = vadd.f32 %v9332, %v9467
    %v9486 = vadd.f32 %v9333, %v9469
    %v9487 = vld [vmem:[#allocation2 + $0x90] sm:$0xf]
    %v9488 = vld [vmem:[#allocation2 + $0x94] sm:$0xf]
    %v9489 = vld [vmem:[#allocation2 + $0x98] sm:$0xf]
    %v9490 = vld [vmem:[#allocation2 + $0x9c] sm:$0xf]
    %v9491 = vld [vmem:[#allocation2 + $0xa0] sm:$0xf]
    %v9492 = vld [vmem:[#allocation2 + $0xa4] sm:$0xf]
    %v9493 = vld [vmem:[#allocation2 + $0xa8] sm:$0xf]
    %v9494 = vld [vmem:[#allocation2 + $0xac] sm:$0xf]
    %v9495 = vld [vmem:[#allocation2 + $0xb0] sm:$0xf]
    %v9496 = vld [vmem:[#allocation2 + $0xb4] sm:$0xf]
    %v9497 = vld [vmem:[#allocation2 + $0xb8] sm:$0xf]
    %v9498 = vld [vmem:[#allocation2 + $0xbc] sm:$0xf]
    %v9499 = vld [vmem:[#allocation2 + $0xc0] sm:$0xf]
    %v9500 = vld [vmem:[#allocation2 + $0xc4] sm:$0xf]
    %v9501 = vld [vmem:[#allocation2 + $0xc8] sm:$0xf]
    %v9502 = vld [vmem:[#allocation2 + $0xcc] sm:$0xf]
    %v9503 = vld [vmem:[#allocation2 + $0xd0] sm:$0x1]
    %v9504 = vld [vmem:[%s3 + $0x38] sm:$0xf]
    %v9505 = vld [vmem:[%s3 + $0x3c] sm:$0xf]
    %v9523 = vunpack.c.l.b16 %v9487
    %v9524 = vunpack.c.l.b16 %v9488
    %v9525 = vunpack.c.l.b16 %v9489
    %v9526 = vunpack.c.l.b16 %v9490
    %v9527 = vunpack.c.l.b16 %v9491
    %v9528 = vunpack.c.l.b16 %v9492
    %v9529 = vunpack.c.l.b16 %v9493
    %v9530 = vunpack.c.l.b16 %v9494
    %v9531 = vunpack.c.l.b16 %v9495
    %v9532 = vunpack.c.l.b16 %v9496
    %v9533 = vunpack.c.l.b16 %v9497
    %v9534 = vunpack.c.l.b16 %v9498
    %v9535 = vunpack.c.l.b16 %v9499
    %v9536 = vunpack.c.l.b16 %v9500
    %v9537 = vunpack.c.l.b16 %v9501
    %v9538 = vunpack.c.l.b16 %v9502
    %v9539 = vunpack.c.l.b16 %v9503
    %v9540 = vpack.c.b16 %v9524, %v9523
    %v9541 = vpack.c.b16 %v9526, %v9525
    %v9542 = vpack.c.b16 %v9528, %v9527
    %v9543 = vpack.c.b16 %v9530, %v9529
    %v9544 = vpack.c.b16 %v9532, %v9531
    %v9545 = vpack.c.b16 %v9534, %v9533
    %v9546 = vpack.c.b16 %v9536, %v9535
    %v9547 = vpack.c.b16 %v9538, %v9537
    %v9548 = vpack.c.b16 %v9539, %v9539
    %v9550 = vshrl.u32 %v9540, 16
    %v9552 = vshll.u32 %v9540, 16
    %v9554 = vrot.slane %v9552, 1
    %v9555 = vor.u32 %v9550, %v9554
    %v9557 = vshll.u32 %v9541, 16
    %v9559 = vrot.slane %v9557, 1
    %v9560 = vsel %vm109, %v9555, %v9559
    %v9561 = vshrl.u32 %v9541, 16
    %v9563 = vor.u32 %v9561, %v9559
    %v9565 = vshll.u32 %v9542, 16
    %v9567 = vrot.slane %v9565, 1
    %v9568 = vsel %vm109, %v9563, %v9567
    %v9569 = vshrl.u32 %v9542, 16
    %v9571 = vor.u32 %v9569, %v9567
    %v9573 = vshll.u32 %v9543, 16
    %v9575 = vrot.slane %v9573, 1
    %v9576 = vsel %vm109, %v9571, %v9575
    %v9577 = vshrl.u32 %v9543, 16
    %v9579 = vor.u32 %v9577, %v9575
    %v9581 = vshll.u32 %v9544, 16
    %v9583 = vrot.slane %v9581, 1
    %v9584 = vsel %vm109, %v9579, %v9583
    %v9585 = vshrl.u32 %v9544, 16
    %v9587 = vor.u32 %v9585, %v9583
    %v9589 = vshll.u32 %v9545, 16
    %v9591 = vrot.slane %v9589, 1
    %v9592 = vsel %vm109, %v9587, %v9591
    %v9593 = vshrl.u32 %v9545, 16
    %v9595 = vor.u32 %v9593, %v9591
    %v9597 = vshll.u32 %v9546, 16
    %v9599 = vrot.slane %v9597, 1
    %v9600 = vsel %vm109, %v9595, %v9599
    %v9601 = vshrl.u32 %v9546, 16
    %v9603 = vor.u32 %v9601, %v9599
    %v9605 = vshll.u32 %v9547, 16
    %v9607 = vrot.slane %v9605, 1
    %v9608 = vsel %vm109, %v9603, %v9607
    %v9609 = vshrl.u32 %v9547, 16
    %v9611 = vor.u32 %v9609, %v9607
    %v9613 = vshll.u32 %v9548, 16
    %v9615 = vrot.slane %v9613, 1
    %v9616 = vsel %vm109, %v9611, %v9615
    %v9619 = vunpack.c.l.b16 %v9504
    %v9620 = vunpack.c.l.b16 %v9505
    %v9621 = vpack.c.b16 %v9620, %v9619
    %v9624 = vsel %vm5691, %v9560, 0
    %v9627 = vsel %vm5691, %v9568, 0
    %v9630 = vsel %vm5691, %v9576, 0
    %v9633 = vsel %vm5691, %v9584, 0
    %v9636 = vsel %vm5691, %v9592, 0
    %v9639 = vsel %vm5691, %v9600, 0
    %v9642 = vsel %vm5691, %v9608, 0
    %v9645 = vsel %vm5691, %v9616, 0
    %9647 = vmatpush.bf16.msra.mxu0 0
    %9648 = vmatpush.bf16.msra.mxu0 0
    %9649 = vmatpush.bf16.msra.mxu0 0
    %9650 = vmatpush.bf16.msra.mxu0 0
    %9651 = vmatpush.bf16.msra.mxu0 0
    %9652 = vmatpush.bf16.msra.mxu0 0
    %9653 = vmatpush.bf16.msra.mxu0 0
    %9654 = vmatpush.bf16.msra.mxu0 %v9621
    %9655 = vmatmul.bf16.gmra.mxu0 %v9624
    %v9656 = vpop.f32.mrf.mxu0
    %v9657 = vadd.f32 0.0, %v9656
    %v9658 = vpop.f32.mrf.mxu0
    %v9659 = vadd.f32 0.0, %v9658
    %9660 = vmatmul.bf16.gmra.mxu0 %v9627
    %v9661 = vpop.f32.mrf.mxu0
    %v9662 = vadd.f32 0.0, %v9661
    %v9663 = vpop.f32.mrf.mxu0
    %v9664 = vadd.f32 0.0, %v9663
    %9665 = vmatmul.bf16.gmra.mxu0 %v9630
    %v9666 = vpop.f32.mrf.mxu0
    %v9667 = vadd.f32 0.0, %v9666
    %v9668 = vpop.f32.mrf.mxu0
    %v9669 = vadd.f32 0.0, %v9668
    %9670 = vmatmul.bf16.gmra.mxu0 %v9633
    %v9671 = vpop.f32.mrf.mxu0
    %v9672 = vadd.f32 0.0, %v9671
    %v9673 = vpop.f32.mrf.mxu0
    %v9674 = vadd.f32 0.0, %v9673
    %9675 = vmatmul.bf16.gmra.mxu0 %v9636
    %v9676 = vpop.f32.mrf.mxu0
    %v9677 = vadd.f32 0.0, %v9676
    %v9678 = vpop.f32.mrf.mxu0
    %v9679 = vadd.f32 0.0, %v9678
    %9680 = vmatmul.bf16.gmra.mxu0 %v9639
    %v9681 = vpop.f32.mrf.mxu0
    %v9682 = vadd.f32 0.0, %v9681
    %v9683 = vpop.f32.mrf.mxu0
    %v9684 = vadd.f32 0.0, %v9683
    %9685 = vmatmul.bf16.gmra.mxu0 %v9642
    %v9686 = vpop.f32.mrf.mxu0
    %v9687 = vadd.f32 0.0, %v9686
    %v9688 = vpop.f32.mrf.mxu0
    %v9689 = vadd.f32 0.0, %v9688
    %9690 = vmatmul.bf16.gmra.mxu0 %v9645
    %v9691 = vpop.f32.mrf.mxu0
    %v9692 = vadd.f32 0.0, %v9691
    %v9693 = vpop.f32.mrf.mxu0
    %v9694 = vadd.f32 0.0, %v9693
    %9695 = vdwg.mxu0
    %v9696 = vadd.f32 %v9471, %v9657
    %v9697 = vadd.f32 %v9472, %v9659
    %v9698 = vadd.f32 %v9473, %v9662
    %v9699 = vadd.f32 %v9474, %v9664
    %v9700 = vadd.f32 %v9475, %v9667
    %v9701 = vadd.f32 %v9476, %v9669
    %v9702 = vadd.f32 %v9477, %v9672
    %v9703 = vadd.f32 %v9478, %v9674
    %v9704 = vadd.f32 %v9479, %v9677
    %v9705 = vadd.f32 %v9480, %v9679
    %v9706 = vadd.f32 %v9481, %v9682
    %v9707 = vadd.f32 %v9482, %v9684
    %v9708 = vadd.f32 %v9483, %v9687
    %v9709 = vadd.f32 %v9484, %v9689
    %v9710 = vadd.f32 %v9485, %v9692
    %v9711 = vadd.f32 %v9486, %v9694
    %v9712 = vld [vmem:[#allocation2 + $0x90] sm:$0xe]
    %v9713 = vld [vmem:[%s3 + $0x40] sm:$0xf]
    %v9714 = vld [vmem:[%s3 + $0x44] sm:$0xf]
    %v9716 = vunpack.c.l.b16 %v9712
    %v9717 = vpack.c.b16 %v9524, %v9716
    %v9718 = vrot.slane %v9717, 1
    %v9719 = vrot.slane %v9541, 1
    %v9720 = vsel %vm344, %v9718, %v9719
    %v9721 = vrot.slane %v9542, 1
    %v9722 = vsel %vm344, %v9719, %v9721
    %v9723 = vrot.slane %v9543, 1
    %v9724 = vsel %vm344, %v9721, %v9723
    %v9725 = vrot.slane %v9544, 1
    %v9726 = vsel %vm344, %v9723, %v9725
    %v9727 = vrot.slane %v9545, 1
    %v9728 = vsel %vm344, %v9725, %v9727
    %v9729 = vrot.slane %v9546, 1
    %v9730 = vsel %vm344, %v9727, %v9729
    %v9731 = vrot.slane %v9547, 1
    %v9732 = vsel %vm344, %v9729, %v9731
    %v9733 = vrot.slane %v9548, 1
    %v9734 = vsel %vm344, %v9731, %v9733
    %v9737 = vunpack.c.l.b16 %v9713
    %v9738 = vunpack.c.l.b16 %v9714
    %v9739 = vpack.c.b16 %v9738, %v9737
    %v9742 = vsel %vm5691, %v9720, 0
    %v9745 = vsel %vm5691, %v9722, 0
    %v9748 = vsel %vm5691, %v9724, 0
    %v9751 = vsel %vm5691, %v9726, 0
    %v9754 = vsel %vm5691, %v9728, 0
    %v9757 = vsel %vm5691, %v9730, 0
    %v9760 = vsel %vm5691, %v9732, 0
    %v9763 = vsel %vm5691, %v9734, 0
    %9765 = vmatpush.bf16.msra.mxu0 0
    %9766 = vmatpush.bf16.msra.mxu0 0
    %9767 = vmatpush.bf16.msra.mxu0 0
    %9768 = vmatpush.bf16.msra.mxu0 0
    %9769 = vmatpush.bf16.msra.mxu0 0
    %9770 = vmatpush.bf16.msra.mxu0 0
    %9771 = vmatpush.bf16.msra.mxu0 0
    %9772 = vmatpush.bf16.msra.mxu0 %v9739
    %9773 = vmatmul.bf16.gmra.mxu0 %v9742
    %v9774 = vpop.f32.mrf.mxu0
    %v9775 = vadd.f32 0.0, %v9774
    %v9776 = vpop.f32.mrf.mxu0
    %v9777 = vadd.f32 0.0, %v9776
    %9778 = vmatmul.bf16.gmra.mxu0 %v9745
    %v9779 = vpop.f32.mrf.mxu0
    %v9780 = vadd.f32 0.0, %v9779
    %v9781 = vpop.f32.mrf.mxu0
    %v9782 = vadd.f32 0.0, %v9781
    %9783 = vmatmul.bf16.gmra.mxu0 %v9748
    %v9784 = vpop.f32.mrf.mxu0
    %v9785 = vadd.f32 0.0, %v9784
    %v9786 = vpop.f32.mrf.mxu0
    %v9787 = vadd.f32 0.0, %v9786
    %9788 = vmatmul.bf16.gmra.mxu0 %v9751
    %v9789 = vpop.f32.mrf.mxu0
    %v9790 = vadd.f32 0.0, %v9789
    %v9791 = vpop.f32.mrf.mxu0
    %v9792 = vadd.f32 0.0, %v9791
    %9793 = vmatmul.bf16.gmra.mxu0 %v9754
    %v9794 = vpop.f32.mrf.mxu0
    %v9795 = vadd.f32 0.0, %v9794
    %v9796 = vpop.f32.mrf.mxu0
    %v9797 = vadd.f32 0.0, %v9796
    %9798 = vmatmul.bf16.gmra.mxu0 %v9757
    %v9799 = vpop.f32.mrf.mxu0
    %v9800 = vadd.f32 0.0, %v9799
    %v9801 = vpop.f32.mrf.mxu0
    %v9802 = vadd.f32 0.0, %v9801
    %9803 = vmatmul.bf16.gmra.mxu0 %v9760
    %v9804 = vpop.f32.mrf.mxu0
    %v9805 = vadd.f32 0.0, %v9804
    %v9806 = vpop.f32.mrf.mxu0
    %v9807 = vadd.f32 0.0, %v9806
    %9808 = vmatmul.bf16.gmra.mxu0 %v9763
    %v9809 = vpop.f32.mrf.mxu0
    %v9810 = vadd.f32 0.0, %v9809
    %v9811 = vpop.f32.mrf.mxu0
    %v9812 = vadd.f32 0.0, %v9811
    %9813 = vdwg.mxu0
    %v9814 = vadd.f32 %v9696, %v9775
    %v9815 = vadd.f32 %v9697, %v9777
    %v9816 = vadd.f32 %v9698, %v9780
    %v9817 = vadd.f32 %v9699, %v9782
    %v9818 = vadd.f32 %v9700, %v9785
    %v9819 = vadd.f32 %v9701, %v9787
    %v9820 = vadd.f32 %v9702, %v9790
    %v9821 = vadd.f32 %v9703, %v9792
    %v9822 = vadd.f32 %v9704, %v9795
    %v9823 = vadd.f32 %v9705, %v9797
    %v9824 = vadd.f32 %v9706, %v9800
    %v9825 = vadd.f32 %v9707, %v9802
    %v9826 = vadd.f32 %v9708, %v9805
    %v9827 = vadd.f32 %v9709, %v9807
    %v9828 = vadd.f32 %v9710, %v9810
    %v9829 = vadd.f32 %v9711, %v9812
    %v9830 = vadd.f32 %v9814, %v6947
    %v9831 = vadd.f32 %v9815, %v6947
    %v9832 = vadd.f32 %v9816, %v6947
    %v9833 = vadd.f32 %v9817, %v6947
    %v9834 = vadd.f32 %v9818, %v6947
    %v9835 = vadd.f32 %v9819, %v6947
    %v9836 = vadd.f32 %v9820, %v6947
    %v9837 = vadd.f32 %v9821, %v6947
    %v9838 = vadd.f32 %v9822, %v6947
    %v9839 = vadd.f32 %v9823, %v6947
    %v9840 = vadd.f32 %v9824, %v6947
    %v9841 = vadd.f32 %v9825, %v6947
    %v9842 = vadd.f32 %v9826, %v6947
    %v9843 = vadd.f32 %v9827, %v6947
    %v9844 = vadd.f32 %v9828, %v6947
    %v9845 = vadd.f32 %v9829, %v6947
    %v9846 = vmax.f32 %v9830, 0.0
    %v9847 = vmax.f32 %v9831, 0.0
    %v9848 = vmax.f32 %v9832, 0.0
    %v9849 = vmax.f32 %v9833, 0.0
    %v9850 = vmax.f32 %v9834, 0.0
    %v9851 = vmax.f32 %v9835, 0.0
    %v9852 = vmax.f32 %v9836, 0.0
    %v9853 = vmax.f32 %v9837, 0.0
    %v9854 = vmax.f32 %v9838, 0.0
    %v9855 = vmax.f32 %v9839, 0.0
    %v9856 = vmax.f32 %v9840, 0.0
    %v9857 = vmax.f32 %v9841, 0.0
    %v9858 = vmax.f32 %v9842, 0.0
    %v9859 = vmax.f32 %v9843, 0.0
    %v9860 = vmax.f32 %v9844, 0.0
    %v9861 = vmax.f32 %v9845, 0.0
    %9862 = vst.msk [vmem:[#allocation3 + $0x100] sm:$0xff] %vm6981, %v9846
    %9863 = vst.msk [vmem:[#allocation3 + $0x108] sm:$0xff] %vm6981, %v9847
    %9864 = vst.msk [vmem:[#allocation3 + $0x110] sm:$0xff] %vm6981, %v9848
    %9865 = vst.msk [vmem:[#allocation3 + $0x118] sm:$0xff] %vm6981, %v9849
    %9866 = vst.msk [vmem:[#allocation3 + $0x120] sm:$0xff] %vm6981, %v9850
    %9867 = vst.msk [vmem:[#allocation3 + $0x128] sm:$0xff] %vm6981, %v9851
    %9868 = vst.msk [vmem:[#allocation3 + $0x130] sm:$0xff] %vm6981, %v9852
    %9869 = vst.msk [vmem:[#allocation3 + $0x138] sm:$0xff] %vm6981, %v9853
    %9870 = vst.msk [vmem:[#allocation3 + $0x140] sm:$0xff] %vm6981, %v9854
    %9871 = vst.msk [vmem:[#allocation3 + $0x148] sm:$0xff] %vm6981, %v9855
    %9872 = vst.msk [vmem:[#allocation3 + $0x150] sm:$0xff] %vm6981, %v9856
    %9873 = vst.msk [vmem:[#allocation3 + $0x158] sm:$0xff] %vm6981, %v9857
    %9874 = vst.msk [vmem:[#allocation3 + $0x160] sm:$0xff] %vm6981, %v9858
    %9875 = vst.msk [vmem:[#allocation3 + $0x168] sm:$0xff] %vm6981, %v9859
    %9876 = vst.msk [vmem:[#allocation3 + $0x170] sm:$0xff] %vm6981, %v9860
    %9877 = vst.msk [vmem:[#allocation3 + $0x178] sm:$0xff] %vm6981, %v9861
    %v9878 = vld [vmem:[#allocation2 + $0xc0] sm:$0xf]
    %v9879 = vld [vmem:[#allocation2 + $0xc4] sm:$0xf]
    %v9880 = vld [vmem:[#allocation2 + $0xc8] sm:$0xf]
    %v9881 = vld [vmem:[#allocation2 + $0xcc] sm:$0xf]
    %v9882 = vld [vmem:[#allocation2 + $0xd0] sm:$0xf]
    %v9883 = vld [vmem:[#allocation2 + $0xd4] sm:$0xf]
    %v9884 = vld [vmem:[#allocation2 + $0xd8] sm:$0xf]
    %v9885 = vld [vmem:[#allocation2 + $0xdc] sm:$0x3]
    %v9886 = vld [vmem:[%s3] sm:$0xf]
    %v9887 = vld [vmem:[%s3 + $0x4] sm:$0xf]
    %v9888 = vld [vmem:[#allocation2 + $0xdc] sm:$0x7]
    %v9889 = vld [vmem:[%s3 + $0x8] sm:$0xf]
    %v9890 = vld [vmem:[%s3 + $0xc] sm:$0xf]
    %v9899 = vunpack.c.l.b16 %v9878
    %v9900 = vunpack.c.l.b16 %v9879
    %v9901 = vunpack.c.l.b16 %v9880
    %v9902 = vunpack.c.l.b16 %v9881
    %v9903 = vunpack.c.l.b16 %v9882
    %v9904 = vunpack.c.l.b16 %v9883
    %v9905 = vunpack.c.l.b16 %v9884
    %v9906 = vunpack.c.l.b16 %v9888
    %v9907 = vpack.c.b16 %v9900, %v9899
    %v9908 = vpack.c.b16 %v9902, %v9901
    %v9909 = vpack.c.b16 %v9904, %v9903
    %v9910 = vpack.c.b16 %v9906, %v9905
    %v9912 = vshrl.u32 %v9907, 16
    %v9914 = vshll.u32 %v9907, 16
    %v9916 = vrot.slane %v9914, 1
    %v9917 = vor.u32 %v9912, %v9916
    %v9919 = vshll.u32 %v9908, 16
    %v9921 = vrot.slane %v9919, 1
    %v9922 = vsel %vm109, %v9917, %v9921
    %v9923 = vshrl.u32 %v9908, 16
    %v9925 = vor.u32 %v9923, %v9921
    %v9927 = vshll.u32 %v9909, 16
    %v9929 = vrot.slane %v9927, 1
    %v9930 = vsel %vm109, %v9925, %v9929
    %v9931 = vshrl.u32 %v9909, 16
    %v9933 = vor.u32 %v9931, %v9929
    %v9935 = vshll.u32 %v9910, 16
    %v9937 = vrot.slane %v9935, 1
    %v9938 = vsel %vm109, %v9933, %v9937
    %v9939 = vshrl.u32 %v9910, 16
    %v9941 = vor.u32 %v9939, %v9937
    %v9944 = vunpack.c.l.b16 %v9889
    %v9945 = vunpack.c.l.b16 %v9890
    %v9946 = vpack.c.b16 %v9945, %v9944
    %v9949 = vsel %vm5691, %v9922, 0
    %v9952 = vsel %vm5691, %v9930, 0
    %v9955 = vsel %vm5691, %v9938, 0
    %v9958 = vsel %vm5691, %v9941, 0
    %9960 = vmatpush.bf16.msra.mxu0 0
    %9961 = vmatpush.bf16.msra.mxu0 0
    %9962 = vmatpush.bf16.msra.mxu0 0
    %9963 = vmatpush.bf16.msra.mxu0 0
    %9964 = vmatpush.bf16.msra.mxu0 0
    %9965 = vmatpush.bf16.msra.mxu0 0
    %9966 = vmatpush.bf16.msra.mxu0 0
    %9967 = vmatpush.bf16.msra.mxu0 %v9946
    %9968 = vmatmul.bf16.gmra.mxu0 %v9949
    %v9969 = vpop.f32.mrf.mxu0
    %v9970 = vadd.f32 0.0, %v9969
    %v9971 = vpop.f32.mrf.mxu0
    %v9972 = vadd.f32 0.0, %v9971
    %9973 = vmatmul.bf16.gmra.mxu0 %v9952
    %v9974 = vpop.f32.mrf.mxu0
    %v9975 = vadd.f32 0.0, %v9974
    %v9976 = vpop.f32.mrf.mxu0
    %v9977 = vadd.f32 0.0, %v9976
    %9978 = vmatmul.bf16.gmra.mxu0 %v9955
    %v9979 = vpop.f32.mrf.mxu0
    %v9980 = vadd.f32 0.0, %v9979
    %v9981 = vpop.f32.mrf.mxu0
    %v9982 = vadd.f32 0.0, %v9981
    %9983 = vmatmul.bf16.gmra.mxu0 %v9958
    %v9984 = vpop.f32.mrf.mxu0
    %v9985 = vadd.f32 0.0, %v9984
    %v9986 = vpop.f32.mrf.mxu0
    %v9987 = vadd.f32 0.0, %v9986
    %9988 = vdwg.mxu0
    %v9990 = vunpack.c.l.b16 %v9885
    %v9991 = vpack.c.b16 %v9990, %v9905
    %v9994 = vunpack.c.l.b16 %v9886
    %v9995 = vunpack.c.l.b16 %v9887
    %v9996 = vpack.c.b16 %v9995, %v9994
    %v9998 = vsel %vm5691, %v9907, 0
    %v10000 = vsel %vm5691, %v9908, 0
    %v10002 = vsel %vm5691, %v9909, 0
    %v10005 = vsel %vm5691, %v9991, 0
    %10007 = vmatpush.bf16.msra.mxu0 0
    %10008 = vmatpush.bf16.msra.mxu0 0
    %10009 = vmatpush.bf16.msra.mxu0 0
    %10010 = vmatpush.bf16.msra.mxu0 0
    %10011 = vmatpush.bf16.msra.mxu0 0
    %10012 = vmatpush.bf16.msra.mxu0 0
    %10013 = vmatpush.bf16.msra.mxu0 0
    %10014 = vmatpush.bf16.msra.mxu0 %v9996
    %10015 = vmatmul.bf16.gmra.mxu0 %v9998
    %v10016 = vpop.f32.mrf.mxu0
    %v10017 = vadd.f32 %v9970, %v10016
    %v10018 = vpop.f32.mrf.mxu0
    %v10019 = vadd.f32 %v9972, %v10018
    %10020 = vmatmul.bf16.gmra.mxu0 %v10000
    %v10021 = vpop.f32.mrf.mxu0
    %v10022 = vadd.f32 %v9975, %v10021
    %v10023 = vpop.f32.mrf.mxu0
    %v10024 = vadd.f32 %v9977, %v10023
    %10025 = vmatmul.bf16.gmra.mxu0 %v10002
    %v10026 = vpop.f32.mrf.mxu0
    %v10027 = vadd.f32 %v9980, %v10026
    %v10028 = vpop.f32.mrf.mxu0
    %v10029 = vadd.f32 %v9982, %v10028
    %10030 = vmatmul.bf16.gmra.mxu0 %v10005
    %v10031 = vpop.f32.mrf.mxu0
    %v10032 = vadd.f32 %v9985, %v10031
    %v10033 = vpop.f32.mrf.mxu0
    %v10034 = vadd.f32 %v9987, %v10033
    %10035 = vdwg.mxu0
    %v10036 = vld [vmem:[#allocation2 + $0xc0] sm:$0xe]
    %v10037 = vld [vmem:[%s3 + $0x10] sm:$0xf]
    %v10038 = vld [vmem:[%s3 + $0x14] sm:$0xf]
    %v10040 = vunpack.c.l.b16 %v10036
    %v10041 = vpack.c.b16 %v9900, %v10040
    %v10042 = vrot.slane %v10041, 1
    %v10043 = vrot.slane %v9908, 1
    %v10044 = vsel %vm344, %v10042, %v10043
    %v10045 = vrot.slane %v9909, 1
    %v10046 = vsel %vm344, %v10043, %v10045
    %v10047 = vrot.slane %v9910, 1
    %v10048 = vsel %vm344, %v10045, %v10047
    %v10051 = vunpack.c.l.b16 %v10037
    %v10052 = vunpack.c.l.b16 %v10038
    %v10053 = vpack.c.b16 %v10052, %v10051
    %v10056 = vsel %vm5691, %v10044, 0
    %v10059 = vsel %vm5691, %v10046, 0
    %v10062 = vsel %vm5691, %v10048, 0
    %v10065 = vsel %vm5691, %v10047, 0
    %10067 = vmatpush.bf16.msra.mxu0 0
    %10068 = vmatpush.bf16.msra.mxu0 0
    %10069 = vmatpush.bf16.msra.mxu0 0
    %10070 = vmatpush.bf16.msra.mxu0 0
    %10071 = vmatpush.bf16.msra.mxu0 0
    %10072 = vmatpush.bf16.msra.mxu0 0
    %10073 = vmatpush.bf16.msra.mxu0 0
    %10074 = vmatpush.bf16.msra.mxu0 %v10053
    %10075 = vmatmul.bf16.gmra.mxu0 %v10056
    %v10076 = vpop.f32.mrf.mxu0
    %v10077 = vadd.f32 0.0, %v10076
    %v10078 = vpop.f32.mrf.mxu0
    %v10079 = vadd.f32 0.0, %v10078
    %10080 = vmatmul.bf16.gmra.mxu0 %v10059
    %v10081 = vpop.f32.mrf.mxu0
    %v10082 = vadd.f32 0.0, %v10081
    %v10083 = vpop.f32.mrf.mxu0
    %v10084 = vadd.f32 0.0, %v10083
    %10085 = vmatmul.bf16.gmra.mxu0 %v10062
    %v10086 = vpop.f32.mrf.mxu0
    %v10087 = vadd.f32 0.0, %v10086
    %v10088 = vpop.f32.mrf.mxu0
    %v10089 = vadd.f32 0.0, %v10088
    %10090 = vmatmul.bf16.gmra.mxu0 %v10065
    %v10091 = vpop.f32.mrf.mxu0
    %v10092 = vadd.f32 0.0, %v10091
    %v10093 = vpop.f32.mrf.mxu0
    %v10094 = vadd.f32 0.0, %v10093
    %10095 = vdwg.mxu0
    %v10096 = vadd.f32 %v10017, %v10077
    %v10097 = vadd.f32 %v10019, %v10079
    %v10098 = vadd.f32 %v10022, %v10082
    %v10099 = vadd.f32 %v10024, %v10084
    %v10100 = vadd.f32 %v10027, %v10087
    %v10101 = vadd.f32 %v10029, %v10089
    %v10102 = vadd.f32 %v10032, %v10092
    %v10103 = vadd.f32 %v10034, %v10094
    %v10104 = vld [vmem:[#allocation2 + $0xc8] sm:$0xf]
    %v10105 = vld [vmem:[#allocation2 + $0xcc] sm:$0xf]
    %v10106 = vld [vmem:[#allocation2 + $0xd0] sm:$0xf]
    %v10107 = vld [vmem:[#allocation2 + $0xd4] sm:$0xf]
    %v10108 = vld [vmem:[#allocation2 + $0xd8] sm:$0xf]
    %v10109 = vld [vmem:[#allocation2 + $0xdc] sm:$0xf]
    %v10110 = vld [vmem:[#allocation2 + $0xe0] sm:$0xf]
    %v10111 = vld [vmem:[#allocation2 + $0xe4] sm:$0x3]
    %v10112 = vld [vmem:[%s3 + $0x18] sm:$0xf]
    %v10113 = vld [vmem:[%s3 + $0x1c] sm:$0xf]
    %v10122 = vunpack.c.l.b16 %v10104
    %v10123 = vunpack.c.l.b16 %v10105
    %v10124 = vunpack.c.l.b16 %v10106
    %v10125 = vunpack.c.l.b16 %v10107
    %v10126 = vunpack.c.l.b16 %v10108
    %v10127 = vunpack.c.l.b16 %v10109
    %v10128 = vunpack.c.l.b16 %v10110
    %v10129 = vunpack.c.l.b16 %v10111
    %v10130 = vpack.c.b16 %v10123, %v10122
    %v10131 = vpack.c.b16 %v10125, %v10124
    %v10132 = vpack.c.b16 %v10127, %v10126
    %v10133 = vpack.c.b16 %v10129, %v10128
    %v10136 = vunpack.c.l.b16 %v10112
    %v10137 = vunpack.c.l.b16 %v10113
    %v10138 = vpack.c.b16 %v10137, %v10136
    %v10141 = vsel %vm5691, %v10130, 0
    %v10144 = vsel %vm5691, %v10131, 0
    %v10147 = vsel %vm5691, %v10132, 0
    %v10150 = vsel %vm5691, %v10133, 0
    %10152 = vmatpush.bf16.msra.mxu0 0
    %10153 = vmatpush.bf16.msra.mxu0 0
    %10154 = vmatpush.bf16.msra.mxu0 0
    %10155 = vmatpush.bf16.msra.mxu0 0
    %10156 = vmatpush.bf16.msra.mxu0 0
    %10157 = vmatpush.bf16.msra.mxu0 0
    %10158 = vmatpush.bf16.msra.mxu0 0
    %10159 = vmatpush.bf16.msra.mxu0 %v10138
    %10160 = vmatmul.bf16.gmra.mxu0 %v10141
    %v10161 = vpop.f32.mrf.mxu0
    %v10162 = vadd.f32 0.0, %v10161
    %v10163 = vpop.f32.mrf.mxu0
    %v10164 = vadd.f32 0.0, %v10163
    %10165 = vmatmul.bf16.gmra.mxu0 %v10144
    %v10166 = vpop.f32.mrf.mxu0
    %v10167 = vadd.f32 0.0, %v10166
    %v10168 = vpop.f32.mrf.mxu0
    %v10169 = vadd.f32 0.0, %v10168
    %10170 = vmatmul.bf16.gmra.mxu0 %v10147
    %v10171 = vpop.f32.mrf.mxu0
    %v10172 = vadd.f32 0.0, %v10171
    %v10173 = vpop.f32.mrf.mxu0
    %v10174 = vadd.f32 0.0, %v10173
    %10175 = vmatmul.bf16.gmra.mxu0 %v10150
    %v10176 = vpop.f32.mrf.mxu0
    %v10177 = vadd.f32 0.0, %v10176
    %v10178 = vpop.f32.mrf.mxu0
    %v10179 = vadd.f32 0.0, %v10178
    %10180 = vdwg.mxu0
    %v10181 = vadd.f32 %v10096, %v10162
    %v10182 = vadd.f32 %v10097, %v10164
    %v10183 = vadd.f32 %v10098, %v10167
    %v10184 = vadd.f32 %v10099, %v10169
    %v10185 = vadd.f32 %v10100, %v10172
    %v10186 = vadd.f32 %v10101, %v10174
    %v10187 = vadd.f32 %v10102, %v10177
    %v10188 = vadd.f32 %v10103, %v10179
    %v10189 = vld [vmem:[#allocation2 + $0xe4] sm:$0x7]
    %v10190 = vld [vmem:[%s3 + $0x20] sm:$0xf]
    %v10191 = vld [vmem:[%s3 + $0x24] sm:$0xf]
    %v10193 = vunpack.c.l.b16 %v10189
    %v10194 = vpack.c.b16 %v10193, %v10128
    %v10195 = vshrl.u32 %v10130, 16
    %v10197 = vshll.u32 %v10130, 16
    %v10199 = vrot.slane %v10197, 1
    %v10200 = vor.u32 %v10195, %v10199
    %v10201 = vshll.u32 %v10131, 16
    %v10203 = vrot.slane %v10201, 1
    %v10204 = vsel %vm109, %v10200, %v10203
    %v10205 = vshrl.u32 %v10131, 16
    %v10207 = vor.u32 %v10205, %v10203
    %v10208 = vshll.u32 %v10132, 16
    %v10210 = vrot.slane %v10208, 1
    %v10211 = vsel %vm109, %v10207, %v10210
    %v10212 = vshrl.u32 %v10132, 16
    %v10214 = vor.u32 %v10212, %v10210
    %v10216 = vshll.u32 %v10194, 16
    %v10218 = vrot.slane %v10216, 1
    %v10219 = vsel %vm109, %v10214, %v10218
    %v10220 = vshrl.u32 %v10194, 16
    %v10222 = vor.u32 %v10220, %v10218
    %v10225 = vunpack.c.l.b16 %v10190
    %v10226 = vunpack.c.l.b16 %v10191
    %v10227 = vpack.c.b16 %v10226, %v10225
    %v10230 = vsel %vm5691, %v10204, 0
    %v10233 = vsel %vm5691, %v10211, 0
    %v10236 = vsel %vm5691, %v10219, 0
    %v10239 = vsel %vm5691, %v10222, 0
    %10241 = vmatpush.bf16.msra.mxu0 0
    %10242 = vmatpush.bf16.msra.mxu0 0
    %10243 = vmatpush.bf16.msra.mxu0 0
    %10244 = vmatpush.bf16.msra.mxu0 0
    %10245 = vmatpush.bf16.msra.mxu0 0
    %10246 = vmatpush.bf16.msra.mxu0 0
    %10247 = vmatpush.bf16.msra.mxu0 0
    %10248 = vmatpush.bf16.msra.mxu0 %v10227
    %10249 = vmatmul.bf16.gmra.mxu0 %v10230
    %v10250 = vpop.f32.mrf.mxu0
    %v10251 = vadd.f32 0.0, %v10250
    %v10252 = vpop.f32.mrf.mxu0
    %v10253 = vadd.f32 0.0, %v10252
    %10254 = vmatmul.bf16.gmra.mxu0 %v10233
    %v10255 = vpop.f32.mrf.mxu0
    %v10256 = vadd.f32 0.0, %v10255
    %v10257 = vpop.f32.mrf.mxu0
    %v10258 = vadd.f32 0.0, %v10257
    %10259 = vmatmul.bf16.gmra.mxu0 %v10236
    %v10260 = vpop.f32.mrf.mxu0
    %v10261 = vadd.f32 0.0, %v10260
    %v10262 = vpop.f32.mrf.mxu0
    %v10263 = vadd.f32 0.0, %v10262
    %10264 = vmatmul.bf16.gmra.mxu0 %v10239
    %v10265 = vpop.f32.mrf.mxu0
    %v10266 = vadd.f32 0.0, %v10265
    %v10267 = vpop.f32.mrf.mxu0
    %v10268 = vadd.f32 0.0, %v10267
    %10269 = vdwg.mxu0
    %v10270 = vadd.f32 %v10181, %v10251
    %v10271 = vadd.f32 %v10182, %v10253
    %v10272 = vadd.f32 %v10183, %v10256
    %v10273 = vadd.f32 %v10184, %v10258
    %v10274 = vadd.f32 %v10185, %v10261
    %v10275 = vadd.f32 %v10186, %v10263
    %v10276 = vadd.f32 %v10187, %v10266
    %v10277 = vadd.f32 %v10188, %v10268
    %v10278 = vld [vmem:[#allocation2 + $0xc8] sm:$0xe]
    %v10279 = vld [vmem:[%s3 + $0x28] sm:$0xf]
    %v10280 = vld [vmem:[%s3 + $0x2c] sm:$0xf]
    %v10282 = vunpack.c.l.b16 %v10278
    %v10283 = vpack.c.b16 %v10123, %v10282
    %v10284 = vrot.slane %v10283, 1
    %v10285 = vrot.slane %v10131, 1
    %v10286 = vsel %vm344, %v10284, %v10285
    %v10287 = vrot.slane %v10132, 1
    %v10288 = vsel %vm344, %v10285, %v10287
    %v10289 = vrot.slane %v10194, 1
    %v10290 = vsel %vm344, %v10287, %v10289
    %v10293 = vunpack.c.l.b16 %v10279
    %v10294 = vunpack.c.l.b16 %v10280
    %v10295 = vpack.c.b16 %v10294, %v10293
    %v10298 = vsel %vm5691, %v10286, 0
    %v10301 = vsel %vm5691, %v10288, 0
    %v10304 = vsel %vm5691, %v10290, 0
    %v10307 = vsel %vm5691, %v10289, 0
    %10309 = vmatpush.bf16.msra.mxu0 0
    %10310 = vmatpush.bf16.msra.mxu0 0
    %10311 = vmatpush.bf16.msra.mxu0 0
    %10312 = vmatpush.bf16.msra.mxu0 0
    %10313 = vmatpush.bf16.msra.mxu0 0
    %10314 = vmatpush.bf16.msra.mxu0 0
    %10315 = vmatpush.bf16.msra.mxu0 0
    %10316 = vmatpush.bf16.msra.mxu0 %v10295
    %10317 = vmatmul.bf16.gmra.mxu0 %v10298
    %v10318 = vpop.f32.mrf.mxu0
    %v10319 = vadd.f32 0.0, %v10318
    %v10320 = vpop.f32.mrf.mxu0
    %v10321 = vadd.f32 0.0, %v10320
    %10322 = vmatmul.bf16.gmra.mxu0 %v10301
    %v10323 = vpop.f32.mrf.mxu0
    %v10324 = vadd.f32 0.0, %v10323
    %v10325 = vpop.f32.mrf.mxu0
    %v10326 = vadd.f32 0.0, %v10325
    %10327 = vmatmul.bf16.gmra.mxu0 %v10304
    %v10328 = vpop.f32.mrf.mxu0
    %v10329 = vadd.f32 0.0, %v10328
    %v10330 = vpop.f32.mrf.mxu0
    %v10331 = vadd.f32 0.0, %v10330
    %10332 = vmatmul.bf16.gmra.mxu0 %v10307
    %v10333 = vpop.f32.mrf.mxu0
    %v10334 = vadd.f32 0.0, %v10333
    %v10335 = vpop.f32.mrf.mxu0
    %v10336 = vadd.f32 0.0, %v10335
    %10337 = vdwg.mxu0
    %v10338 = vadd.f32 %v10270, %v10319
    %v10339 = vadd.f32 %v10271, %v10321
    %v10340 = vadd.f32 %v10272, %v10324
    %v10341 = vadd.f32 %v10273, %v10326
    %v10342 = vadd.f32 %v10274, %v10329
    %v10343 = vadd.f32 %v10275, %v10331
    %v10344 = vadd.f32 %v10276, %v10334
    %v10345 = vadd.f32 %v10277, %v10336
    %v10346 = vld [vmem:[#allocation2 + $0xd0] sm:$0xf]
    %v10347 = vld [vmem:[#allocation2 + $0xd4] sm:$0xf]
    %v10348 = vld [vmem:[#allocation2 + $0xd8] sm:$0xf]
    %v10349 = vld [vmem:[#allocation2 + $0xdc] sm:$0xf]
    %v10350 = vld [vmem:[#allocation2 + $0xe0] sm:$0xf]
    %v10351 = vld [vmem:[#allocation2 + $0xe4] sm:$0xf]
    %v10352 = vld [vmem:[#allocation2 + $0xe8] sm:$0xf]
    %v10353 = vld [vmem:[#allocation2 + $0xec] sm:$0x3]
    %v10354 = vld [vmem:[%s3 + $0x30] sm:$0xf]
    %v10355 = vld [vmem:[%s3 + $0x34] sm:$0xf]
    %v10364 = vunpack.c.l.b16 %v10346
    %v10365 = vunpack.c.l.b16 %v10347
    %v10366 = vunpack.c.l.b16 %v10348
    %v10367 = vunpack.c.l.b16 %v10349
    %v10368 = vunpack.c.l.b16 %v10350
    %v10369 = vunpack.c.l.b16 %v10351
    %v10370 = vunpack.c.l.b16 %v10352
    %v10371 = vunpack.c.l.b16 %v10353
    %v10372 = vpack.c.b16 %v10365, %v10364
    %v10373 = vpack.c.b16 %v10367, %v10366
    %v10374 = vpack.c.b16 %v10369, %v10368
    %v10375 = vpack.c.b16 %v10371, %v10370
    %v10378 = vunpack.c.l.b16 %v10354
    %v10379 = vunpack.c.l.b16 %v10355
    %v10380 = vpack.c.b16 %v10379, %v10378
    %v10383 = vsel %vm5691, %v10372, 0
    %v10386 = vsel %vm5691, %v10373, 0
    %v10389 = vsel %vm5691, %v10374, 0
    %v10392 = vsel %vm5691, %v10375, 0
    %10394 = vmatpush.bf16.msra.mxu0 0
    %10395 = vmatpush.bf16.msra.mxu0 0
    %10396 = vmatpush.bf16.msra.mxu0 0
    %10397 = vmatpush.bf16.msra.mxu0 0
    %10398 = vmatpush.bf16.msra.mxu0 0
    %10399 = vmatpush.bf16.msra.mxu0 0
    %10400 = vmatpush.bf16.msra.mxu0 0
    %10401 = vmatpush.bf16.msra.mxu0 %v10380
    %10402 = vmatmul.bf16.gmra.mxu0 %v10383
    %v10403 = vpop.f32.mrf.mxu0
    %v10404 = vadd.f32 0.0, %v10403
    %v10405 = vpop.f32.mrf.mxu0
    %v10406 = vadd.f32 0.0, %v10405
    %10407 = vmatmul.bf16.gmra.mxu0 %v10386
    %v10408 = vpop.f32.mrf.mxu0
    %v10409 = vadd.f32 0.0, %v10408
    %v10410 = vpop.f32.mrf.mxu0
    %v10411 = vadd.f32 0.0, %v10410
    %10412 = vmatmul.bf16.gmra.mxu0 %v10389
    %v10413 = vpop.f32.mrf.mxu0
    %v10414 = vadd.f32 0.0, %v10413
    %v10415 = vpop.f32.mrf.mxu0
    %v10416 = vadd.f32 0.0, %v10415
    %10417 = vmatmul.bf16.gmra.mxu0 %v10392
    %v10418 = vpop.f32.mrf.mxu0
    %v10419 = vadd.f32 0.0, %v10418
    %v10420 = vpop.f32.mrf.mxu0
    %v10421 = vadd.f32 0.0, %v10420
    %10422 = vdwg.mxu0
    %v10423 = vadd.f32 %v10338, %v10404
    %v10424 = vadd.f32 %v10339, %v10406
    %v10425 = vadd.f32 %v10340, %v10409
    %v10426 = vadd.f32 %v10341, %v10411
    %v10427 = vadd.f32 %v10342, %v10414
    %v10428 = vadd.f32 %v10343, %v10416
    %v10429 = vadd.f32 %v10344, %v10419
    %v10430 = vadd.f32 %v10345, %v10421
    %v10431 = vld [vmem:[#allocation2 + $0xec] sm:$0x7]
    %v10432 = vld [vmem:[%s3 + $0x38] sm:$0xf]
    %v10433 = vld [vmem:[%s3 + $0x3c] sm:$0xf]
    %v10435 = vunpack.c.l.b16 %v10431
    %v10436 = vpack.c.b16 %v10435, %v10370
    %v10437 = vshrl.u32 %v10372, 16
    %v10439 = vshll.u32 %v10372, 16
    %v10441 = vrot.slane %v10439, 1
    %v10442 = vor.u32 %v10437, %v10441
    %v10443 = vshll.u32 %v10373, 16
    %v10445 = vrot.slane %v10443, 1
    %v10446 = vsel %vm109, %v10442, %v10445
    %v10447 = vshrl.u32 %v10373, 16
    %v10449 = vor.u32 %v10447, %v10445
    %v10450 = vshll.u32 %v10374, 16
    %v10452 = vrot.slane %v10450, 1
    %v10453 = vsel %vm109, %v10449, %v10452
    %v10454 = vshrl.u32 %v10374, 16
    %v10456 = vor.u32 %v10454, %v10452
    %v10458 = vshll.u32 %v10436, 16
    %v10460 = vrot.slane %v10458, 1
    %v10461 = vsel %vm109, %v10456, %v10460
    %v10462 = vshrl.u32 %v10436, 16
    %v10464 = vor.u32 %v10462, %v10460
    %v10467 = vunpack.c.l.b16 %v10432
    %v10468 = vunpack.c.l.b16 %v10433
    %v10469 = vpack.c.b16 %v10468, %v10467
    %v10472 = vsel %vm5691, %v10446, 0
    %v10475 = vsel %vm5691, %v10453, 0
    %v10478 = vsel %vm5691, %v10461, 0
    %v10481 = vsel %vm5691, %v10464, 0
    %10483 = vmatpush.bf16.msra.mxu0 0
    %10484 = vmatpush.bf16.msra.mxu0 0
    %10485 = vmatpush.bf16.msra.mxu0 0
    %10486 = vmatpush.bf16.msra.mxu0 0
    %10487 = vmatpush.bf16.msra.mxu0 0
    %10488 = vmatpush.bf16.msra.mxu0 0
    %10489 = vmatpush.bf16.msra.mxu0 0
    %10490 = vmatpush.bf16.msra.mxu0 %v10469
    %10491 = vmatmul.bf16.gmra.mxu0 %v10472
    %v10492 = vpop.f32.mrf.mxu0
    %v10493 = vadd.f32 0.0, %v10492
    %v10494 = vpop.f32.mrf.mxu0
    %v10495 = vadd.f32 0.0, %v10494
    %10496 = vmatmul.bf16.gmra.mxu0 %v10475
    %v10497 = vpop.f32.mrf.mxu0
    %v10498 = vadd.f32 0.0, %v10497
    %v10499 = vpop.f32.mrf.mxu0
    %v10500 = vadd.f32 0.0, %v10499
    %10501 = vmatmul.bf16.gmra.mxu0 %v10478
    %v10502 = vpop.f32.mrf.mxu0
    %v10503 = vadd.f32 0.0, %v10502
    %v10504 = vpop.f32.mrf.mxu0
    %v10505 = vadd.f32 0.0, %v10504
    %10506 = vmatmul.bf16.gmra.mxu0 %v10481
    %v10507 = vpop.f32.mrf.mxu0
    %v10508 = vadd.f32 0.0, %v10507
    %v10509 = vpop.f32.mrf.mxu0
    %v10510 = vadd.f32 0.0, %v10509
    %10511 = vdwg.mxu0
    %v10512 = vadd.f32 %v10423, %v10493
    %v10513 = vadd.f32 %v10424, %v10495
    %v10514 = vadd.f32 %v10425, %v10498
    %v10515 = vadd.f32 %v10426, %v10500
    %v10516 = vadd.f32 %v10427, %v10503
    %v10517 = vadd.f32 %v10428, %v10505
    %v10518 = vadd.f32 %v10429, %v10508
    %v10519 = vadd.f32 %v10430, %v10510
    %v10520 = vld [vmem:[#allocation2 + $0xd0] sm:$0xe]
    %v10521 = vld [vmem:[%s3 + $0x40] sm:$0xf]
    %v10522 = vld [vmem:[%s3 + $0x44] sm:$0xf]
    %v10524 = vunpack.c.l.b16 %v10520
    %v10525 = vpack.c.b16 %v10365, %v10524
    %v10526 = vrot.slane %v10525, 1
    %v10527 = vrot.slane %v10373, 1
    %v10528 = vsel %vm344, %v10526, %v10527
    %v10529 = vrot.slane %v10374, 1
    %v10530 = vsel %vm344, %v10527, %v10529
    %v10531 = vrot.slane %v10436, 1
    %v10532 = vsel %vm344, %v10529, %v10531
    %v10535 = vunpack.c.l.b16 %v10521
    %v10536 = vunpack.c.l.b16 %v10522
    %v10537 = vpack.c.b16 %v10536, %v10535
    %v10540 = vsel %vm5691, %v10528, 0
    %v10543 = vsel %vm5691, %v10530, 0
    %v10546 = vsel %vm5691, %v10532, 0
    %v10549 = vsel %vm5691, %v10531, 0
    %10551 = vmatpush.bf16.msra.mxu0 0
    %10552 = vmatpush.bf16.msra.mxu0 0
    %10553 = vmatpush.bf16.msra.mxu0 0
    %10554 = vmatpush.bf16.msra.mxu0 0
    %10555 = vmatpush.bf16.msra.mxu0 0
    %10556 = vmatpush.bf16.msra.mxu0 0
    %10557 = vmatpush.bf16.msra.mxu0 0
    %10558 = vmatpush.bf16.msra.mxu0 %v10537
    %10559 = vmatmul.bf16.gmra.mxu0 %v10540
    %v10560 = vpop.f32.mrf.mxu0
    %v10561 = vadd.f32 0.0, %v10560
    %v10562 = vpop.f32.mrf.mxu0
    %v10563 = vadd.f32 0.0, %v10562
    %10564 = vmatmul.bf16.gmra.mxu0 %v10543
    %v10565 = vpop.f32.mrf.mxu0
    %v10566 = vadd.f32 0.0, %v10565
    %v10567 = vpop.f32.mrf.mxu0
    %v10568 = vadd.f32 0.0, %v10567
    %10569 = vmatmul.bf16.gmra.mxu0 %v10546
    %v10570 = vpop.f32.mrf.mxu0
    %v10571 = vadd.f32 0.0, %v10570
    %v10572 = vpop.f32.mrf.mxu0
    %v10573 = vadd.f32 0.0, %v10572
    %10574 = vmatmul.bf16.gmra.mxu0 %v10549
    %v10575 = vpop.f32.mrf.mxu0
    %v10576 = vadd.f32 0.0, %v10575
    %v10577 = vpop.f32.mrf.mxu0
    %v10578 = vadd.f32 0.0, %v10577
    %10579 = vdwg.mxu0
    %v10580 = vadd.f32 %v10512, %v10561
    %v10581 = vadd.f32 %v10513, %v10563
    %v10582 = vadd.f32 %v10514, %v10566
    %v10583 = vadd.f32 %v10515, %v10568
    %v10584 = vadd.f32 %v10516, %v10571
    %v10585 = vadd.f32 %v10517, %v10573
    %v10586 = vadd.f32 %v10518, %v10576
    %v10587 = vadd.f32 %v10519, %v10578
    %v10588 = vadd.f32 %v10580, %v6947
    %v10589 = vadd.f32 %v10581, %v6947
    %v10590 = vadd.f32 %v10582, %v6947
    %v10591 = vadd.f32 %v10583, %v6947
    %v10592 = vadd.f32 %v10584, %v6947
    %v10593 = vadd.f32 %v10585, %v6947
    %v10594 = vadd.f32 %v10586, %v6947
    %v10595 = vadd.f32 %v10587, %v6947
    %v10596 = vmax.f32 %v10588, 0.0
    %v10597 = vmax.f32 %v10589, 0.0
    %v10598 = vmax.f32 %v10590, 0.0
    %v10599 = vmax.f32 %v10591, 0.0
    %v10600 = vmax.f32 %v10592, 0.0
    %v10601 = vmax.f32 %v10593, 0.0
    %v10602 = vmax.f32 %v10594, 0.0
    %v10603 = vmax.f32 %v10595, 0.0
    %10604 = vst.msk [vmem:[#allocation3 + $0x180] sm:$0xff] %vm6981, %v10596
    %10605 = vst.msk [vmem:[#allocation3 + $0x188] sm:$0xff] %vm6981, %v10597
    %10606 = vst.msk [vmem:[#allocation3 + $0x190] sm:$0xff] %vm6981, %v10598
    %10607 = vst.msk [vmem:[#allocation3 + $0x198] sm:$0xff] %vm6981, %v10599
    %10608 = vst.msk [vmem:[#allocation3 + $0x1a0] sm:$0xff] %vm6981, %v10600
    %10609 = vst.msk [vmem:[#allocation3 + $0x1a8] sm:$0xff] %vm6981, %v10601
    %10610 = vst.msk [vmem:[#allocation3 + $0x1b0] sm:$0xff] %vm6981, %v10602
    %vm10611 = vcmask 257024
    %10612 = vst.msk [vmem:[#allocation3 + $0x1b8] sm:$0xf] %vm10611, %v10603
    %v10613 = vld [vmem:[#allocation3] ss:$2 sm:$0x3f]
    %s10614 = scalar_lea.vmem [#allocation3], 1
    %v10615 = vld [vmem:[%s10614] ss:$2 sm:$0x3f]
    %s10616 = scalar_lea.vmem [#allocation3], 16
    %v10617 = vld [vmem:[%s10616] ss:$2 sm:$0x3f]
    %s10618 = scalar_lea.vmem [#allocation3], 17
    %v10619 = vld [vmem:[%s10618] ss:$2 sm:$0x3f]
    %v10620 = vmax.f32 %v10613, %v10615
    %v10621 = vmax.f32 %v10617, %v10619
    %v10622 = vmax.f32 %v10620, %v10621
    %v10623 = vpack.c.bf16 %v10622, %v10622
    %vm10624 = vcmask 256000
    %10625 = vst.msk [vmem:[#allocation4] sm:$0x7] %vm10624, %v10623
    %s10626 = scalar_lea.vmem [#allocation3], 32
    %v10627 = vld [vmem:[%s10626] ss:$2 sm:$0x3f]
    %s10628 = scalar_lea.vmem [#allocation3], 33
    %v10629 = vld [vmem:[%s10628] ss:$2 sm:$0x3f]
    %s10630 = scalar_lea.vmem [#allocation3], 48
    %v10631 = vld [vmem:[%s10630] ss:$2 sm:$0x3f]
    %s10632 = scalar_lea.vmem [#allocation3], 49
    %v10633 = vld [vmem:[%s10632] ss:$2 sm:$0x3f]
    %v10634 = vmax.f32 %v10627, %v10629
    %v10635 = vmax.f32 %v10631, %v10633
    %v10636 = vmax.f32 %v10634, %v10635
    %v10637 = vpack.c.bf16 %v10636, %v10636
    %10639 = vrot.lane.b32.xlu0 %v10637, 32
    %v10640 = vpop.permute.xlu0 %10639
    %vm10642 = vcmask 518400
    %10643 = vst.msk [vmem:[#allocation4] sm:$0x7] %vm10642, %v10640
    %s10644 = scalar_lea.vmem [#allocation3], 64
    %v10645 = vld [vmem:[%s10644] ss:$2 sm:$0x3f]
    %s10646 = scalar_lea.vmem [#allocation3], 65
    %v10647 = vld [vmem:[%s10646] ss:$2 sm:$0x3f]
    %s10648 = scalar_lea.vmem [#allocation3], 80
    %v10649 = vld [vmem:[%s10648] ss:$2 sm:$0x3f]
    %s10650 = scalar_lea.vmem [#allocation3], 81
    %v10651 = vld [vmem:[%s10650] ss:$2 sm:$0x3f]
    %v10652 = vmax.f32 %v10645, %v10647
    %v10653 = vmax.f32 %v10649, %v10651
    %v10654 = vmax.f32 %v10652, %v10653
    %v10655 = vpack.c.bf16 %v10654, %v10654
    %10657 = vrot.lane.b32.xlu0 %v10655, 64
    %v10658 = vpop.permute.xlu0 %10657
    %vm10660 = vcmask 780800
    %10661 = vst.msk [vmem:[#allocation4] sm:$0x7] %vm10660, %v10658
    %s10662 = scalar_lea.vmem [#allocation3], 96
    %v10663 = vld [vmem:[%s10662] ss:$2 sm:$0x3f]
    %s10664 = scalar_lea.vmem [#allocation3], 97
    %v10665 = vld [vmem:[%s10664] ss:$2 sm:$0x3f]
    %s10666 = scalar_lea.vmem [#allocation3], 112
    %v10667 = vld [vmem:[%s10666] ss:$2 sm:$0x3f]
    %s10668 = scalar_lea.vmem [#allocation3], 113
    %v10669 = vld [vmem:[%s10668] ss:$2 sm:$0x3f]
    %v10670 = vmax.f32 %v10663, %v10665
    %v10671 = vmax.f32 %v10667, %v10669
    %v10672 = vmax.f32 %v10670, %v10671
    %v10673 = vpack.c.bf16 %v10672, %v10672
    %10675 = vrot.lane.b32.xlu0 %v10673, 96
    %v10676 = vpop.permute.xlu0 %10675
    %vm10678 = vcmask 1043200
    %10679 = vst.msk [vmem:[#allocation4] sm:$0x7] %vm10678, %v10676
    %s10680 = scalar_lea.vmem [#allocation3], 128
    %v10681 = vld [vmem:[%s10680] ss:$2 sm:$0x3f]
    %s10682 = scalar_lea.vmem [#allocation3], 129
    %v10683 = vld [vmem:[%s10682] ss:$2 sm:$0x3f]
    %s10684 = scalar_lea.vmem [#allocation3], 144
    %v10685 = vld [vmem:[%s10684] ss:$2 sm:$0x3f]
    %s10686 = scalar_lea.vmem [#allocation3], 145
    %v10687 = vld [vmem:[%s10686] ss:$2 sm:$0x3f]
    %v10688 = vmax.f32 %v10681, %v10683
    %v10689 = vmax.f32 %v10685, %v10687
    %v10690 = vmax.f32 %v10688, %v10689
    %v10691 = vpack.c.bf16 %v10690, %v10690
    %10692 = vst.msk [vmem:[#allocation4 + $0x4] sm:$0x7] %vm10624, %v10691
    %s10693 = scalar_lea.vmem [#allocation3], 160
    %v10694 = vld [vmem:[%s10693] ss:$2 sm:$0x3f]
    %s10695 = scalar_lea.vmem [#allocation3], 161
    %v10696 = vld [vmem:[%s10695] ss:$2 sm:$0x3f]
    %s10697 = scalar_lea.vmem [#allocation3], 176
    %v10698 = vld [vmem:[%s10697] ss:$2 sm:$0x3f]
    %s10699 = scalar_lea.vmem [#allocation3], 177
    %v10700 = vld [vmem:[%s10699] ss:$2 sm:$0x3f]
    %v10701 = vmax.f32 %v10694, %v10696
    %v10702 = vmax.f32 %v10698, %v10700
    %v10703 = vmax.f32 %v10701, %v10702
    %v10704 = vpack.c.bf16 %v10703, %v10703
    %10706 = vrot.lane.b32.xlu0 %v10704, 32
    %v10707 = vpop.permute.xlu0 %10706
    %10709 = vst.msk [vmem:[#allocation4 + $0x4] sm:$0x7] %vm10642, %v10707
    %s10710 = scalar_lea.vmem [#allocation3], 256
    %v10711 = vld [vmem:[%s10710] ss:$2 sm:$0x3f]
    %s10712 = scalar_lea.vmem [#allocation3], 257
    %v10713 = vld [vmem:[%s10712] ss:$2 sm:$0x3f]
    %s10714 = scalar_lea.vmem [#allocation3], 272
    %v10715 = vld [vmem:[%s10714] ss:$2 sm:$0x3f]
    %s10716 = scalar_lea.vmem [#allocation3], 273
    %v10717 = vld [vmem:[%s10716] ss:$2 sm:$0x3f]
    %v10718 = vmax.f32 %v10711, %v10713
    %v10719 = vmax.f32 %v10715, %v10717
    %v10720 = vmax.f32 %v10718, %v10719
    %v10721 = vpack.c.bf16 %v10720, %v10720
    %10723 = vrot.lane.b32.xlu0 %v10721, 64
    %v10724 = vpop.permute.xlu0 %10723
    %10726 = vst.msk [vmem:[#allocation4 + $0x4] sm:$0x7] %vm10660, %v10724
    %s10727 = scalar_lea.vmem [#allocation3], 288
    %v10728 = vld [vmem:[%s10727] ss:$2 sm:$0x3f]
    %s10729 = scalar_lea.vmem [#allocation3], 289
    %v10730 = vld [vmem:[%s10729] ss:$2 sm:$0x3f]
    %s10731 = scalar_lea.vmem [#allocation3], 304
    %v10732 = vld [vmem:[%s10731] ss:$2 sm:$0x3f]
    %s10733 = scalar_lea.vmem [#allocation3], 305
    %v10734 = vld [vmem:[%s10733] ss:$2 sm:$0x3f]
    %v10735 = vmax.f32 %v10728, %v10730
    %v10736 = vmax.f32 %v10732, %v10734
    %v10737 = vmax.f32 %v10735, %v10736
    %v10738 = vpack.c.bf16 %v10737, %v10737
    %10740 = vrot.lane.b32.xlu0 %v10738, 96
    %v10741 = vpop.permute.xlu0 %10740
    %10743 = vst.msk [vmem:[#allocation4 + $0x4] sm:$0x7] %vm10678, %v10741
    %s10744 = scalar_lea.vmem [#allocation3], 320
    %v10745 = vld [vmem:[%s10744] ss:$2 sm:$0x3f]
    %s10746 = scalar_lea.vmem [#allocation3], 321
    %v10747 = vld [vmem:[%s10746] ss:$2 sm:$0x3f]
    %s10748 = scalar_lea.vmem [#allocation3], 336
    %v10749 = vld [vmem:[%s10748] ss:$2 sm:$0x3f]
    %s10750 = scalar_lea.vmem [#allocation3], 337
    %v10751 = vld [vmem:[%s10750] ss:$2 sm:$0x3f]
    %v10752 = vmax.f32 %v10745, %v10747
    %v10753 = vmax.f32 %v10749, %v10751
    %v10754 = vmax.f32 %v10752, %v10753
    %v10755 = vpack.c.bf16 %v10754, %v10754
    %10756 = vst.msk [vmem:[#allocation4 + $0x8] sm:$0x7] %vm10624, %v10755
    %s10757 = scalar_lea.vmem [#allocation3], 352
    %v10758 = vld [vmem:[%s10757] ss:$2 sm:$0x3f]
    %s10759 = scalar_lea.vmem [#allocation3], 353
    %v10760 = vld [vmem:[%s10759] ss:$2 sm:$0x3f]
    %s10761 = scalar_lea.vmem [#allocation3], 368
    %v10762 = vld [vmem:[%s10761] ss:$2 sm:$0x3f]
    %s10763 = scalar_lea.vmem [#allocation3], 369
    %v10764 = vld [vmem:[%s10763] ss:$2 sm:$0x3f]
    %v10765 = vmax.f32 %v10758, %v10760
    %v10766 = vmax.f32 %v10762, %v10764
    %v10767 = vmax.f32 %v10765, %v10766
    %v10768 = vpack.c.bf16 %v10767, %v10767
    %10770 = vrot.lane.b32.xlu0 %v10768, 32
    %v10771 = vpop.permute.xlu0 %10770
    %10773 = vst.msk [vmem:[#allocation4 + $0x8] sm:$0x7] %vm10642, %v10771
    %s10774 = scalar_lea.vmem [#allocation3], 384
    %v10775 = vld [vmem:[%s10774] ss:$2 sm:$0x3f]
    %s10776 = scalar_lea.vmem [#allocation3], 385
    %v10777 = vld [vmem:[%s10776] ss:$2 sm:$0x3f]
    %s10778 = scalar_lea.vmem [#allocation3], 400
    %v10779 = vld [vmem:[%s10778] ss:$2 sm:$0x3f]
    %s10780 = scalar_lea.vmem [#allocation3], 401
    %v10781 = vld [vmem:[%s10780] ss:$2 sm:$0x3f]
    %v10782 = vmax.f32 %v10775, %v10777
    %v10783 = vmax.f32 %v10779, %v10781
    %v10784 = vmax.f32 %v10782, %v10783
    %v10785 = vpack.c.bf16 %v10784, %v10784
    %10787 = vrot.lane.b32.xlu0 %v10785, 64
    %v10788 = vpop.permute.xlu0 %10787
    %10790 = vst.msk [vmem:[#allocation4 + $0x8] sm:$0x7] %vm10660, %v10788
    %s10791 = scalar_lea.vmem [#allocation3], 416
    %v10792 = vld [vmem:[%s10791] ss:$2 sm:$0x3f]
    %s10793 = scalar_lea.vmem [#allocation3], 417
    %v10794 = vld [vmem:[%s10793] ss:$2 sm:$0x3f]
    %s10795 = scalar_lea.vmem [#allocation3], 432
    %v10796 = vld [vmem:[%s10795] ss:$2 sm:$0x3f]
    %s10797 = scalar_lea.vmem [#allocation3], 433
    %v10798 = vld [vmem:[%s10797] ss:$2 sm:$0x3f]
    %v10799 = vmax.f32 %v10792, %v10794
    %v10800 = vmax.f32 %v10796, %v10798
    %v10801 = vmax.f32 %v10799, %v10800
    %v10802 = vpack.c.bf16 %v10801, %v10801
    %10804 = vrot.lane.b32.xlu0 %v10802, 96
    %v10805 = vpop.permute.xlu0 %10804
    %10807 = vst.msk [vmem:[#allocation4 + $0x8] sm:$0x7] %vm10678, %v10805
    %s10808 = smul.u32 4, 288
    %s10809 = smul.u32 %s10808, 1
    %s10810 = sshll.u32 %s10809, 4
    %10811 = dma.done [#allocation6], %s10810
    %v10812 = vld [vmem:[%s6] sm:$0x1]
    %v10813 = vld [vmem:[#allocation4] sm:$0x11]
    %v10814 = vld [vmem:[#allocation4 + $0x8] sm:$0x1]
    %v10815 = vld [vmem:[#allocation5] sm:$0xf]
    %v10816 = vld [vmem:[#allocation5 + $0x4] sm:$0xf]
    %v10817 = vld [vmem:[#allocation5 + $0x8] sm:$0xf]
    %v10818 = vld [vmem:[#allocation5 + $0xc] sm:$0xf]
    %v10819 = vld [vmem:[#allocation5 + $0x10] sm:$0xf]
    %v10820 = vld [vmem:[#allocation5 + $0x14] sm:$0xf]
    %v10821 = vld [vmem:[#allocation5 + $0x18] sm:$0xf]
    %v10822 = vld [vmem:[#allocation5 + $0x1c] sm:$0xf]
    %v10823 = vld [vmem:[#allocation5 + $0x20] sm:$0xf]
    %v10824 = vld [vmem:[#allocation5 + $0x24] sm:$0xf]
    %v10825 = vld [vmem:[#allocation5 + $0x28] sm:$0xf]
    %v10826 = vld [vmem:[#allocation5 + $0x2c] sm:$0xf]
    %v10827 = vld [vmem:[#allocation5 + $0x30] sm:$0xf]
    %v10828 = vld [vmem:[#allocation5 + $0x34] sm:$0xf]
    %v10829 = vld [vmem:[#allocation5 + $0x38] sm:$0xf]
    %v10830 = vld [vmem:[#allocation5 + $0x3c] sm:$0xf]
    %v10831 = vld [vmem:[#allocation5 + $0x40] sm:$0xf]
    %v10832 = vld [vmem:[#allocation5 + $0x44] sm:$0xf]
    %v10833 = vld [vmem:[#allocation5 + $0x48] sm:$0xf]
    %v10834 = vld [vmem:[#allocation5 + $0x4c] sm:$0xf]
    %v10835 = vld [vmem:[#allocation5 + $0x50] sm:$0xf]
    %v10836 = vld [vmem:[#allocation5 + $0x54] sm:$0xf]
    %v10837 = vld [vmem:[#allocation5 + $0x58] sm:$0xf]
    %v10838 = vld [vmem:[#allocation5 + $0x5c] sm:$0xf]
    %v10839 = vld [vmem:[#allocation5 + $0x60] sm:$0xf]
    %v10840 = vld [vmem:[#allocation5 + $0x64] sm:$0xf]
    %v10841 = vld [vmem:[#allocation5 + $0x68] sm:$0xf]
    %v10842 = vld [vmem:[#allocation5 + $0x6c] sm:$0xf]
    %v10843 = vld [vmem:[#allocation5 + $0x70] sm:$0xf]
    %v10844 = vld [vmem:[#allocation5 + $0x74] sm:$0xf]
    %v10845 = vld [vmem:[#allocation5 + $0x78] sm:$0xf]
    %v10846 = vld [vmem:[#allocation5 + $0x7c] sm:$0xf]
    %v10847 = vld [vmem:[#allocation5 + $0x80] sm:$0xf]
    %v10848 = vld [vmem:[#allocation5 + $0x84] sm:$0xf]
    %v10849 = vld [vmem:[#allocation5 + $0x88] sm:$0xf]
    %v10850 = vld [vmem:[#allocation5 + $0x8c] sm:$0xf]
    %v10851 = vld [vmem:[#allocation5 + $0x90] sm:$0xf]
    %v10852 = vld [vmem:[#allocation5 + $0x94] sm:$0xf]
    %v10853 = vld [vmem:[#allocation5 + $0x98] sm:$0xf]
    %v10854 = vld [vmem:[#allocation5 + $0x9c] sm:$0xf]
    %v10855 = vld [vmem:[#allocation5 + $0xa0] sm:$0xf]
    %v10856 = vld [vmem:[#allocation5 + $0xa4] sm:$0xf]
    %v10857 = vld [vmem:[#allocation5 + $0xa8] sm:$0xf]
    %v10858 = vld [vmem:[#allocation5 + $0xac] sm:$0xf]
    %v10859 = vld [vmem:[#allocation5 + $0xb0] sm:$0xf]
    %v10860 = vld [vmem:[#allocation5 + $0xb4] sm:$0xf]
    %v10861 = vld [vmem:[#allocation5 + $0xb8] sm:$0xf]
    %v10862 = vld [vmem:[#allocation5 + $0xbc] sm:$0xf]
    %v10865 = vunpack.c.l.b16 %v10813
    %v10866 = vunpack.c.h.b16 %v10813
    %v10867 = vunpack.c.l.b16 %v10814
    %v10868 = vpack.c.b16 %v10865, %v10865
    %v10869 = vpack.c.b16 %v10866, %v10866
    %v10870 = vpack.c.b16 %v10867, %v10867
    %v10922 = vunpack.c.l.b16 %v10815
    %v10923 = vunpack.c.l.b16 %v10816
    %v10924 = vunpack.c.l.b16 %v10817
    %v10925 = vunpack.c.l.b16 %v10818
    %v10926 = vunpack.c.l.b16 %v10819
    %v10927 = vunpack.c.l.b16 %v10820
    %v10928 = vunpack.c.l.b16 %v10821
    %v10929 = vunpack.c.l.b16 %v10822
    %v10930 = vunpack.c.l.b16 %v10823
    %v10931 = vunpack.c.l.b16 %v10824
    %v10932 = vunpack.c.l.b16 %v10825
    %v10933 = vunpack.c.l.b16 %v10826
    %v10934 = vunpack.c.l.b16 %v10827
    %v10935 = vunpack.c.l.b16 %v10828
    %v10936 = vunpack.c.l.b16 %v10829
    %v10937 = vunpack.c.l.b16 %v10830
    %v10938 = vunpack.c.l.b16 %v10831
    %v10939 = vunpack.c.l.b16 %v10832
    %v10940 = vunpack.c.l.b16 %v10833
    %v10941 = vunpack.c.l.b16 %v10834
    %v10942 = vunpack.c.l.b16 %v10835
    %v10943 = vunpack.c.l.b16 %v10836
    %v10944 = vunpack.c.l.b16 %v10837
    %v10945 = vunpack.c.l.b16 %v10838
    %v10946 = vunpack.c.l.b16 %v10839
    %v10947 = vunpack.c.l.b16 %v10840
    %v10948 = vunpack.c.l.b16 %v10841
    %v10949 = vunpack.c.l.b16 %v10842
    %v10950 = vunpack.c.l.b16 %v10843
    %v10951 = vunpack.c.l.b16 %v10844
    %v10952 = vunpack.c.l.b16 %v10845
    %v10953 = vunpack.c.l.b16 %v10846
    %v10954 = vunpack.c.l.b16 %v10847
    %v10955 = vunpack.c.l.b16 %v10848
    %v10956 = vunpack.c.l.b16 %v10849
    %v10957 = vunpack.c.l.b16 %v10850
    %v10958 = vunpack.c.l.b16 %v10851
    %v10959 = vunpack.c.l.b16 %v10852
    %v10960 = vunpack.c.l.b16 %v10853
    %v10961 = vunpack.c.l.b16 %v10854
    %v10962 = vunpack.c.l.b16 %v10855
    %v10963 = vunpack.c.l.b16 %v10856
    %v10964 = vunpack.c.l.b16 %v10857
    %v10965 = vunpack.c.l.b16 %v10858
    %v10966 = vunpack.c.l.b16 %v10859
    %v10967 = vunpack.c.l.b16 %v10860
    %v10968 = vunpack.c.l.b16 %v10861
    %v10969 = vunpack.c.l.b16 %v10862
    %v10970 = vpack.c.b16 %v10923, %v10922
    %v10971 = vpack.c.b16 %v10925, %v10924
    %v10972 = vpack.c.b16 %v10927, %v10926
    %v10973 = vpack.c.b16 %v10929, %v10928
    %v10974 = vpack.c.b16 %v10931, %v10930
    %v10975 = vpack.c.b16 %v10933, %v10932
    %v10976 = vpack.c.b16 %v10935, %v10934
    %v10977 = vpack.c.b16 %v10937, %v10936
    %v10978 = vpack.c.b16 %v10939, %v10938
    %v10979 = vpack.c.b16 %v10941, %v10940
    %v10980 = vpack.c.b16 %v10943, %v10942
    %v10981 = vpack.c.b16 %v10945, %v10944
    %v10982 = vpack.c.b16 %v10947, %v10946
    %v10983 = vpack.c.b16 %v10949, %v10948
    %v10984 = vpack.c.b16 %v10951, %v10950
    %v10985 = vpack.c.b16 %v10953, %v10952
    %v10986 = vpack.c.b16 %v10955, %v10954
    %v10987 = vpack.c.b16 %v10957, %v10956
    %v10988 = vpack.c.b16 %v10959, %v10958
    %v10989 = vpack.c.b16 %v10961, %v10960
    %v10990 = vpack.c.b16 %v10963, %v10962
    %v10991 = vpack.c.b16 %v10965, %v10964
    %v10992 = vpack.c.b16 %v10967, %v10966
    %v10993 = vpack.c.b16 %v10969, %v10968
    %11018 = vmatpush.bf16.msra.mxu0 %v10977
    %11019 = vmatpush.bf16.msra.mxu0 %v10976
    %11020 = vmatpush.bf16.msra.mxu0 %v10975
    %11021 = vmatpush.bf16.msra.mxu0 %v10974
    %11022 = vmatpush.bf16.msra.mxu0 %v10973
    %11023 = vmatpush.bf16.msra.mxu0 %v10972
    %11024 = vmatpush.bf16.msra.mxu0 %v10971
    %11025 = vmatpush.bf16.msra.mxu0 %v10970
    %11026 = vmatmul.bf16.gmra.mxu0 %v10868
    %v11027 = vpop.f32.mrf.mxu0
    %v11028 = vadd.f32 0.0, %v11027
    %v11029 = vpop.f32.mrf.mxu0
    %11030 = vdwg.mxu0
    %11031 = vmatpush.bf16.msra.mxu0 %v10985
    %11032 = vmatpush.bf16.msra.mxu0 %v10984
    %11033 = vmatpush.bf16.msra.mxu0 %v10983
    %11034 = vmatpush.bf16.msra.mxu0 %v10982
    %11035 = vmatpush.bf16.msra.mxu0 %v10981
    %11036 = vmatpush.bf16.msra.mxu0 %v10980
    %11037 = vmatpush.bf16.msra.mxu0 %v10979
    %11038 = vmatpush.bf16.msra.mxu0 %v10978
    %11039 = vmatmul.bf16.gmra.mxu0 %v10869
    %v11040 = vpop.f32.mrf.mxu0
    %v11041 = vadd.f32 %v11028, %v11040
    %v11042 = vpop.f32.mrf.mxu0
    %11043 = vdwg.mxu0
    %11044 = vmatpush.bf16.msra.mxu0 %v10993
    %11045 = vmatpush.bf16.msra.mxu0 %v10992
    %11046 = vmatpush.bf16.msra.mxu0 %v10991
    %11047 = vmatpush.bf16.msra.mxu0 %v10990
    %11048 = vmatpush.bf16.msra.mxu0 %v10989
    %11049 = vmatpush.bf16.msra.mxu0 %v10988
    %11050 = vmatpush.bf16.msra.mxu0 %v10987
    %11051 = vmatpush.bf16.msra.mxu0 %v10986
    %11052 = vmatmul.bf16.gmra.mxu0 %v10870
    %v11053 = vpop.f32.mrf.mxu0
    %v11054 = vadd.f32 %v11041, %v11053
    %v11055 = vpop.f32.mrf.mxu0
    %11056 = vdwg.mxu0
    %v11057 = vadd.f32 %v10812, %v11054
    %v11058 = vld [vmem:[#allocation5 + $0xc0] sm:$0xf]
    %v11059 = vld [vmem:[#allocation5 + $0xc4] sm:$0xf]
    %v11060 = vld [vmem:[#allocation5 + $0xc8] sm:$0xf]
    %v11061 = vld [vmem:[#allocation5 + $0xcc] sm:$0xf]
    %v11062 = vld [vmem:[#allocation5 + $0xd0] sm:$0xf]
    %v11063 = vld [vmem:[#allocation5 + $0xd4] sm:$0xf]
    %v11064 = vld [vmem:[#allocation5 + $0xd8] sm:$0xf]
    %v11065 = vld [vmem:[#allocation5 + $0xdc] sm:$0xf]
    %v11066 = vld [vmem:[#allocation5 + $0xe0] sm:$0xf]
    %v11067 = vld [vmem:[#allocation5 + $0xe4] sm:$0xf]
    %v11068 = vld [vmem:[#allocation5 + $0xe8] sm:$0xf]
    %v11069 = vld [vmem:[#allocation5 + $0xec] sm:$0xf]
    %v11070 = vld [vmem:[#allocation5 + $0xf0] sm:$0xf]
    %v11071 = vld [vmem:[#allocation5 + $0xf4] sm:$0xf]
    %v11072 = vld [vmem:[#allocation5 + $0xf8] sm:$0xf]
    %v11073 = vld [vmem:[#allocation5 + $0xfc] sm:$0xf]
    %v11074 = vld [vmem:[#allocation5 + $0x100] sm:$0xf]
    %v11075 = vld [vmem:[#allocation5 + $0x104] sm:$0xf]
    %v11076 = vld [vmem:[#allocation5 + $0x108] sm:$0xf]
    %v11077 = vld [vmem:[#allocation5 + $0x10c] sm:$0xf]
    %v11078 = vld [vmem:[#allocation5 + $0x110] sm:$0xf]
    %v11079 = vld [vmem:[#allocation5 + $0x114] sm:$0xf]
    %v11080 = vld [vmem:[#allocation5 + $0x118] sm:$0xf]
    %v11081 = vld [vmem:[#allocation5 + $0x11c] sm:$0xf]
    %v11082 = vld [vmem:[#allocation5 + $0x120] sm:$0xf]
    %v11083 = vld [vmem:[#allocation5 + $0x124] sm:$0xf]
    %v11084 = vld [vmem:[#allocation5 + $0x128] sm:$0xf]
    %v11085 = vld [vmem:[#allocation5 + $0x12c] sm:$0xf]
    %v11086 = vld [vmem:[#allocation5 + $0x130] sm:$0xf]
    %v11087 = vld [vmem:[#allocation5 + $0x134] sm:$0xf]
    %v11088 = vld [vmem:[#allocation5 + $0x138] sm:$0xf]
    %v11089 = vld [vmem:[#allocation5 + $0x13c] sm:$0xf]
    %v11090 = vld [vmem:[#allocation5 + $0x140] sm:$0xf]
    %v11091 = vld [vmem:[#allocation5 + $0x144] sm:$0xf]
    %v11092 = vld [vmem:[#allocation5 + $0x148] sm:$0xf]
    %v11093 = vld [vmem:[#allocation5 + $0x14c] sm:$0xf]
    %v11094 = vld [vmem:[#allocation5 + $0x150] sm:$0xf]
    %v11095 = vld [vmem:[#allocation5 + $0x154] sm:$0xf]
    %v11096 = vld [vmem:[#allocation5 + $0x158] sm:$0xf]
    %v11097 = vld [vmem:[#allocation5 + $0x15c] sm:$0xf]
    %v11098 = vld [vmem:[#allocation5 + $0x160] sm:$0xf]
    %v11099 = vld [vmem:[#allocation5 + $0x164] sm:$0xf]
    %v11100 = vld [vmem:[#allocation5 + $0x168] sm:$0xf]
    %v11101 = vld [vmem:[#allocation5 + $0x16c] sm:$0xf]
    %v11102 = vld [vmem:[#allocation5 + $0x170] sm:$0xf]
    %v11103 = vld [vmem:[#allocation5 + $0x174] sm:$0xf]
    %v11104 = vld [vmem:[#allocation5 + $0x178] sm:$0xf]
    %v11105 = vld [vmem:[#allocation5 + $0x17c] sm:$0xf]
    %v11107 = vshrl.u32 %v10868, 16
    %v11110 = vshrl.u32 %v10869, 16
    %v11113 = vshrl.u32 %v10870, 16
    %v11166 = vunpack.c.l.b16 %v11058
    %v11167 = vunpack.c.l.b16 %v11059
    %v11168 = vunpack.c.l.b16 %v11060
    %v11169 = vunpack.c.l.b16 %v11061
    %v11170 = vunpack.c.l.b16 %v11062
    %v11171 = vunpack.c.l.b16 %v11063
    %v11172 = vunpack.c.l.b16 %v11064
    %v11173 = vunpack.c.l.b16 %v11065
    %v11174 = vunpack.c.l.b16 %v11066
    %v11175 = vunpack.c.l.b16 %v11067
    %v11176 = vunpack.c.l.b16 %v11068
    %v11177 = vunpack.c.l.b16 %v11069
    %v11178 = vunpack.c.l.b16 %v11070
    %v11179 = vunpack.c.l.b16 %v11071
    %v11180 = vunpack.c.l.b16 %v11072
    %v11181 = vunpack.c.l.b16 %v11073
    %v11182 = vunpack.c.l.b16 %v11074
    %v11183 = vunpack.c.l.b16 %v11075
    %v11184 = vunpack.c.l.b16 %v11076
    %v11185 = vunpack.c.l.b16 %v11077
    %v11186 = vunpack.c.l.b16 %v11078
    %v11187 = vunpack.c.l.b16 %v11079
    %v11188 = vunpack.c.l.b16 %v11080
    %v11189 = vunpack.c.l.b16 %v11081
    %v11190 = vunpack.c.l.b16 %v11082
    %v11191 = vunpack.c.l.b16 %v11083
    %v11192 = vunpack.c.l.b16 %v11084
    %v11193 = vunpack.c.l.b16 %v11085
    %v11194 = vunpack.c.l.b16 %v11086
    %v11195 = vunpack.c.l.b16 %v11087
    %v11196 = vunpack.c.l.b16 %v11088
    %v11197 = vunpack.c.l.b16 %v11089
    %v11198 = vunpack.c.l.b16 %v11090
    %v11199 = vunpack.c.l.b16 %v11091
    %v11200 = vunpack.c.l.b16 %v11092
    %v11201 = vunpack.c.l.b16 %v11093
    %v11202 = vunpack.c.l.b16 %v11094
    %v11203 = vunpack.c.l.b16 %v11095
    %v11204 = vunpack.c.l.b16 %v11096
    %v11205 = vunpack.c.l.b16 %v11097
    %v11206 = vunpack.c.l.b16 %v11098
    %v11207 = vunpack.c.l.b16 %v11099
    %v11208 = vunpack.c.l.b16 %v11100
    %v11209 = vunpack.c.l.b16 %v11101
    %v11210 = vunpack.c.l.b16 %v11102
    %v11211 = vunpack.c.l.b16 %v11103
    %v11212 = vunpack.c.l.b16 %v11104
    %v11213 = vunpack.c.l.b16 %v11105
    %v11214 = vpack.c.b16 %v11167, %v11166
    %v11215 = vpack.c.b16 %v11169, %v11168
    %v11216 = vpack.c.b16 %v11171, %v11170
    %v11217 = vpack.c.b16 %v11173, %v11172
    %v11218 = vpack.c.b16 %v11175, %v11174
    %v11219 = vpack.c.b16 %v11177, %v11176
    %v11220 = vpack.c.b16 %v11179, %v11178
    %v11221 = vpack.c.b16 %v11181, %v11180
    %v11222 = vpack.c.b16 %v11183, %v11182
    %v11223 = vpack.c.b16 %v11185, %v11184
    %v11224 = vpack.c.b16 %v11187, %v11186
    %v11225 = vpack.c.b16 %v11189, %v11188
    %v11226 = vpack.c.b16 %v11191, %v11190
    %v11227 = vpack.c.b16 %v11193, %v11192
    %v11228 = vpack.c.b16 %v11195, %v11194
    %v11229 = vpack.c.b16 %v11197, %v11196
    %v11230 = vpack.c.b16 %v11199, %v11198
    %v11231 = vpack.c.b16 %v11201, %v11200
    %v11232 = vpack.c.b16 %v11203, %v11202
    %v11233 = vpack.c.b16 %v11205, %v11204
    %v11234 = vpack.c.b16 %v11207, %v11206
    %v11235 = vpack.c.b16 %v11209, %v11208
    %v11236 = vpack.c.b16 %v11211, %v11210
    %v11237 = vpack.c.b16 %v11213, %v11212
    %11262 = vmatpush.bf16.msra.mxu0 %v11221
    %11263 = vmatpush.bf16.msra.mxu0 %v11220
    %11264 = vmatpush.bf16.msra.mxu0 %v11219
    %11265 = vmatpush.bf16.msra.mxu0 %v11218
    %11266 = vmatpush.bf16.msra.mxu0 %v11217
    %11267 = vmatpush.bf16.msra.mxu0 %v11216
    %11268 = vmatpush.bf16.msra.mxu0 %v11215
    %11269 = vmatpush.bf16.msra.mxu0 %v11214
    %11270 = vmatmul.bf16.gmra.mxu0 %v11107
    %v11271 = vpop.f32.mrf.mxu0
    %v11272 = vadd.f32 0.0, %v11271
    %v11273 = vpop.f32.mrf.mxu0
    %11274 = vdwg.mxu0
    %11275 = vmatpush.bf16.msra.mxu0 %v11229
    %11276 = vmatpush.bf16.msra.mxu0 %v11228
    %11277 = vmatpush.bf16.msra.mxu0 %v11227
    %11278 = vmatpush.bf16.msra.mxu0 %v11226
    %11279 = vmatpush.bf16.msra.mxu0 %v11225
    %11280 = vmatpush.bf16.msra.mxu0 %v11224
    %11281 = vmatpush.bf16.msra.mxu0 %v11223
    %11282 = vmatpush.bf16.msra.mxu0 %v11222
    %11283 = vmatmul.bf16.gmra.mxu0 %v11110
    %v11284 = vpop.f32.mrf.mxu0
    %v11285 = vadd.f32 %v11272, %v11284
    %v11286 = vpop.f32.mrf.mxu0
    %11287 = vdwg.mxu0
    %11288 = vmatpush.bf16.msra.mxu0 %v11237
    %11289 = vmatpush.bf16.msra.mxu0 %v11236
    %11290 = vmatpush.bf16.msra.mxu0 %v11235
    %11291 = vmatpush.bf16.msra.mxu0 %v11234
    %11292 = vmatpush.bf16.msra.mxu0 %v11233
    %11293 = vmatpush.bf16.msra.mxu0 %v11232
    %11294 = vmatpush.bf16.msra.mxu0 %v11231
    %11295 = vmatpush.bf16.msra.mxu0 %v11230
    %11296 = vmatmul.bf16.gmra.mxu0 %v11113
    %v11297 = vpop.f32.mrf.mxu0
    %v11298 = vadd.f32 %v11285, %v11297
    %v11299 = vpop.f32.mrf.mxu0
    %11300 = vdwg.mxu0
    %v11301 = vadd.f32 %v11057, %v11298
    %v11302 = vld [vmem:[#allocation4] sm:$0x22]
    %v11303 = vld [vmem:[#allocation4 + $0x8] sm:$0x2]
    %v11304 = vld [vmem:[#allocation5 + $0x180] sm:$0xf]
    %v11305 = vld [vmem:[#allocation5 + $0x184] sm:$0xf]
    %v11306 = vld [vmem:[#allocation5 + $0x188] sm:$0xf]
    %v11307 = vld [vmem:[#allocation5 + $0x18c] sm:$0xf]
    %v11308 = vld [vmem:[#allocation5 + $0x190] sm:$0xf]
    %v11309 = vld [vmem:[#allocation5 + $0x194] sm:$0xf]
    %v11310 = vld [vmem:[#allocation5 + $0x198] sm:$0xf]
    %v11311 = vld [vmem:[#allocation5 + $0x19c] sm:$0xf]
    %v11312 = vld [vmem:[#allocation5 + $0x1a0] sm:$0xf]
    %v11313 = vld [vmem:[#allocation5 + $0x1a4] sm:$0xf]
    %v11314 = vld [vmem:[#allocation5 + $0x1a8] sm:$0xf]
    %v11315 = vld [vmem:[#allocation5 + $0x1ac] sm:$0xf]
    %v11316 = vld [vmem:[#allocation5 + $0x1b0] sm:$0xf]
    %v11317 = vld [vmem:[#allocation5 + $0x1b4] sm:$0xf]
    %v11318 = vld [vmem:[#allocation5 + $0x1b8] sm:$0xf]
    %v11319 = vld [vmem:[#allocation5 + $0x1bc] sm:$0xf]
    %v11320 = vld [vmem:[#allocation5 + $0x1c0] sm:$0xf]
    %v11321 = vld [vmem:[#allocation5 + $0x1c4] sm:$0xf]
    %v11322 = vld [vmem:[#allocation5 + $0x1c8] sm:$0xf]
    %v11323 = vld [vmem:[#allocation5 + $0x1cc] sm:$0xf]
    %v11324 = vld [vmem:[#allocation5 + $0x1d0] sm:$0xf]
    %v11325 = vld [vmem:[#allocation5 + $0x1d4] sm:$0xf]
    %v11326 = vld [vmem:[#allocation5 + $0x1d8] sm:$0xf]
    %v11327 = vld [vmem:[#allocation5 + $0x1dc] sm:$0xf]
    %v11328 = vld [vmem:[#allocation5 + $0x1e0] sm:$0xf]
    %v11329 = vld [vmem:[#allocation5 + $0x1e4] sm:$0xf]
    %v11330 = vld [vmem:[#allocation5 + $0x1e8] sm:$0xf]
    %v11331 = vld [vmem:[#allocation5 + $0x1ec] sm:$0xf]
    %v11332 = vld [vmem:[#allocation5 + $0x1f0] sm:$0xf]
    %v11333 = vld [vmem:[#allocation5 + $0x1f4] sm:$0xf]
    %v11334 = vld [vmem:[#allocation5 + $0x1f8] sm:$0xf]
    %v11335 = vld [vmem:[#allocation5 + $0x1fc] sm:$0xf]
    %v11336 = vld [vmem:[#allocation5 + $0x200] sm:$0xf]
    %v11337 = vld [vmem:[#allocation5 + $0x204] sm:$0xf]
    %v11338 = vld [vmem:[#allocation5 + $0x208] sm:$0xf]
    %v11339 = vld [vmem:[#allocation5 + $0x20c] sm:$0xf]
    %v11340 = vld [vmem:[#allocation5 + $0x210] sm:$0xf]
    %v11341 = vld [vmem:[#allocation5 + $0x214] sm:$0xf]
    %v11342 = vld [vmem:[#allocation5 + $0x218] sm:$0xf]
    %v11343 = vld [vmem:[#allocation5 + $0x21c] sm:$0xf]
    %v11344 = vld [vmem:[#allocation5 + $0x220] sm:$0xf]
    %v11345 = vld [vmem:[#allocation5 + $0x224] sm:$0xf]
    %v11346 = vld [vmem:[#allocation5 + $0x228] sm:$0xf]
    %v11347 = vld [vmem:[#allocation5 + $0x22c] sm:$0xf]
    %v11348 = vld [vmem:[#allocation5 + $0x230] sm:$0xf]
    %v11349 = vld [vmem:[#allocation5 + $0x234] sm:$0xf]
    %v11350 = vld [vmem:[#allocation5 + $0x238] sm:$0xf]
    %v11351 = vld [vmem:[#allocation5 + $0x23c] sm:$0xf]
    %v11354 = vunpack.c.l.b16 %v11302
    %v11355 = vunpack.c.h.b16 %v11302
    %v11356 = vunpack.c.l.b16 %v11303
    %v11357 = vpack.c.b16 %v11354, %v11354
    %v11358 = vpack.c.b16 %v11355, %v11355
    %v11359 = vpack.c.b16 %v11356, %v11356
    %v11360 = vrot.slane %v11357, 1
    %v11361 = vrot.slane %v11358, 1
    %v11362 = vrot.slane %v11359, 1
    %v11414 = vunpack.c.l.b16 %v11304
    %v11415 = vunpack.c.l.b16 %v11305
    %v11416 = vunpack.c.l.b16 %v11306
    %v11417 = vunpack.c.l.b16 %v11307
    %v11418 = vunpack.c.l.b16 %v11308
    %v11419 = vunpack.c.l.b16 %v11309
    %v11420 = vunpack.c.l.b16 %v11310
    %v11421 = vunpack.c.l.b16 %v11311
    %v11422 = vunpack.c.l.b16 %v11312
    %v11423 = vunpack.c.l.b16 %v11313
    %v11424 = vunpack.c.l.b16 %v11314
    %v11425 = vunpack.c.l.b16 %v11315
    %v11426 = vunpack.c.l.b16 %v11316
    %v11427 = vunpack.c.l.b16 %v11317
    %v11428 = vunpack.c.l.b16 %v11318
    %v11429 = vunpack.c.l.b16 %v11319
    %v11430 = vunpack.c.l.b16 %v11320
    %v11431 = vunpack.c.l.b16 %v11321
    %v11432 = vunpack.c.l.b16 %v11322
    %v11433 = vunpack.c.l.b16 %v11323
    %v11434 = vunpack.c.l.b16 %v11324
    %v11435 = vunpack.c.l.b16 %v11325
    %v11436 = vunpack.c.l.b16 %v11326
    %v11437 = vunpack.c.l.b16 %v11327
    %v11438 = vunpack.c.l.b16 %v11328
    %v11439 = vunpack.c.l.b16 %v11329
    %v11440 = vunpack.c.l.b16 %v11330
    %v11441 = vunpack.c.l.b16 %v11331
    %v11442 = vunpack.c.l.b16 %v11332
    %v11443 = vunpack.c.l.b16 %v11333
    %v11444 = vunpack.c.l.b16 %v11334
    %v11445 = vunpack.c.l.b16 %v11335
    %v11446 = vunpack.c.l.b16 %v11336
    %v11447 = vunpack.c.l.b16 %v11337
    %v11448 = vunpack.c.l.b16 %v11338
    %v11449 = vunpack.c.l.b16 %v11339
    %v11450 = vunpack.c.l.b16 %v11340
    %v11451 = vunpack.c.l.b16 %v11341
    %v11452 = vunpack.c.l.b16 %v11342
    %v11453 = vunpack.c.l.b16 %v11343
    %v11454 = vunpack.c.l.b16 %v11344
    %v11455 = vunpack.c.l.b16 %v11345
    %v11456 = vunpack.c.l.b16 %v11346
    %v11457 = vunpack.c.l.b16 %v11347
    %v11458 = vunpack.c.l.b16 %v11348
    %v11459 = vunpack.c.l.b16 %v11349
    %v11460 = vunpack.c.l.b16 %v11350
    %v11461 = vunpack.c.l.b16 %v11351
    %v11462 = vpack.c.b16 %v11415, %v11414
    %v11463 = vpack.c.b16 %v11417, %v11416
    %v11464 = vpack.c.b16 %v11419, %v11418
    %v11465 = vpack.c.b16 %v11421, %v11420
    %v11466 = vpack.c.b16 %v11423, %v11422
    %v11467 = vpack.c.b16 %v11425, %v11424
    %v11468 = vpack.c.b16 %v11427, %v11426
    %v11469 = vpack.c.b16 %v11429, %v11428
    %v11470 = vpack.c.b16 %v11431, %v11430
    %v11471 = vpack.c.b16 %v11433, %v11432
    %v11472 = vpack.c.b16 %v11435, %v11434
    %v11473 = vpack.c.b16 %v11437, %v11436
    %v11474 = vpack.c.b16 %v11439, %v11438
    %v11475 = vpack.c.b16 %v11441, %v11440
    %v11476 = vpack.c.b16 %v11443, %v11442
    %v11477 = vpack.c.b16 %v11445, %v11444
    %v11478 = vpack.c.b16 %v11447, %v11446
    %v11479 = vpack.c.b16 %v11449, %v11448
    %v11480 = vpack.c.b16 %v11451, %v11450
    %v11481 = vpack.c.b16 %v11453, %v11452
    %v11482 = vpack.c.b16 %v11455, %v11454
    %v11483 = vpack.c.b16 %v11457, %v11456
    %v11484 = vpack.c.b16 %v11459, %v11458
    %v11485 = vpack.c.b16 %v11461, %v11460
    %11510 = vmatpush.bf16.msra.mxu0 %v11469
    %11511 = vmatpush.bf16.msra.mxu0 %v11468
    %11512 = vmatpush.bf16.msra.mxu0 %v11467
    %11513 = vmatpush.bf16.msra.mxu0 %v11466
    %11514 = vmatpush.bf16.msra.mxu0 %v11465
    %11515 = vmatpush.bf16.msra.mxu0 %v11464
    %11516 = vmatpush.bf16.msra.mxu0 %v11463
    %11517 = vmatpush.bf16.msra.mxu0 %v11462
    %11518 = vmatmul.bf16.gmra.mxu0 %v11360
    %v11519 = vpop.f32.mrf.mxu0
    %v11520 = vadd.f32 0.0, %v11519
    %v11521 = vpop.f32.mrf.mxu0
    %11522 = vdwg.mxu0
    %11523 = vmatpush.bf16.msra.mxu0 %v11477
    %11524 = vmatpush.bf16.msra.mxu0 %v11476
    %11525 = vmatpush.bf16.msra.mxu0 %v11475
    %11526 = vmatpush.bf16.msra.mxu0 %v11474
    %11527 = vmatpush.bf16.msra.mxu0 %v11473
    %11528 = vmatpush.bf16.msra.mxu0 %v11472
    %11529 = vmatpush.bf16.msra.mxu0 %v11471
    %11530 = vmatpush.bf16.msra.mxu0 %v11470
    %11531 = vmatmul.bf16.gmra.mxu0 %v11361
    %v11532 = vpop.f32.mrf.mxu0
    %v11533 = vadd.f32 %v11520, %v11532
    %v11534 = vpop.f32.mrf.mxu0
    %11535 = vdwg.mxu0
    %11536 = vmatpush.bf16.msra.mxu0 %v11485
    %11537 = vmatpush.bf16.msra.mxu0 %v11484
    %11538 = vmatpush.bf16.msra.mxu0 %v11483
    %11539 = vmatpush.bf16.msra.mxu0 %v11482
    %11540 = vmatpush.bf16.msra.mxu0 %v11481
    %11541 = vmatpush.bf16.msra.mxu0 %v11480
    %11542 = vmatpush.bf16.msra.mxu0 %v11479
    %11543 = vmatpush.bf16.msra.mxu0 %v11478
    %11544 = vmatmul.bf16.gmra.mxu0 %v11362
    %v11545 = vpop.f32.mrf.mxu0
    %v11546 = vadd.f32 %v11533, %v11545
    %v11547 = vpop.f32.mrf.mxu0
    %11548 = vdwg.mxu0
    %v11549 = vadd.f32 %v11301, %v11546
    %v11550 = vld [vmem:[#allocation5 + $0x240] sm:$0xf]
    %v11551 = vld [vmem:[#allocation5 + $0x244] sm:$0xf]
    %v11552 = vld [vmem:[#allocation5 + $0x248] sm:$0xf]
    %v11553 = vld [vmem:[#allocation5 + $0x24c] sm:$0xf]
    %v11554 = vld [vmem:[#allocation5 + $0x250] sm:$0xf]
    %v11555 = vld [vmem:[#allocation5 + $0x254] sm:$0xf]
    %v11556 = vld [vmem:[#allocation5 + $0x258] sm:$0xf]
    %v11557 = vld [vmem:[#allocation5 + $0x25c] sm:$0xf]
    %v11558 = vld [vmem:[#allocation5 + $0x260] sm:$0xf]
    %v11559 = vld [vmem:[#allocation5 + $0x264] sm:$0xf]
    %v11560 = vld [vmem:[#allocation5 + $0x268] sm:$0xf]
    %v11561 = vld [vmem:[#allocation5 + $0x26c] sm:$0xf]
    %v11562 = vld [vmem:[#allocation5 + $0x270] sm:$0xf]
    %v11563 = vld [vmem:[#allocation5 + $0x274] sm:$0xf]
    %v11564 = vld [vmem:[#allocation5 + $0x278] sm:$0xf]
    %v11565 = vld [vmem:[#allocation5 + $0x27c] sm:$0xf]
    %v11566 = vld [vmem:[#allocation5 + $0x280] sm:$0xf]
    %v11567 = vld [vmem:[#allocation5 + $0x284] sm:$0xf]
    %v11568 = vld [vmem:[#allocation5 + $0x288] sm:$0xf]
    %v11569 = vld [vmem:[#allocation5 + $0x28c] sm:$0xf]
    %v11570 = vld [vmem:[#allocation5 + $0x290] sm:$0xf]
    %v11571 = vld [vmem:[#allocation5 + $0x294] sm:$0xf]
    %v11572 = vld [vmem:[#allocation5 + $0x298] sm:$0xf]
    %v11573 = vld [vmem:[#allocation5 + $0x29c] sm:$0xf]
    %v11574 = vld [vmem:[#allocation5 + $0x2a0] sm:$0xf]
    %v11575 = vld [vmem:[#allocation5 + $0x2a4] sm:$0xf]
    %v11576 = vld [vmem:[#allocation5 + $0x2a8] sm:$0xf]
    %v11577 = vld [vmem:[#allocation5 + $0x2ac] sm:$0xf]
    %v11578 = vld [vmem:[#allocation5 + $0x2b0] sm:$0xf]
    %v11579 = vld [vmem:[#allocation5 + $0x2b4] sm:$0xf]
    %v11580 = vld [vmem:[#allocation5 + $0x2b8] sm:$0xf]
    %v11581 = vld [vmem:[#allocation5 + $0x2bc] sm:$0xf]
    %v11582 = vld [vmem:[#allocation5 + $0x2c0] sm:$0xf]
    %v11583 = vld [vmem:[#allocation5 + $0x2c4] sm:$0xf]
    %v11584 = vld [vmem:[#allocation5 + $0x2c8] sm:$0xf]
    %v11585 = vld [vmem:[#allocation5 + $0x2cc] sm:$0xf]
    %v11586 = vld [vmem:[#allocation5 + $0x2d0] sm:$0xf]
    %v11587 = vld [vmem:[#allocation5 + $0x2d4] sm:$0xf]
    %v11588 = vld [vmem:[#allocation5 + $0x2d8] sm:$0xf]
    %v11589 = vld [vmem:[#allocation5 + $0x2dc] sm:$0xf]
    %v11590 = vld [vmem:[#allocation5 + $0x2e0] sm:$0xf]
    %v11591 = vld [vmem:[#allocation5 + $0x2e4] sm:$0xf]
    %v11592 = vld [vmem:[#allocation5 + $0x2e8] sm:$0xf]
    %v11593 = vld [vmem:[#allocation5 + $0x2ec] sm:$0xf]
    %v11594 = vld [vmem:[#allocation5 + $0x2f0] sm:$0xf]
    %v11595 = vld [vmem:[#allocation5 + $0x2f4] sm:$0xf]
    %v11596 = vld [vmem:[#allocation5 + $0x2f8] sm:$0xf]
    %v11597 = vld [vmem:[#allocation5 + $0x2fc] sm:$0xf]
    %v11599 = vshrl.u32 %v11357, 16
    %v11601 = vrot.slane %v11599, 1
    %v11603 = vshrl.u32 %v11358, 16
    %v11605 = vrot.slane %v11603, 1
    %v11607 = vshrl.u32 %v11359, 16
    %v11609 = vrot.slane %v11607, 1
    %v11661 = vunpack.c.l.b16 %v11550
    %v11662 = vunpack.c.l.b16 %v11551
    %v11663 = vunpack.c.l.b16 %v11552
    %v11664 = vunpack.c.l.b16 %v11553
    %v11665 = vunpack.c.l.b16 %v11554
    %v11666 = vunpack.c.l.b16 %v11555
    %v11667 = vunpack.c.l.b16 %v11556
    %v11668 = vunpack.c.l.b16 %v11557
    %v11669 = vunpack.c.l.b16 %v11558
    %v11670 = vunpack.c.l.b16 %v11559
    %v11671 = vunpack.c.l.b16 %v11560
    %v11672 = vunpack.c.l.b16 %v11561
    %v11673 = vunpack.c.l.b16 %v11562
    %v11674 = vunpack.c.l.b16 %v11563
    %v11675 = vunpack.c.l.b16 %v11564
    %v11676 = vunpack.c.l.b16 %v11565
    %v11677 = vunpack.c.l.b16 %v11566
    %v11678 = vunpack.c.l.b16 %v11567
    %v11679 = vunpack.c.l.b16 %v11568
    %v11680 = vunpack.c.l.b16 %v11569
    %v11681 = vunpack.c.l.b16 %v11570
    %v11682 = vunpack.c.l.b16 %v11571
    %v11683 = vunpack.c.l.b16 %v11572
    %v11684 = vunpack.c.l.b16 %v11573
    %v11685 = vunpack.c.l.b16 %v11574
    %v11686 = vunpack.c.l.b16 %v11575
    %v11687 = vunpack.c.l.b16 %v11576
    %v11688 = vunpack.c.l.b16 %v11577
    %v11689 = vunpack.c.l.b16 %v11578
    %v11690 = vunpack.c.l.b16 %v11579
    %v11691 = vunpack.c.l.b16 %v11580
    %v11692 = vunpack.c.l.b16 %v11581
    %v11693 = vunpack.c.l.b16 %v11582
    %v11694 = vunpack.c.l.b16 %v11583
    %v11695 = vunpack.c.l.b16 %v11584
    %v11696 = vunpack.c.l.b16 %v11585
    %v11697 = vunpack.c.l.b16 %v11586
    %v11698 = vunpack.c.l.b16 %v11587
    %v11699 = vunpack.c.l.b16 %v11588
    %v11700 = vunpack.c.l.b16 %v11589
    %v11701 = vunpack.c.l.b16 %v11590
    %v11702 = vunpack.c.l.b16 %v11591
    %v11703 = vunpack.c.l.b16 %v11592
    %v11704 = vunpack.c.l.b16 %v11593
    %v11705 = vunpack.c.l.b16 %v11594
    %v11706 = vunpack.c.l.b16 %v11595
    %v11707 = vunpack.c.l.b16 %v11596
    %v11708 = vunpack.c.l.b16 %v11597
    %v11709 = vpack.c.b16 %v11662, %v11661
    %v11710 = vpack.c.b16 %v11664, %v11663
    %v11711 = vpack.c.b16 %v11666, %v11665
    %v11712 = vpack.c.b16 %v11668, %v11667
    %v11713 = vpack.c.b16 %v11670, %v11669
    %v11714 = vpack.c.b16 %v11672, %v11671
    %v11715 = vpack.c.b16 %v11674, %v11673
    %v11716 = vpack.c.b16 %v11676, %v11675
    %v11717 = vpack.c.b16 %v11678, %v11677
    %v11718 = vpack.c.b16 %v11680, %v11679
    %v11719 = vpack.c.b16 %v11682, %v11681
    %v11720 = vpack.c.b16 %v11684, %v11683
    %v11721 = vpack.c.b16 %v11686, %v11685
    %v11722 = vpack.c.b16 %v11688, %v11687
    %v11723 = vpack.c.b16 %v11690, %v11689
    %v11724 = vpack.c.b16 %v11692, %v11691
    %v11725 = vpack.c.b16 %v11694, %v11693
    %v11726 = vpack.c.b16 %v11696, %v11695
    %v11727 = vpack.c.b16 %v11698, %v11697
    %v11728 = vpack.c.b16 %v11700, %v11699
    %v11729 = vpack.c.b16 %v11702, %v11701
    %v11730 = vpack.c.b16 %v11704, %v11703
    %v11731 = vpack.c.b16 %v11706, %v11705
    %v11732 = vpack.c.b16 %v11708, %v11707
    %11757 = vmatpush.bf16.msra.mxu0 %v11716
    %11758 = vmatpush.bf16.msra.mxu0 %v11715
    %11759 = vmatpush.bf16.msra.mxu0 %v11714
    %11760 = vmatpush.bf16.msra.mxu0 %v11713
    %11761 = vmatpush.bf16.msra.mxu0 %v11712
    %11762 = vmatpush.bf16.msra.mxu0 %v11711
    %11763 = vmatpush.bf16.msra.mxu0 %v11710
    %11764 = vmatpush.bf16.msra.mxu0 %v11709
    %11765 = vmatmul.bf16.gmra.mxu0 %v11601
    %v11766 = vpop.f32.mrf.mxu0
    %v11767 = vadd.f32 0.0, %v11766
    %v11768 = vpop.f32.mrf.mxu0
    %11769 = vdwg.mxu0
    %11770 = vmatpush.bf16.msra.mxu0 %v11724
    %11771 = vmatpush.bf16.msra.mxu0 %v11723
    %11772 = vmatpush.bf16.msra.mxu0 %v11722
    %11773 = vmatpush.bf16.msra.mxu0 %v11721
    %11774 = vmatpush.bf16.msra.mxu0 %v11720
    %11775 = vmatpush.bf16.msra.mxu0 %v11719
    %11776 = vmatpush.bf16.msra.mxu0 %v11718
    %11777 = vmatpush.bf16.msra.mxu0 %v11717
    %11778 = vmatmul.bf16.gmra.mxu0 %v11605
    %v11779 = vpop.f32.mrf.mxu0
    %v11780 = vadd.f32 %v11767, %v11779
    %v11781 = vpop.f32.mrf.mxu0
    %11782 = vdwg.mxu0
    %11783 = vmatpush.bf16.msra.mxu0 %v11732
    %11784 = vmatpush.bf16.msra.mxu0 %v11731
    %11785 = vmatpush.bf16.msra.mxu0 %v11730
    %11786 = vmatpush.bf16.msra.mxu0 %v11729
    %11787 = vmatpush.bf16.msra.mxu0 %v11728
    %11788 = vmatpush.bf16.msra.mxu0 %v11727
    %11789 = vmatpush.bf16.msra.mxu0 %v11726
    %11790 = vmatpush.bf16.msra.mxu0 %v11725
    %11791 = vmatmul.bf16.gmra.mxu0 %v11609
    %v11792 = vpop.f32.mrf.mxu0
    %v11793 = vadd.f32 %v11780, %v11792
    %v11794 = vpop.f32.mrf.mxu0
    %11795 = vdwg.mxu0
    %v11796 = vadd.f32 %v11549, %v11793
    %v11797 = vld [vmem:[#allocation4] sm:$0x44]
    %v11798 = vld [vmem:[#allocation4 + $0x8] sm:$0x4]
    %v11799 = vld [vmem:[#allocation5 + $0x300] sm:$0xf]
    %v11800 = vld [vmem:[#allocation5 + $0x304] sm:$0xf]
    %v11801 = vld [vmem:[#allocation5 + $0x308] sm:$0xf]
    %v11802 = vld [vmem:[#allocation5 + $0x30c] sm:$0xf]
    %v11803 = vld [vmem:[#allocation5 + $0x310] sm:$0xf]
    %v11804 = vld [vmem:[#allocation5 + $0x314] sm:$0xf]
    %v11805 = vld [vmem:[#allocation5 + $0x318] sm:$0xf]
    %v11806 = vld [vmem:[#allocation5 + $0x31c] sm:$0xf]
    %v11807 = vld [vmem:[#allocation5 + $0x320] sm:$0xf]
    %v11808 = vld [vmem:[#allocation5 + $0x324] sm:$0xf]
    %v11809 = vld [vmem:[#allocation5 + $0x328] sm:$0xf]
    %v11810 = vld [vmem:[#allocation5 + $0x32c] sm:$0xf]
    %v11811 = vld [vmem:[#allocation5 + $0x330] sm:$0xf]
    %v11812 = vld [vmem:[#allocation5 + $0x334] sm:$0xf]
    %v11813 = vld [vmem:[#allocation5 + $0x338] sm:$0xf]
    %v11814 = vld [vmem:[#allocation5 + $0x33c] sm:$0xf]
    %v11815 = vld [vmem:[#allocation5 + $0x340] sm:$0xf]
    %v11816 = vld [vmem:[#allocation5 + $0x344] sm:$0xf]
    %v11817 = vld [vmem:[#allocation5 + $0x348] sm:$0xf]
    %v11818 = vld [vmem:[#allocation5 + $0x34c] sm:$0xf]
    %v11819 = vld [vmem:[#allocation5 + $0x350] sm:$0xf]
    %v11820 = vld [vmem:[#allocation5 + $0x354] sm:$0xf]
    %v11821 = vld [vmem:[#allocation5 + $0x358] sm:$0xf]
    %v11822 = vld [vmem:[#allocation5 + $0x35c] sm:$0xf]
    %v11823 = vld [vmem:[#allocation5 + $0x360] sm:$0xf]
    %v11824 = vld [vmem:[#allocation5 + $0x364] sm:$0xf]
    %v11825 = vld [vmem:[#allocation5 + $0x368] sm:$0xf]
    %v11826 = vld [vmem:[#allocation5 + $0x36c] sm:$0xf]
    %v11827 = vld [vmem:[#allocation5 + $0x370] sm:$0xf]
    %v11828 = vld [vmem:[#allocation5 + $0x374] sm:$0xf]
    %v11829 = vld [vmem:[#allocation5 + $0x378] sm:$0xf]
    %v11830 = vld [vmem:[#allocation5 + $0x37c] sm:$0xf]
    %v11831 = vld [vmem:[#allocation5 + $0x380] sm:$0xf]
    %v11832 = vld [vmem:[#allocation5 + $0x384] sm:$0xf]
    %v11833 = vld [vmem:[#allocation5 + $0x388] sm:$0xf]
    %v11834 = vld [vmem:[#allocation5 + $0x38c] sm:$0xf]
    %v11835 = vld [vmem:[#allocation5 + $0x390] sm:$0xf]
    %v11836 = vld [vmem:[#allocation5 + $0x394] sm:$0xf]
    %v11837 = vld [vmem:[#allocation5 + $0x398] sm:$0xf]
    %v11838 = vld [vmem:[#allocation5 + $0x39c] sm:$0xf]
    %v11839 = vld [vmem:[#allocation5 + $0x3a0] sm:$0xf]
    %v11840 = vld [vmem:[#allocation5 + $0x3a4] sm:$0xf]
    %v11841 = vld [vmem:[#allocation5 + $0x3a8] sm:$0xf]
    %v11842 = vld [vmem:[#allocation5 + $0x3ac] sm:$0xf]
    %v11843 = vld [vmem:[#allocation5 + $0x3b0] sm:$0xf]
    %v11844 = vld [vmem:[#allocation5 + $0x3b4] sm:$0xf]
    %v11845 = vld [vmem:[#allocation5 + $0x3b8] sm:$0xf]
    %v11846 = vld [vmem:[#allocation5 + $0x3bc] sm:$0xf]
    %v11849 = vunpack.c.l.b16 %v11797
    %v11850 = vunpack.c.h.b16 %v11797
    %v11851 = vunpack.c.l.b16 %v11798
    %v11852 = vpack.c.b16 %v11849, %v11849
    %v11853 = vpack.c.b16 %v11850, %v11850
    %v11854 = vpack.c.b16 %v11851, %v11851
    %v11855 = vrot.slane %v11852, 2
    %v11856 = vrot.slane %v11853, 2
    %v11857 = vrot.slane %v11854, 2
    %v11909 = vunpack.c.l.b16 %v11799
    %v11910 = vunpack.c.l.b16 %v11800
    %v11911 = vunpack.c.l.b16 %v11801
    %v11912 = vunpack.c.l.b16 %v11802
    %v11913 = vunpack.c.l.b16 %v11803
    %v11914 = vunpack.c.l.b16 %v11804
    %v11915 = vunpack.c.l.b16 %v11805
    %v11916 = vunpack.c.l.b16 %v11806
    %v11917 = vunpack.c.l.b16 %v11807
    %v11918 = vunpack.c.l.b16 %v11808
    %v11919 = vunpack.c.l.b16 %v11809
    %v11920 = vunpack.c.l.b16 %v11810
    %v11921 = vunpack.c.l.b16 %v11811
    %v11922 = vunpack.c.l.b16 %v11812
    %v11923 = vunpack.c.l.b16 %v11813
    %v11924 = vunpack.c.l.b16 %v11814
    %v11925 = vunpack.c.l.b16 %v11815
    %v11926 = vunpack.c.l.b16 %v11816
    %v11927 = vunpack.c.l.b16 %v11817
    %v11928 = vunpack.c.l.b16 %v11818
    %v11929 = vunpack.c.l.b16 %v11819
    %v11930 = vunpack.c.l.b16 %v11820
    %v11931 = vunpack.c.l.b16 %v11821
    %v11932 = vunpack.c.l.b16 %v11822
    %v11933 = vunpack.c.l.b16 %v11823
    %v11934 = vunpack.c.l.b16 %v11824
    %v11935 = vunpack.c.l.b16 %v11825
    %v11936 = vunpack.c.l.b16 %v11826
    %v11937 = vunpack.c.l.b16 %v11827
    %v11938 = vunpack.c.l.b16 %v11828
    %v11939 = vunpack.c.l.b16 %v11829
    %v11940 = vunpack.c.l.b16 %v11830
    %v11941 = vunpack.c.l.b16 %v11831
    %v11942 = vunpack.c.l.b16 %v11832
    %v11943 = vunpack.c.l.b16 %v11833
    %v11944 = vunpack.c.l.b16 %v11834
    %v11945 = vunpack.c.l.b16 %v11835
    %v11946 = vunpack.c.l.b16 %v11836
    %v11947 = vunpack.c.l.b16 %v11837
    %v11948 = vunpack.c.l.b16 %v11838
    %v11949 = vunpack.c.l.b16 %v11839
    %v11950 = vunpack.c.l.b16 %v11840
    %v11951 = vunpack.c.l.b16 %v11841
    %v11952 = vunpack.c.l.b16 %v11842
    %v11953 = vunpack.c.l.b16 %v11843
    %v11954 = vunpack.c.l.b16 %v11844
    %v11955 = vunpack.c.l.b16 %v11845
    %v11956 = vunpack.c.l.b16 %v11846
    %v11957 = vpack.c.b16 %v11910, %v11909
    %v11958 = vpack.c.b16 %v11912, %v11911
    %v11959 = vpack.c.b16 %v11914, %v11913
    %v11960 = vpack.c.b16 %v11916, %v11915
    %v11961 = vpack.c.b16 %v11918, %v11917
    %v11962 = vpack.c.b16 %v11920, %v11919
    %v11963 = vpack.c.b16 %v11922, %v11921
    %v11964 = vpack.c.b16 %v11924, %v11923
    %v11965 = vpack.c.b16 %v11926, %v11925
    %v11966 = vpack.c.b16 %v11928, %v11927
    %v11967 = vpack.c.b16 %v11930, %v11929
    %v11968 = vpack.c.b16 %v11932, %v11931
    %v11969 = vpack.c.b16 %v11934, %v11933
    %v11970 = vpack.c.b16 %v11936, %v11935
    %v11971 = vpack.c.b16 %v11938, %v11937
    %v11972 = vpack.c.b16 %v11940, %v11939
    %v11973 = vpack.c.b16 %v11942, %v11941
    %v11974 = vpack.c.b16 %v11944, %v11943
    %v11975 = vpack.c.b16 %v11946, %v11945
    %v11976 = vpack.c.b16 %v11948, %v11947
    %v11977 = vpack.c.b16 %v11950, %v11949
    %v11978 = vpack.c.b16 %v11952, %v11951
    %v11979 = vpack.c.b16 %v11954, %v11953
    %v11980 = vpack.c.b16 %v11956, %v11955
    %12005 = vmatpush.bf16.msra.mxu0 %v11964
    %12006 = vmatpush.bf16.msra.mxu0 %v11963
    %12007 = vmatpush.bf16.msra.mxu0 %v11962
    %12008 = vmatpush.bf16.msra.mxu0 %v11961
    %12009 = vmatpush.bf16.msra.mxu0 %v11960
    %12010 = vmatpush.bf16.msra.mxu0 %v11959
    %12011 = vmatpush.bf16.msra.mxu0 %v11958
    %12012 = vmatpush.bf16.msra.mxu0 %v11957
    %12013 = vmatmul.bf16.gmra.mxu0 %v11855
    %v12014 = vpop.f32.mrf.mxu0
    %v12015 = vadd.f32 0.0, %v12014
    %v12016 = vpop.f32.mrf.mxu0
    %12017 = vdwg.mxu0
    %12018 = vmatpush.bf16.msra.mxu0 %v11972
    %12019 = vmatpush.bf16.msra.mxu0 %v11971
    %12020 = vmatpush.bf16.msra.mxu0 %v11970
    %12021 = vmatpush.bf16.msra.mxu0 %v11969
    %12022 = vmatpush.bf16.msra.mxu0 %v11968
    %12023 = vmatpush.bf16.msra.mxu0 %v11967
    %12024 = vmatpush.bf16.msra.mxu0 %v11966
    %12025 = vmatpush.bf16.msra.mxu0 %v11965
    %12026 = vmatmul.bf16.gmra.mxu0 %v11856
    %v12027 = vpop.f32.mrf.mxu0
    %v12028 = vadd.f32 %v12015, %v12027
    %v12029 = vpop.f32.mrf.mxu0
    %12030 = vdwg.mxu0
    %12031 = vmatpush.bf16.msra.mxu0 %v11980
    %12032 = vmatpush.bf16.msra.mxu0 %v11979
    %12033 = vmatpush.bf16.msra.mxu0 %v11978
    %12034 = vmatpush.bf16.msra.mxu0 %v11977
    %12035 = vmatpush.bf16.msra.mxu0 %v11976
    %12036 = vmatpush.bf16.msra.mxu0 %v11975
    %12037 = vmatpush.bf16.msra.mxu0 %v11974
    %12038 = vmatpush.bf16.msra.mxu0 %v11973
    %12039 = vmatmul.bf16.gmra.mxu0 %v11857
    %v12040 = vpop.f32.mrf.mxu0
    %v12041 = vadd.f32 %v12028, %v12040
    %v12042 = vpop.f32.mrf.mxu0
    %12043 = vdwg.mxu0
    %v12044 = vadd.f32 %v11796, %v12041
    %v12045 = vld [vmem:[#allocation5 + $0x3c0] sm:$0xf]
    %v12046 = vld [vmem:[#allocation5 + $0x3c4] sm:$0xf]
    %v12047 = vld [vmem:[#allocation5 + $0x3c8] sm:$0xf]
    %v12048 = vld [vmem:[#allocation5 + $0x3cc] sm:$0xf]
    %v12049 = vld [vmem:[#allocation5 + $0x3d0] sm:$0xf]
    %v12050 = vld [vmem:[#allocation5 + $0x3d4] sm:$0xf]
    %v12051 = vld [vmem:[#allocation5 + $0x3d8] sm:$0xf]
    %v12052 = vld [vmem:[#allocation5 + $0x3dc] sm:$0xf]
    %v12053 = vld [vmem:[#allocation5 + $0x3e0] sm:$0xf]
    %v12054 = vld [vmem:[#allocation5 + $0x3e4] sm:$0xf]
    %v12055 = vld [vmem:[#allocation5 + $0x3e8] sm:$0xf]
    %v12056 = vld [vmem:[#allocation5 + $0x3ec] sm:$0xf]
    %v12057 = vld [vmem:[#allocation5 + $0x3f0] sm:$0xf]
    %v12058 = vld [vmem:[#allocation5 + $0x3f4] sm:$0xf]
    %v12059 = vld [vmem:[#allocation5 + $0x3f8] sm:$0xf]
    %v12060 = vld [vmem:[#allocation5 + $0x3fc] sm:$0xf]
    %v12061 = vld [vmem:[#allocation5 + $0x400] sm:$0xf]
    %v12062 = vld [vmem:[#allocation5 + $0x404] sm:$0xf]
    %v12063 = vld [vmem:[#allocation5 + $0x408] sm:$0xf]
    %v12064 = vld [vmem:[#allocation5 + $0x40c] sm:$0xf]
    %v12065 = vld [vmem:[#allocation5 + $0x410] sm:$0xf]
    %v12066 = vld [vmem:[#allocation5 + $0x414] sm:$0xf]
    %v12067 = vld [vmem:[#allocation5 + $0x418] sm:$0xf]
    %v12068 = vld [vmem:[#allocation5 + $0x41c] sm:$0xf]
    %v12069 = vld [vmem:[#allocation5 + $0x420] sm:$0xf]
    %v12070 = vld [vmem:[#allocation5 + $0x424] sm:$0xf]
    %v12071 = vld [vmem:[#allocation5 + $0x428] sm:$0xf]
    %v12072 = vld [vmem:[#allocation5 + $0x42c] sm:$0xf]
    %v12073 = vld [vmem:[#allocation5 + $0x430] sm:$0xf]
    %v12074 = vld [vmem:[#allocation5 + $0x434] sm:$0xf]
    %v12075 = vld [vmem:[#allocation5 + $0x438] sm:$0xf]
    %v12076 = vld [vmem:[#allocation5 + $0x43c] sm:$0xf]
    %v12077 = vld [vmem:[#allocation5 + $0x440] sm:$0xf]
    %v12078 = vld [vmem:[#allocation5 + $0x444] sm:$0xf]
    %v12079 = vld [vmem:[#allocation5 + $0x448] sm:$0xf]
    %v12080 = vld [vmem:[#allocation5 + $0x44c] sm:$0xf]
    %v12081 = vld [vmem:[#allocation5 + $0x450] sm:$0xf]
    %v12082 = vld [vmem:[#allocation5 + $0x454] sm:$0xf]
    %v12083 = vld [vmem:[#allocation5 + $0x458] sm:$0xf]
    %v12084 = vld [vmem:[#allocation5 + $0x45c] sm:$0xf]
    %v12085 = vld [vmem:[#allocation5 + $0x460] sm:$0xf]
    %v12086 = vld [vmem:[#allocation5 + $0x464] sm:$0xf]
    %v12087 = vld [vmem:[#allocation5 + $0x468] sm:$0xf]
    %v12088 = vld [vmem:[#allocation5 + $0x46c] sm:$0xf]
    %v12089 = vld [vmem:[#allocation5 + $0x470] sm:$0xf]
    %v12090 = vld [vmem:[#allocation5 + $0x474] sm:$0xf]
    %v12091 = vld [vmem:[#allocation5 + $0x478] sm:$0xf]
    %v12092 = vld [vmem:[#allocation5 + $0x47c] sm:$0xf]
    %v12094 = vshrl.u32 %v11852, 16
    %v12096 = vrot.slane %v12094, 2
    %v12098 = vshrl.u32 %v11853, 16
    %v12100 = vrot.slane %v12098, 2
    %v12102 = vshrl.u32 %v11854, 16
    %v12104 = vrot.slane %v12102, 2
    %v12156 = vunpack.c.l.b16 %v12045
    %v12157 = vunpack.c.l.b16 %v12046
    %v12158 = vunpack.c.l.b16 %v12047
    %v12159 = vunpack.c.l.b16 %v12048
    %v12160 = vunpack.c.l.b16 %v12049
    %v12161 = vunpack.c.l.b16 %v12050
    %v12162 = vunpack.c.l.b16 %v12051
    %v12163 = vunpack.c.l.b16 %v12052
    %v12164 = vunpack.c.l.b16 %v12053
    %v12165 = vunpack.c.l.b16 %v12054
    %v12166 = vunpack.c.l.b16 %v12055
    %v12167 = vunpack.c.l.b16 %v12056
    %v12168 = vunpack.c.l.b16 %v12057
    %v12169 = vunpack.c.l.b16 %v12058
    %v12170 = vunpack.c.l.b16 %v12059
    %v12171 = vunpack.c.l.b16 %v12060
    %v12172 = vunpack.c.l.b16 %v12061
    %v12173 = vunpack.c.l.b16 %v12062
    %v12174 = vunpack.c.l.b16 %v12063
    %v12175 = vunpack.c.l.b16 %v12064
    %v12176 = vunpack.c.l.b16 %v12065
    %v12177 = vunpack.c.l.b16 %v12066
    %v12178 = vunpack.c.l.b16 %v12067
    %v12179 = vunpack.c.l.b16 %v12068
    %v12180 = vunpack.c.l.b16 %v12069
    %v12181 = vunpack.c.l.b16 %v12070
    %v12182 = vunpack.c.l.b16 %v12071
    %v12183 = vunpack.c.l.b16 %v12072
    %v12184 = vunpack.c.l.b16 %v12073
    %v12185 = vunpack.c.l.b16 %v12074
    %v12186 = vunpack.c.l.b16 %v12075
    %v12187 = vunpack.c.l.b16 %v12076
    %v12188 = vunpack.c.l.b16 %v12077
    %v12189 = vunpack.c.l.b16 %v12078
    %v12190 = vunpack.c.l.b16 %v12079
    %v12191 = vunpack.c.l.b16 %v12080
    %v12192 = vunpack.c.l.b16 %v12081
    %v12193 = vunpack.c.l.b16 %v12082
    %v12194 = vunpack.c.l.b16 %v12083
    %v12195 = vunpack.c.l.b16 %v12084
    %v12196 = vunpack.c.l.b16 %v12085
    %v12197 = vunpack.c.l.b16 %v12086
    %v12198 = vunpack.c.l.b16 %v12087
    %v12199 = vunpack.c.l.b16 %v12088
    %v12200 = vunpack.c.l.b16 %v12089
    %v12201 = vunpack.c.l.b16 %v12090
    %v12202 = vunpack.c.l.b16 %v12091
    %v12203 = vunpack.c.l.b16 %v12092
    %v12204 = vpack.c.b16 %v12157, %v12156
    %v12205 = vpack.c.b16 %v12159, %v12158
    %v12206 = vpack.c.b16 %v12161, %v12160
    %v12207 = vpack.c.b16 %v12163, %v12162
    %v12208 = vpack.c.b16 %v12165, %v12164
    %v12209 = vpack.c.b16 %v12167, %v12166
    %v12210 = vpack.c.b16 %v12169, %v12168
    %v12211 = vpack.c.b16 %v12171, %v12170
    %v12212 = vpack.c.b16 %v12173, %v12172
    %v12213 = vpack.c.b16 %v12175, %v12174
    %v12214 = vpack.c.b16 %v12177, %v12176
    %v12215 = vpack.c.b16 %v12179, %v12178
    %v12216 = vpack.c.b16 %v12181, %v12180
    %v12217 = vpack.c.b16 %v12183, %v12182
    %v12218 = vpack.c.b16 %v12185, %v12184
    %v12219 = vpack.c.b16 %v12187, %v12186
    %v12220 = vpack.c.b16 %v12189, %v12188
    %v12221 = vpack.c.b16 %v12191, %v12190
    %v12222 = vpack.c.b16 %v12193, %v12192
    %v12223 = vpack.c.b16 %v12195, %v12194
    %v12224 = vpack.c.b16 %v12197, %v12196
    %v12225 = vpack.c.b16 %v12199, %v12198
    %v12226 = vpack.c.b16 %v12201, %v12200
    %v12227 = vpack.c.b16 %v12203, %v12202
    %12252 = vmatpush.bf16.msra.mxu0 %v12211
    %12253 = vmatpush.bf16.msra.mxu0 %v12210
    %12254 = vmatpush.bf16.msra.mxu0 %v12209
    %12255 = vmatpush.bf16.msra.mxu0 %v12208
    %12256 = vmatpush.bf16.msra.mxu0 %v12207
    %12257 = vmatpush.bf16.msra.mxu0 %v12206
    %12258 = vmatpush.bf16.msra.mxu0 %v12205
    %12259 = vmatpush.bf16.msra.mxu0 %v12204
    %12260 = vmatmul.bf16.gmra.mxu0 %v12096
    %v12261 = vpop.f32.mrf.mxu0
    %v12262 = vadd.f32 0.0, %v12261
    %v12263 = vpop.f32.mrf.mxu0
    %12264 = vdwg.mxu0
    %12265 = vmatpush.bf16.msra.mxu0 %v12219
    %12266 = vmatpush.bf16.msra.mxu0 %v12218
    %12267 = vmatpush.bf16.msra.mxu0 %v12217
    %12268 = vmatpush.bf16.msra.mxu0 %v12216
    %12269 = vmatpush.bf16.msra.mxu0 %v12215
    %12270 = vmatpush.bf16.msra.mxu0 %v12214
    %12271 = vmatpush.bf16.msra.mxu0 %v12213
    %12272 = vmatpush.bf16.msra.mxu0 %v12212
    %12273 = vmatmul.bf16.gmra.mxu0 %v12100
    %v12274 = vpop.f32.mrf.mxu0
    %v12275 = vadd.f32 %v12262, %v12274
    %v12276 = vpop.f32.mrf.mxu0
    %12277 = vdwg.mxu0
    %12278 = vmatpush.bf16.msra.mxu0 %v12227
    %12279 = vmatpush.bf16.msra.mxu0 %v12226
    %12280 = vmatpush.bf16.msra.mxu0 %v12225
    %12281 = vmatpush.bf16.msra.mxu0 %v12224
    %12282 = vmatpush.bf16.msra.mxu0 %v12223
    %12283 = vmatpush.bf16.msra.mxu0 %v12222
    %12284 = vmatpush.bf16.msra.mxu0 %v12221
    %12285 = vmatpush.bf16.msra.mxu0 %v12220
    %12286 = vmatmul.bf16.gmra.mxu0 %v12104
    %v12287 = vpop.f32.mrf.mxu0
    %v12288 = vadd.f32 %v12275, %v12287
    %v12289 = vpop.f32.mrf.mxu0
    %12290 = vdwg.mxu0
    %v12291 = vadd.f32 %v12044, %v12288
    %v12292 = vmax.f32 %v12291, 0.0
    %v12293 = vpack.c.bf16 %v12292, %v12292
    %v12294 = vld [vmem:[%s7] sm:$0xf]
    %v12295 = vld [vmem:[%s7 + $0x4] sm:$0xf]
    %v12296 = vld [vmem:[%s7 + $0x8] sm:$0xf]
    %v12297 = vld [vmem:[%s7 + $0xc] sm:$0xf]
    %v12298 = vld [vmem:[%s7 + $0x10] sm:$0xf]
    %v12299 = vld [vmem:[%s7 + $0x14] sm:$0xf]
    %v12300 = vld [vmem:[%s7 + $0x18] sm:$0xf]
    %v12301 = vld [vmem:[%s7 + $0x1c] sm:$0xf]
    %v12302 = vld [vmem:[%s7 + $0x20] sm:$0xf]
    %v12303 = vld [vmem:[%s7 + $0x24] sm:$0xf]
    %v12304 = vld [vmem:[%s7 + $0x28] sm:$0xf]
    %v12305 = vld [vmem:[%s7 + $0x2c] sm:$0xf]
    %v12306 = vld [vmem:[%s7 + $0x30] sm:$0xf]
    %v12307 = vld [vmem:[%s7 + $0x34] sm:$0xf]
    %v12308 = vld [vmem:[%s7 + $0x38] sm:$0xf]
    %v12309 = vld [vmem:[%s7 + $0x3c] sm:$0xf]
    %v12310 = vld [vmem:[%s8] sm:$0x1]
    %v12327 = vunpack.c.l.b16 %v12294
    %v12328 = vunpack.c.l.b16 %v12295
    %v12329 = vunpack.c.l.b16 %v12296
    %v12330 = vunpack.c.l.b16 %v12297
    %v12331 = vunpack.c.l.b16 %v12298
    %v12332 = vunpack.c.l.b16 %v12299
    %v12333 = vunpack.c.l.b16 %v12300
    %v12334 = vunpack.c.l.b16 %v12301
    %v12335 = vunpack.c.l.b16 %v12302
    %v12336 = vunpack.c.l.b16 %v12303
    %v12337 = vunpack.c.l.b16 %v12304
    %v12338 = vunpack.c.l.b16 %v12305
    %v12339 = vunpack.c.l.b16 %v12306
    %v12340 = vunpack.c.l.b16 %v12307
    %v12341 = vunpack.c.l.b16 %v12308
    %v12342 = vunpack.c.l.b16 %v12309
    %v12343 = vpack.c.b16 %v12328, %v12327
    %v12344 = vpack.c.b16 %v12330, %v12329
    %v12345 = vpack.c.b16 %v12332, %v12331
    %v12346 = vpack.c.b16 %v12334, %v12333
    %v12347 = vpack.c.b16 %v12336, %v12335
    %v12348 = vpack.c.b16 %v12338, %v12337
    %v12349 = vpack.c.b16 %v12340, %v12339
    %v12350 = vpack.c.b16 %v12342, %v12341
    %12359 = vmatpush.bf16.msra.mxu0 %v12350
    %12360 = vmatpush.bf16.msra.mxu0 %v12349
    %12361 = vmatpush.bf16.msra.mxu0 %v12348
    %12362 = vmatpush.bf16.msra.mxu0 %v12347
    %12363 = vmatpush.bf16.msra.mxu0 %v12346
    %12364 = vmatpush.bf16.msra.mxu0 %v12345
    %12365 = vmatpush.bf16.msra.mxu0 %v12344
    %12366 = vmatpush.bf16.msra.mxu0 %v12343
    %12367 = vmatmul.bf16.gmra.mxu0 %v12293
    %v12368 = vpop.f32.mrf.mxu0
    %v12369 = vadd.f32 %v12310, %v12368
    %v12370 = vpop.f32.mrf.mxu0
    %12371 = vdwg.mxu0
    %vm12372 = vcmask 73728
    %12373 = vst.msk [vmem:[#allocation7] sm:$0x1] %vm12372, %v12369
    // Predicated region
    $region38: #{net_forward.1} parent=1 // pred_check
      _
    $region39: #{net_forward.1} parent=1 // pred_check_branch
      %12375 = sbr.rel (0) target = $region41
    $region40: #{net_forward.1} parent=1 // pred_region
      %12377 = vsyncadd [#allocation8], 0
      %s12379 = sshll.u32 [#allocation7], 4
      %s12380 = int_to_ptr.vmem [resolvable:$true] %s12379
      %s12381 = sshll.u32 %s9, 4
      %s12382 = int_to_ptr.hbm [resolvable:$true] %s12381
      %12384 = dma.vmem_to_hbm [thread:$0]  %s12380, 16, %s12382, [#allocation8]
    $region41: #{net_forward.1} parent=1 // pred_fallthru
      _
    // Predicated region
    $region42: #{net_forward.1} parent=1 // pred_check
      _
    $region43: #{net_forward.1} parent=1 // pred_check_branch
      %12386 = sbr.rel (0) target = $region45
    $region44: #{net_forward.1} parent=1 // pred_region
      %12388 = dma.done [#allocation8], 16
    $region45: #{net_forward.1} parent=1 // pred_fallthru
      _
    %12389 = vsyncpa [#allocation8], 1
  %12390 = vsyncmov [#allocation6]
  %s12391 = vpop.sfrf %12390
  %p12392 = scmp.eq.s32.totalorder %s12391, 0
  %p12393 = pneg %p12392
  %12395 = shalt.err (%p12393)

</llo_original>
